<compile_context>
chip_gen: v7x
topology: tpu7x:2x2x1
jax: 0.10.0
libtpu: 0.0.40
codegen_flags: <defaults>
</compile_context>

<pallas_src>
import jax
import jax.numpy as jnp
from jax import lax
from jax.experimental import pallas as pl
from jax.experimental.pallas import tpu as pltpu


# ---------------------------------------------------------------------------
# Pallas kernels
# ---------------------------------------------------------------------------

def _conv_matmul_kernel(p_ref, w_ref, b_ref, o_ref):
    """conv-as-matmul on one row tile: o = p @ w + b (bf16 in, f32 acc, bf16 out)."""
    acc = jnp.dot(p_ref[...], w_ref[...], preferred_element_type=jnp.float32)
    o_ref[...] = (acc + b_ref[...]).astype(o_ref.dtype)


def _conv_stats_kernel(p_ref, w_ref, b_ref, y_ref, sum_ref, sq_ref):
    """conv-as-matmul + per-tile BatchNorm partial stats (sum, sum of squares).

    Per-tile stats keep the kernel correct under M-tiling; the global batch
    mean/var are derived outside from the tiny (num_tiles, 1, C) outputs.
    """
    y = jnp.dot(p_ref[...], w_ref[...], preferred_element_type=jnp.float32)
    y = y + b_ref[...]
    y_ref[...] = y.astype(y_ref.dtype)
    s = jnp.sum(y, axis=0, keepdims=True)          # (1, C)
    sq = jnp.sum(y * y, axis=0, keepdims=True)     # (1, C)
    sum_ref[...] = s.reshape(1, 1, -1)
    sq_ref[...] = sq.reshape(1, 1, -1)


def _bn_relu_linear_kernel(x_ref, scale_ref, shift_ref, w_ref, b_ref, o_ref):
    """Fused BN-apply + ReLU + K-tiled linear, accumulating directly into o_ref."""
    k = pl.program_id(0)

    @pl.when(k == 0)
    def _():
        o_ref[...] = jnp.zeros_like(o_ref) + b_ref[...]

    z = jnp.maximum(
        x_ref[...].astype(jnp.float32) * scale_ref[...] + shift_ref[...], 0.0
    )
    o_ref[...] += jnp.dot(
        z.astype(jnp.bfloat16), w_ref[...], preferred_element_type=jnp.float32
    )


# ---------------------------------------------------------------------------
# Pallas wrappers
# ---------------------------------------------------------------------------

def _pick_row_tile(m, candidates=(1024, 512, 256, 128, 64, 32, 16, 8)):
    for t in candidates:
        if t <= m and m % t == 0:
            return t
    return m


def pallas_conv(p, w, b):
    """p: (M, K) bf16, w: (K, C) bf16, b: (1, C) f32 -> (M, C) bf16."""
    M, K = p.shape
    _, C = w.shape
    tm = _pick_row_tile(M)
    return pl.pallas_call(
        _conv_matmul_kernel,
        out_shape=jax.ShapeDtypeStruct((M, C), jnp.bfloat16),
        grid_spec=pltpu.PrefetchScalarGridSpec(
            num_scalar_prefetch=0,
            grid=(M // tm,),
            in_specs=[
                pl.BlockSpec((tm, K), lambda i: (i, 0)),
                pl.BlockSpec((K, C), lambda i: (0, 0)),
                pl.BlockSpec((1, C), lambda i: (0, 0)),
            ],
            out_specs=pl.BlockSpec((tm, C), lambda i: (i, 0)),
        ),
        compiler_params=pltpu.CompilerParams(
            dimension_semantics=("parallel",)
        ),
    )(p, w, b)


def pallas_conv_stats(p, w, b):
    """Conv matmul + per-tile BN partial statistics (sum / sum-of-squares)."""
    M, K = p.shape
    _, C = w.shape
    tm = _pick_row_tile(M)
    nt = M // tm
    out_shapes = (
        jax.ShapeDtypeStruct((M, C), jnp.bfloat16),
        jax.ShapeDtypeStruct((nt, 1, C), jnp.float32),
        jax.ShapeDtypeStruct((nt, 1, C), jnp.float32),
    )
    return pl.pallas_call(
        _conv_stats_kernel,
        out_shape=out_shapes,
        grid_spec=pltpu.PrefetchScalarGridSpec(
            num_scalar_prefetch=0,
            grid=(nt,),
            in_specs=[
                pl.BlockSpec((tm, K), lambda i: (i, 0)),
                pl.BlockSpec((K, C), lambda i: (0, 0)),
                pl.BlockSpec((1, C), lambda i: (0, 0)),
            ],
            out_specs=[
                pl.BlockSpec((tm, C), lambda i: (i, 0)),
                pl.BlockSpec((1, 1, C), lambda i: (i, 0, 0)),
                pl.BlockSpec((1, 1, C), lambda i: (i, 0, 0)),
            ],
        ),
        compiler_params=pltpu.CompilerParams(
            dimension_semantics=("parallel",)
        ),
    )(p, w, b)


def pallas_bn_relu_linear(x, scale_flat, shift_flat, w, b, *, tk=8192):
    """x: (N, K) bf16 pre-BN activations (h,w,c flattened); w: (K, C) bf16."""
    N, K = x.shape
    _, C = w.shape
    if K % tk != 0:
        tk = K
    nk = K // tk
    return pl.pallas_call(
        _bn_relu_linear_kernel,
        out_shape=jax.ShapeDtypeStruct((N, C), jnp.float32),
        grid_spec=pltpu.PrefetchScalarGridSpec(
            num_scalar_prefetch=0,
            grid=(nk,),
            in_specs=[
                pl.BlockSpec((N, tk), lambda k: (0, k)),
                pl.BlockSpec((1, tk), lambda k: (0, k)),
                pl.BlockSpec((1, tk), lambda k: (0, k)),
                pl.BlockSpec((tk, C), lambda k: (k, 0)),
                pl.BlockSpec((1, C), lambda k: (0, 0)),
            ],
            out_specs=pl.BlockSpec((N, C), lambda k: (0, 0)),
        ),
        compiler_params=pltpu.CompilerParams(
            dimension_semantics=("arbitrary",)
        ),
    )(x, scale_flat, shift_flat, w, b)


# ---------------------------------------------------------------------------
# JAX glue: weight prep (one-time), im2col, forward pass
# ---------------------------------------------------------------------------

def prepare_params(params):
    """One-time layout plumbing: transpose/reshape/cast weights OUTSIDE the
    jitted forward so it does not run on every call."""
    (w1, b1, w2, b2, gamma, beta, wl, bl) = params
    c1 = w1.shape[0]
    c2 = w2.shape[0]
    w1m = jnp.transpose(w1, (2, 3, 1, 0)).reshape(9 * w1.shape[1], c1)
    w2m = jnp.transpose(w2, (2, 3, 1, 0)).reshape(9 * w2.shape[1], c2)
    # PyTorch flattens NCHW as (c, h, w); our activation rows flatten as
    # (h, w, c). Reorder the linear weight once so no activation transpose
    # is needed at runtime.
    classes, k_in = wl.shape
    hw = k_in // c2
    side = int(round(hw ** 0.5))
    wl_hwc = (
        wl.reshape(classes, c2, side, side)
        .transpose(2, 3, 1, 0)
        .reshape(k_in, classes)
    )
    return dict(
        w1m=w1m.astype(jnp.bfloat16),
        b1=b1.reshape(1, -1).astype(jnp.float32),
        w2m=w2m.astype(jnp.bfloat16),
        b2=b2.reshape(1, -1).astype(jnp.float32),
        gamma=gamma.astype(jnp.float32),
        beta=beta.astype(jnp.float32),
        wl_hwc=wl_hwc.astype(jnp.bfloat16),
        bl=bl.reshape(1, -1).astype(jnp.float32),
    )


def im2col_3x3_pad1(x_nhwc, stride):
    """Returns patches of shape (N*Ho*Wo, 9*C), ordered (kh, kw, cin)."""
    # TODO(synk): move this patch build (and ideally a conv1->conv2 fusion)
    # inside the Pallas kernels with halo'd row blocks so the 9x-expanded
    # patch matrix never round-trips HBM.
    N, H, W, C = x_nhwc.shape
    xp = jnp.pad(x_nhwc, ((0, 0), (1, 1), (1, 1), (0, 0)))
    Ho = (H + 2 - 3) // stride + 1
    Wo = (W + 2 - 3) // stride + 1
    cols = []
    for dy in range(3):
        for dx in range(3):
            sl = xp[
                :,
                dy : dy + stride * (Ho - 1) + 1 : stride,
                dx : dx + stride * (Wo - 1) + 1 : stride,
                :,
            ]
            cols.append(sl)
    patches = jnp.stack(cols, axis=3)            # (N, Ho, Wo, 9, C)
    return patches.reshape(N * Ho * Wo, 9 * C), Ho, Wo


@jax.jit
def dgr_cnn_forward(x_nchw, prepped):
    """Pallas implementation of DGR_CNN.forward (pre-prepared weights)."""
    w1m, b1 = prepped["w1m"], prepped["b1"]
    w2m, b2 = prepped["w2m"], prepped["b2"]
    gamma, beta = prepped["gamma"], prepped["beta"]
    wl_hwc, bl = prepped["wl_hwc"], prepped["bl"]

    N = x_nchw.shape[0]
    c1 = w1m.shape[1]
    c2 = w2m.shape[1]

    x = jnp.transpose(x_nchw, (0, 2, 3, 1)).astype(jnp.bfloat16)     # NHWC bf16

    # --- Conv2d(3, 32, k=3, s=1, p=1) -------------------------------------
    p1, ho1, wo1 = im2col_3x3_pad1(x, stride=1)                      # (N*1024, 27)
    h1 = pallas_conv(p1, w1m, b1)                                    # (N*1024, 32) bf16
    h1 = h1.reshape(N, ho1, wo1, c1)

    # --- Conv2d(32, 64, k=3, s=2, p=1) + fused BN statistics ---------------
    p2, ho2, wo2 = im2col_3x3_pad1(h1, stride=2)                     # (N*256, 288)
    y, sums, sqs = pallas_conv_stats(p2, w2m, b2)                    # (N*256, 64) bf16

    # --- BatchNorm2d (training mode, biased variance) -> per-channel affine
    m2 = jnp.float32(N * ho2 * wo2)
    mean = sums.sum(axis=(0, 1)) / m2
    var = jnp.maximum(sqs.sum(axis=(0, 1)) / m2 - mean * mean, 0.0)
    scale = gamma * lax.rsqrt(var + 1e-5)
    shift = beta - mean * scale

    # --- Fused BN-apply + ReLU + Linear(16384, classes) ---------------------
    # y rows are (n, h, w) x channels c; the contiguous reshape below gives the
    # (h, w, c)-ordered flatten that wl_hwc was pre-reordered for.
    x_flat = y.reshape(N, ho2 * wo2 * c2)                            # (N, 16384) bf16
    scale_flat = jnp.tile(scale, ho2 * wo2).reshape(1, -1)
    shift_flat = jnp.tile(shift, ho2 * wo2).reshape(1, -1)
    logits = pallas_bn_relu_linear(x_flat, scale_flat, shift_flat, wl_hwc, bl)
    return logits


# ---------------------------------------------------------------------------
# Pure-JAX reference (f32, NCHW, mirrors the PyTorch module exactly)
# ---------------------------------------------------------------------------

def reference_forward(x_nchw, params):
    (w1, b1, w2, b2, gamma, beta, wl, bl) = params
    dn = ("NCHW", "OIHW", "NCHW")
    h = lax.conv_general_dilated(
        x_nchw, w1, (1, 1), ((1, 1), (1, 1)), dimension_numbers=dn
    ) + b1[None, :, None, None]
    h = lax.conv_general_dilated(
        h, w2, (2, 2), ((1, 1), (1, 1)), dimension_numbers=dn
    ) + b2[None, :, None, None]
    mean = h.mean(axis=(0, 2, 3), keepdims=True)
    var = ((h - mean) ** 2).mean(axis=(0, 2, 3), keepdims=True)
    h = (h - mean) / jnp.sqrt(var + 1e-5)
    h = h * gamma[None, :, None, None] + beta[None, :, None, None]
    h = jnp.maximum(h, 0.0)
    h = h.reshape(h.shape[0], -1)
    return h @ wl.T + bl


# ---------------------------------------------------------------------------
# Main
# ---------------------------------------------------------------------------

if __name__ == "__main__":
    # Module config: image_size=32, image_channel_size=3, classes=10,
    #                depth=3, channel_size=64, reducing_layers=3
    N, CIN, HW = 2, 3, 32
    C1, C2, CLASSES = 32, 64, 10

    key = jax.random.PRNGKey(0)
    ks = jax.random.split(key, 9)

    # Deterministic synthetic parameters in PyTorch layouts.
    w1 = 0.10 * jax.random.normal(ks[0], (C1, CIN, 3, 3), jnp.float32)
    b1 = 0.05 * jax.random.normal(ks[1], (C1,), jnp.float32)
    w2 = 0.05 * jax.random.normal(ks[2], (C2, C1, 3, 3), jnp.float32)
    b2 = 0.05 * jax.random.normal(ks[3], (C2,), jnp.float32)
    gamma = 1.0 + 0.1 * jax.random.normal(ks[4], (C2,), jnp.float32)
    beta = 0.1 * jax.random.normal(ks[5], (C2,), jnp.float32)
    wl = 0.01 * jax.random.normal(ks[6], (CLASSES, C2 * 16 * 16), jnp.float32)
    bl = 0.01 * jax.random.normal(ks[7], (CLASSES,), jnp.float32)
    params = (w1, b1, w2, b2, gamma, beta, wl, bl)
    prepped = prepare_params(params)          # one-time layout + bf16 cast

    x = jax.random.normal(ks[8], (N, CIN, HW, HW), jnp.float32)

    out = dgr_cnn_forward(x, prepped)
    out = jax.block_until_ready(out)
    assert out.shape == (N, CLASSES), out.shape

    ref = jax.block_until_ready(reference_forward(x, params))
    # Tolerance accounts for bf16 MXU operands (f32 reference).
    max_diff = float(jnp.max(jnp.abs(out - ref)))
    assert bool(jnp.allclose(out, ref, rtol=1e-1, atol=1e-1)), (
        "mismatch vs reference: max |diff| = %f" % max_diff
    )

    print("KERNEL_OK")
</pallas_src>

<mosaic_0001>
module attributes {stable_mosaic.version = 11 : i64} {
  func.func @_conv_matmul_kernel(%arg0: i32, %arg1: memref<1024x27xbf16, #tpu.memory_space<vmem>>, %arg2: memref<27x32xbf16, #tpu.memory_space<vmem>>, %arg3: memref<1x32xf32, #tpu.memory_space<vmem>>, %arg4: memref<1024x32xbf16, #tpu.memory_space<vmem>>) attributes {dimension_semantics = [#tpu.dimension_semantics<parallel>], iteration_bounds = array<i64: 2>, scalar_prefetch = 0 : i64, scratch_operands = 0 : i64, tpu.core_type = #tpu.core_type<tc>, window_params = [{transform_indices = @transform_0, window_bounds = array<i64: 1024, 27>}, {pipeline_mode = #tpu.pipeline_mode<synchronous>, transform_indices = @transform_1, window_bounds = array<i64: 27, 32>}, {pipeline_mode = #tpu.pipeline_mode<synchronous>, transform_indices = @transform_2, window_bounds = array<i64: 1, 32>}, {transform_indices = @transform_3, window_bounds = array<i64: 1024, 32>}]} {
    %c0 = arith.constant 0 : index
    %c0_0 = arith.constant 0 : index
    %0 = vector.load %arg1[%c0, %c0_0] : memref<1024x27xbf16, #tpu.memory_space<vmem>>, vector<1024x27xbf16>
    %c0_1 = arith.constant 0 : index
    %c0_2 = arith.constant 0 : index
    %1 = vector.load %arg2[%c0_1, %c0_2] : memref<27x32xbf16, #tpu.memory_space<vmem>>, vector<27x32xbf16>
    %cst = arith.constant dense<0.000000e+00> : vector<1024x32xf32>
    %2 = tpu.matmul %0, %1, %cst {dimension_numbers = #tpu.dot_dimension_numbers<[1], [0], [0], [1], [0, 0, 1, 1], [], []>} : vector<1024x27xbf16>, vector<27x32xbf16>, vector<1024x32xf32> -> vector<1024x32xf32>
    %c0_3 = arith.constant 0 : index
    %c0_4 = arith.constant 0 : index
    %3 = vector.load %arg3[%c0_3, %c0_4] : memref<1x32xf32, #tpu.memory_space<vmem>>, vector<1x32xf32>
    %4 = vector.broadcast %3 : vector<1x32xf32> to vector<1024x32xf32>
    %5 = arith.addf %2, %4 : vector<1024x32xf32>
    %6 = arith.truncf %5 : vector<1024x32xf32> to vector<1024x32xbf16>
    %c0_5 = arith.constant 0 : index
    %c0_6 = arith.constant 0 : index
    %7 = vector.load %arg4[%c0_5, %c0_6] : memref<1024x32xbf16, #tpu.memory_space<vmem>>, vector<1024x32xbf16>
    tpu.vector_store %arg4[%c0_5, %c0_6], %6 {strides = array<i32>} : memref<1024x32xbf16, #tpu.memory_space<vmem>>, vector<1024x32xbf16>,
    return
  }
  func.func @transform_0(%arg0: i32) -> (i32, i32) {
    %c0_i32 = arith.constant 0 : i32
    %c0_i32_0 = arith.constant 0 : i32
    return %arg0, %c0_i32 : i32, i32
  }
  func.func @transform_1(%arg0: i32) -> (i32, i32) {
    %c0_i32 = arith.constant 0 : i32
    %c0_i32_0 = arith.constant 0 : i32
    %c0_i32_1 = arith.constant 0 : i32
    return %c0_i32, %c0_i32_0 : i32, i32
  }
  func.func @transform_2(%arg0: i32) -> (i32, i32) {
    %c0_i32 = arith.constant 0 : i32
    %c0_i32_0 = arith.constant 0 : i32
    %c0_i32_1 = arith.constant 0 : i32
    return %c0_i32, %c0_i32_0 : i32, i32
  }
  func.func @transform_3(%arg0: i32) -> (i32, i32) {
    %c0_i32 = arith.constant 0 : i32
    %c0_i32_0 = arith.constant 0 : i32
    return %arg0, %c0_i32 : i32, i32
  }
}

module attributes {stable_mosaic.version = 11 : i64} {
  func.func @_conv_stats_kernel(%arg0: i32, %arg1: memref<512x288xbf16, #tpu.memory_space<vmem>>, %arg2: memref<288x64xbf16, #tpu.memory_space<vmem>>, %arg3: memref<1x64xf32, #tpu.memory_space<vmem>>, %arg4: memref<512x64xbf16, #tpu.memory_space<vmem>>, %arg5: memref<1x1x64xf32, #tpu.memory_space<vmem>>, %arg6: memref<1x1x64xf32, #tpu.memory_space<vmem>>) attributes {dimension_semantics = [#tpu.dimension_semantics<parallel>], iteration_bounds = array<i64: 1>, scalar_prefetch = 0 : i64, scratch_operands = 0 : i64, tpu.core_type = #tpu.core_type<tc>, window_params = [{transform_indices = @transform_0, window_bounds = array<i64: 512, 288>}, {pipeline_mode = #tpu.pipeline_mode<synchronous>, transform_indices = @transform_1, window_bounds = array<i64: 288, 64>}, {pipeline_mode = #tpu.pipeline_mode<synchronous>, transform_indices = @transform_2, window_bounds = array<i64: 1, 64>}, {transform_indices = @transform_3, window_bounds = array<i64: 512, 64>}, {transform_indices = @transform_4, window_bounds = array<i64: 1, 1, 64>}, {transform_indices = @transform_5, window_bounds = array<i64: 1, 1, 64>}]} {
    %c0 = arith.constant 0 : index
    %c0_0 = arith.constant 0 : index
    %0 = vector.load %arg1[%c0, %c0_0] : memref<512x288xbf16, #tpu.memory_space<vmem>>, vector<512x288xbf16>
    %c0_1 = arith.constant 0 : index
    %c0_2 = arith.constant 0 : index
    %1 = vector.load %arg2[%c0_1, %c0_2] : memref<288x64xbf16, #tpu.memory_space<vmem>>, vector<288x64xbf16>
    %cst = arith.constant dense<0.000000e+00> : vector<512x64xf32>
    %2 = tpu.matmul %0, %1, %cst {dimension_numbers = #tpu.dot_dimension_numbers<[1], [0], [0], [1], [0, 0, 1, 1], [], []>} : vector<512x288xbf16>, vector<288x64xbf16>, vector<512x64xf32> -> vector<512x64xf32>
    %c0_3 = arith.constant 0 : index
    %c0_4 = arith.constant 0 : index
    %3 = vector.load %arg3[%c0_3, %c0_4] : memref<1x64xf32, #tpu.memory_space<vmem>>, vector<1x64xf32>
    %4 = vector.broadcast %3 : vector<1x64xf32> to vector<512x64xf32>
    %5 = arith.addf %2, %4 : vector<512x64xf32>
    %6 = arith.truncf %5 : vector<512x64xf32> to vector<512x64xbf16>
    %c0_5 = arith.constant 0 : index
    %c0_6 = arith.constant 0 : index
    %7 = vector.load %arg4[%c0_5, %c0_6] : memref<512x64xbf16, #tpu.memory_space<vmem>>, vector<512x64xbf16>
    tpu.vector_store %arg4[%c0_5, %c0_6], %6 {strides = array<i32>} : memref<512x64xbf16, #tpu.memory_space<vmem>>, vector<512x64xbf16>,
    %cst_7 = arith.constant dense<0.000000e+00> : vector<64xf32>
    %8 = vector.multi_reduction <add>, %5, %cst_7 [0] : vector<512x64xf32> to vector<64xf32>
    %9 = vector.shape_cast %8 : vector<64xf32> to vector<1x64xf32>
    %10 = arith.mulf %5, %5 : vector<512x64xf32>
    %cst_8 = arith.constant dense<0.000000e+00> : vector<64xf32>
    %11 = vector.multi_reduction <add>, %10, %cst_8 [0] : vector<512x64xf32> to vector<64xf32>
    %12 = vector.shape_cast %11 : vector<64xf32> to vector<1x64xf32>
    %13 = vector.shape_cast %9 : vector<1x64xf32> to vector<1x1x64xf32>
    %c0_9 = arith.constant 0 : index
    %c0_10 = arith.constant 0 : index
    %c0_11 = arith.constant 0 : index
    %14 = vector.load %arg5[%c0_9, %c0_10, %c0_11] : memref<1x1x64xf32, #tpu.memory_space<vmem>>, vector<1x1x64xf32>
    tpu.vector_store %arg5[%c0_9, %c0_10, %c0_11], %13 {strides = array<i32>} : memref<1x1x64xf32, #tpu.memory_space<vmem>>, vector<1x1x64xf32>,
    %15 = vector.shape_cast %12 : vector<1x64xf32> to vector<1x1x64xf32>
    %c0_12 = arith.constant 0 : index
    %c0_13 = arith.constant 0 : index
    %c0_14 = arith.constant 0 : index
    %16 = vector.load %arg6[%c0_12, %c0_13, %c0_14] : memref<1x1x64xf32, #tpu.memory_space<vmem>>, vector<1x1x64xf32>
    tpu.vector_store %arg6[%c0_12, %c0_13, %c0_14], %15 {strides = array<i32>} : memref<1x1x64xf32, #tpu.memory_space<vmem>>, vector<1x1x64xf32>,
    return
  }
  func.func @transform_0(%arg0: i32) -> (i32, i32) {
    %c0_i32 = arith.constant 0 : i32
    %c0_i32_0 = arith.constant 0 : i32
    return %arg0, %c0_i32 : i32, i32
  }
  func.func @transform_1(%arg0: i32) -> (i32, i32) {
    %c0_i32 = arith.constant 0 : i32
    %c0_i32_0 = arith.constant 0 : i32
    %c0_i32_1 = arith.constant 0 : i32
    return %c0_i32, %c0_i32_0 : i32, i32
  }
  func.func @transform_2(%arg0: i32) -> (i32, i32) {
    %c0_i32 = arith.constant 0 : i32
    %c0_i32_0 = arith.constant 0 : i32
    %c0_i32_1 = arith.constant 0 : i32
    return %c0_i32, %c0_i32_0 : i32, i32
  }
  func.func @transform_3(%arg0: i32) -> (i32, i32) {
    %c0_i32 = arith.constant 0 : i32
    %c0_i32_0 = arith.constant 0 : i32
    return %arg0, %c0_i32 : i32, i32
  }
  func.func @transform_4(%arg0: i32) -> (i32, i32, i32) {
    %c0_i32 = arith.constant 0 : i32
    %c0_i32_0 = arith.constant 0 : i32
    %c0_i32_1 = arith.constant 0 : i32
    return %arg0, %c0_i32, %c0_i32_0 : i32, i32, i32
  }
  func.func @transform_5(%arg0: i32) -> (i32, i32, i32) {
    %c0_i32 = arith.constant 0 : i32
    %c0_i32_0 = arith.constant 0 : i32
    %c0_i32_1 = arith.constant 0 : i32
    return %arg0, %c0_i32, %c0_i32_0 : i32, i32, i32
  }
}

module attributes {stable_mosaic.version = 11 : i64} {
  func.func @_bn_relu_linear_kernel(%arg0: i32, %arg1: memref<2x8192xbf16, #tpu.memory_space<vmem>>, %arg2: memref<1x8192xf32, #tpu.memory_space<vmem>>, %arg3: memref<1x8192xf32, #tpu.memory_space<vmem>>, %arg4: memref<8192x10xbf16, #tpu.memory_space<vmem>>, %arg5: memref<1x10xf32, #tpu.memory_space<vmem>>, %arg6: memref<2x10xf32, #tpu.memory_space<vmem>>) attributes {dimension_semantics = [#tpu.dimension_semantics<arbitrary>], iteration_bounds = array<i64: 2>, scalar_prefetch = 0 : i64, scratch_operands = 0 : i64, tpu.core_type = #tpu.core_type<tc>, window_params = [{transform_indices = @transform_0, window_bounds = array<i64: 2, 8192>}, {transform_indices = @transform_1, window_bounds = array<i64: 1, 8192>}, {transform_indices = @transform_2, window_bounds = array<i64: 1, 8192>}, {transform_indices = @transform_3, window_bounds = array<i64: 8192, 10>}, {pipeline_mode = #tpu.pipeline_mode<synchronous>, transform_indices = @transform_4, window_bounds = array<i64: 1, 10>}, {pipeline_mode = #tpu.pipeline_mode<synchronous>, transform_indices = @transform_5, window_bounds = array<i64: 2, 10>}]} {
    %c0_i32 = arith.constant 0 : i32
    %0 = arith.cmpi eq, %arg0, %c0_i32 : i32
    %1 = arith.extui %0 : i1 to i32
    %c0_i32_0 = arith.constant 0 : i32
    %2 = arith.cmpi ne, %1, %c0_i32_0 : i32
    scf.if %2 {
      %cst_13 = arith.constant 0.000000e+00 : f32
      %19 = vector.broadcast %cst_13 : f32 to vector<2x10xf32>
      %c0_14 = arith.constant 0 : index
      %c0_15 = arith.constant 0 : index
      %20 = vector.load %arg5[%c0_14, %c0_15] : memref<1x10xf32, #tpu.memory_space<vmem>>, vector<1x10xf32>
      %21 = vector.broadcast %20 : vector<1x10xf32> to vector<2x10xf32>
      %22 = arith.addf %19, %21 : vector<2x10xf32>
      %c0_16 = arith.constant 0 : index
      %c0_17 = arith.constant 0 : index
      %23 = vector.load %arg6[%c0_16, %c0_17] : memref<2x10xf32, #tpu.memory_space<vmem>>, vector<2x10xf32>
      tpu.vector_store %arg6[%c0_16, %c0_17], %22 {strides = array<i32>} : memref<2x10xf32, #tpu.memory_space<vmem>>, vector<2x10xf32>,
    } else {
    }
    %c0 = arith.constant 0 : index
    %c0_1 = arith.constant 0 : index
    %3 = vector.load %arg1[%c0, %c0_1] : memref<2x8192xbf16, #tpu.memory_space<vmem>>, vector<2x8192xbf16>
    %4 = arith.extf %3 : vector<2x8192xbf16> to vector<2x8192xf32>
    %c0_2 = arith.constant 0 : index
    %c0_3 = arith.constant 0 : index
    %5 = vector.load %arg2[%c0_2, %c0_3] : memref<1x8192xf32, #tpu.memory_space<vmem>>, vector<1x8192xf32>
    %6 = vector.broadcast %5 : vector<1x8192xf32> to vector<2x8192xf32>
    %7 = arith.mulf %4, %6 : vector<2x8192xf32>
    %c0_4 = arith.constant 0 : index
    %c0_5 = arith.constant 0 : index
    %8 = vector.load %arg3[%c0_4, %c0_5] : memref<1x8192xf32, #tpu.memory_space<vmem>>, vector<1x8192xf32>
    %9 = vector.broadcast %8 : vector<1x8192xf32> to vector<2x8192xf32>
    %10 = arith.addf %7, %9 : vector<2x8192xf32>
    %cst = arith.constant 0.000000e+00 : f32
    %11 = vector.broadcast %cst : f32 to vector<2x8192xf32>
    %12 = arith.maximumf %10, %11 : vector<2x8192xf32>
    %c0_6 = arith.constant 0 : index
    %c0_7 = arith.constant 0 : index
    %13 = vector.load %arg6[%c0_6, %c0_7] : memref<2x10xf32, #tpu.memory_space<vmem>>, vector<2x10xf32>
    %14 = arith.truncf %12 : vector<2x8192xf32> to vector<2x8192xbf16>
    %c0_8 = arith.constant 0 : index
    %c0_9 = arith.constant 0 : index
    %15 = vector.load %arg4[%c0_8, %c0_9] : memref<8192x10xbf16, #tpu.memory_space<vmem>>, vector<8192x10xbf16>
    %cst_10 = arith.constant dense<0.000000e+00> : vector<2x10xf32>
    %16 = tpu.matmul %14, %15, %cst_10 {dimension_numbers = #tpu.dot_dimension_numbers<[1], [0], [0], [1], [0, 0, 1, 1], [], []>} : vector<2x8192xbf16>, vector<8192x10xbf16>, vector<2x10xf32> -> vector<2x10xf32>
    %17 = arith.addf %13, %16 : vector<2x10xf32>
    %c0_11 = arith.constant 0 : index
    %c0_12 = arith.constant 0 : index
    %18 = vector.load %arg6[%c0_11, %c0_12] : memref<2x10xf32, #tpu.memory_space<vmem>>, vector<2x10xf32>
    tpu.vector_store %arg6[%c0_11, %c0_12], %17 {strides = array<i32>} : memref<2x10xf32, #tpu.memory_space<vmem>>, vector<2x10xf32>,
    return
  }
  func.func @transform_0(%arg0: i32) -> (i32, i32) {
    %c0_i32 = arith.constant 0 : i32
    %c0_i32_0 = arith.constant 0 : i32
    return %c0_i32, %arg0 : i32, i32
  }
  func.func @transform_1(%arg0: i32) -> (i32, i32) {
    %c0_i32 = arith.constant 0 : i32
    %c0_i32_0 = arith.constant 0 : i32
    return %c0_i32, %arg0 : i32, i32
  }
  func.func @transform_2(%arg0: i32) -> (i32, i32) {
    %c0_i32 = arith.constant 0 : i32
    %c0_i32_0 = arith.constant 0 : i32
    return %c0_i32, %arg0 : i32, i32
  }
  func.func @transform_3(%arg0: i32) -> (i32, i32) {
    %c0_i32 = arith.constant 0 : i32
    %c0_i32_0 = arith.constant 0 : i32
    return %arg0, %c0_i32 : i32, i32
  }
  func.func @transform_4(%arg0: i32) -> (i32, i32) {
    %c0_i32 = arith.constant 0 : i32
    %c0_i32_0 = arith.constant 0 : i32
    %c0_i32_1 = arith.constant 0 : i32
    return %c0_i32, %c0_i32_0 : i32, i32
  }
  func.func @transform_5(%arg0: i32) -> (i32, i32) {
    %c0_i32 = arith.constant 0 : i32
    %c0_i32_0 = arith.constant 0 : i32
    %c0_i32_1 = arith.constant 0 : i32
    return %c0_i32, %c0_i32_0 : i32, i32
  }
}

</mosaic_0001>

<llo_original>
// kernel: dgr_cnn_forward.3
$region0: #{dgr_cnn_forward.3}
  #allocation0 [shape = 'u32[]', space=smem, size = 0x4, offset = 0x4, fixed_abs, tag = 'smem constant byte address 0x4 - core index']
  #allocation1 [shape = 'u32[144,128]{1,0:T(1,128)}', space=vmem, size = 0x12000, scoped, tag = 'internal scratch']
  %s0 = inlined_call_operand.vmem [shape: bf16[2048,27], index: 0, kind: input, shape index: {}]
  %s1 = inlined_call_operand.vmem [shape: bf16[27,32], index: 1, kind: input, shape index: {}]
  %s2 = inlined_call_operand.vmem [shape: f32[1,32], index: 2, kind: input, shape index: {}]
  %s3 = inlined_call_operand.vmem [shape: bf16[2048,32], index: 3, kind: output, shape index: {}]
  %s4 = sld [smem:[#allocation0]]
  $region45: #{dgr_cnn_forward.3} parent=0
    _
  %s6 = ssub.s32 1, %s4
  %s7 = scalar_select 0, %s6, %s4
  loop: start=0, step=1, limit=4
  $region2: #{dgr_cnn_forward.3} parent=0 // loop_pre_header
    _
  $region3: #{dgr_cnn_forward.3} parent=0 // loop_header
    %s9 = sphi 0, %s13
    %p10 = scmp.ge.s32.totalorder %s9, 4
    %s19 = sphi 0, %s21
    %s22 = sphi 0, %s19
    %s23 = sphi 0, %s22
    %s39 = sphi 0, %s23
    %s43 = sphi 0, %s43
    %s45 = sphi 0, %s43
    %s46 = sphi 0, %s45
    %s60 = sphi 0, %s46
    %s64 = sphi 0, %s64
    %s66 = sphi 0, %s64
    %s67 = sphi 0, %s66
    %s81 = sphi 0, %s67
    %s87 = sphi 0, %s89
    %s90 = sphi 0, %s87
    %s91 = sphi 0, %s90
    %s107 = sphi 0, %s91
  $region4: #{dgr_cnn_forward.3} parent=0 // loop_header_branch
    %12 = sbr.rel (%p10) target = $region8
  $region5: #{dgr_cnn_forward.3} parent=0 // loop_body
    %s14 = ssub.s32 %s9, 1
    %s15 = ssub.s32 %s9, 2
    %s16 = sadd.s32 %s9, 1
    %s17 = ssub.s32 %s9, %s16
    %p18 = scmp.eq.s32.totalorder %s17, 0
    %s20 = sadd.s32 %s19, 1
    %s21 = scalar_select %p18, %s19, %s20
    %p24 = pneg %p18
    %p25 = scmp.eq.s32.totalorder %s9, 1
    %p26 = por %p24, %p25
    %p27 = scmp.ne.s32.totalorder %s19, %s22
    %p28 = scmp.eq.s32.totalorder %s9, 0
    %p29 = por %p27, %p28
    %p30 = scmp.ne.s32.totalorder %s19, %s22
    %p31 = scmp.eq.s32.totalorder %s14, 1
    %p32 = por %p30, %p31
    %p33 = scmp.ne.s32.totalorder %s22, %s23
    %p34 = scmp.eq.s32.totalorder %s14, 0
    %p35 = por %p33, %p34
    %p36 = scmp.ne.s32.totalorder %s22, %s23
    %p37 = scmp.eq.s32.totalorder %s15, 1
    %p38 = por %p36, %p37
    %p40 = scmp.ne.s32.totalorder %s23, %s39
    %p41 = scmp.eq.s32.totalorder %s15, 0
    %p42 = por %p40, %p41
    %s44 = sadd.s32 %s43, 1
    %p47 = scmp.eq.s32.totalorder %s9, 1
    %p48 = scmp.ne.s32.totalorder %s43, %s45
    %p49 = scmp.eq.s32.totalorder %s9, 0
    %p50 = por %p48, %p49
    %p51 = scmp.ne.s32.totalorder %s43, %s45
    %p52 = scmp.eq.s32.totalorder %s14, 1
    %p53 = por %p51, %p52
    %p54 = scmp.ne.s32.totalorder %s45, %s46
    %p55 = scmp.eq.s32.totalorder %s14, 0
    %p56 = por %p54, %p55
    %p57 = scmp.ne.s32.totalorder %s45, %s46
    %p58 = scmp.eq.s32.totalorder %s15, 1
    %p59 = por %p57, %p58
    %p61 = scmp.ne.s32.totalorder %s46, %s60
    %p62 = scmp.eq.s32.totalorder %s15, 0
    %p63 = por %p61, %p62
    %s65 = sadd.s32 %s64, 1
    %p68 = scmp.eq.s32.totalorder %s9, 1
    %p69 = scmp.ne.s32.totalorder %s64, %s66
    %p70 = scmp.eq.s32.totalorder %s9, 0
    %p71 = por %p69, %p70
    %p72 = scmp.ne.s32.totalorder %s64, %s66
    %p73 = scmp.eq.s32.totalorder %s14, 1
    %p74 = por %p72, %p73
    %p75 = scmp.ne.s32.totalorder %s66, %s67
    %p76 = scmp.eq.s32.totalorder %s14, 0
    %p77 = por %p75, %p76
    %p78 = scmp.ne.s32.totalorder %s66, %s67
    %p79 = scmp.eq.s32.totalorder %s15, 1
    %p80 = por %p78, %p79
    %p82 = scmp.ne.s32.totalorder %s67, %s81
    %p83 = scmp.eq.s32.totalorder %s15, 0
    %p84 = por %p82, %p83
    %s85 = ssub.s32 %s9, %s16
    %p86 = scmp.eq.s32.totalorder %s85, 0
    %s88 = sadd.s32 %s87, 1
    %s89 = scalar_select %p86, %s87, %s88
    %p92 = pneg %p86
    %p93 = scmp.eq.s32.totalorder %s9, 1
    %p94 = por %p92, %p93
    %p95 = scmp.ne.s32.totalorder %s87, %s90
    %p96 = scmp.eq.s32.totalorder %s9, 0
    %p97 = por %p95, %p96
    %p98 = scmp.ne.s32.totalorder %s87, %s90
    %p99 = scmp.eq.s32.totalorder %s14, 1
    %p100 = por %p98, %p99
    %p101 = scmp.ne.s32.totalorder %s90, %s91
    %p102 = scmp.eq.s32.totalorder %s14, 0
    %p103 = por %p101, %p102
    %p104 = scmp.ne.s32.totalorder %s90, %s91
    %p105 = scmp.eq.s32.totalorder %s15, 1
    %p106 = por %p104, %p105
    %p108 = scmp.ne.s32.totalorder %s91, %s107
    %p109 = scmp.eq.s32.totalorder %s15, 0
    %p110 = por %p108, %p109
    %p111 = scmp.le.s32.totalorder 1, %s9
    %p112 = scmp.lt.s32.totalorder %s9, 3
    %p113 = pnand %p111, %p112
    %p114 = pneg %p113
    // Predicated region
    $region9: #{dgr_cnn_forward.3} parent=5 // pred_check
      _
    $region10: #{dgr_cnn_forward.3} parent=5 // pred_check_branch
      %116 = sbr.rel (%p113) target = $region12
    $region11: #{dgr_cnn_forward.3} parent=5 // pred_region
      %s117 = ssub.s32 %s9, 1
      // Predicated region
      $region13: #{dgr_cnn_forward.3} parent=11 // pred_check
        %p118 = pneg %p56
      $region14: #{dgr_cnn_forward.3} parent=11 // pred_check_branch
        %120 = sbr.rel (%p118) target = $region16
      $region15: #{dgr_cnn_forward.3} parent=11 // pred_region
        _
      $region16: #{dgr_cnn_forward.3} parent=11 // pred_fallthru
        _
      // Predicated region
      $region17: #{dgr_cnn_forward.3} parent=11 // pred_check
        %p121 = pneg %p77
      $region18: #{dgr_cnn_forward.3} parent=11 // pred_check_branch
        %123 = sbr.rel (%p121) target = $region20
      $region19: #{dgr_cnn_forward.3} parent=11 // pred_region
        _
      $region20: #{dgr_cnn_forward.3} parent=11 // pred_fallthru
        _
    $region12: #{dgr_cnn_forward.3} parent=5 // pred_fallthru
      _
    %p124 = scmp.lt.s32.totalorder %s9, 2
    // Predicated region
    $region21: #{dgr_cnn_forward.3} parent=5 // pred_check
      %p125 = pneg %p124
    $region22: #{dgr_cnn_forward.3} parent=5 // pred_check_branch
      %127 = sbr.rel (%p125) target = $region24
    $region23: #{dgr_cnn_forward.3} parent=5 // pred_region
      // Predicated region
      $region25: #{dgr_cnn_forward.3} parent=23 // pred_check
        %p128 = pneg %p29
      $region26: #{dgr_cnn_forward.3} parent=23 // pred_check_branch
        %130 = sbr.rel (%p128) target = $region28
      $region27: #{dgr_cnn_forward.3} parent=23 // pred_region
        %s131 = smul.u32 128, %s9
        %p132 = scmp.lt.s32.totalorder %s131, 255
        %s133 = scalar_select %p132, %s131, 255
        %s134 = smul.addr %s133, 4
        %s135 = scalar_lea.vmem %s0, %s134
        %s136 = smul.u32 128, %s9
      $region28: #{dgr_cnn_forward.3} parent=23 // pred_fallthru
        _
    $region24: #{dgr_cnn_forward.3} parent=5 // pred_fallthru
      _
    %p137 = scmp.le.s32.totalorder 1, %s9
    %p138 = scmp.lt.s32.totalorder %s9, 3
    %p139 = pnand %p137, %p138
    %p140 = pneg %p139
    // Predicated region
    $region29: #{dgr_cnn_forward.3} parent=5 // pred_check
      _
    $region30: #{dgr_cnn_forward.3} parent=5 // pred_check_branch
      %142 = sbr.rel (%p139) target = $region32
    $region31: #{dgr_cnn_forward.3} parent=5 // pred_region
      %s143 = ssub.s32 %s9, 1
      %s144 = smul.u32 128, %s14
      %p145 = scmp.lt.s32.totalorder %s144, 255
      %s146 = scalar_select %p145, %s144, 255
      %s147 = smul.addr %s146, 4
      %s148 = scalar_lea.vmem %s0, %s147
      %p149 = pneg %p35
      %p150 = pneg %p32
      %p151 = pneg %p56
      %p152 = pneg %p53
      %p153 = pneg %p77
      %p154 = pneg %p74
      %p155 = pneg %p103
      %p156 = pneg %p100
      %s157 = smul.u32 128, %s14
      %p158 = scmp.lt.s32.totalorder %s157, 255
      %s159 = scalar_select %p158, %s157, 255
      %s160 = smul.addr %s159, 4
      %s161 = scalar_lea.vmem %s3, %s160
      %s162 = smul.u32 128, %s14
      %p163 = scmp.lt.s32.totalorder %s162, 255
      %s164 = scalar_select %p163, %s162, 255
      %s165 = smul.addr %s164, 4
      %s166 = scalar_lea.vmem %s0, %s165
      %s167 = smul.u32 128, %s14
      %s168 = smul.u32 128, %s14
      %p169 = scmp.lt.s32.totalorder %s168, 255
      %s170 = scalar_select %p169, %s168, 255
      %s171 = smul.addr %s170, 4
      %s172 = scalar_lea.vmem %s3, %s171
      %s173 = smul.u32 128, %s14
      %v175 = vld [vmem:[%s166] sm:$0xf]
      %v176 = vld [vmem:[%s166 + $0x4] sm:$0xf]
      %v177 = vld [vmem:[%s166 + $0x8] sm:$0xf]
      %v178 = vld [vmem:[%s166 + $0xc] sm:$0xf]
      %v179 = vld [vmem:[%s166 + $0x10] sm:$0xf]
      %v180 = vld [vmem:[%s166 + $0x14] sm:$0xf]
      %v181 = vld [vmem:[%s166 + $0x18] sm:$0xf]
      %v182 = vld [vmem:[%s166 + $0x1c] sm:$0xf]
      %v183 = vld [vmem:[%s166 + $0x20] sm:$0xf]
      %v184 = vld [vmem:[%s166 + $0x24] sm:$0xf]
      %v185 = vld [vmem:[%s166 + $0x28] sm:$0xf]
      %v186 = vld [vmem:[%s166 + $0x2c] sm:$0xf]
      %v187 = vld [vmem:[%s166 + $0x30] sm:$0xf]
      %v188 = vld [vmem:[%s166 + $0x34] sm:$0xf]
      %v189 = vld [vmem:[%s166 + $0x38] sm:$0xf]
      %v190 = vld [vmem:[%s166 + $0x3c] sm:$0xf]
      %v191 = vld [vmem:[%s166 + $0x40] sm:$0xf]
      %v192 = vld [vmem:[%s166 + $0x44] sm:$0xf]
      %v193 = vld [vmem:[%s166 + $0x48] sm:$0xf]
      %v194 = vld [vmem:[%s166 + $0x4c] sm:$0xf]
      %v195 = vld [vmem:[%s166 + $0x50] sm:$0xf]
      %v196 = vld [vmem:[%s166 + $0x54] sm:$0xf]
      %v197 = vld [vmem:[%s166 + $0x58] sm:$0xf]
      %v198 = vld [vmem:[%s166 + $0x5c] sm:$0xf]
      %v199 = vld [vmem:[%s166 + $0x60] sm:$0xf]
      %v200 = vld [vmem:[%s166 + $0x64] sm:$0xf]
      %v201 = vld [vmem:[%s166 + $0x68] sm:$0xf]
      %v202 = vld [vmem:[%s166 + $0x6c] sm:$0xf]
      %v203 = vld [vmem:[%s166 + $0x70] sm:$0xf]
      %v204 = vld [vmem:[%s166 + $0x74] sm:$0xf]
      %v205 = vld [vmem:[%s166 + $0x78] sm:$0xf]
      %v206 = vld [vmem:[%s166 + $0x7c] sm:$0xf]
      %v207 = vld [vmem:[%s166 + $0x80] sm:$0xf]
      %v208 = vld [vmem:[%s166 + $0x84] sm:$0xf]
      %v209 = vld [vmem:[%s166 + $0x88] sm:$0xf]
      %v210 = vld [vmem:[%s166 + $0x8c] sm:$0xf]
      %v211 = vld [vmem:[%s166 + $0x90] sm:$0xf]
      %v212 = vld [vmem:[%s166 + $0x94] sm:$0xf]
      %v213 = vld [vmem:[%s166 + $0x98] sm:$0xf]
      %v214 = vld [vmem:[%s166 + $0x9c] sm:$0xf]
      %v215 = vld [vmem:[%s166 + $0xa0] sm:$0xf]
      %v216 = vld [vmem:[%s166 + $0xa4] sm:$0xf]
      %v217 = vld [vmem:[%s166 + $0xa8] sm:$0xf]
      %v218 = vld [vmem:[%s166 + $0xac] sm:$0xf]
      %v219 = vld [vmem:[%s166 + $0xb0] sm:$0xf]
      %v220 = vld [vmem:[%s166 + $0xb4] sm:$0xf]
      %v221 = vld [vmem:[%s166 + $0xb8] sm:$0xf]
      %v222 = vld [vmem:[%s166 + $0xbc] sm:$0xf]
      %v223 = vld [vmem:[%s166 + $0xc0] sm:$0xf]
      %v224 = vld [vmem:[%s166 + $0xc4] sm:$0xf]
      %v225 = vld [vmem:[%s166 + $0xc8] sm:$0xf]
      %v226 = vld [vmem:[%s166 + $0xcc] sm:$0xf]
      %v227 = vld [vmem:[%s166 + $0xd0] sm:$0xf]
      %v228 = vld [vmem:[%s166 + $0xd4] sm:$0xf]
      %v229 = vld [vmem:[%s166 + $0xd8] sm:$0xf]
      %v230 = vld [vmem:[%s166 + $0xdc] sm:$0xf]
      %v231 = vld [vmem:[%s166 + $0xe0] sm:$0xf]
      %v232 = vld [vmem:[%s166 + $0xe4] sm:$0xf]
      %v233 = vld [vmem:[%s166 + $0xe8] sm:$0xf]
      %v234 = vld [vmem:[%s166 + $0xec] sm:$0xf]
      %v235 = vld [vmem:[%s166 + $0xf0] sm:$0xf]
      %v236 = vld [vmem:[%s166 + $0xf4] sm:$0xf]
      %v237 = vld [vmem:[%s166 + $0xf8] sm:$0xf]
      %v238 = vld [vmem:[%s166 + $0xfc] sm:$0xf]
      %v239 = vld [vmem:[%s166 + $0x100] sm:$0xf]
      %v240 = vld [vmem:[%s166 + $0x104] sm:$0xf]
      %v241 = vld [vmem:[%s166 + $0x108] sm:$0xf]
      %v242 = vld [vmem:[%s166 + $0x10c] sm:$0xf]
      %v243 = vld [vmem:[%s166 + $0x110] sm:$0xf]
      %v244 = vld [vmem:[%s166 + $0x114] sm:$0xf]
      %v245 = vld [vmem:[%s166 + $0x118] sm:$0xf]
      %v246 = vld [vmem:[%s166 + $0x11c] sm:$0xf]
      %v247 = vld [vmem:[%s166 + $0x120] sm:$0xf]
      %v248 = vld [vmem:[%s166 + $0x124] sm:$0xf]
      %v249 = vld [vmem:[%s166 + $0x128] sm:$0xf]
      %v250 = vld [vmem:[%s166 + $0x12c] sm:$0xf]
      %v251 = vld [vmem:[%s166 + $0x130] sm:$0xf]
      %v252 = vld [vmem:[%s166 + $0x134] sm:$0xf]
      %v253 = vld [vmem:[%s166 + $0x138] sm:$0xf]
      %v254 = vld [vmem:[%s166 + $0x13c] sm:$0xf]
      %v255 = vld [vmem:[%s166 + $0x140] sm:$0xf]
      %v256 = vld [vmem:[%s166 + $0x144] sm:$0xf]
      %v257 = vld [vmem:[%s166 + $0x148] sm:$0xf]
      %v258 = vld [vmem:[%s166 + $0x14c] sm:$0xf]
      %v259 = vld [vmem:[%s166 + $0x150] sm:$0xf]
      %v260 = vld [vmem:[%s166 + $0x154] sm:$0xf]
      %v261 = vld [vmem:[%s166 + $0x158] sm:$0xf]
      %v262 = vld [vmem:[%s166 + $0x15c] sm:$0xf]
      %v263 = vld [vmem:[%s166 + $0x160] sm:$0xf]
      %v264 = vld [vmem:[%s166 + $0x164] sm:$0xf]
      %v265 = vld [vmem:[%s166 + $0x168] sm:$0xf]
      %v266 = vld [vmem:[%s166 + $0x16c] sm:$0xf]
      %v267 = vld [vmem:[%s166 + $0x170] sm:$0xf]
      %v268 = vld [vmem:[%s166 + $0x174] sm:$0xf]
      %v269 = vld [vmem:[%s166 + $0x178] sm:$0xf]
      %v270 = vld [vmem:[%s166 + $0x17c] sm:$0xf]
      %v271 = vld [vmem:[%s166 + $0x180] sm:$0xf]
      %v272 = vld [vmem:[%s166 + $0x184] sm:$0xf]
      %v273 = vld [vmem:[%s166 + $0x188] sm:$0xf]
      %v274 = vld [vmem:[%s166 + $0x18c] sm:$0xf]
      %v275 = vld [vmem:[%s166 + $0x190] sm:$0xf]
      %v276 = vld [vmem:[%s166 + $0x194] sm:$0xf]
      %v277 = vld [vmem:[%s166 + $0x198] sm:$0xf]
      %v278 = vld [vmem:[%s166 + $0x19c] sm:$0xf]
      %v279 = vld [vmem:[%s166 + $0x1a0] sm:$0xf]
      %v280 = vld [vmem:[%s166 + $0x1a4] sm:$0xf]
      %v281 = vld [vmem:[%s166 + $0x1a8] sm:$0xf]
      %v282 = vld [vmem:[%s166 + $0x1ac] sm:$0xf]
      %v283 = vld [vmem:[%s166 + $0x1b0] sm:$0xf]
      %v284 = vld [vmem:[%s166 + $0x1b4] sm:$0xf]
      %v285 = vld [vmem:[%s166 + $0x1b8] sm:$0xf]
      %v286 = vld [vmem:[%s166 + $0x1bc] sm:$0xf]
      %v287 = vld [vmem:[%s166 + $0x1c0] sm:$0xf]
      %v288 = vld [vmem:[%s166 + $0x1c4] sm:$0xf]
      %v289 = vld [vmem:[%s166 + $0x1c8] sm:$0xf]
      %v290 = vld [vmem:[%s166 + $0x1cc] sm:$0xf]
      %v291 = vld [vmem:[%s166 + $0x1d0] sm:$0xf]
      %v292 = vld [vmem:[%s166 + $0x1d4] sm:$0xf]
      %v293 = vld [vmem:[%s166 + $0x1d8] sm:$0xf]
      %v294 = vld [vmem:[%s166 + $0x1dc] sm:$0xf]
      %v295 = vld [vmem:[%s166 + $0x1e0] sm:$0xf]
      %v296 = vld [vmem:[%s166 + $0x1e4] sm:$0xf]
      %v297 = vld [vmem:[%s166 + $0x1e8] sm:$0xf]
      %v298 = vld [vmem:[%s166 + $0x1ec] sm:$0xf]
      %v299 = vld [vmem:[%s166 + $0x1f0] sm:$0xf]
      %v300 = vld [vmem:[%s166 + $0x1f4] sm:$0xf]
      %v301 = vld [vmem:[%s166 + $0x1f8] sm:$0xf]
      %v302 = vld [vmem:[%s166 + $0x1fc] sm:$0xf]
      %v303 = vld [vmem:[%s1] sm:$0xf]
      %v304 = vld [vmem:[%s1 + $0x4] sm:$0xf]
      %v305 = vld [vmem:[%s1 + $0x8] sm:$0xf]
      %v306 = vld [vmem:[%s1 + $0xc] sm:$0x3]
      %v307 = vld [vmem:[%s2] sm:$0x1]
      %v309 = vlaneseq
      %v310 = vshrl.u32 %v309, 7
      %v311 = vsub.s32 0, %v310
      %v312 = vrot.slane %v307, %v311
      %v442 = vunpack.c.l.b16 %v175
      %v443 = vunpack.c.l.b16 %v176
      %v444 = vunpack.c.l.b16 %v177
      %v445 = vunpack.c.l.b16 %v178
      %v446 = vunpack.c.l.b16 %v179
      %v447 = vunpack.c.l.b16 %v180
      %v448 = vunpack.c.l.b16 %v181
      %v449 = vunpack.c.l.b16 %v182
      %v450 = vunpack.c.l.b16 %v183
      %v451 = vunpack.c.l.b16 %v184
      %v452 = vunpack.c.l.b16 %v185
      %v453 = vunpack.c.l.b16 %v186
      %v454 = vunpack.c.l.b16 %v187
      %v455 = vunpack.c.l.b16 %v188
      %v456 = vunpack.c.l.b16 %v189
      %v457 = vunpack.c.l.b16 %v190
      %v458 = vunpack.c.l.b16 %v191
      %v459 = vunpack.c.l.b16 %v192
      %v460 = vunpack.c.l.b16 %v193
      %v461 = vunpack.c.l.b16 %v194
      %v462 = vunpack.c.l.b16 %v195
      %v463 = vunpack.c.l.b16 %v196
      %v464 = vunpack.c.l.b16 %v197
      %v465 = vunpack.c.l.b16 %v198
      %v466 = vunpack.c.l.b16 %v199
      %v467 = vunpack.c.l.b16 %v200
      %v468 = vunpack.c.l.b16 %v201
      %v469 = vunpack.c.l.b16 %v202
      %v470 = vunpack.c.l.b16 %v203
      %v471 = vunpack.c.l.b16 %v204
      %v472 = vunpack.c.l.b16 %v205
      %v473 = vunpack.c.l.b16 %v206
      %v474 = vunpack.c.l.b16 %v207
      %v475 = vunpack.c.l.b16 %v208
      %v476 = vunpack.c.l.b16 %v209
      %v477 = vunpack.c.l.b16 %v210
      %v478 = vunpack.c.l.b16 %v211
      %v479 = vunpack.c.l.b16 %v212
      %v480 = vunpack.c.l.b16 %v213
      %v481 = vunpack.c.l.b16 %v214
      %v482 = vunpack.c.l.b16 %v215
      %v483 = vunpack.c.l.b16 %v216
      %v484 = vunpack.c.l.b16 %v217
      %v485 = vunpack.c.l.b16 %v218
      %v486 = vunpack.c.l.b16 %v219
      %v487 = vunpack.c.l.b16 %v220
      %v488 = vunpack.c.l.b16 %v221
      %v489 = vunpack.c.l.b16 %v222
      %v490 = vunpack.c.l.b16 %v223
      %v491 = vunpack.c.l.b16 %v224
      %v492 = vunpack.c.l.b16 %v225
      %v493 = vunpack.c.l.b16 %v226
      %v494 = vunpack.c.l.b16 %v227
      %v495 = vunpack.c.l.b16 %v228
      %v496 = vunpack.c.l.b16 %v229
      %v497 = vunpack.c.l.b16 %v230
      %v498 = vunpack.c.l.b16 %v231
      %v499 = vunpack.c.l.b16 %v232
      %v500 = vunpack.c.l.b16 %v233
      %v501 = vunpack.c.l.b16 %v234
      %v502 = vunpack.c.l.b16 %v235
      %v503 = vunpack.c.l.b16 %v236
      %v504 = vunpack.c.l.b16 %v237
      %v505 = vunpack.c.l.b16 %v238
      %v506 = vunpack.c.l.b16 %v239
      %v507 = vunpack.c.l.b16 %v240
      %v508 = vunpack.c.l.b16 %v241
      %v509 = vunpack.c.l.b16 %v242
      %v510 = vunpack.c.l.b16 %v243
      %v511 = vunpack.c.l.b16 %v244
      %v512 = vunpack.c.l.b16 %v245
      %v513 = vunpack.c.l.b16 %v246
      %v514 = vunpack.c.l.b16 %v247
      %v515 = vunpack.c.l.b16 %v248
      %v516 = vunpack.c.l.b16 %v249
      %v517 = vunpack.c.l.b16 %v250
      %v518 = vunpack.c.l.b16 %v251
      %v519 = vunpack.c.l.b16 %v252
      %v520 = vunpack.c.l.b16 %v253
      %v521 = vunpack.c.l.b16 %v254
      %v522 = vunpack.c.l.b16 %v255
      %v523 = vunpack.c.l.b16 %v256
      %v524 = vunpack.c.l.b16 %v257
      %v525 = vunpack.c.l.b16 %v258
      %v526 = vunpack.c.l.b16 %v259
      %v527 = vunpack.c.l.b16 %v260
      %v528 = vunpack.c.l.b16 %v261
      %v529 = vunpack.c.l.b16 %v262
      %v530 = vunpack.c.l.b16 %v263
      %v531 = vunpack.c.l.b16 %v264
      %v532 = vunpack.c.l.b16 %v265
      %v533 = vunpack.c.l.b16 %v266
      %v534 = vunpack.c.l.b16 %v267
      %v535 = vunpack.c.l.b16 %v268
      %v536 = vunpack.c.l.b16 %v269
      %v537 = vunpack.c.l.b16 %v270
      %v538 = vunpack.c.l.b16 %v271
      %v539 = vunpack.c.l.b16 %v272
      %v540 = vunpack.c.l.b16 %v273
      %v541 = vunpack.c.l.b16 %v274
      %v542 = vunpack.c.l.b16 %v275
      %v543 = vunpack.c.l.b16 %v276
      %v544 = vunpack.c.l.b16 %v277
      %v545 = vunpack.c.l.b16 %v278
      %v546 = vunpack.c.l.b16 %v279
      %v547 = vunpack.c.l.b16 %v280
      %v548 = vunpack.c.l.b16 %v281
      %v549 = vunpack.c.l.b16 %v282
      %v550 = vunpack.c.l.b16 %v283
      %v551 = vunpack.c.l.b16 %v284
      %v552 = vunpack.c.l.b16 %v285
      %v553 = vunpack.c.l.b16 %v286
      %v554 = vunpack.c.l.b16 %v287
      %v555 = vunpack.c.l.b16 %v288
      %v556 = vunpack.c.l.b16 %v289
      %v557 = vunpack.c.l.b16 %v290
      %v558 = vunpack.c.l.b16 %v291
      %v559 = vunpack.c.l.b16 %v292
      %v560 = vunpack.c.l.b16 %v293
      %v561 = vunpack.c.l.b16 %v294
      %v562 = vunpack.c.l.b16 %v295
      %v563 = vunpack.c.l.b16 %v296
      %v564 = vunpack.c.l.b16 %v297
      %v565 = vunpack.c.l.b16 %v298
      %v566 = vunpack.c.l.b16 %v299
      %v567 = vunpack.c.l.b16 %v300
      %v568 = vunpack.c.l.b16 %v301
      %v569 = vunpack.c.l.b16 %v302
      %v570 = vpack.c.b16 %v443, %v442
      %v571 = vpack.c.b16 %v445, %v444
      %v572 = vpack.c.b16 %v447, %v446
      %v573 = vpack.c.b16 %v449, %v448
      %v574 = vpack.c.b16 %v451, %v450
      %v575 = vpack.c.b16 %v453, %v452
      %v576 = vpack.c.b16 %v455, %v454
      %v577 = vpack.c.b16 %v457, %v456
      %v578 = vpack.c.b16 %v459, %v458
      %v579 = vpack.c.b16 %v461, %v460
      %v580 = vpack.c.b16 %v463, %v462
      %v581 = vpack.c.b16 %v465, %v464
      %v582 = vpack.c.b16 %v467, %v466
      %v583 = vpack.c.b16 %v469, %v468
      %v584 = vpack.c.b16 %v471, %v470
      %v585 = vpack.c.b16 %v473, %v472
      %v586 = vpack.c.b16 %v475, %v474
      %v587 = vpack.c.b16 %v477, %v476
      %v588 = vpack.c.b16 %v479, %v478
      %v589 = vpack.c.b16 %v481, %v480
      %v590 = vpack.c.b16 %v483, %v482
      %v591 = vpack.c.b16 %v485, %v484
      %v592 = vpack.c.b16 %v487, %v486
      %v593 = vpack.c.b16 %v489, %v488
      %v594 = vpack.c.b16 %v491, %v490
      %v595 = vpack.c.b16 %v493, %v492
      %v596 = vpack.c.b16 %v495, %v494
      %v597 = vpack.c.b16 %v497, %v496
      %v598 = vpack.c.b16 %v499, %v498
      %v599 = vpack.c.b16 %v501, %v500
      %v600 = vpack.c.b16 %v503, %v502
      %v601 = vpack.c.b16 %v505, %v504
      %v602 = vpack.c.b16 %v507, %v506
      %v603 = vpack.c.b16 %v509, %v508
      %v604 = vpack.c.b16 %v511, %v510
      %v605 = vpack.c.b16 %v513, %v512
      %v606 = vpack.c.b16 %v515, %v514
      %v607 = vpack.c.b16 %v517, %v516
      %v608 = vpack.c.b16 %v519, %v518
      %v609 = vpack.c.b16 %v521, %v520
      %v610 = vpack.c.b16 %v523, %v522
      %v611 = vpack.c.b16 %v525, %v524
      %v612 = vpack.c.b16 %v527, %v526
      %v613 = vpack.c.b16 %v529, %v528
      %v614 = vpack.c.b16 %v531, %v530
      %v615 = vpack.c.b16 %v533, %v532
      %v616 = vpack.c.b16 %v535, %v534
      %v617 = vpack.c.b16 %v537, %v536
      %v618 = vpack.c.b16 %v539, %v538
      %v619 = vpack.c.b16 %v541, %v540
      %v620 = vpack.c.b16 %v543, %v542
      %v621 = vpack.c.b16 %v545, %v544
      %v622 = vpack.c.b16 %v547, %v546
      %v623 = vpack.c.b16 %v549, %v548
      %v624 = vpack.c.b16 %v551, %v550
      %v625 = vpack.c.b16 %v553, %v552
      %v626 = vpack.c.b16 %v555, %v554
      %v627 = vpack.c.b16 %v557, %v556
      %v628 = vpack.c.b16 %v559, %v558
      %v629 = vpack.c.b16 %v561, %v560
      %v630 = vpack.c.b16 %v563, %v562
      %v631 = vpack.c.b16 %v565, %v564
      %v632 = vpack.c.b16 %v567, %v566
      %v633 = vpack.c.b16 %v569, %v568
      %v638 = vunpack.c.l.b16 %v303
      %v639 = vunpack.c.l.b16 %v304
      %v640 = vunpack.c.l.b16 %v305
      %v641 = vunpack.c.l.b16 %v306
      %v642 = vpack.c.b16 %v639, %v638
      %v643 = vpack.c.b16 %v641, %v640
      %vm645 = vcmask 220160
      %v647 = vsel %vm645, %v570, 0
      %v650 = vsel %vm645, %v571, 0
      %v653 = vsel %vm645, %v572, 0
      %v656 = vsel %vm645, %v573, 0
      %v659 = vsel %vm645, %v574, 0
      %v662 = vsel %vm645, %v575, 0
      %v665 = vsel %vm645, %v576, 0
      %v668 = vsel %vm645, %v577, 0
      %v671 = vsel %vm645, %v578, 0
      %v674 = vsel %vm645, %v579, 0
      %v677 = vsel %vm645, %v580, 0
      %v680 = vsel %vm645, %v581, 0
      %v683 = vsel %vm645, %v582, 0
      %v686 = vsel %vm645, %v583, 0
      %v689 = vsel %vm645, %v584, 0
      %v692 = vsel %vm645, %v585, 0
      %v695 = vsel %vm645, %v586, 0
      %v698 = vsel %vm645, %v587, 0
      %v701 = vsel %vm645, %v588, 0
      %v704 = vsel %vm645, %v589, 0
      %v707 = vsel %vm645, %v590, 0
      %v710 = vsel %vm645, %v591, 0
      %v713 = vsel %vm645, %v592, 0
      %v716 = vsel %vm645, %v593, 0
      %v719 = vsel %vm645, %v594, 0
      %v722 = vsel %vm645, %v595, 0
      %v725 = vsel %vm645, %v596, 0
      %v728 = vsel %vm645, %v597, 0
      %v731 = vsel %vm645, %v598, 0
      %v734 = vsel %vm645, %v599, 0
      %v737 = vsel %vm645, %v600, 0
      %v740 = vsel %vm645, %v601, 0
      %v743 = vsel %vm645, %v602, 0
      %v746 = vsel %vm645, %v603, 0
      %v749 = vsel %vm645, %v604, 0
      %v752 = vsel %vm645, %v605, 0
      %v755 = vsel %vm645, %v606, 0
      %v758 = vsel %vm645, %v607, 0
      %v761 = vsel %vm645, %v608, 0
      %v764 = vsel %vm645, %v609, 0
      %v767 = vsel %vm645, %v610, 0
      %v770 = vsel %vm645, %v611, 0
      %v773 = vsel %vm645, %v612, 0
      %v776 = vsel %vm645, %v613, 0
      %v779 = vsel %vm645, %v614, 0
      %v782 = vsel %vm645, %v615, 0
      %v785 = vsel %vm645, %v616, 0
      %v788 = vsel %vm645, %v617, 0
      %v791 = vsel %vm645, %v618, 0
      %v794 = vsel %vm645, %v619, 0
      %v797 = vsel %vm645, %v620, 0
      %v800 = vsel %vm645, %v621, 0
      %v803 = vsel %vm645, %v622, 0
      %v806 = vsel %vm645, %v623, 0
      %v809 = vsel %vm645, %v624, 0
      %v812 = vsel %vm645, %v625, 0
      %v815 = vsel %vm645, %v626, 0
      %v818 = vsel %vm645, %v627, 0
      %v821 = vsel %vm645, %v628, 0
      %v824 = vsel %vm645, %v629, 0
      %v827 = vsel %vm645, %v630, 0
      %v830 = vsel %vm645, %v631, 0
      %v833 = vsel %vm645, %v632, 0
      %v836 = vsel %vm645, %v633, 0
      %vm838 = vcmask 1044480
      %vm839 = vcmask 1045504
      %v840 = vsel %vm838, 4294967295, 65535
      %v841 = vsel %vm839, %v840, 0
      %v843 = vand.u32 %v643, %v841
      %845 = vmatprep.subr.bf16.mxu0 0
      %846 = vmatpush1.bf16.msra.mxu0 %v642
      %847 = vmatprep.subr.bf16.mxu0 0
      %848 = vmatpush1.bf16.msra.mxu0 %v843
      %849 = vmatprep.subr.bf16.mxu0 0
      %850 = vmatpush1.bf16.msra.mxu0 0
      %851 = vmatprep.subr.bf16.mxu0 0
      %852 = vmatpush1.bf16.msra.mxu0 0
      %853 = vmatprep.subr.bf16.mxu0 0
      %854 = vmatpush1.bf16.msra.mxu0 0
      %855 = vmatprep.subr.bf16.mxu0 0
      %856 = vmatpush1.bf16.msra.mxu0 0
      %857 = vmatprep.subr.bf16.mxu0 0
      %858 = vmatpush1.bf16.msra.mxu0 0
      %859 = vmatprep.subr.bf16.mxu0 0
      %860 = vmatpush1.bf16.msra.mxu0 0
      %861 = vmatprep.subr.bf16.mxu0 0
      %862 = vmatpush1.bf16.msra.mxu0 0
      %863 = vmatprep.subr.bf16.mxu0 0
      %864 = vmatpush1.bf16.msra.mxu0 0
      %865 = vmatprep.subr.bf16.mxu0 0
      %866 = vmatpush1.bf16.msra.mxu0 0
      %867 = vmatprep.subr.bf16.mxu0 0
      %868 = vmatpush1.bf16.msra.mxu0 0
      %869 = vmatprep.subr.bf16.mxu0 0
      %870 = vmatpush1.bf16.msra.mxu0 0
      %871 = vmatprep.subr.bf16.mxu0 0
      %872 = vmatpush1.bf16.msra.mxu0 0
      %873 = vmatprep.subr.bf16.mxu0 0
      %874 = vmatpush1.bf16.msra.mxu0 0
      %875 = vmatprep.subr.bf16.mxu0 0
      %876 = vmatpush1.bf16.msra.mxu0 0
      %877 = vmatprep.mubr.bf16.mxu0 0
      %878 = vmatmul.mubr.bf16.gmra.mrb[0].mxu0 %v647
      %v879 = vpop.f32.mrb[0].mxu0
      %v880 = vadd.f32 %v312, %v879
      %v881 = vpop.f32.mrb[0].mxu0
      %v882 = vpop.f32.mrb[0].mxu0
      %v883 = vadd.f32 %v312, %v882
      %v884 = vpop.f32.mrb[0].mxu0
      %885 = vmatprep.mubr.bf16.mxu0 0
      %886 = vmatmul.mubr.bf16.gmra.mrb[0].mxu0 %v650
      %v887 = vpop.f32.mrb[0].mxu0
      %v888 = vadd.f32 %v312, %v887
      %v889 = vpop.f32.mrb[0].mxu0
      %v890 = vpop.f32.mrb[0].mxu0
      %v891 = vadd.f32 %v312, %v890
      %v892 = vpop.f32.mrb[0].mxu0
      %893 = vmatprep.mubr.bf16.mxu0 0
      %894 = vmatmul.mubr.bf16.gmra.mrb[0].mxu0 %v653
      %v895 = vpop.f32.mrb[0].mxu0
      %v896 = vadd.f32 %v312, %v895
      %v897 = vpop.f32.mrb[0].mxu0
      %v898 = vpop.f32.mrb[0].mxu0
      %v899 = vadd.f32 %v312, %v898
      %v900 = vpop.f32.mrb[0].mxu0
      %901 = vmatprep.mubr.bf16.mxu0 0
      %902 = vmatmul.mubr.bf16.gmra.mrb[0].mxu0 %v656
      %v903 = vpop.f32.mrb[0].mxu0
      %v904 = vadd.f32 %v312, %v903
      %v905 = vpop.f32.mrb[0].mxu0
      %v906 = vpop.f32.mrb[0].mxu0
      %v907 = vadd.f32 %v312, %v906
      %v908 = vpop.f32.mrb[0].mxu0
      %909 = vmatprep.mubr.bf16.mxu0 0
      %910 = vmatmul.mubr.bf16.gmra.mrb[0].mxu0 %v659
      %v911 = vpop.f32.mrb[0].mxu0
      %v912 = vadd.f32 %v312, %v911
      %v913 = vpop.f32.mrb[0].mxu0
      %v914 = vpop.f32.mrb[0].mxu0
      %v915 = vadd.f32 %v312, %v914
      %v916 = vpop.f32.mrb[0].mxu0
      %917 = vmatprep.mubr.bf16.mxu0 0
      %918 = vmatmul.mubr.bf16.gmra.mrb[0].mxu0 %v662
      %v919 = vpop.f32.mrb[0].mxu0
      %v920 = vadd.f32 %v312, %v919
      %v921 = vpop.f32.mrb[0].mxu0
      %v922 = vpop.f32.mrb[0].mxu0
      %v923 = vadd.f32 %v312, %v922
      %v924 = vpop.f32.mrb[0].mxu0
      %925 = vmatprep.mubr.bf16.mxu0 0
      %926 = vmatmul.mubr.bf16.gmra.mrb[0].mxu0 %v665
      %v927 = vpop.f32.mrb[0].mxu0
      %v928 = vadd.f32 %v312, %v927
      %v929 = vpop.f32.mrb[0].mxu0
      %v930 = vpop.f32.mrb[0].mxu0
      %v931 = vadd.f32 %v312, %v930
      %v932 = vpop.f32.mrb[0].mxu0
      %933 = vmatprep.mubr.bf16.mxu0 0
      %934 = vmatmul.mubr.bf16.gmra.mrb[0].mxu0 %v668
      %v935 = vpop.f32.mrb[0].mxu0
      %v936 = vadd.f32 %v312, %v935
      %v937 = vpop.f32.mrb[0].mxu0
      %v938 = vpop.f32.mrb[0].mxu0
      %v939 = vadd.f32 %v312, %v938
      %v940 = vpop.f32.mrb[0].mxu0
      %941 = vmatprep.mubr.bf16.mxu0 0
      %942 = vmatmul.mubr.bf16.gmra.mrb[0].mxu0 %v671
      %v943 = vpop.f32.mrb[0].mxu0
      %v944 = vadd.f32 %v312, %v943
      %v945 = vpop.f32.mrb[0].mxu0
      %v946 = vpop.f32.mrb[0].mxu0
      %v947 = vadd.f32 %v312, %v946
      %v948 = vpop.f32.mrb[0].mxu0
      %949 = vmatprep.mubr.bf16.mxu0 0
      %950 = vmatmul.mubr.bf16.gmra.mrb[0].mxu0 %v674
      %v951 = vpop.f32.mrb[0].mxu0
      %v952 = vadd.f32 %v312, %v951
      %v953 = vpop.f32.mrb[0].mxu0
      %v954 = vpop.f32.mrb[0].mxu0
      %v955 = vadd.f32 %v312, %v954
      %v956 = vpop.f32.mrb[0].mxu0
      %957 = vmatprep.mubr.bf16.mxu0 0
      %958 = vmatmul.mubr.bf16.gmra.mrb[0].mxu0 %v677
      %v959 = vpop.f32.mrb[0].mxu0
      %v960 = vadd.f32 %v312, %v959
      %v961 = vpop.f32.mrb[0].mxu0
      %v962 = vpop.f32.mrb[0].mxu0
      %v963 = vadd.f32 %v312, %v962
      %v964 = vpop.f32.mrb[0].mxu0
      %965 = vmatprep.mubr.bf16.mxu0 0
      %966 = vmatmul.mubr.bf16.gmra.mrb[0].mxu0 %v680
      %v967 = vpop.f32.mrb[0].mxu0
      %v968 = vadd.f32 %v312, %v967
      %v969 = vpop.f32.mrb[0].mxu0
      %v970 = vpop.f32.mrb[0].mxu0
      %v971 = vadd.f32 %v312, %v970
      %v972 = vpop.f32.mrb[0].mxu0
      %973 = vmatprep.mubr.bf16.mxu0 0
      %974 = vmatmul.mubr.bf16.gmra.mrb[0].mxu0 %v683
      %v975 = vpop.f32.mrb[0].mxu0
      %v976 = vadd.f32 %v312, %v975
      %v977 = vpop.f32.mrb[0].mxu0
      %v978 = vpop.f32.mrb[0].mxu0
      %v979 = vadd.f32 %v312, %v978
      %v980 = vpop.f32.mrb[0].mxu0
      %981 = vmatprep.mubr.bf16.mxu0 0
      %982 = vmatmul.mubr.bf16.gmra.mrb[0].mxu0 %v686
      %v983 = vpop.f32.mrb[0].mxu0
      %v984 = vadd.f32 %v312, %v983
      %v985 = vpop.f32.mrb[0].mxu0
      %v986 = vpop.f32.mrb[0].mxu0
      %v987 = vadd.f32 %v312, %v986
      %v988 = vpop.f32.mrb[0].mxu0
      %989 = vmatprep.mubr.bf16.mxu0 0
      %990 = vmatmul.mubr.bf16.gmra.mrb[0].mxu0 %v689
      %v991 = vpop.f32.mrb[0].mxu0
      %v992 = vadd.f32 %v312, %v991
      %v993 = vpop.f32.mrb[0].mxu0
      %v994 = vpop.f32.mrb[0].mxu0
      %v995 = vadd.f32 %v312, %v994
      %v996 = vpop.f32.mrb[0].mxu0
      %997 = vmatprep.mubr.bf16.mxu0 0
      %998 = vmatmul.mubr.bf16.gmra.mrb[0].mxu0 %v692
      %v999 = vpop.f32.mrb[0].mxu0
      %v1000 = vadd.f32 %v312, %v999
      %v1001 = vpop.f32.mrb[0].mxu0
      %v1002 = vpop.f32.mrb[0].mxu0
      %v1003 = vadd.f32 %v312, %v1002
      %v1004 = vpop.f32.mrb[0].mxu0
      %1005 = vmatprep.mubr.bf16.mxu0 0
      %1006 = vmatmul.mubr.bf16.gmra.mrb[0].mxu0 %v695
      %v1007 = vpop.f32.mrb[0].mxu0
      %v1008 = vadd.f32 %v312, %v1007
      %v1009 = vpop.f32.mrb[0].mxu0
      %v1010 = vpop.f32.mrb[0].mxu0
      %v1011 = vadd.f32 %v312, %v1010
      %v1012 = vpop.f32.mrb[0].mxu0
      %1013 = vmatprep.mubr.bf16.mxu0 0
      %1014 = vmatmul.mubr.bf16.gmra.mrb[0].mxu0 %v698
      %v1015 = vpop.f32.mrb[0].mxu0
      %v1016 = vadd.f32 %v312, %v1015
      %v1017 = vpop.f32.mrb[0].mxu0
      %v1018 = vpop.f32.mrb[0].mxu0
      %v1019 = vadd.f32 %v312, %v1018
      %v1020 = vpop.f32.mrb[0].mxu0
      %1021 = vmatprep.mubr.bf16.mxu0 0
      %1022 = vmatmul.mubr.bf16.gmra.mrb[0].mxu0 %v701
      %v1023 = vpop.f32.mrb[0].mxu0
      %v1024 = vadd.f32 %v312, %v1023
      %v1025 = vpop.f32.mrb[0].mxu0
      %v1026 = vpop.f32.mrb[0].mxu0
      %v1027 = vadd.f32 %v312, %v1026
      %v1028 = vpop.f32.mrb[0].mxu0
      %1029 = vmatprep.mubr.bf16.mxu0 0
      %1030 = vmatmul.mubr.bf16.gmra.mrb[0].mxu0 %v704
      %v1031 = vpop.f32.mrb[0].mxu0
      %v1032 = vadd.f32 %v312, %v1031
      %v1033 = vpop.f32.mrb[0].mxu0
      %v1034 = vpop.f32.mrb[0].mxu0
      %v1035 = vadd.f32 %v312, %v1034
      %v1036 = vpop.f32.mrb[0].mxu0
      %1037 = vmatprep.mubr.bf16.mxu0 0
      %1038 = vmatmul.mubr.bf16.gmra.mrb[0].mxu0 %v707
      %v1039 = vpop.f32.mrb[0].mxu0
      %v1040 = vadd.f32 %v312, %v1039
      %v1041 = vpop.f32.mrb[0].mxu0
      %v1042 = vpop.f32.mrb[0].mxu0
      %v1043 = vadd.f32 %v312, %v1042
      %v1044 = vpop.f32.mrb[0].mxu0
      %1045 = vmatprep.mubr.bf16.mxu0 0
      %1046 = vmatmul.mubr.bf16.gmra.mrb[0].mxu0 %v710
      %v1047 = vpop.f32.mrb[0].mxu0
      %v1048 = vadd.f32 %v312, %v1047
      %v1049 = vpop.f32.mrb[0].mxu0
      %v1050 = vpop.f32.mrb[0].mxu0
      %v1051 = vadd.f32 %v312, %v1050
      %v1052 = vpop.f32.mrb[0].mxu0
      %1053 = vmatprep.mubr.bf16.mxu0 0
      %1054 = vmatmul.mubr.bf16.gmra.mrb[0].mxu0 %v713
      %v1055 = vpop.f32.mrb[0].mxu0
      %v1056 = vadd.f32 %v312, %v1055
      %v1057 = vpop.f32.mrb[0].mxu0
      %v1058 = vpop.f32.mrb[0].mxu0
      %v1059 = vadd.f32 %v312, %v1058
      %v1060 = vpop.f32.mrb[0].mxu0
      %1061 = vmatprep.mubr.bf16.mxu0 0
      %1062 = vmatmul.mubr.bf16.gmra.mrb[0].mxu0 %v716
      %v1063 = vpop.f32.mrb[0].mxu0
      %v1064 = vadd.f32 %v312, %v1063
      %v1065 = vpop.f32.mrb[0].mxu0
      %v1066 = vpop.f32.mrb[0].mxu0
      %v1067 = vadd.f32 %v312, %v1066
      %v1068 = vpop.f32.mrb[0].mxu0
      %1069 = vmatprep.mubr.bf16.mxu0 0
      %1070 = vmatmul.mubr.bf16.gmra.mrb[0].mxu0 %v719
      %v1071 = vpop.f32.mrb[0].mxu0
      %v1072 = vadd.f32 %v312, %v1071
      %v1073 = vpop.f32.mrb[0].mxu0
      %v1074 = vpop.f32.mrb[0].mxu0
      %v1075 = vadd.f32 %v312, %v1074
      %v1076 = vpop.f32.mrb[0].mxu0
      %1077 = vmatprep.mubr.bf16.mxu0 0
      %1078 = vmatmul.mubr.bf16.gmra.mrb[0].mxu0 %v722
      %v1079 = vpop.f32.mrb[0].mxu0
      %v1080 = vadd.f32 %v312, %v1079
      %v1081 = vpop.f32.mrb[0].mxu0
      %v1082 = vpop.f32.mrb[0].mxu0
      %v1083 = vadd.f32 %v312, %v1082
      %v1084 = vpop.f32.mrb[0].mxu0
      %1085 = vmatprep.mubr.bf16.mxu0 0
      %1086 = vmatmul.mubr.bf16.gmra.mrb[0].mxu0 %v725
      %v1087 = vpop.f32.mrb[0].mxu0
      %v1088 = vadd.f32 %v312, %v1087
      %v1089 = vpop.f32.mrb[0].mxu0
      %v1090 = vpop.f32.mrb[0].mxu0
      %v1091 = vadd.f32 %v312, %v1090
      %v1092 = vpop.f32.mrb[0].mxu0
      %1093 = vmatprep.mubr.bf16.mxu0 0
      %1094 = vmatmul.mubr.bf16.gmra.mrb[0].mxu0 %v728
      %v1095 = vpop.f32.mrb[0].mxu0
      %v1096 = vadd.f32 %v312, %v1095
      %v1097 = vpop.f32.mrb[0].mxu0
      %v1098 = vpop.f32.mrb[0].mxu0
      %v1099 = vadd.f32 %v312, %v1098
      %v1100 = vpop.f32.mrb[0].mxu0
      %1101 = vmatprep.mubr.bf16.mxu0 0
      %1102 = vmatmul.mubr.bf16.gmra.mrb[0].mxu0 %v731
      %v1103 = vpop.f32.mrb[0].mxu0
      %v1104 = vadd.f32 %v312, %v1103
      %v1105 = vpop.f32.mrb[0].mxu0
      %v1106 = vpop.f32.mrb[0].mxu0
      %v1107 = vadd.f32 %v312, %v1106
      %v1108 = vpop.f32.mrb[0].mxu0
      %1109 = vmatprep.mubr.bf16.mxu0 0
      %1110 = vmatmul.mubr.bf16.gmra.mrb[0].mxu0 %v734
      %v1111 = vpop.f32.mrb[0].mxu0
      %v1112 = vadd.f32 %v312, %v1111
      %v1113 = vpop.f32.mrb[0].mxu0
      %v1114 = vpop.f32.mrb[0].mxu0
      %v1115 = vadd.f32 %v312, %v1114
      %v1116 = vpop.f32.mrb[0].mxu0
      %1117 = vmatprep.mubr.bf16.mxu0 0
      %1118 = vmatmul.mubr.bf16.gmra.mrb[0].mxu0 %v737
      %v1119 = vpop.f32.mrb[0].mxu0
      %v1120 = vadd.f32 %v312, %v1119
      %v1121 = vpop.f32.mrb[0].mxu0
      %v1122 = vpop.f32.mrb[0].mxu0
      %v1123 = vadd.f32 %v312, %v1122
      %v1124 = vpop.f32.mrb[0].mxu0
      %1125 = vmatprep.mubr.bf16.mxu0 0
      %1126 = vmatmul.mubr.bf16.gmra.mrb[0].mxu0 %v740
      %v1127 = vpop.f32.mrb[0].mxu0
      %v1128 = vadd.f32 %v312, %v1127
      %v1129 = vpop.f32.mrb[0].mxu0
      %v1130 = vpop.f32.mrb[0].mxu0
      %v1131 = vadd.f32 %v312, %v1130
      %v1132 = vpop.f32.mrb[0].mxu0
      %1133 = vmatprep.mubr.bf16.mxu0 0
      %1134 = vmatmul.mubr.bf16.gmra.mrb[0].mxu0 %v743
      %v1135 = vpop.f32.mrb[0].mxu0
      %v1136 = vadd.f32 %v312, %v1135
      %v1137 = vpop.f32.mrb[0].mxu0
      %v1138 = vpop.f32.mrb[0].mxu0
      %v1139 = vadd.f32 %v312, %v1138
      %v1140 = vpop.f32.mrb[0].mxu0
      %1141 = vmatprep.mubr.bf16.mxu0 0
      %1142 = vmatmul.mubr.bf16.gmra.mrb[0].mxu0 %v746
      %v1143 = vpop.f32.mrb[0].mxu0
      %v1144 = vadd.f32 %v312, %v1143
      %v1145 = vpop.f32.mrb[0].mxu0
      %v1146 = vpop.f32.mrb[0].mxu0
      %v1147 = vadd.f32 %v312, %v1146
      %v1148 = vpop.f32.mrb[0].mxu0
      %1149 = vmatprep.mubr.bf16.mxu0 0
      %1150 = vmatmul.mubr.bf16.gmra.mrb[0].mxu0 %v749
      %v1151 = vpop.f32.mrb[0].mxu0
      %v1152 = vadd.f32 %v312, %v1151
      %v1153 = vpop.f32.mrb[0].mxu0
      %v1154 = vpop.f32.mrb[0].mxu0
      %v1155 = vadd.f32 %v312, %v1154
      %v1156 = vpop.f32.mrb[0].mxu0
      %1157 = vmatprep.mubr.bf16.mxu0 0
      %1158 = vmatmul.mubr.bf16.gmra.mrb[0].mxu0 %v752
      %v1159 = vpop.f32.mrb[0].mxu0
      %v1160 = vadd.f32 %v312, %v1159
      %v1161 = vpop.f32.mrb[0].mxu0
      %v1162 = vpop.f32.mrb[0].mxu0
      %v1163 = vadd.f32 %v312, %v1162
      %v1164 = vpop.f32.mrb[0].mxu0
      %1165 = vmatprep.mubr.bf16.mxu0 0
      %1166 = vmatmul.mubr.bf16.gmra.mrb[0].mxu0 %v755
      %v1167 = vpop.f32.mrb[0].mxu0
      %v1168 = vadd.f32 %v312, %v1167
      %v1169 = vpop.f32.mrb[0].mxu0
      %v1170 = vpop.f32.mrb[0].mxu0
      %v1171 = vadd.f32 %v312, %v1170
      %v1172 = vpop.f32.mrb[0].mxu0
      %1173 = vmatprep.mubr.bf16.mxu0 0
      %1174 = vmatmul.mubr.bf16.gmra.mrb[0].mxu0 %v758
      %v1175 = vpop.f32.mrb[0].mxu0
      %v1176 = vadd.f32 %v312, %v1175
      %v1177 = vpop.f32.mrb[0].mxu0
      %v1178 = vpop.f32.mrb[0].mxu0
      %v1179 = vadd.f32 %v312, %v1178
      %v1180 = vpop.f32.mrb[0].mxu0
      %1181 = vmatprep.mubr.bf16.mxu0 0
      %1182 = vmatmul.mubr.bf16.gmra.mrb[0].mxu0 %v761
      %v1183 = vpop.f32.mrb[0].mxu0
      %v1184 = vadd.f32 %v312, %v1183
      %v1185 = vpop.f32.mrb[0].mxu0
      %v1186 = vpop.f32.mrb[0].mxu0
      %v1187 = vadd.f32 %v312, %v1186
      %v1188 = vpop.f32.mrb[0].mxu0
      %1189 = vmatprep.mubr.bf16.mxu0 0
      %1190 = vmatmul.mubr.bf16.gmra.mrb[0].mxu0 %v764
      %v1191 = vpop.f32.mrb[0].mxu0
      %v1192 = vadd.f32 %v312, %v1191
      %v1193 = vpop.f32.mrb[0].mxu0
      %v1194 = vpop.f32.mrb[0].mxu0
      %v1195 = vadd.f32 %v312, %v1194
      %v1196 = vpop.f32.mrb[0].mxu0
      %1197 = vmatprep.mubr.bf16.mxu0 0
      %1198 = vmatmul.mubr.bf16.gmra.mrb[0].mxu0 %v767
      %v1199 = vpop.f32.mrb[0].mxu0
      %v1200 = vadd.f32 %v312, %v1199
      %v1201 = vpop.f32.mrb[0].mxu0
      %v1202 = vpop.f32.mrb[0].mxu0
      %v1203 = vadd.f32 %v312, %v1202
      %v1204 = vpop.f32.mrb[0].mxu0
      %1205 = vmatprep.mubr.bf16.mxu0 0
      %1206 = vmatmul.mubr.bf16.gmra.mrb[0].mxu0 %v770
      %v1207 = vpop.f32.mrb[0].mxu0
      %v1208 = vadd.f32 %v312, %v1207
      %v1209 = vpop.f32.mrb[0].mxu0
      %v1210 = vpop.f32.mrb[0].mxu0
      %v1211 = vadd.f32 %v312, %v1210
      %v1212 = vpop.f32.mrb[0].mxu0
      %1213 = vmatprep.mubr.bf16.mxu0 0
      %1214 = vmatmul.mubr.bf16.gmra.mrb[0].mxu0 %v773
      %v1215 = vpop.f32.mrb[0].mxu0
      %v1216 = vadd.f32 %v312, %v1215
      %v1217 = vpop.f32.mrb[0].mxu0
      %v1218 = vpop.f32.mrb[0].mxu0
      %v1219 = vadd.f32 %v312, %v1218
      %v1220 = vpop.f32.mrb[0].mxu0
      %1221 = vmatprep.mubr.bf16.mxu0 0
      %1222 = vmatmul.mubr.bf16.gmra.mrb[0].mxu0 %v776
      %v1223 = vpop.f32.mrb[0].mxu0
      %v1224 = vadd.f32 %v312, %v1223
      %v1225 = vpop.f32.mrb[0].mxu0
      %v1226 = vpop.f32.mrb[0].mxu0
      %v1227 = vadd.f32 %v312, %v1226
      %v1228 = vpop.f32.mrb[0].mxu0
      %1229 = vmatprep.mubr.bf16.mxu0 0
      %1230 = vmatmul.mubr.bf16.gmra.mrb[0].mxu0 %v779
      %v1231 = vpop.f32.mrb[0].mxu0
      %v1232 = vadd.f32 %v312, %v1231
      %v1233 = vpop.f32.mrb[0].mxu0
      %v1234 = vpop.f32.mrb[0].mxu0
      %v1235 = vadd.f32 %v312, %v1234
      %v1236 = vpop.f32.mrb[0].mxu0
      %1237 = vmatprep.mubr.bf16.mxu0 0
      %1238 = vmatmul.mubr.bf16.gmra.mrb[0].mxu0 %v782
      %v1239 = vpop.f32.mrb[0].mxu0
      %v1240 = vadd.f32 %v312, %v1239
      %v1241 = vpop.f32.mrb[0].mxu0
      %v1242 = vpop.f32.mrb[0].mxu0
      %v1243 = vadd.f32 %v312, %v1242
      %v1244 = vpop.f32.mrb[0].mxu0
      %1245 = vmatprep.mubr.bf16.mxu0 0
      %1246 = vmatmul.mubr.bf16.gmra.mrb[0].mxu0 %v785
      %v1247 = vpop.f32.mrb[0].mxu0
      %v1248 = vadd.f32 %v312, %v1247
      %v1249 = vpop.f32.mrb[0].mxu0
      %v1250 = vpop.f32.mrb[0].mxu0
      %v1251 = vadd.f32 %v312, %v1250
      %v1252 = vpop.f32.mrb[0].mxu0
      %1253 = vmatprep.mubr.bf16.mxu0 0
      %1254 = vmatmul.mubr.bf16.gmra.mrb[0].mxu0 %v788
      %v1255 = vpop.f32.mrb[0].mxu0
      %v1256 = vadd.f32 %v312, %v1255
      %v1257 = vpop.f32.mrb[0].mxu0
      %v1258 = vpop.f32.mrb[0].mxu0
      %v1259 = vadd.f32 %v312, %v1258
      %v1260 = vpop.f32.mrb[0].mxu0
      %1261 = vmatprep.mubr.bf16.mxu0 0
      %1262 = vmatmul.mubr.bf16.gmra.mrb[0].mxu0 %v791
      %v1263 = vpop.f32.mrb[0].mxu0
      %v1264 = vadd.f32 %v312, %v1263
      %v1265 = vpop.f32.mrb[0].mxu0
      %v1266 = vpop.f32.mrb[0].mxu0
      %v1267 = vadd.f32 %v312, %v1266
      %v1268 = vpop.f32.mrb[0].mxu0
      %1269 = vmatprep.mubr.bf16.mxu0 0
      %1270 = vmatmul.mubr.bf16.gmra.mrb[0].mxu0 %v794
      %v1271 = vpop.f32.mrb[0].mxu0
      %v1272 = vadd.f32 %v312, %v1271
      %v1273 = vpop.f32.mrb[0].mxu0
      %v1274 = vpop.f32.mrb[0].mxu0
      %v1275 = vadd.f32 %v312, %v1274
      %v1276 = vpop.f32.mrb[0].mxu0
      %1277 = vmatprep.mubr.bf16.mxu0 0
      %1278 = vmatmul.mubr.bf16.gmra.mrb[0].mxu0 %v797
      %v1279 = vpop.f32.mrb[0].mxu0
      %v1280 = vadd.f32 %v312, %v1279
      %v1281 = vpop.f32.mrb[0].mxu0
      %v1282 = vpop.f32.mrb[0].mxu0
      %v1283 = vadd.f32 %v312, %v1282
      %v1284 = vpop.f32.mrb[0].mxu0
      %1285 = vmatprep.mubr.bf16.mxu0 0
      %1286 = vmatmul.mubr.bf16.gmra.mrb[0].mxu0 %v800
      %v1287 = vpop.f32.mrb[0].mxu0
      %v1288 = vadd.f32 %v312, %v1287
      %v1289 = vpop.f32.mrb[0].mxu0
      %v1290 = vpop.f32.mrb[0].mxu0
      %v1291 = vadd.f32 %v312, %v1290
      %v1292 = vpop.f32.mrb[0].mxu0
      %1293 = vmatprep.mubr.bf16.mxu0 0
      %1294 = vmatmul.mubr.bf16.gmra.mrb[0].mxu0 %v803
      %v1295 = vpop.f32.mrb[0].mxu0
      %v1296 = vadd.f32 %v312, %v1295
      %v1297 = vpop.f32.mrb[0].mxu0
      %v1298 = vpop.f32.mrb[0].mxu0
      %v1299 = vadd.f32 %v312, %v1298
      %v1300 = vpop.f32.mrb[0].mxu0
      %1301 = vmatprep.mubr.bf16.mxu0 0
      %1302 = vmatmul.mubr.bf16.gmra.mrb[0].mxu0 %v806
      %v1303 = vpop.f32.mrb[0].mxu0
      %v1304 = vadd.f32 %v312, %v1303
      %v1305 = vpop.f32.mrb[0].mxu0
      %v1306 = vpop.f32.mrb[0].mxu0
      %v1307 = vadd.f32 %v312, %v1306
      %v1308 = vpop.f32.mrb[0].mxu0
      %1309 = vmatprep.mubr.bf16.mxu0 0
      %1310 = vmatmul.mubr.bf16.gmra.mrb[0].mxu0 %v809
      %v1311 = vpop.f32.mrb[0].mxu0
      %v1312 = vadd.f32 %v312, %v1311
      %v1313 = vpop.f32.mrb[0].mxu0
      %v1314 = vpop.f32.mrb[0].mxu0
      %v1315 = vadd.f32 %v312, %v1314
      %v1316 = vpop.f32.mrb[0].mxu0
      %1317 = vmatprep.mubr.bf16.mxu0 0
      %1318 = vmatmul.mubr.bf16.gmra.mrb[0].mxu0 %v812
      %v1319 = vpop.f32.mrb[0].mxu0
      %v1320 = vadd.f32 %v312, %v1319
      %v1321 = vpop.f32.mrb[0].mxu0
      %v1322 = vpop.f32.mrb[0].mxu0
      %v1323 = vadd.f32 %v312, %v1322
      %v1324 = vpop.f32.mrb[0].mxu0
      %1325 = vmatprep.mubr.bf16.mxu0 0
      %1326 = vmatmul.mubr.bf16.gmra.mrb[0].mxu0 %v815
      %v1327 = vpop.f32.mrb[0].mxu0
      %v1328 = vadd.f32 %v312, %v1327
      %v1329 = vpop.f32.mrb[0].mxu0
      %v1330 = vpop.f32.mrb[0].mxu0
      %v1331 = vadd.f32 %v312, %v1330
      %v1332 = vpop.f32.mrb[0].mxu0
      %1333 = vmatprep.mubr.bf16.mxu0 0
      %1334 = vmatmul.mubr.bf16.gmra.mrb[0].mxu0 %v818
      %v1335 = vpop.f32.mrb[0].mxu0
      %v1336 = vadd.f32 %v312, %v1335
      %v1337 = vpop.f32.mrb[0].mxu0
      %v1338 = vpop.f32.mrb[0].mxu0
      %v1339 = vadd.f32 %v312, %v1338
      %v1340 = vpop.f32.mrb[0].mxu0
      %1341 = vmatprep.mubr.bf16.mxu0 0
      %1342 = vmatmul.mubr.bf16.gmra.mrb[0].mxu0 %v821
      %v1343 = vpop.f32.mrb[0].mxu0
      %v1344 = vadd.f32 %v312, %v1343
      %v1345 = vpop.f32.mrb[0].mxu0
      %v1346 = vpop.f32.mrb[0].mxu0
      %v1347 = vadd.f32 %v312, %v1346
      %v1348 = vpop.f32.mrb[0].mxu0
      %1349 = vmatprep.mubr.bf16.mxu0 0
      %1350 = vmatmul.mubr.bf16.gmra.mrb[0].mxu0 %v824
      %v1351 = vpop.f32.mrb[0].mxu0
      %v1352 = vadd.f32 %v312, %v1351
      %v1353 = vpop.f32.mrb[0].mxu0
      %v1354 = vpop.f32.mrb[0].mxu0
      %v1355 = vadd.f32 %v312, %v1354
      %v1356 = vpop.f32.mrb[0].mxu0
      %1357 = vmatprep.mubr.bf16.mxu0 0
      %1358 = vmatmul.mubr.bf16.gmra.mrb[0].mxu0 %v827
      %v1359 = vpop.f32.mrb[0].mxu0
      %v1360 = vadd.f32 %v312, %v1359
      %v1361 = vpop.f32.mrb[0].mxu0
      %v1362 = vpop.f32.mrb[0].mxu0
      %v1363 = vadd.f32 %v312, %v1362
      %v1364 = vpop.f32.mrb[0].mxu0
      %1365 = vmatprep.mubr.bf16.mxu0 0
      %1366 = vmatmul.mubr.bf16.gmra.mrb[0].mxu0 %v830
      %v1367 = vpop.f32.mrb[0].mxu0
      %v1368 = vadd.f32 %v312, %v1367
      %v1369 = vpop.f32.mrb[0].mxu0
      %v1370 = vpop.f32.mrb[0].mxu0
      %v1371 = vadd.f32 %v312, %v1370
      %v1372 = vpop.f32.mrb[0].mxu0
      %1373 = vmatprep.mubr.bf16.mxu0 0
      %1374 = vmatmul.mubr.bf16.gmra.mrb[0].mxu0 %v833
      %v1375 = vpop.f32.mrb[0].mxu0
      %v1376 = vadd.f32 %v312, %v1375
      %v1377 = vpop.f32.mrb[0].mxu0
      %v1378 = vpop.f32.mrb[0].mxu0
      %v1379 = vadd.f32 %v312, %v1378
      %v1380 = vpop.f32.mrb[0].mxu0
      %1381 = vmatprep.mubr.bf16.mxu0 0
      %1382 = vmatmul.mubr.bf16.gmra.mrb[0].mxu0 %v836
      %v1383 = vpop.f32.mrb[0].mxu0
      %v1384 = vadd.f32 %v312, %v1383
      %v1385 = vpop.f32.mrb[0].mxu0
      %v1386 = vpop.f32.mrb[0].mxu0
      %v1387 = vadd.f32 %v312, %v1386
      %v1388 = vpop.f32.mrb[0].mxu0
      %1389 = vdwg.mxu0
      %v1390 = vpack.c.bf16 %v883, %v880
      %v1391 = vpack.c.bf16 %v891, %v888
      %v1392 = vpack.c.bf16 %v899, %v896
      %v1393 = vpack.c.bf16 %v907, %v904
      %v1394 = vpack.c.bf16 %v915, %v912
      %v1395 = vpack.c.bf16 %v923, %v920
      %v1396 = vpack.c.bf16 %v931, %v928
      %v1397 = vpack.c.bf16 %v939, %v936
      %v1398 = vpack.c.bf16 %v947, %v944
      %v1399 = vpack.c.bf16 %v955, %v952
      %v1400 = vpack.c.bf16 %v963, %v960
      %v1401 = vpack.c.bf16 %v971, %v968
      %v1402 = vpack.c.bf16 %v979, %v976
      %v1403 = vpack.c.bf16 %v987, %v984
      %v1404 = vpack.c.bf16 %v995, %v992
      %v1405 = vpack.c.bf16 %v1003, %v1000
      %v1406 = vpack.c.bf16 %v1011, %v1008
      %v1407 = vpack.c.bf16 %v1019, %v1016
      %v1408 = vpack.c.bf16 %v1027, %v1024
      %v1409 = vpack.c.bf16 %v1035, %v1032
      %v1410 = vpack.c.bf16 %v1043, %v1040
      %v1411 = vpack.c.bf16 %v1051, %v1048
      %v1412 = vpack.c.bf16 %v1059, %v1056
      %v1413 = vpack.c.bf16 %v1067, %v1064
      %v1414 = vpack.c.bf16 %v1075, %v1072
      %v1415 = vpack.c.bf16 %v1083, %v1080
      %v1416 = vpack.c.bf16 %v1091, %v1088
      %v1417 = vpack.c.bf16 %v1099, %v1096
      %v1418 = vpack.c.bf16 %v1107, %v1104
      %v1419 = vpack.c.bf16 %v1115, %v1112
      %v1420 = vpack.c.bf16 %v1123, %v1120
      %v1421 = vpack.c.bf16 %v1131, %v1128
      %v1422 = vpack.c.bf16 %v1139, %v1136
      %v1423 = vpack.c.bf16 %v1147, %v1144
      %v1424 = vpack.c.bf16 %v1155, %v1152
      %v1425 = vpack.c.bf16 %v1163, %v1160
      %v1426 = vpack.c.bf16 %v1171, %v1168
      %v1427 = vpack.c.bf16 %v1179, %v1176
      %v1428 = vpack.c.bf16 %v1187, %v1184
      %v1429 = vpack.c.bf16 %v1195, %v1192
      %v1430 = vpack.c.bf16 %v1203, %v1200
      %v1431 = vpack.c.bf16 %v1211, %v1208
      %v1432 = vpack.c.bf16 %v1219, %v1216
      %v1433 = vpack.c.bf16 %v1227, %v1224
      %v1434 = vpack.c.bf16 %v1235, %v1232
      %v1435 = vpack.c.bf16 %v1243, %v1240
      %v1436 = vpack.c.bf16 %v1251, %v1248
      %v1437 = vpack.c.bf16 %v1259, %v1256
      %v1438 = vpack.c.bf16 %v1267, %v1264
      %v1439 = vpack.c.bf16 %v1275, %v1272
      %v1440 = vpack.c.bf16 %v1283, %v1280
      %v1441 = vpack.c.bf16 %v1291, %v1288
      %v1442 = vpack.c.bf16 %v1299, %v1296
      %v1443 = vpack.c.bf16 %v1307, %v1304
      %v1444 = vpack.c.bf16 %v1315, %v1312
      %v1445 = vpack.c.bf16 %v1323, %v1320
      %v1446 = vpack.c.bf16 %v1331, %v1328
      %v1447 = vpack.c.bf16 %v1339, %v1336
      %v1448 = vpack.c.bf16 %v1347, %v1344
      %v1449 = vpack.c.bf16 %v1355, %v1352
      %v1450 = vpack.c.bf16 %v1363, %v1360
      %v1451 = vpack.c.bf16 %v1371, %v1368
      %v1452 = vpack.c.bf16 %v1379, %v1376
      %v1453 = vpack.c.bf16 %v1387, %v1384
      %v1518 = vunpack.c.l.b16 %v1390
      %v1519 = vunpack.c.h.b16 %v1390
      %v1520 = vunpack.c.l.b16 %v1391
      %v1521 = vunpack.c.h.b16 %v1391
      %v1522 = vunpack.c.l.b16 %v1392
      %v1523 = vunpack.c.h.b16 %v1392
      %v1524 = vunpack.c.l.b16 %v1393
      %v1525 = vunpack.c.h.b16 %v1393
      %v1526 = vunpack.c.l.b16 %v1394
      %v1527 = vunpack.c.h.b16 %v1394
      %v1528 = vunpack.c.l.b16 %v1395
      %v1529 = vunpack.c.h.b16 %v1395
      %v1530 = vunpack.c.l.b16 %v1396
      %v1531 = vunpack.c.h.b16 %v1396
      %v1532 = vunpack.c.l.b16 %v1397
      %v1533 = vunpack.c.h.b16 %v1397
      %v1534 = vunpack.c.l.b16 %v1398
      %v1535 = vunpack.c.h.b16 %v1398
      %v1536 = vunpack.c.l.b16 %v1399
      %v1537 = vunpack.c.h.b16 %v1399
      %v1538 = vunpack.c.l.b16 %v1400
      %v1539 = vunpack.c.h.b16 %v1400
      %v1540 = vunpack.c.l.b16 %v1401
      %v1541 = vunpack.c.h.b16 %v1401
      %v1542 = vunpack.c.l.b16 %v1402
      %v1543 = vunpack.c.h.b16 %v1402
      %v1544 = vunpack.c.l.b16 %v1403
      %v1545 = vunpack.c.h.b16 %v1403
      %v1546 = vunpack.c.l.b16 %v1404
      %v1547 = vunpack.c.h.b16 %v1404
      %v1548 = vunpack.c.l.b16 %v1405
      %v1549 = vunpack.c.h.b16 %v1405
      %v1550 = vunpack.c.l.b16 %v1406
      %v1551 = vunpack.c.h.b16 %v1406
      %v1552 = vunpack.c.l.b16 %v1407
      %v1553 = vunpack.c.h.b16 %v1407
      %v1554 = vunpack.c.l.b16 %v1408
      %v1555 = vunpack.c.h.b16 %v1408
      %v1556 = vunpack.c.l.b16 %v1409
      %v1557 = vunpack.c.h.b16 %v1409
      %v1558 = vunpack.c.l.b16 %v1410
      %v1559 = vunpack.c.h.b16 %v1410
      %v1560 = vunpack.c.l.b16 %v1411
      %v1561 = vunpack.c.h.b16 %v1411
      %v1562 = vunpack.c.l.b16 %v1412
      %v1563 = vunpack.c.h.b16 %v1412
      %v1564 = vunpack.c.l.b16 %v1413
      %v1565 = vunpack.c.h.b16 %v1413
      %v1566 = vunpack.c.l.b16 %v1414
      %v1567 = vunpack.c.h.b16 %v1414
      %v1568 = vunpack.c.l.b16 %v1415
      %v1569 = vunpack.c.h.b16 %v1415
      %v1570 = vunpack.c.l.b16 %v1416
      %v1571 = vunpack.c.h.b16 %v1416
      %v1572 = vunpack.c.l.b16 %v1417
      %v1573 = vunpack.c.h.b16 %v1417
      %v1574 = vunpack.c.l.b16 %v1418
      %v1575 = vunpack.c.h.b16 %v1418
      %v1576 = vunpack.c.l.b16 %v1419
      %v1577 = vunpack.c.h.b16 %v1419
      %v1578 = vunpack.c.l.b16 %v1420
      %v1579 = vunpack.c.h.b16 %v1420
      %v1580 = vunpack.c.l.b16 %v1421
      %v1581 = vunpack.c.h.b16 %v1421
      %v1582 = vunpack.c.l.b16 %v1422
      %v1583 = vunpack.c.h.b16 %v1422
      %v1584 = vunpack.c.l.b16 %v1423
      %v1585 = vunpack.c.h.b16 %v1423
      %v1586 = vunpack.c.l.b16 %v1424
      %v1587 = vunpack.c.h.b16 %v1424
      %v1588 = vunpack.c.l.b16 %v1425
      %v1589 = vunpack.c.h.b16 %v1425
      %v1590 = vunpack.c.l.b16 %v1426
      %v1591 = vunpack.c.h.b16 %v1426
      %v1592 = vunpack.c.l.b16 %v1427
      %v1593 = vunpack.c.h.b16 %v1427
      %v1594 = vunpack.c.l.b16 %v1428
      %v1595 = vunpack.c.h.b16 %v1428
      %v1596 = vunpack.c.l.b16 %v1429
      %v1597 = vunpack.c.h.b16 %v1429
      %v1598 = vunpack.c.l.b16 %v1430
      %v1599 = vunpack.c.h.b16 %v1430
      %v1600 = vunpack.c.l.b16 %v1431
      %v1601 = vunpack.c.h.b16 %v1431
      %v1602 = vunpack.c.l.b16 %v1432
      %v1603 = vunpack.c.h.b16 %v1432
      %v1604 = vunpack.c.l.b16 %v1433
      %v1605 = vunpack.c.h.b16 %v1433
      %v1606 = vunpack.c.l.b16 %v1434
      %v1607 = vunpack.c.h.b16 %v1434
      %v1608 = vunpack.c.l.b16 %v1435
      %v1609 = vunpack.c.h.b16 %v1435
      %v1610 = vunpack.c.l.b16 %v1436
      %v1611 = vunpack.c.h.b16 %v1436
      %v1612 = vunpack.c.l.b16 %v1437
      %v1613 = vunpack.c.h.b16 %v1437
      %v1614 = vunpack.c.l.b16 %v1438
      %v1615 = vunpack.c.h.b16 %v1438
      %v1616 = vunpack.c.l.b16 %v1439
      %v1617 = vunpack.c.h.b16 %v1439
      %v1618 = vunpack.c.l.b16 %v1440
      %v1619 = vunpack.c.h.b16 %v1440
      %v1620 = vunpack.c.l.b16 %v1441
      %v1621 = vunpack.c.h.b16 %v1441
      %v1622 = vunpack.c.l.b16 %v1442
      %v1623 = vunpack.c.h.b16 %v1442
      %v1624 = vunpack.c.l.b16 %v1443
      %v1625 = vunpack.c.h.b16 %v1443
      %v1626 = vunpack.c.l.b16 %v1444
      %v1627 = vunpack.c.h.b16 %v1444
      %v1628 = vunpack.c.l.b16 %v1445
      %v1629 = vunpack.c.h.b16 %v1445
      %v1630 = vunpack.c.l.b16 %v1446
      %v1631 = vunpack.c.h.b16 %v1446
      %v1632 = vunpack.c.l.b16 %v1447
      %v1633 = vunpack.c.h.b16 %v1447
      %v1634 = vunpack.c.l.b16 %v1448
      %v1635 = vunpack.c.h.b16 %v1448
      %v1636 = vunpack.c.l.b16 %v1449
      %v1637 = vunpack.c.h.b16 %v1449
      %v1638 = vunpack.c.l.b16 %v1450
      %v1639 = vunpack.c.h.b16 %v1450
      %v1640 = vunpack.c.l.b16 %v1451
      %v1641 = vunpack.c.h.b16 %v1451
      %v1642 = vunpack.c.l.b16 %v1452
      %v1643 = vunpack.c.h.b16 %v1452
      %v1644 = vunpack.c.l.b16 %v1453
      %v1645 = vunpack.c.h.b16 %v1453
      %v1646 = vpack.c.b16 %v1518, %v1518
      %v1647 = vpack.c.b16 %v1519, %v1519
      %v1648 = vpack.c.b16 %v1520, %v1520
      %v1649 = vpack.c.b16 %v1521, %v1521
      %v1650 = vpack.c.b16 %v1522, %v1522
      %v1651 = vpack.c.b16 %v1523, %v1523
      %v1652 = vpack.c.b16 %v1524, %v1524
      %v1653 = vpack.c.b16 %v1525, %v1525
      %v1654 = vpack.c.b16 %v1526, %v1526
      %v1655 = vpack.c.b16 %v1527, %v1527
      %v1656 = vpack.c.b16 %v1528, %v1528
      %v1657 = vpack.c.b16 %v1529, %v1529
      %v1658 = vpack.c.b16 %v1530, %v1530
      %v1659 = vpack.c.b16 %v1531, %v1531
      %v1660 = vpack.c.b16 %v1532, %v1532
      %v1661 = vpack.c.b16 %v1533, %v1533
      %v1662 = vpack.c.b16 %v1534, %v1534
      %v1663 = vpack.c.b16 %v1535, %v1535
      %v1664 = vpack.c.b16 %v1536, %v1536
      %v1665 = vpack.c.b16 %v1537, %v1537
      %v1666 = vpack.c.b16 %v1538, %v1538
      %v1667 = vpack.c.b16 %v1539, %v1539
      %v1668 = vpack.c.b16 %v1540, %v1540
      %v1669 = vpack.c.b16 %v1541, %v1541
      %v1670 = vpack.c.b16 %v1542, %v1542
      %v1671 = vpack.c.b16 %v1543, %v1543
      %v1672 = vpack.c.b16 %v1544, %v1544
      %v1673 = vpack.c.b16 %v1545, %v1545
      %v1674 = vpack.c.b16 %v1546, %v1546
      %v1675 = vpack.c.b16 %v1547, %v1547
      %v1676 = vpack.c.b16 %v1548, %v1548
      %v1677 = vpack.c.b16 %v1549, %v1549
      %v1678 = vpack.c.b16 %v1550, %v1550
      %v1679 = vpack.c.b16 %v1551, %v1551
      %v1680 = vpack.c.b16 %v1552, %v1552
      %v1681 = vpack.c.b16 %v1553, %v1553
      %v1682 = vpack.c.b16 %v1554, %v1554
      %v1683 = vpack.c.b16 %v1555, %v1555
      %v1684 = vpack.c.b16 %v1556, %v1556
      %v1685 = vpack.c.b16 %v1557, %v1557
      %v1686 = vpack.c.b16 %v1558, %v1558
      %v1687 = vpack.c.b16 %v1559, %v1559
      %v1688 = vpack.c.b16 %v1560, %v1560
      %v1689 = vpack.c.b16 %v1561, %v1561
      %v1690 = vpack.c.b16 %v1562, %v1562
      %v1691 = vpack.c.b16 %v1563, %v1563
      %v1692 = vpack.c.b16 %v1564, %v1564
      %v1693 = vpack.c.b16 %v1565, %v1565
      %v1694 = vpack.c.b16 %v1566, %v1566
      %v1695 = vpack.c.b16 %v1567, %v1567
      %v1696 = vpack.c.b16 %v1568, %v1568
      %v1697 = vpack.c.b16 %v1569, %v1569
      %v1698 = vpack.c.b16 %v1570, %v1570
      %v1699 = vpack.c.b16 %v1571, %v1571
      %v1700 = vpack.c.b16 %v1572, %v1572
      %v1701 = vpack.c.b16 %v1573, %v1573
      %v1702 = vpack.c.b16 %v1574, %v1574
      %v1703 = vpack.c.b16 %v1575, %v1575
      %v1704 = vpack.c.b16 %v1576, %v1576
      %v1705 = vpack.c.b16 %v1577, %v1577
      %v1706 = vpack.c.b16 %v1578, %v1578
      %v1707 = vpack.c.b16 %v1579, %v1579
      %v1708 = vpack.c.b16 %v1580, %v1580
      %v1709 = vpack.c.b16 %v1581, %v1581
      %v1710 = vpack.c.b16 %v1582, %v1582
      %v1711 = vpack.c.b16 %v1583, %v1583
      %v1712 = vpack.c.b16 %v1584, %v1584
      %v1713 = vpack.c.b16 %v1585, %v1585
      %v1714 = vpack.c.b16 %v1586, %v1586
      %v1715 = vpack.c.b16 %v1587, %v1587
      %v1716 = vpack.c.b16 %v1588, %v1588
      %v1717 = vpack.c.b16 %v1589, %v1589
      %v1718 = vpack.c.b16 %v1590, %v1590
      %v1719 = vpack.c.b16 %v1591, %v1591
      %v1720 = vpack.c.b16 %v1592, %v1592
      %v1721 = vpack.c.b16 %v1593, %v1593
      %v1722 = vpack.c.b16 %v1594, %v1594
      %v1723 = vpack.c.b16 %v1595, %v1595
      %v1724 = vpack.c.b16 %v1596, %v1596
      %v1725 = vpack.c.b16 %v1597, %v1597
      %v1726 = vpack.c.b16 %v1598, %v1598
      %v1727 = vpack.c.b16 %v1599, %v1599
      %v1728 = vpack.c.b16 %v1600, %v1600
      %v1729 = vpack.c.b16 %v1601, %v1601
      %v1730 = vpack.c.b16 %v1602, %v1602
      %v1731 = vpack.c.b16 %v1603, %v1603
      %v1732 = vpack.c.b16 %v1604, %v1604
      %v1733 = vpack.c.b16 %v1605, %v1605
      %v1734 = vpack.c.b16 %v1606, %v1606
      %v1735 = vpack.c.b16 %v1607, %v1607
      %v1736 = vpack.c.b16 %v1608, %v1608
      %v1737 = vpack.c.b16 %v1609, %v1609
      %v1738 = vpack.c.b16 %v1610, %v1610
      %v1739 = vpack.c.b16 %v1611, %v1611
      %v1740 = vpack.c.b16 %v1612, %v1612
      %v1741 = vpack.c.b16 %v1613, %v1613
      %v1742 = vpack.c.b16 %v1614, %v1614
      %v1743 = vpack.c.b16 %v1615, %v1615
      %v1744 = vpack.c.b16 %v1616, %v1616
      %v1745 = vpack.c.b16 %v1617, %v1617
      %v1746 = vpack.c.b16 %v1618, %v1618
      %v1747 = vpack.c.b16 %v1619, %v1619
      %v1748 = vpack.c.b16 %v1620, %v1620
      %v1749 = vpack.c.b16 %v1621, %v1621
      %v1750 = vpack.c.b16 %v1622, %v1622
      %v1751 = vpack.c.b16 %v1623, %v1623
      %v1752 = vpack.c.b16 %v1624, %v1624
      %v1753 = vpack.c.b16 %v1625, %v1625
      %v1754 = vpack.c.b16 %v1626, %v1626
      %v1755 = vpack.c.b16 %v1627, %v1627
      %v1756 = vpack.c.b16 %v1628, %v1628
      %v1757 = vpack.c.b16 %v1629, %v1629
      %v1758 = vpack.c.b16 %v1630, %v1630
      %v1759 = vpack.c.b16 %v1631, %v1631
      %v1760 = vpack.c.b16 %v1632, %v1632
      %v1761 = vpack.c.b16 %v1633, %v1633
      %v1762 = vpack.c.b16 %v1634, %v1634
      %v1763 = vpack.c.b16 %v1635, %v1635
      %v1764 = vpack.c.b16 %v1636, %v1636
      %v1765 = vpack.c.b16 %v1637, %v1637
      %v1766 = vpack.c.b16 %v1638, %v1638
      %v1767 = vpack.c.b16 %v1639, %v1639
      %v1768 = vpack.c.b16 %v1640, %v1640
      %v1769 = vpack.c.b16 %v1641, %v1641
      %v1770 = vpack.c.b16 %v1642, %v1642
      %v1771 = vpack.c.b16 %v1643, %v1643
      %v1772 = vpack.c.b16 %v1644, %v1644
      %v1773 = vpack.c.b16 %v1645, %v1645
      %vm1902 = vcmask 257024
      %1903 = vst.msk [vmem:[%s172] sm:$0xf] %vm1902, %v1646
      %1904 = vst.msk [vmem:[%s172 + $0x4] sm:$0xf] %vm1902, %v1647
      %1905 = vst.msk [vmem:[%s172 + $0x8] sm:$0xf] %vm1902, %v1648
      %1906 = vst.msk [vmem:[%s172 + $0xc] sm:$0xf] %vm1902, %v1649
      %1907 = vst.msk [vmem:[%s172 + $0x10] sm:$0xf] %vm1902, %v1650
      %1908 = vst.msk [vmem:[%s172 + $0x14] sm:$0xf] %vm1902, %v1651
      %1909 = vst.msk [vmem:[%s172 + $0x18] sm:$0xf] %vm1902, %v1652
      %1910 = vst.msk [vmem:[%s172 + $0x1c] sm:$0xf] %vm1902, %v1653
      %1911 = vst.msk [vmem:[%s172 + $0x20] sm:$0xf] %vm1902, %v1654
      %1912 = vst.msk [vmem:[%s172 + $0x24] sm:$0xf] %vm1902, %v1655
      %1913 = vst.msk [vmem:[%s172 + $0x28] sm:$0xf] %vm1902, %v1656
      %1914 = vst.msk [vmem:[%s172 + $0x2c] sm:$0xf] %vm1902, %v1657
      %1915 = vst.msk [vmem:[%s172 + $0x30] sm:$0xf] %vm1902, %v1658
      %1916 = vst.msk [vmem:[%s172 + $0x34] sm:$0xf] %vm1902, %v1659
      %1917 = vst.msk [vmem:[%s172 + $0x38] sm:$0xf] %vm1902, %v1660
      %1918 = vst.msk [vmem:[%s172 + $0x3c] sm:$0xf] %vm1902, %v1661
      %1919 = vst.msk [vmem:[%s172 + $0x40] sm:$0xf] %vm1902, %v1662
      %1920 = vst.msk [vmem:[%s172 + $0x44] sm:$0xf] %vm1902, %v1663
      %1921 = vst.msk [vmem:[%s172 + $0x48] sm:$0xf] %vm1902, %v1664
      %1922 = vst.msk [vmem:[%s172 + $0x4c] sm:$0xf] %vm1902, %v1665
      %1923 = vst.msk [vmem:[%s172 + $0x50] sm:$0xf] %vm1902, %v1666
      %1924 = vst.msk [vmem:[%s172 + $0x54] sm:$0xf] %vm1902, %v1667
      %1925 = vst.msk [vmem:[%s172 + $0x58] sm:$0xf] %vm1902, %v1668
      %1926 = vst.msk [vmem:[%s172 + $0x5c] sm:$0xf] %vm1902, %v1669
      %1927 = vst.msk [vmem:[%s172 + $0x60] sm:$0xf] %vm1902, %v1670
      %1928 = vst.msk [vmem:[%s172 + $0x64] sm:$0xf] %vm1902, %v1671
      %1929 = vst.msk [vmem:[%s172 + $0x68] sm:$0xf] %vm1902, %v1672
      %1930 = vst.msk [vmem:[%s172 + $0x6c] sm:$0xf] %vm1902, %v1673
      %1931 = vst.msk [vmem:[%s172 + $0x70] sm:$0xf] %vm1902, %v1674
      %1932 = vst.msk [vmem:[%s172 + $0x74] sm:$0xf] %vm1902, %v1675
      %1933 = vst.msk [vmem:[%s172 + $0x78] sm:$0xf] %vm1902, %v1676
      %1934 = vst.msk [vmem:[%s172 + $0x7c] sm:$0xf] %vm1902, %v1677
      %1935 = vst.msk [vmem:[%s172 + $0x80] sm:$0xf] %vm1902, %v1678
      %1936 = vst.msk [vmem:[%s172 + $0x84] sm:$0xf] %vm1902, %v1679
      %1937 = vst.msk [vmem:[%s172 + $0x88] sm:$0xf] %vm1902, %v1680
      %1938 = vst.msk [vmem:[%s172 + $0x8c] sm:$0xf] %vm1902, %v1681
      %1939 = vst.msk [vmem:[%s172 + $0x90] sm:$0xf] %vm1902, %v1682
      %1940 = vst.msk [vmem:[%s172 + $0x94] sm:$0xf] %vm1902, %v1683
      %1941 = vst.msk [vmem:[%s172 + $0x98] sm:$0xf] %vm1902, %v1684
      %1942 = vst.msk [vmem:[%s172 + $0x9c] sm:$0xf] %vm1902, %v1685
      %1943 = vst.msk [vmem:[%s172 + $0xa0] sm:$0xf] %vm1902, %v1686
      %1944 = vst.msk [vmem:[%s172 + $0xa4] sm:$0xf] %vm1902, %v1687
      %1945 = vst.msk [vmem:[%s172 + $0xa8] sm:$0xf] %vm1902, %v1688
      %1946 = vst.msk [vmem:[%s172 + $0xac] sm:$0xf] %vm1902, %v1689
      %1947 = vst.msk [vmem:[%s172 + $0xb0] sm:$0xf] %vm1902, %v1690
      %1948 = vst.msk [vmem:[%s172 + $0xb4] sm:$0xf] %vm1902, %v1691
      %1949 = vst.msk [vmem:[%s172 + $0xb8] sm:$0xf] %vm1902, %v1692
      %1950 = vst.msk [vmem:[%s172 + $0xbc] sm:$0xf] %vm1902, %v1693
      %1951 = vst.msk [vmem:[%s172 + $0xc0] sm:$0xf] %vm1902, %v1694
      %1952 = vst.msk [vmem:[%s172 + $0xc4] sm:$0xf] %vm1902, %v1695
      %1953 = vst.msk [vmem:[%s172 + $0xc8] sm:$0xf] %vm1902, %v1696
      %1954 = vst.msk [vmem:[%s172 + $0xcc] sm:$0xf] %vm1902, %v1697
      %1955 = vst.msk [vmem:[%s172 + $0xd0] sm:$0xf] %vm1902, %v1698
      %1956 = vst.msk [vmem:[%s172 + $0xd4] sm:$0xf] %vm1902, %v1699
      %1957 = vst.msk [vmem:[%s172 + $0xd8] sm:$0xf] %vm1902, %v1700
      %1958 = vst.msk [vmem:[%s172 + $0xdc] sm:$0xf] %vm1902, %v1701
      %1959 = vst.msk [vmem:[%s172 + $0xe0] sm:$0xf] %vm1902, %v1702
      %1960 = vst.msk [vmem:[%s172 + $0xe4] sm:$0xf] %vm1902, %v1703
      %1961 = vst.msk [vmem:[%s172 + $0xe8] sm:$0xf] %vm1902, %v1704
      %1962 = vst.msk [vmem:[%s172 + $0xec] sm:$0xf] %vm1902, %v1705
      %1963 = vst.msk [vmem:[%s172 + $0xf0] sm:$0xf] %vm1902, %v1706
      %1964 = vst.msk [vmem:[%s172 + $0xf4] sm:$0xf] %vm1902, %v1707
      %1965 = vst.msk [vmem:[%s172 + $0xf8] sm:$0xf] %vm1902, %v1708
      %1966 = vst.msk [vmem:[%s172 + $0xfc] sm:$0xf] %vm1902, %v1709
      %1967 = vst.msk [vmem:[%s172 + $0x100] sm:$0xf] %vm1902, %v1710
      %1968 = vst.msk [vmem:[%s172 + $0x104] sm:$0xf] %vm1902, %v1711
      %1969 = vst.msk [vmem:[%s172 + $0x108] sm:$0xf] %vm1902, %v1712
      %1970 = vst.msk [vmem:[%s172 + $0x10c] sm:$0xf] %vm1902, %v1713
      %1971 = vst.msk [vmem:[%s172 + $0x110] sm:$0xf] %vm1902, %v1714
      %1972 = vst.msk [vmem:[%s172 + $0x114] sm:$0xf] %vm1902, %v1715
      %1973 = vst.msk [vmem:[%s172 + $0x118] sm:$0xf] %vm1902, %v1716
      %1974 = vst.msk [vmem:[%s172 + $0x11c] sm:$0xf] %vm1902, %v1717
      %1975 = vst.msk [vmem:[%s172 + $0x120] sm:$0xf] %vm1902, %v1718
      %1976 = vst.msk [vmem:[%s172 + $0x124] sm:$0xf] %vm1902, %v1719
      %1977 = vst.msk [vmem:[%s172 + $0x128] sm:$0xf] %vm1902, %v1720
      %1978 = vst.msk [vmem:[%s172 + $0x12c] sm:$0xf] %vm1902, %v1721
      %1979 = vst.msk [vmem:[%s172 + $0x130] sm:$0xf] %vm1902, %v1722
      %1980 = vst.msk [vmem:[%s172 + $0x134] sm:$0xf] %vm1902, %v1723
      %1981 = vst.msk [vmem:[%s172 + $0x138] sm:$0xf] %vm1902, %v1724
      %1982 = vst.msk [vmem:[%s172 + $0x13c] sm:$0xf] %vm1902, %v1725
      %1983 = vst.msk [vmem:[%s172 + $0x140] sm:$0xf] %vm1902, %v1726
      %1984 = vst.msk [vmem:[%s172 + $0x144] sm:$0xf] %vm1902, %v1727
      %1985 = vst.msk [vmem:[%s172 + $0x148] sm:$0xf] %vm1902, %v1728
      %1986 = vst.msk [vmem:[%s172 + $0x14c] sm:$0xf] %vm1902, %v1729
      %1987 = vst.msk [vmem:[%s172 + $0x150] sm:$0xf] %vm1902, %v1730
      %1988 = vst.msk [vmem:[%s172 + $0x154] sm:$0xf] %vm1902, %v1731
      %1989 = vst.msk [vmem:[%s172 + $0x158] sm:$0xf] %vm1902, %v1732
      %1990 = vst.msk [vmem:[%s172 + $0x15c] sm:$0xf] %vm1902, %v1733
      %1991 = vst.msk [vmem:[%s172 + $0x160] sm:$0xf] %vm1902, %v1734
      %1992 = vst.msk [vmem:[%s172 + $0x164] sm:$0xf] %vm1902, %v1735
      %1993 = vst.msk [vmem:[%s172 + $0x168] sm:$0xf] %vm1902, %v1736
      %1994 = vst.msk [vmem:[%s172 + $0x16c] sm:$0xf] %vm1902, %v1737
      %1995 = vst.msk [vmem:[%s172 + $0x170] sm:$0xf] %vm1902, %v1738
      %1996 = vst.msk [vmem:[%s172 + $0x174] sm:$0xf] %vm1902, %v1739
      %1997 = vst.msk [vmem:[%s172 + $0x178] sm:$0xf] %vm1902, %v1740
      %1998 = vst.msk [vmem:[%s172 + $0x17c] sm:$0xf] %vm1902, %v1741
      %1999 = vst.msk [vmem:[%s172 + $0x180] sm:$0xf] %vm1902, %v1742
      %2000 = vst.msk [vmem:[%s172 + $0x184] sm:$0xf] %vm1902, %v1743
      %2001 = vst.msk [vmem:[%s172 + $0x188] sm:$0xf] %vm1902, %v1744
      %2002 = vst.msk [vmem:[%s172 + $0x18c] sm:$0xf] %vm1902, %v1745
      %2003 = vst.msk [vmem:[%s172 + $0x190] sm:$0xf] %vm1902, %v1746
      %2004 = vst.msk [vmem:[%s172 + $0x194] sm:$0xf] %vm1902, %v1747
      %2005 = vst.msk [vmem:[%s172 + $0x198] sm:$0xf] %vm1902, %v1748
      %2006 = vst.msk [vmem:[%s172 + $0x19c] sm:$0xf] %vm1902, %v1749
      %2007 = vst.msk [vmem:[%s172 + $0x1a0] sm:$0xf] %vm1902, %v1750
      %2008 = vst.msk [vmem:[%s172 + $0x1a4] sm:$0xf] %vm1902, %v1751
      %2009 = vst.msk [vmem:[%s172 + $0x1a8] sm:$0xf] %vm1902, %v1752
      %2010 = vst.msk [vmem:[%s172 + $0x1ac] sm:$0xf] %vm1902, %v1753
      %2011 = vst.msk [vmem:[%s172 + $0x1b0] sm:$0xf] %vm1902, %v1754
      %2012 = vst.msk [vmem:[%s172 + $0x1b4] sm:$0xf] %vm1902, %v1755
      %2013 = vst.msk [vmem:[%s172 + $0x1b8] sm:$0xf] %vm1902, %v1756
      %2014 = vst.msk [vmem:[%s172 + $0x1bc] sm:$0xf] %vm1902, %v1757
      %2015 = vst.msk [vmem:[%s172 + $0x1c0] sm:$0xf] %vm1902, %v1758
      %2016 = vst.msk [vmem:[%s172 + $0x1c4] sm:$0xf] %vm1902, %v1759
      %2017 = vst.msk [vmem:[%s172 + $0x1c8] sm:$0xf] %vm1902, %v1760
      %2018 = vst.msk [vmem:[%s172 + $0x1cc] sm:$0xf] %vm1902, %v1761
      %2019 = vst.msk [vmem:[%s172 + $0x1d0] sm:$0xf] %vm1902, %v1762
      %2020 = vst.msk [vmem:[%s172 + $0x1d4] sm:$0xf] %vm1902, %v1763
      %2021 = vst.msk [vmem:[%s172 + $0x1d8] sm:$0xf] %vm1902, %v1764
      %2022 = vst.msk [vmem:[%s172 + $0x1dc] sm:$0xf] %vm1902, %v1765
      %2023 = vst.msk [vmem:[%s172 + $0x1e0] sm:$0xf] %vm1902, %v1766
      %2024 = vst.msk [vmem:[%s172 + $0x1e4] sm:$0xf] %vm1902, %v1767
      %2025 = vst.msk [vmem:[%s172 + $0x1e8] sm:$0xf] %vm1902, %v1768
      %2026 = vst.msk [vmem:[%s172 + $0x1ec] sm:$0xf] %vm1902, %v1769
      %2027 = vst.msk [vmem:[%s172 + $0x1f0] sm:$0xf] %vm1902, %v1770
      %2028 = vst.msk [vmem:[%s172 + $0x1f4] sm:$0xf] %vm1902, %v1771
      %2029 = vst.msk [vmem:[%s172 + $0x1f8] sm:$0xf] %vm1902, %v1772
      %2030 = vst.msk [vmem:[%s172 + $0x1fc] sm:$0xf] %vm1902, %v1773
      %s2031 = smul.u32 128, %s14
      %p2032 = scmp.lt.s32.totalorder %s2031, 255
      %s2033 = scalar_select %p2032, %s2031, 255
      %s2034 = smul.addr %s2033, 4
      %s2035 = scalar_lea.vmem %s3, %s2034
      // Predicated region
      $region33: #{dgr_cnn_forward.3} parent=31 // pred_check
        %p2036 = pneg %p100
      $region34: #{dgr_cnn_forward.3} parent=31 // pred_check_branch
        %2038 = sbr.rel (%p2036) target = $region36
      $region35: #{dgr_cnn_forward.3} parent=31 // pred_region
        %s2039 = smul.u32 128, %s14
      $region36: #{dgr_cnn_forward.3} parent=31 // pred_fallthru
        _
    $region32: #{dgr_cnn_forward.3} parent=5 // pred_fallthru
      _
    %p2040 = scmp.le.s32.totalorder 2, %s9
    // Predicated region
    $region37: #{dgr_cnn_forward.3} parent=5 // pred_check
      %p2041 = pneg %p2040
    $region38: #{dgr_cnn_forward.3} parent=5 // pred_check_branch
      %2043 = sbr.rel (%p2041) target = $region40
    $region39: #{dgr_cnn_forward.3} parent=5 // pred_region
      %s2044 = ssub.s32 %s9, 2
      // Predicated region
      $region41: #{dgr_cnn_forward.3} parent=39 // pred_check
        %p2045 = pneg %p106
      $region42: #{dgr_cnn_forward.3} parent=39 // pred_check_branch
        %2047 = sbr.rel (%p2045) target = $region44
      $region43: #{dgr_cnn_forward.3} parent=39 // pred_region
        %s2048 = smul.u32 128, %s15
        %p2049 = scmp.lt.s32.totalorder %s2048, 255
        %s2050 = scalar_select %p2049, %s2048, 255
        %s2051 = smul.addr %s2050, 4
        %s2052 = scalar_lea.vmem %s3, %s2051
      $region44: #{dgr_cnn_forward.3} parent=39 // pred_fallthru
        _
    $region40: #{dgr_cnn_forward.3} parent=5 // pred_fallthru
      _
  $region6: #{dgr_cnn_forward.3} parent=0 // loop_footer
    %s13 = sadd.s32 1, %s9
  $region7: #{dgr_cnn_forward.3} parent=0 // loop_footer_branch
    %8 = sbr.rel target = $region3
  $region8: #{dgr_cnn_forward.3} parent=0 // loop_exit
    _

// kernel: dgr_cnn_forward.4
$region0: #{dgr_cnn_forward.4}
  #allocation0 [shape = 'u32[]', space=smem, size = 0x4, offset = 0x4, fixed_abs, tag = 'smem constant byte address 0x4 - core index']
  #allocation1 [shape = 'u32[144,128]{1,0:T(1,128)}', space=vmem, size = 0x12000, scoped, tag = 'internal scratch']
  %s0 = inlined_call_operand.vmem [shape: bf16[512,288], index: 0, kind: input, shape index: {}]
  %s1 = inlined_call_operand.vmem [shape: bf16[288,64], index: 1, kind: input, shape index: {}]
  %s2 = inlined_call_operand.vmem [shape: f32[1,64], index: 2, kind: input, shape index: {}]
  %s3 = inlined_call_operand.vmem [shape: bf16[512,64], index: 3, kind: output, shape index: {0}]
  %s4 = inlined_call_operand.vmem [shape: f32[1,1,64], index: 4, kind: output, shape index: {1}]
  %s5 = inlined_call_operand.vmem [shape: f32[1,1,64], index: 5, kind: output, shape index: {2}]
  %6 = xla_tuple %s3, %s4, %s5
  %s7 = sld [smem:[#allocation0]]
  $region38: #{dgr_cnn_forward.4} parent=0
    _
  %s9 = ssub.s32 1, %s7
  %s10 = scalar_select 0, %s9, %s7
  // Predicated region
  $region2: #{dgr_cnn_forward.4} parent=0 // pred_check
    _
  $region3: #{dgr_cnn_forward.4} parent=0 // pred_check_branch
    %12 = sbr.rel (0) target = $region5
  $region4: #{dgr_cnn_forward.4} parent=0 // pred_region
    _
  $region5: #{dgr_cnn_forward.4} parent=0 // pred_fallthru
    _
  // Predicated region
  $region6: #{dgr_cnn_forward.4} parent=0 // pred_check
    _
  $region7: #{dgr_cnn_forward.4} parent=0 // pred_check_branch
    %14 = sbr.rel (0) target = $region9
  $region8: #{dgr_cnn_forward.4} parent=0 // pred_region
    _
  $region9: #{dgr_cnn_forward.4} parent=0 // pred_fallthru
    _
  // Predicated region
  $region10: #{dgr_cnn_forward.4} parent=0 // pred_check
    _
  $region11: #{dgr_cnn_forward.4} parent=0 // pred_check_branch
    %16 = sbr.rel (0) target = $region13
  $region12: #{dgr_cnn_forward.4} parent=0 // pred_region
    _
  $region13: #{dgr_cnn_forward.4} parent=0 // pred_fallthru
    _
  %v18 = vld [vmem:[%s0] sm:$0xff]
  %v19 = vld [vmem:[%s0 + $0x8] sm:$0xf]
  %v20 = vld [vmem:[%s0 + $0xc] sm:$0xff]
  %v21 = vld [vmem:[%s0 + $0x14] sm:$0xf]
  %v22 = vld [vmem:[%s0 + $0x18] sm:$0xff]
  %v23 = vld [vmem:[%s0 + $0x20] sm:$0xf]
  %v24 = vld [vmem:[%s0 + $0x24] sm:$0xff]
  %v25 = vld [vmem:[%s0 + $0x2c] sm:$0xf]
  %v26 = vld [vmem:[%s0 + $0x30] sm:$0xff]
  %v27 = vld [vmem:[%s0 + $0x38] sm:$0xf]
  %v28 = vld [vmem:[%s0 + $0x3c] sm:$0xff]
  %v29 = vld [vmem:[%s0 + $0x44] sm:$0xf]
  %v30 = vld [vmem:[%s0 + $0x48] sm:$0xff]
  %v31 = vld [vmem:[%s0 + $0x50] sm:$0xf]
  %v32 = vld [vmem:[%s0 + $0x54] sm:$0xff]
  %v33 = vld [vmem:[%s0 + $0x5c] sm:$0xf]
  %v34 = vld [vmem:[%s0 + $0x60] sm:$0xff]
  %v35 = vld [vmem:[%s0 + $0x68] sm:$0xf]
  %v36 = vld [vmem:[%s0 + $0x6c] sm:$0xff]
  %v37 = vld [vmem:[%s0 + $0x74] sm:$0xf]
  %v38 = vld [vmem:[%s0 + $0x78] sm:$0xff]
  %v39 = vld [vmem:[%s0 + $0x80] sm:$0xf]
  %v40 = vld [vmem:[%s0 + $0x84] sm:$0xff]
  %v41 = vld [vmem:[%s0 + $0x8c] sm:$0xf]
  %v42 = vld [vmem:[%s0 + $0x90] sm:$0xff]
  %v43 = vld [vmem:[%s0 + $0x98] sm:$0xf]
  %v44 = vld [vmem:[%s0 + $0x9c] sm:$0xff]
  %v45 = vld [vmem:[%s0 + $0xa4] sm:$0xf]
  %v46 = vld [vmem:[%s0 + $0xa8] sm:$0xff]
  %v47 = vld [vmem:[%s0 + $0xb0] sm:$0xf]
  %v48 = vld [vmem:[%s0 + $0xb4] sm:$0xff]
  %v49 = vld [vmem:[%s0 + $0xbc] sm:$0xf]
  %v50 = vld [vmem:[%s0 + $0xc0] sm:$0xff]
  %v51 = vld [vmem:[%s0 + $0xc8] sm:$0xf]
  %v52 = vld [vmem:[%s0 + $0xcc] sm:$0xff]
  %v53 = vld [vmem:[%s0 + $0xd4] sm:$0xf]
  %v54 = vld [vmem:[%s0 + $0xd8] sm:$0xff]
  %v55 = vld [vmem:[%s0 + $0xe0] sm:$0xf]
  %v56 = vld [vmem:[%s0 + $0xe4] sm:$0xff]
  %v57 = vld [vmem:[%s0 + $0xec] sm:$0xf]
  %v58 = vld [vmem:[%s0 + $0xf0] sm:$0xff]
  %v59 = vld [vmem:[%s0 + $0xf8] sm:$0xf]
  %v60 = vld [vmem:[%s0 + $0xfc] sm:$0xff]
  %v61 = vld [vmem:[%s0 + $0x104] sm:$0xf]
  %v62 = vld [vmem:[%s0 + $0x108] sm:$0xff]
  %v63 = vld [vmem:[%s0 + $0x110] sm:$0xf]
  %v64 = vld [vmem:[%s0 + $0x114] sm:$0xff]
  %v65 = vld [vmem:[%s0 + $0x11c] sm:$0xf]
  %v66 = vld [vmem:[%s0 + $0x120] sm:$0xff]
  %v67 = vld [vmem:[%s0 + $0x128] sm:$0xf]
  %v68 = vld [vmem:[%s0 + $0x12c] sm:$0xff]
  %v69 = vld [vmem:[%s0 + $0x134] sm:$0xf]
  %v70 = vld [vmem:[%s0 + $0x138] sm:$0xff]
  %v71 = vld [vmem:[%s0 + $0x140] sm:$0xf]
  %v72 = vld [vmem:[%s0 + $0x144] sm:$0xff]
  %v73 = vld [vmem:[%s0 + $0x14c] sm:$0xf]
  %v74 = vld [vmem:[%s0 + $0x150] sm:$0xff]
  %v75 = vld [vmem:[%s0 + $0x158] sm:$0xf]
  %v76 = vld [vmem:[%s0 + $0x15c] sm:$0xff]
  %v77 = vld [vmem:[%s0 + $0x164] sm:$0xf]
  %v78 = vld [vmem:[%s0 + $0x168] sm:$0xff]
  %v79 = vld [vmem:[%s0 + $0x170] sm:$0xf]
  %v80 = vld [vmem:[%s0 + $0x174] sm:$0xff]
  %v81 = vld [vmem:[%s0 + $0x17c] sm:$0xf]
  %v82 = vld [vmem:[%s0 + $0x180] sm:$0xff]
  %v83 = vld [vmem:[%s0 + $0x188] sm:$0xf]
  %v84 = vld [vmem:[%s0 + $0x18c] sm:$0xff]
  %v85 = vld [vmem:[%s0 + $0x194] sm:$0xf]
  %v86 = vld [vmem:[%s0 + $0x198] sm:$0xff]
  %v87 = vld [vmem:[%s0 + $0x1a0] sm:$0xf]
  %v88 = vld [vmem:[%s0 + $0x1a4] sm:$0xff]
  %v89 = vld [vmem:[%s0 + $0x1ac] sm:$0xf]
  %v90 = vld [vmem:[%s0 + $0x1b0] sm:$0xff]
  %v91 = vld [vmem:[%s0 + $0x1b8] sm:$0xf]
  %v92 = vld [vmem:[%s0 + $0x1bc] sm:$0xff]
  %v93 = vld [vmem:[%s0 + $0x1c4] sm:$0xf]
  %v94 = vld [vmem:[%s0 + $0x1c8] sm:$0xff]
  %v95 = vld [vmem:[%s0 + $0x1d0] sm:$0xf]
  %v96 = vld [vmem:[%s0 + $0x1d4] sm:$0xff]
  %v97 = vld [vmem:[%s0 + $0x1dc] sm:$0xf]
  %v98 = vld [vmem:[%s0 + $0x1e0] sm:$0xff]
  %v99 = vld [vmem:[%s0 + $0x1e8] sm:$0xf]
  %v100 = vld [vmem:[%s0 + $0x1ec] sm:$0xff]
  %v101 = vld [vmem:[%s0 + $0x1f4] sm:$0xf]
  %v102 = vld [vmem:[%s0 + $0x1f8] sm:$0xff]
  %v103 = vld [vmem:[%s0 + $0x200] sm:$0xf]
  %v104 = vld [vmem:[%s0 + $0x204] sm:$0xff]
  %v105 = vld [vmem:[%s0 + $0x20c] sm:$0xf]
  %v106 = vld [vmem:[%s0 + $0x210] sm:$0xff]
  %v107 = vld [vmem:[%s0 + $0x218] sm:$0xf]
  %v108 = vld [vmem:[%s0 + $0x21c] sm:$0xff]
  %v109 = vld [vmem:[%s0 + $0x224] sm:$0xf]
  %v110 = vld [vmem:[%s0 + $0x228] sm:$0xff]
  %v111 = vld [vmem:[%s0 + $0x230] sm:$0xf]
  %v112 = vld [vmem:[%s0 + $0x234] sm:$0xff]
  %v113 = vld [vmem:[%s0 + $0x23c] sm:$0xf]
  %v114 = vld [vmem:[%s0 + $0x240] sm:$0xff]
  %v115 = vld [vmem:[%s0 + $0x248] sm:$0xf]
  %v116 = vld [vmem:[%s0 + $0x24c] sm:$0xff]
  %v117 = vld [vmem:[%s0 + $0x254] sm:$0xf]
  %v118 = vld [vmem:[%s0 + $0x258] sm:$0xff]
  %v119 = vld [vmem:[%s0 + $0x260] sm:$0xf]
  %v120 = vld [vmem:[%s0 + $0x264] sm:$0xff]
  %v121 = vld [vmem:[%s0 + $0x26c] sm:$0xf]
  %v122 = vld [vmem:[%s0 + $0x270] sm:$0xff]
  %v123 = vld [vmem:[%s0 + $0x278] sm:$0xf]
  %v124 = vld [vmem:[%s0 + $0x27c] sm:$0xff]
  %v125 = vld [vmem:[%s0 + $0x284] sm:$0xf]
  %v126 = vld [vmem:[%s0 + $0x288] sm:$0xff]
  %v127 = vld [vmem:[%s0 + $0x290] sm:$0xf]
  %v128 = vld [vmem:[%s0 + $0x294] sm:$0xff]
  %v129 = vld [vmem:[%s0 + $0x29c] sm:$0xf]
  %v130 = vld [vmem:[%s0 + $0x2a0] sm:$0xff]
  %v131 = vld [vmem:[%s0 + $0x2a8] sm:$0xf]
  %v132 = vld [vmem:[%s0 + $0x2ac] sm:$0xff]
  %v133 = vld [vmem:[%s0 + $0x2b4] sm:$0xf]
  %v134 = vld [vmem:[%s0 + $0x2b8] sm:$0xff]
  %v135 = vld [vmem:[%s0 + $0x2c0] sm:$0xf]
  %v136 = vld [vmem:[%s0 + $0x2c4] sm:$0xff]
  %v137 = vld [vmem:[%s0 + $0x2cc] sm:$0xf]
  %v138 = vld [vmem:[%s0 + $0x2d0] sm:$0xff]
  %v139 = vld [vmem:[%s0 + $0x2d8] sm:$0xf]
  %v140 = vld [vmem:[%s0 + $0x2dc] sm:$0xff]
  %v141 = vld [vmem:[%s0 + $0x2e4] sm:$0xf]
  %v142 = vld [vmem:[%s0 + $0x2e8] sm:$0xff]
  %v143 = vld [vmem:[%s0 + $0x2f0] sm:$0xf]
  %v144 = vld [vmem:[%s0 + $0x2f4] sm:$0xff]
  %v145 = vld [vmem:[%s0 + $0x2fc] sm:$0xf]
  %v146 = vld [vmem:[%s1] sm:$0xf]
  %v147 = vld [vmem:[%s1 + $0x4] sm:$0xf]
  %v148 = vld [vmem:[%s1 + $0x8] sm:$0xf]
  %v149 = vld [vmem:[%s1 + $0xc] sm:$0xf]
  %v150 = vld [vmem:[%s1 + $0x10] sm:$0xf]
  %v151 = vld [vmem:[%s1 + $0x14] sm:$0xf]
  %v152 = vld [vmem:[%s1 + $0x18] sm:$0xf]
  %v153 = vld [vmem:[%s1 + $0x1c] sm:$0xf]
  %v154 = vld [vmem:[%s1 + $0x20] sm:$0xf]
  %v155 = vld [vmem:[%s1 + $0x24] sm:$0xf]
  %v156 = vld [vmem:[%s1 + $0x28] sm:$0xf]
  %v157 = vld [vmem:[%s1 + $0x2c] sm:$0xf]
  %v158 = vld [vmem:[%s1 + $0x30] sm:$0xf]
  %v159 = vld [vmem:[%s1 + $0x34] sm:$0xf]
  %v160 = vld [vmem:[%s1 + $0x38] sm:$0xf]
  %v161 = vld [vmem:[%s1 + $0x3c] sm:$0xf]
  %v162 = vld [vmem:[%s1 + $0x40] sm:$0xf]
  %v163 = vld [vmem:[%s1 + $0x44] sm:$0xf]
  %v164 = vld [vmem:[%s1 + $0x48] sm:$0xf]
  %v165 = vld [vmem:[%s1 + $0x4c] sm:$0xf]
  %v166 = vld [vmem:[%s1 + $0x50] sm:$0xf]
  %v167 = vld [vmem:[%s1 + $0x54] sm:$0xf]
  %v168 = vld [vmem:[%s1 + $0x58] sm:$0xf]
  %v169 = vld [vmem:[%s1 + $0x5c] sm:$0xf]
  %v170 = vld [vmem:[%s1 + $0x60] sm:$0xf]
  %v171 = vld [vmem:[%s1 + $0x64] sm:$0xf]
  %v172 = vld [vmem:[%s1 + $0x68] sm:$0xf]
  %v173 = vld [vmem:[%s1 + $0x6c] sm:$0xf]
  %v174 = vld [vmem:[%s1 + $0x70] sm:$0xf]
  %v175 = vld [vmem:[%s1 + $0x74] sm:$0xf]
  %v176 = vld [vmem:[%s1 + $0x78] sm:$0xf]
  %v177 = vld [vmem:[%s1 + $0x7c] sm:$0xf]
  %v178 = vld [vmem:[%s1 + $0x80] sm:$0xf]
  %v179 = vld [vmem:[%s1 + $0x84] sm:$0xf]
  %v180 = vld [vmem:[%s1 + $0x88] sm:$0xf]
  %v181 = vld [vmem:[%s1 + $0x8c] sm:$0xf]
  %v182 = vld [vmem:[%s2] sm:$0x1]
  %v184 = vlaneseq
  %v185 = vshrl.u32 %v184, 7
  %v186 = vsub.s32 0, %v185
  %v187 = vrot.slane %v182, %v186
  %v317 = vunpack.c.l.b16 %v18
  %v318 = vunpack.c.h.b16 %v18
  %v319 = vunpack.c.l.b16 %v19
  %v320 = vunpack.c.l.b16 %v20
  %v321 = vunpack.c.h.b16 %v20
  %v322 = vunpack.c.l.b16 %v21
  %v323 = vunpack.c.l.b16 %v22
  %v324 = vunpack.c.h.b16 %v22
  %v325 = vunpack.c.l.b16 %v23
  %v326 = vunpack.c.l.b16 %v24
  %v327 = vunpack.c.h.b16 %v24
  %v328 = vunpack.c.l.b16 %v25
  %v329 = vunpack.c.l.b16 %v26
  %v330 = vunpack.c.h.b16 %v26
  %v331 = vunpack.c.l.b16 %v27
  %v332 = vunpack.c.l.b16 %v28
  %v333 = vunpack.c.h.b16 %v28
  %v334 = vunpack.c.l.b16 %v29
  %v335 = vunpack.c.l.b16 %v30
  %v336 = vunpack.c.h.b16 %v30
  %v337 = vunpack.c.l.b16 %v31
  %v338 = vunpack.c.l.b16 %v32
  %v339 = vunpack.c.h.b16 %v32
  %v340 = vunpack.c.l.b16 %v33
  %v341 = vunpack.c.l.b16 %v34
  %v342 = vunpack.c.h.b16 %v34
  %v343 = vunpack.c.l.b16 %v35
  %v344 = vunpack.c.l.b16 %v36
  %v345 = vunpack.c.h.b16 %v36
  %v346 = vunpack.c.l.b16 %v37
  %v347 = vunpack.c.l.b16 %v38
  %v348 = vunpack.c.h.b16 %v38
  %v349 = vunpack.c.l.b16 %v39
  %v350 = vunpack.c.l.b16 %v40
  %v351 = vunpack.c.h.b16 %v40
  %v352 = vunpack.c.l.b16 %v41
  %v353 = vunpack.c.l.b16 %v42
  %v354 = vunpack.c.h.b16 %v42
  %v355 = vunpack.c.l.b16 %v43
  %v356 = vunpack.c.l.b16 %v44
  %v357 = vunpack.c.h.b16 %v44
  %v358 = vunpack.c.l.b16 %v45
  %v359 = vunpack.c.l.b16 %v46
  %v360 = vunpack.c.h.b16 %v46
  %v361 = vunpack.c.l.b16 %v47
  %v362 = vunpack.c.l.b16 %v48
  %v363 = vunpack.c.h.b16 %v48
  %v364 = vunpack.c.l.b16 %v49
  %v365 = vunpack.c.l.b16 %v50
  %v366 = vunpack.c.h.b16 %v50
  %v367 = vunpack.c.l.b16 %v51
  %v368 = vunpack.c.l.b16 %v52
  %v369 = vunpack.c.h.b16 %v52
  %v370 = vunpack.c.l.b16 %v53
  %v371 = vunpack.c.l.b16 %v54
  %v372 = vunpack.c.h.b16 %v54
  %v373 = vunpack.c.l.b16 %v55
  %v374 = vunpack.c.l.b16 %v56
  %v375 = vunpack.c.h.b16 %v56
  %v376 = vunpack.c.l.b16 %v57
  %v377 = vunpack.c.l.b16 %v58
  %v378 = vunpack.c.h.b16 %v58
  %v379 = vunpack.c.l.b16 %v59
  %v380 = vunpack.c.l.b16 %v60
  %v381 = vunpack.c.h.b16 %v60
  %v382 = vunpack.c.l.b16 %v61
  %v383 = vunpack.c.l.b16 %v62
  %v384 = vunpack.c.h.b16 %v62
  %v385 = vunpack.c.l.b16 %v63
  %v386 = vunpack.c.l.b16 %v64
  %v387 = vunpack.c.h.b16 %v64
  %v388 = vunpack.c.l.b16 %v65
  %v389 = vunpack.c.l.b16 %v66
  %v390 = vunpack.c.h.b16 %v66
  %v391 = vunpack.c.l.b16 %v67
  %v392 = vunpack.c.l.b16 %v68
  %v393 = vunpack.c.h.b16 %v68
  %v394 = vunpack.c.l.b16 %v69
  %v395 = vunpack.c.l.b16 %v70
  %v396 = vunpack.c.h.b16 %v70
  %v397 = vunpack.c.l.b16 %v71
  %v398 = vunpack.c.l.b16 %v72
  %v399 = vunpack.c.h.b16 %v72
  %v400 = vunpack.c.l.b16 %v73
  %v401 = vunpack.c.l.b16 %v74
  %v402 = vunpack.c.h.b16 %v74
  %v403 = vunpack.c.l.b16 %v75
  %v404 = vunpack.c.l.b16 %v76
  %v405 = vunpack.c.h.b16 %v76
  %v406 = vunpack.c.l.b16 %v77
  %v407 = vunpack.c.l.b16 %v78
  %v408 = vunpack.c.h.b16 %v78
  %v409 = vunpack.c.l.b16 %v79
  %v410 = vunpack.c.l.b16 %v80
  %v411 = vunpack.c.h.b16 %v80
  %v412 = vunpack.c.l.b16 %v81
  %v413 = vunpack.c.l.b16 %v82
  %v414 = vunpack.c.h.b16 %v82
  %v415 = vunpack.c.l.b16 %v83
  %v416 = vunpack.c.l.b16 %v84
  %v417 = vunpack.c.h.b16 %v84
  %v418 = vunpack.c.l.b16 %v85
  %v419 = vunpack.c.l.b16 %v86
  %v420 = vunpack.c.h.b16 %v86
  %v421 = vunpack.c.l.b16 %v87
  %v422 = vunpack.c.l.b16 %v88
  %v423 = vunpack.c.h.b16 %v88
  %v424 = vunpack.c.l.b16 %v89
  %v425 = vunpack.c.l.b16 %v90
  %v426 = vunpack.c.h.b16 %v90
  %v427 = vunpack.c.l.b16 %v91
  %v428 = vunpack.c.l.b16 %v92
  %v429 = vunpack.c.h.b16 %v92
  %v430 = vunpack.c.l.b16 %v93
  %v431 = vunpack.c.l.b16 %v94
  %v432 = vunpack.c.h.b16 %v94
  %v433 = vunpack.c.l.b16 %v95
  %v434 = vunpack.c.l.b16 %v96
  %v435 = vunpack.c.h.b16 %v96
  %v436 = vunpack.c.l.b16 %v97
  %v437 = vunpack.c.l.b16 %v98
  %v438 = vunpack.c.h.b16 %v98
  %v439 = vunpack.c.l.b16 %v99
  %v440 = vunpack.c.l.b16 %v100
  %v441 = vunpack.c.h.b16 %v100
  %v442 = vunpack.c.l.b16 %v101
  %v443 = vunpack.c.l.b16 %v102
  %v444 = vunpack.c.h.b16 %v102
  %v445 = vunpack.c.l.b16 %v103
  %v446 = vunpack.c.l.b16 %v104
  %v447 = vunpack.c.h.b16 %v104
  %v448 = vunpack.c.l.b16 %v105
  %v449 = vunpack.c.l.b16 %v106
  %v450 = vunpack.c.h.b16 %v106
  %v451 = vunpack.c.l.b16 %v107
  %v452 = vunpack.c.l.b16 %v108
  %v453 = vunpack.c.h.b16 %v108
  %v454 = vunpack.c.l.b16 %v109
  %v455 = vunpack.c.l.b16 %v110
  %v456 = vunpack.c.h.b16 %v110
  %v457 = vunpack.c.l.b16 %v111
  %v458 = vunpack.c.l.b16 %v112
  %v459 = vunpack.c.h.b16 %v112
  %v460 = vunpack.c.l.b16 %v113
  %v461 = vunpack.c.l.b16 %v114
  %v462 = vunpack.c.h.b16 %v114
  %v463 = vunpack.c.l.b16 %v115
  %v464 = vunpack.c.l.b16 %v116
  %v465 = vunpack.c.h.b16 %v116
  %v466 = vunpack.c.l.b16 %v117
  %v467 = vunpack.c.l.b16 %v118
  %v468 = vunpack.c.h.b16 %v118
  %v469 = vunpack.c.l.b16 %v119
  %v470 = vunpack.c.l.b16 %v120
  %v471 = vunpack.c.h.b16 %v120
  %v472 = vunpack.c.l.b16 %v121
  %v473 = vunpack.c.l.b16 %v122
  %v474 = vunpack.c.h.b16 %v122
  %v475 = vunpack.c.l.b16 %v123
  %v476 = vunpack.c.l.b16 %v124
  %v477 = vunpack.c.h.b16 %v124
  %v478 = vunpack.c.l.b16 %v125
  %v479 = vunpack.c.l.b16 %v126
  %v480 = vunpack.c.h.b16 %v126
  %v481 = vunpack.c.l.b16 %v127
  %v482 = vunpack.c.l.b16 %v128
  %v483 = vunpack.c.h.b16 %v128
  %v484 = vunpack.c.l.b16 %v129
  %v485 = vunpack.c.l.b16 %v130
  %v486 = vunpack.c.h.b16 %v130
  %v487 = vunpack.c.l.b16 %v131
  %v488 = vunpack.c.l.b16 %v132
  %v489 = vunpack.c.h.b16 %v132
  %v490 = vunpack.c.l.b16 %v133
  %v491 = vunpack.c.l.b16 %v134
  %v492 = vunpack.c.h.b16 %v134
  %v493 = vunpack.c.l.b16 %v135
  %v494 = vunpack.c.l.b16 %v136
  %v495 = vunpack.c.h.b16 %v136
  %v496 = vunpack.c.l.b16 %v137
  %v497 = vunpack.c.l.b16 %v138
  %v498 = vunpack.c.h.b16 %v138
  %v499 = vunpack.c.l.b16 %v139
  %v500 = vunpack.c.l.b16 %v140
  %v501 = vunpack.c.h.b16 %v140
  %v502 = vunpack.c.l.b16 %v141
  %v503 = vunpack.c.l.b16 %v142
  %v504 = vunpack.c.h.b16 %v142
  %v505 = vunpack.c.l.b16 %v143
  %v506 = vunpack.c.l.b16 %v144
  %v507 = vunpack.c.h.b16 %v144
  %v508 = vunpack.c.l.b16 %v145
  %v509 = vpack.c.b16 %v320, %v317
  %v510 = vpack.c.b16 %v321, %v318
  %v511 = vpack.c.b16 %v322, %v319
  %v512 = vpack.c.b16 %v326, %v323
  %v513 = vpack.c.b16 %v327, %v324
  %v514 = vpack.c.b16 %v328, %v325
  %v515 = vpack.c.b16 %v332, %v329
  %v516 = vpack.c.b16 %v333, %v330
  %v517 = vpack.c.b16 %v334, %v331
  %v518 = vpack.c.b16 %v338, %v335
  %v519 = vpack.c.b16 %v339, %v336
  %v520 = vpack.c.b16 %v340, %v337
  %v521 = vpack.c.b16 %v344, %v341
  %v522 = vpack.c.b16 %v345, %v342
  %v523 = vpack.c.b16 %v346, %v343
  %v524 = vpack.c.b16 %v350, %v347
  %v525 = vpack.c.b16 %v351, %v348
  %v526 = vpack.c.b16 %v352, %v349
  %v527 = vpack.c.b16 %v356, %v353
  %v528 = vpack.c.b16 %v357, %v354
  %v529 = vpack.c.b16 %v358, %v355
  %v530 = vpack.c.b16 %v362, %v359
  %v531 = vpack.c.b16 %v363, %v360
  %v532 = vpack.c.b16 %v364, %v361
  %v533 = vpack.c.b16 %v368, %v365
  %v534 = vpack.c.b16 %v369, %v366
  %v535 = vpack.c.b16 %v370, %v367
  %v536 = vpack.c.b16 %v374, %v371
  %v537 = vpack.c.b16 %v375, %v372
  %v538 = vpack.c.b16 %v376, %v373
  %v539 = vpack.c.b16 %v380, %v377
  %v540 = vpack.c.b16 %v381, %v378
  %v541 = vpack.c.b16 %v382, %v379
  %v542 = vpack.c.b16 %v386, %v383
  %v543 = vpack.c.b16 %v387, %v384
  %v544 = vpack.c.b16 %v388, %v385
  %v545 = vpack.c.b16 %v392, %v389
  %v546 = vpack.c.b16 %v393, %v390
  %v547 = vpack.c.b16 %v394, %v391
  %v548 = vpack.c.b16 %v398, %v395
  %v549 = vpack.c.b16 %v399, %v396
  %v550 = vpack.c.b16 %v400, %v397
  %v551 = vpack.c.b16 %v404, %v401
  %v552 = vpack.c.b16 %v405, %v402
  %v553 = vpack.c.b16 %v406, %v403
  %v554 = vpack.c.b16 %v410, %v407
  %v555 = vpack.c.b16 %v411, %v408
  %v556 = vpack.c.b16 %v412, %v409
  %v557 = vpack.c.b16 %v416, %v413
  %v558 = vpack.c.b16 %v417, %v414
  %v559 = vpack.c.b16 %v418, %v415
  %v560 = vpack.c.b16 %v422, %v419
  %v561 = vpack.c.b16 %v423, %v420
  %v562 = vpack.c.b16 %v424, %v421
  %v563 = vpack.c.b16 %v428, %v425
  %v564 = vpack.c.b16 %v429, %v426
  %v565 = vpack.c.b16 %v430, %v427
  %v566 = vpack.c.b16 %v434, %v431
  %v567 = vpack.c.b16 %v435, %v432
  %v568 = vpack.c.b16 %v436, %v433
  %v569 = vpack.c.b16 %v440, %v437
  %v570 = vpack.c.b16 %v441, %v438
  %v571 = vpack.c.b16 %v442, %v439
  %v572 = vpack.c.b16 %v446, %v443
  %v573 = vpack.c.b16 %v447, %v444
  %v574 = vpack.c.b16 %v448, %v445
  %v575 = vpack.c.b16 %v452, %v449
  %v576 = vpack.c.b16 %v453, %v450
  %v577 = vpack.c.b16 %v454, %v451
  %v578 = vpack.c.b16 %v458, %v455
  %v579 = vpack.c.b16 %v459, %v456
  %v580 = vpack.c.b16 %v460, %v457
  %v581 = vpack.c.b16 %v464, %v461
  %v582 = vpack.c.b16 %v465, %v462
  %v583 = vpack.c.b16 %v466, %v463
  %v584 = vpack.c.b16 %v470, %v467
  %v585 = vpack.c.b16 %v471, %v468
  %v586 = vpack.c.b16 %v472, %v469
  %v587 = vpack.c.b16 %v476, %v473
  %v588 = vpack.c.b16 %v477, %v474
  %v589 = vpack.c.b16 %v478, %v475
  %v590 = vpack.c.b16 %v482, %v479
  %v591 = vpack.c.b16 %v483, %v480
  %v592 = vpack.c.b16 %v484, %v481
  %v593 = vpack.c.b16 %v488, %v485
  %v594 = vpack.c.b16 %v489, %v486
  %v595 = vpack.c.b16 %v490, %v487
  %v596 = vpack.c.b16 %v494, %v491
  %v597 = vpack.c.b16 %v495, %v492
  %v598 = vpack.c.b16 %v496, %v493
  %v599 = vpack.c.b16 %v500, %v497
  %v600 = vpack.c.b16 %v501, %v498
  %v601 = vpack.c.b16 %v502, %v499
  %v602 = vpack.c.b16 %v506, %v503
  %v603 = vpack.c.b16 %v507, %v504
  %v604 = vpack.c.b16 %v508, %v505
  %v705 = vunpack.c.l.b16 %v146
  %v706 = vunpack.c.l.b16 %v147
  %v707 = vunpack.c.l.b16 %v148
  %v708 = vunpack.c.l.b16 %v149
  %v709 = vunpack.c.l.b16 %v150
  %v710 = vunpack.c.l.b16 %v151
  %v711 = vunpack.c.l.b16 %v152
  %v712 = vunpack.c.l.b16 %v153
  %v713 = vunpack.c.l.b16 %v154
  %v714 = vunpack.c.l.b16 %v155
  %v715 = vunpack.c.l.b16 %v156
  %v716 = vunpack.c.l.b16 %v157
  %v717 = vunpack.c.l.b16 %v158
  %v718 = vunpack.c.l.b16 %v159
  %v719 = vunpack.c.l.b16 %v160
  %v720 = vunpack.c.l.b16 %v161
  %v721 = vunpack.c.l.b16 %v162
  %v722 = vunpack.c.l.b16 %v163
  %v723 = vunpack.c.l.b16 %v164
  %v724 = vunpack.c.l.b16 %v165
  %v725 = vunpack.c.l.b16 %v166
  %v726 = vunpack.c.l.b16 %v167
  %v727 = vunpack.c.l.b16 %v168
  %v728 = vunpack.c.l.b16 %v169
  %v729 = vunpack.c.l.b16 %v170
  %v730 = vunpack.c.l.b16 %v171
  %v731 = vunpack.c.l.b16 %v172
  %v732 = vunpack.c.l.b16 %v173
  %v733 = vunpack.c.l.b16 %v174
  %v734 = vunpack.c.l.b16 %v175
  %v735 = vunpack.c.l.b16 %v176
  %v736 = vunpack.c.l.b16 %v177
  %v737 = vunpack.c.l.b16 %v178
  %v738 = vunpack.c.l.b16 %v179
  %v739 = vunpack.c.l.b16 %v180
  %v740 = vunpack.c.l.b16 %v181
  %v741 = vpack.c.b16 %v706, %v705
  %v742 = vpack.c.b16 %v708, %v707
  %v743 = vpack.c.b16 %v710, %v709
  %v744 = vpack.c.b16 %v712, %v711
  %v745 = vpack.c.b16 %v714, %v713
  %v746 = vpack.c.b16 %v716, %v715
  %v747 = vpack.c.b16 %v718, %v717
  %v748 = vpack.c.b16 %v720, %v719
  %v749 = vpack.c.b16 %v722, %v721
  %v750 = vpack.c.b16 %v724, %v723
  %v751 = vpack.c.b16 %v726, %v725
  %v752 = vpack.c.b16 %v728, %v727
  %v753 = vpack.c.b16 %v730, %v729
  %v754 = vpack.c.b16 %v732, %v731
  %v755 = vpack.c.b16 %v734, %v733
  %v756 = vpack.c.b16 %v736, %v735
  %v757 = vpack.c.b16 %v738, %v737
  %v758 = vpack.c.b16 %v740, %v739
  %vm777 = vcmask 261120
  %v779 = vsel %vm777, %v511, 0
  %v782 = vsel %vm777, %v514, 0
  %v785 = vsel %vm777, %v517, 0
  %v788 = vsel %vm777, %v520, 0
  %v791 = vsel %vm777, %v523, 0
  %v794 = vsel %vm777, %v526, 0
  %v797 = vsel %vm777, %v529, 0
  %v800 = vsel %vm777, %v532, 0
  %v803 = vsel %vm777, %v535, 0
  %v806 = vsel %vm777, %v538, 0
  %v809 = vsel %vm777, %v541, 0
  %v812 = vsel %vm777, %v544, 0
  %v815 = vsel %vm777, %v547, 0
  %v818 = vsel %vm777, %v550, 0
  %v821 = vsel %vm777, %v553, 0
  %v824 = vsel %vm777, %v556, 0
  %v827 = vsel %vm777, %v559, 0
  %v830 = vsel %vm777, %v562, 0
  %v833 = vsel %vm777, %v565, 0
  %v836 = vsel %vm777, %v568, 0
  %v839 = vsel %vm777, %v571, 0
  %v842 = vsel %vm777, %v574, 0
  %v845 = vsel %vm777, %v577, 0
  %v848 = vsel %vm777, %v580, 0
  %v851 = vsel %vm777, %v583, 0
  %v854 = vsel %vm777, %v586, 0
  %v857 = vsel %vm777, %v589, 0
  %v860 = vsel %vm777, %v592, 0
  %v863 = vsel %vm777, %v595, 0
  %v866 = vsel %vm777, %v598, 0
  %v869 = vsel %vm777, %v601, 0
  %v872 = vsel %vm777, %v604, 0
  %874 = vmatprep.subr.bf16.mxu0 0
  %875 = vmatpush1.bf16.msra.mxu0 %v741
  %876 = vmatprep.subr.bf16.mxu0 0
  %877 = vmatpush1.bf16.msra.mxu0 %v742
  %878 = vmatprep.subr.bf16.mxu0 0
  %879 = vmatpush1.bf16.msra.mxu0 %v743
  %880 = vmatprep.subr.bf16.mxu0 0
  %881 = vmatpush1.bf16.msra.mxu0 %v744
  %882 = vmatprep.subr.bf16.mxu0 0
  %883 = vmatpush1.bf16.msra.mxu0 %v745
  %884 = vmatprep.subr.bf16.mxu0 0
  %885 = vmatpush1.bf16.msra.mxu0 %v746
  %886 = vmatprep.subr.bf16.mxu0 0
  %887 = vmatpush1.bf16.msra.mxu0 %v747
  %888 = vmatprep.subr.bf16.mxu0 0
  %889 = vmatpush1.bf16.msra.mxu0 %v748
  %890 = vmatprep.subr.bf16.mxu0 0
  %891 = vmatpush1.bf16.msra.mxu0 %v749
  %892 = vmatprep.subr.bf16.mxu0 0
  %893 = vmatpush1.bf16.msra.mxu0 %v750
  %894 = vmatprep.subr.bf16.mxu0 0
  %895 = vmatpush1.bf16.msra.mxu0 %v751
  %896 = vmatprep.subr.bf16.mxu0 0
  %897 = vmatpush1.bf16.msra.mxu0 %v752
  %898 = vmatprep.subr.bf16.mxu0 0
  %899 = vmatpush1.bf16.msra.mxu0 %v753
  %900 = vmatprep.subr.bf16.mxu0 0
  %901 = vmatpush1.bf16.msra.mxu0 %v754
  %902 = vmatprep.subr.bf16.mxu0 0
  %903 = vmatpush1.bf16.msra.mxu0 %v755
  %904 = vmatprep.subr.bf16.mxu0 0
  %905 = vmatpush1.bf16.msra.mxu0 %v756
  %906 = vmatprep.mubr.bf16.mxu0 %v510
  %907 = vmatmul.mubr.bf16.gmra.mrb[0].mxu0 %v509
  %v908 = vpop.f32.mrb[0].mxu0
  %v909 = vadd.f32 %v187, %v908
  %v910 = vpop.f32.mrb[0].mxu0
  %v911 = vpop.f32.mrb[0].mxu0
  %v912 = vadd.f32 %v187, %v911
  %v913 = vpop.f32.mrb[0].mxu0
  %914 = vmatprep.mubr.bf16.mxu0 %v513
  %915 = vmatmul.mubr.bf16.gmra.mrb[0].mxu0 %v512
  %v916 = vpop.f32.mrb[0].mxu0
  %v917 = vadd.f32 %v187, %v916
  %v918 = vpop.f32.mrb[0].mxu0
  %v919 = vpop.f32.mrb[0].mxu0
  %v920 = vadd.f32 %v187, %v919
  %v921 = vpop.f32.mrb[0].mxu0
  %922 = vmatprep.mubr.bf16.mxu0 %v516
  %923 = vmatmul.mubr.bf16.gmra.mrb[0].mxu0 %v515
  %v924 = vpop.f32.mrb[0].mxu0
  %v925 = vadd.f32 %v187, %v924
  %v926 = vpop.f32.mrb[0].mxu0
  %v927 = vpop.f32.mrb[0].mxu0
  %v928 = vadd.f32 %v187, %v927
  %v929 = vpop.f32.mrb[0].mxu0
  %930 = vmatprep.mubr.bf16.mxu0 %v519
  %931 = vmatmul.mubr.bf16.gmra.mrb[0].mxu0 %v518
  %v932 = vpop.f32.mrb[0].mxu0
  %v933 = vadd.f32 %v187, %v932
  %v934 = vpop.f32.mrb[0].mxu0
  %v935 = vpop.f32.mrb[0].mxu0
  %v936 = vadd.f32 %v187, %v935
  %v937 = vpop.f32.mrb[0].mxu0
  %938 = vmatprep.mubr.bf16.mxu0 %v522
  %939 = vmatmul.mubr.bf16.gmra.mrb[0].mxu0 %v521
  %v940 = vpop.f32.mrb[0].mxu0
  %v941 = vadd.f32 %v187, %v940
  %v942 = vpop.f32.mrb[0].mxu0
  %v943 = vpop.f32.mrb[0].mxu0
  %v944 = vadd.f32 %v187, %v943
  %v945 = vpop.f32.mrb[0].mxu0
  %946 = vmatprep.mubr.bf16.mxu0 %v525
  %947 = vmatmul.mubr.bf16.gmra.mrb[0].mxu0 %v524
  %v948 = vpop.f32.mrb[0].mxu0
  %v949 = vadd.f32 %v187, %v948
  %v950 = vpop.f32.mrb[0].mxu0
  %v951 = vpop.f32.mrb[0].mxu0
  %v952 = vadd.f32 %v187, %v951
  %v953 = vpop.f32.mrb[0].mxu0
  %954 = vmatprep.mubr.bf16.mxu0 %v528
  %955 = vmatmul.mubr.bf16.gmra.mrb[0].mxu0 %v527
  %v956 = vpop.f32.mrb[0].mxu0
  %v957 = vadd.f32 %v187, %v956
  %v958 = vpop.f32.mrb[0].mxu0
  %v959 = vpop.f32.mrb[0].mxu0
  %v960 = vadd.f32 %v187, %v959
  %v961 = vpop.f32.mrb[0].mxu0
  %962 = vmatprep.mubr.bf16.mxu0 %v531
  %963 = vmatmul.mubr.bf16.gmra.mrb[0].mxu0 %v530
  %v964 = vpop.f32.mrb[0].mxu0
  %v965 = vadd.f32 %v187, %v964
  %v966 = vpop.f32.mrb[0].mxu0
  %v967 = vpop.f32.mrb[0].mxu0
  %v968 = vadd.f32 %v187, %v967
  %v969 = vpop.f32.mrb[0].mxu0
  %970 = vmatprep.mubr.bf16.mxu0 %v534
  %971 = vmatmul.mubr.bf16.gmra.mrb[0].mxu0 %v533
  %v972 = vpop.f32.mrb[0].mxu0
  %v973 = vadd.f32 %v187, %v972
  %v974 = vpop.f32.mrb[0].mxu0
  %v975 = vpop.f32.mrb[0].mxu0
  %v976 = vadd.f32 %v187, %v975
  %v977 = vpop.f32.mrb[0].mxu0
  %978 = vmatprep.mubr.bf16.mxu0 %v537
  %979 = vmatmul.mubr.bf16.gmra.mrb[0].mxu0 %v536
  %v980 = vpop.f32.mrb[0].mxu0
  %v981 = vadd.f32 %v187, %v980
  %v982 = vpop.f32.mrb[0].mxu0
  %v983 = vpop.f32.mrb[0].mxu0
  %v984 = vadd.f32 %v187, %v983
  %v985 = vpop.f32.mrb[0].mxu0
  %986 = vmatprep.mubr.bf16.mxu0 %v540
  %987 = vmatmul.mubr.bf16.gmra.mrb[0].mxu0 %v539
  %v988 = vpop.f32.mrb[0].mxu0
  %v989 = vadd.f32 %v187, %v988
  %v990 = vpop.f32.mrb[0].mxu0
  %v991 = vpop.f32.mrb[0].mxu0
  %v992 = vadd.f32 %v187, %v991
  %v993 = vpop.f32.mrb[0].mxu0
  %994 = vmatprep.mubr.bf16.mxu0 %v543
  %995 = vmatmul.mubr.bf16.gmra.mrb[0].mxu0 %v542
  %v996 = vpop.f32.mrb[0].mxu0
  %v997 = vadd.f32 %v187, %v996
  %v998 = vpop.f32.mrb[0].mxu0
  %v999 = vpop.f32.mrb[0].mxu0
  %v1000 = vadd.f32 %v187, %v999
  %v1001 = vpop.f32.mrb[0].mxu0
  %1002 = vmatprep.mubr.bf16.mxu0 %v546
  %1003 = vmatmul.mubr.bf16.gmra.mrb[0].mxu0 %v545
  %v1004 = vpop.f32.mrb[0].mxu0
  %v1005 = vadd.f32 %v187, %v1004
  %v1006 = vpop.f32.mrb[0].mxu0
  %v1007 = vpop.f32.mrb[0].mxu0
  %v1008 = vadd.f32 %v187, %v1007
  %v1009 = vpop.f32.mrb[0].mxu0
  %1010 = vmatprep.mubr.bf16.mxu0 %v549
  %1011 = vmatmul.mubr.bf16.gmra.mrb[0].mxu0 %v548
  %v1012 = vpop.f32.mrb[0].mxu0
  %v1013 = vadd.f32 %v187, %v1012
  %v1014 = vpop.f32.mrb[0].mxu0
  %v1015 = vpop.f32.mrb[0].mxu0
  %v1016 = vadd.f32 %v187, %v1015
  %v1017 = vpop.f32.mrb[0].mxu0
  %1018 = vmatprep.mubr.bf16.mxu0 %v552
  %1019 = vmatmul.mubr.bf16.gmra.mrb[0].mxu0 %v551
  %v1020 = vpop.f32.mrb[0].mxu0
  %v1021 = vadd.f32 %v187, %v1020
  %v1022 = vpop.f32.mrb[0].mxu0
  %v1023 = vpop.f32.mrb[0].mxu0
  %v1024 = vadd.f32 %v187, %v1023
  %v1025 = vpop.f32.mrb[0].mxu0
  %1026 = vmatprep.mubr.bf16.mxu0 %v555
  %1027 = vmatmul.mubr.bf16.gmra.mrb[0].mxu0 %v554
  %v1028 = vpop.f32.mrb[0].mxu0
  %v1029 = vadd.f32 %v187, %v1028
  %v1030 = vpop.f32.mrb[0].mxu0
  %v1031 = vpop.f32.mrb[0].mxu0
  %v1032 = vadd.f32 %v187, %v1031
  %v1033 = vpop.f32.mrb[0].mxu0
  %1034 = vmatprep.mubr.bf16.mxu0 %v558
  %1035 = vmatmul.mubr.bf16.gmra.mrb[0].mxu0 %v557
  %v1036 = vpop.f32.mrb[0].mxu0
  %v1037 = vadd.f32 %v187, %v1036
  %v1038 = vpop.f32.mrb[0].mxu0
  %v1039 = vpop.f32.mrb[0].mxu0
  %v1040 = vadd.f32 %v187, %v1039
  %v1041 = vpop.f32.mrb[0].mxu0
  %1042 = vmatprep.mubr.bf16.mxu0 %v561
  %1043 = vmatmul.mubr.bf16.gmra.mrb[0].mxu0 %v560
  %v1044 = vpop.f32.mrb[0].mxu0
  %v1045 = vadd.f32 %v187, %v1044
  %v1046 = vpop.f32.mrb[0].mxu0
  %v1047 = vpop.f32.mrb[0].mxu0
  %v1048 = vadd.f32 %v187, %v1047
  %v1049 = vpop.f32.mrb[0].mxu0
  %1050 = vmatprep.mubr.bf16.mxu0 %v564
  %1051 = vmatmul.mubr.bf16.gmra.mrb[0].mxu0 %v563
  %v1052 = vpop.f32.mrb[0].mxu0
  %v1053 = vadd.f32 %v187, %v1052
  %v1054 = vpop.f32.mrb[0].mxu0
  %v1055 = vpop.f32.mrb[0].mxu0
  %v1056 = vadd.f32 %v187, %v1055
  %v1057 = vpop.f32.mrb[0].mxu0
  %1058 = vmatprep.mubr.bf16.mxu0 %v567
  %1059 = vmatmul.mubr.bf16.gmra.mrb[0].mxu0 %v566
  %v1060 = vpop.f32.mrb[0].mxu0
  %v1061 = vadd.f32 %v187, %v1060
  %v1062 = vpop.f32.mrb[0].mxu0
  %v1063 = vpop.f32.mrb[0].mxu0
  %v1064 = vadd.f32 %v187, %v1063
  %v1065 = vpop.f32.mrb[0].mxu0
  %1066 = vmatprep.mubr.bf16.mxu0 %v570
  %1067 = vmatmul.mubr.bf16.gmra.mrb[0].mxu0 %v569
  %v1068 = vpop.f32.mrb[0].mxu0
  %v1069 = vadd.f32 %v187, %v1068
  %v1070 = vpop.f32.mrb[0].mxu0
  %v1071 = vpop.f32.mrb[0].mxu0
  %v1072 = vadd.f32 %v187, %v1071
  %v1073 = vpop.f32.mrb[0].mxu0
  %1074 = vmatprep.mubr.bf16.mxu0 %v573
  %1075 = vmatmul.mubr.bf16.gmra.mrb[0].mxu0 %v572
  %v1076 = vpop.f32.mrb[0].mxu0
  %v1077 = vadd.f32 %v187, %v1076
  %v1078 = vpop.f32.mrb[0].mxu0
  %v1079 = vpop.f32.mrb[0].mxu0
  %v1080 = vadd.f32 %v187, %v1079
  %v1081 = vpop.f32.mrb[0].mxu0
  %1082 = vmatprep.mubr.bf16.mxu0 %v576
  %1083 = vmatmul.mubr.bf16.gmra.mrb[0].mxu0 %v575
  %v1084 = vpop.f32.mrb[0].mxu0
  %v1085 = vadd.f32 %v187, %v1084
  %v1086 = vpop.f32.mrb[0].mxu0
  %v1087 = vpop.f32.mrb[0].mxu0
  %v1088 = vadd.f32 %v187, %v1087
  %v1089 = vpop.f32.mrb[0].mxu0
  %1090 = vmatprep.mubr.bf16.mxu0 %v579
  %1091 = vmatmul.mubr.bf16.gmra.mrb[0].mxu0 %v578
  %v1092 = vpop.f32.mrb[0].mxu0
  %v1093 = vadd.f32 %v187, %v1092
  %v1094 = vpop.f32.mrb[0].mxu0
  %v1095 = vpop.f32.mrb[0].mxu0
  %v1096 = vadd.f32 %v187, %v1095
  %v1097 = vpop.f32.mrb[0].mxu0
  %1098 = vmatprep.mubr.bf16.mxu0 %v582
  %1099 = vmatmul.mubr.bf16.gmra.mrb[0].mxu0 %v581
  %v1100 = vpop.f32.mrb[0].mxu0
  %v1101 = vadd.f32 %v187, %v1100
  %v1102 = vpop.f32.mrb[0].mxu0
  %v1103 = vpop.f32.mrb[0].mxu0
  %v1104 = vadd.f32 %v187, %v1103
  %v1105 = vpop.f32.mrb[0].mxu0
  %1106 = vmatprep.mubr.bf16.mxu0 %v585
  %1107 = vmatmul.mubr.bf16.gmra.mrb[0].mxu0 %v584
  %v1108 = vpop.f32.mrb[0].mxu0
  %v1109 = vadd.f32 %v187, %v1108
  %v1110 = vpop.f32.mrb[0].mxu0
  %v1111 = vpop.f32.mrb[0].mxu0
  %v1112 = vadd.f32 %v187, %v1111
  %v1113 = vpop.f32.mrb[0].mxu0
  %1114 = vmatprep.mubr.bf16.mxu0 %v588
  %1115 = vmatmul.mubr.bf16.gmra.mrb[0].mxu0 %v587
  %v1116 = vpop.f32.mrb[0].mxu0
  %v1117 = vadd.f32 %v187, %v1116
  %v1118 = vpop.f32.mrb[0].mxu0
  %v1119 = vpop.f32.mrb[0].mxu0
  %v1120 = vadd.f32 %v187, %v1119
  %v1121 = vpop.f32.mrb[0].mxu0
  %1122 = vmatprep.mubr.bf16.mxu0 %v591
  %1123 = vmatmul.mubr.bf16.gmra.mrb[0].mxu0 %v590
  %v1124 = vpop.f32.mrb[0].mxu0
  %v1125 = vadd.f32 %v187, %v1124
  %v1126 = vpop.f32.mrb[0].mxu0
  %v1127 = vpop.f32.mrb[0].mxu0
  %v1128 = vadd.f32 %v187, %v1127
  %v1129 = vpop.f32.mrb[0].mxu0
  %1130 = vmatprep.mubr.bf16.mxu0 %v594
  %1131 = vmatmul.mubr.bf16.gmra.mrb[0].mxu0 %v593
  %v1132 = vpop.f32.mrb[0].mxu0
  %v1133 = vadd.f32 %v187, %v1132
  %v1134 = vpop.f32.mrb[0].mxu0
  %v1135 = vpop.f32.mrb[0].mxu0
  %v1136 = vadd.f32 %v187, %v1135
  %v1137 = vpop.f32.mrb[0].mxu0
  %1138 = vmatprep.mubr.bf16.mxu0 %v597
  %1139 = vmatmul.mubr.bf16.gmra.mrb[0].mxu0 %v596
  %v1140 = vpop.f32.mrb[0].mxu0
  %v1141 = vadd.f32 %v187, %v1140
  %v1142 = vpop.f32.mrb[0].mxu0
  %v1143 = vpop.f32.mrb[0].mxu0
  %v1144 = vadd.f32 %v187, %v1143
  %v1145 = vpop.f32.mrb[0].mxu0
  %1146 = vmatprep.mubr.bf16.mxu0 %v600
  %1147 = vmatmul.mubr.bf16.gmra.mrb[0].mxu0 %v599
  %v1148 = vpop.f32.mrb[0].mxu0
  %v1149 = vadd.f32 %v187, %v1148
  %v1150 = vpop.f32.mrb[0].mxu0
  %v1151 = vpop.f32.mrb[0].mxu0
  %v1152 = vadd.f32 %v187, %v1151
  %v1153 = vpop.f32.mrb[0].mxu0
  %1154 = vmatprep.mubr.bf16.mxu0 %v603
  %1155 = vmatmul.mubr.bf16.gmra.mrb[0].mxu0 %v602
  %v1156 = vpop.f32.mrb[0].mxu0
  %v1157 = vadd.f32 %v187, %v1156
  %v1158 = vpop.f32.mrb[0].mxu0
  %v1159 = vpop.f32.mrb[0].mxu0
  %v1160 = vadd.f32 %v187, %v1159
  %v1161 = vpop.f32.mrb[0].mxu0
  %1162 = vdwg.mxu0
  %1163 = vmatprep.subr.bf16.mxu0 0
  %1164 = vmatpush1.bf16.msra.mxu0 %v757
  %1165 = vmatprep.subr.bf16.mxu0 0
  %1166 = vmatpush1.bf16.msra.mxu0 %v758
  %1167 = vmatprep.subr.bf16.mxu0 0
  %1168 = vmatpush1.bf16.msra.mxu0 0
  %1169 = vmatprep.subr.bf16.mxu0 0
  %1170 = vmatpush1.bf16.msra.mxu0 0
  %1171 = vmatprep.subr.bf16.mxu0 0
  %1172 = vmatpush1.bf16.msra.mxu0 0
  %1173 = vmatprep.subr.bf16.mxu0 0
  %1174 = vmatpush1.bf16.msra.mxu0 0
  %1175 = vmatprep.subr.bf16.mxu0 0
  %1176 = vmatpush1.bf16.msra.mxu0 0
  %1177 = vmatprep.subr.bf16.mxu0 0
  %1178 = vmatpush1.bf16.msra.mxu0 0
  %1179 = vmatprep.subr.bf16.mxu0 0
  %1180 = vmatpush1.bf16.msra.mxu0 0
  %1181 = vmatprep.subr.bf16.mxu0 0
  %1182 = vmatpush1.bf16.msra.mxu0 0
  %1183 = vmatprep.subr.bf16.mxu0 0
  %1184 = vmatpush1.bf16.msra.mxu0 0
  %1185 = vmatprep.subr.bf16.mxu0 0
  %1186 = vmatpush1.bf16.msra.mxu0 0
  %1187 = vmatprep.subr.bf16.mxu0 0
  %1188 = vmatpush1.bf16.msra.mxu0 0
  %1189 = vmatprep.subr.bf16.mxu0 0
  %1190 = vmatpush1.bf16.msra.mxu0 0
  %1191 = vmatprep.subr.bf16.mxu0 0
  %1192 = vmatpush1.bf16.msra.mxu0 0
  %1193 = vmatprep.subr.bf16.mxu0 0
  %1194 = vmatpush1.bf16.msra.mxu0 0
  %1195 = vmatprep.mubr.bf16.mxu0 0
  %1196 = vmatmul.mubr.bf16.gmra.mrb[0].mxu0 %v779
  %v1197 = vpop.f32.mrb[0].mxu0
  %v1198 = vadd.f32 %v909, %v1197
  %v1199 = vpop.f32.mrb[0].mxu0
  %v1200 = vpop.f32.mrb[0].mxu0
  %v1201 = vadd.f32 %v912, %v1200
  %v1202 = vpop.f32.mrb[0].mxu0
  %1203 = vmatprep.mubr.bf16.mxu0 0
  %1204 = vmatmul.mubr.bf16.gmra.mrb[0].mxu0 %v782
  %v1205 = vpop.f32.mrb[0].mxu0
  %v1206 = vadd.f32 %v917, %v1205
  %v1207 = vpop.f32.mrb[0].mxu0
  %v1208 = vpop.f32.mrb[0].mxu0
  %v1209 = vadd.f32 %v920, %v1208
  %v1210 = vpop.f32.mrb[0].mxu0
  %1211 = vmatprep.mubr.bf16.mxu0 0
  %1212 = vmatmul.mubr.bf16.gmra.mrb[0].mxu0 %v785
  %v1213 = vpop.f32.mrb[0].mxu0
  %v1214 = vadd.f32 %v925, %v1213
  %v1215 = vpop.f32.mrb[0].mxu0
  %v1216 = vpop.f32.mrb[0].mxu0
  %v1217 = vadd.f32 %v928, %v1216
  %v1218 = vpop.f32.mrb[0].mxu0
  %1219 = vmatprep.mubr.bf16.mxu0 0
  %1220 = vmatmul.mubr.bf16.gmra.mrb[0].mxu0 %v788
  %v1221 = vpop.f32.mrb[0].mxu0
  %v1222 = vadd.f32 %v933, %v1221
  %v1223 = vpop.f32.mrb[0].mxu0
  %v1224 = vpop.f32.mrb[0].mxu0
  %v1225 = vadd.f32 %v936, %v1224
  %v1226 = vpop.f32.mrb[0].mxu0
  %1227 = vmatprep.mubr.bf16.mxu0 0
  %1228 = vmatmul.mubr.bf16.gmra.mrb[0].mxu0 %v791
  %v1229 = vpop.f32.mrb[0].mxu0
  %v1230 = vadd.f32 %v941, %v1229
  %v1231 = vpop.f32.mrb[0].mxu0
  %v1232 = vpop.f32.mrb[0].mxu0
  %v1233 = vadd.f32 %v944, %v1232
  %v1234 = vpop.f32.mrb[0].mxu0
  %1235 = vmatprep.mubr.bf16.mxu0 0
  %1236 = vmatmul.mubr.bf16.gmra.mrb[0].mxu0 %v794
  %v1237 = vpop.f32.mrb[0].mxu0
  %v1238 = vadd.f32 %v949, %v1237
  %v1239 = vpop.f32.mrb[0].mxu0
  %v1240 = vpop.f32.mrb[0].mxu0
  %v1241 = vadd.f32 %v952, %v1240
  %v1242 = vpop.f32.mrb[0].mxu0
  %1243 = vmatprep.mubr.bf16.mxu0 0
  %1244 = vmatmul.mubr.bf16.gmra.mrb[0].mxu0 %v797
  %v1245 = vpop.f32.mrb[0].mxu0
  %v1246 = vadd.f32 %v957, %v1245
  %v1247 = vpop.f32.mrb[0].mxu0
  %v1248 = vpop.f32.mrb[0].mxu0
  %v1249 = vadd.f32 %v960, %v1248
  %v1250 = vpop.f32.mrb[0].mxu0
  %1251 = vmatprep.mubr.bf16.mxu0 0
  %1252 = vmatmul.mubr.bf16.gmra.mrb[0].mxu0 %v800
  %v1253 = vpop.f32.mrb[0].mxu0
  %v1254 = vadd.f32 %v965, %v1253
  %v1255 = vpop.f32.mrb[0].mxu0
  %v1256 = vpop.f32.mrb[0].mxu0
  %v1257 = vadd.f32 %v968, %v1256
  %v1258 = vpop.f32.mrb[0].mxu0
  %1259 = vmatprep.mubr.bf16.mxu0 0
  %1260 = vmatmul.mubr.bf16.gmra.mrb[0].mxu0 %v803
  %v1261 = vpop.f32.mrb[0].mxu0
  %v1262 = vadd.f32 %v973, %v1261
  %v1263 = vpop.f32.mrb[0].mxu0
  %v1264 = vpop.f32.mrb[0].mxu0
  %v1265 = vadd.f32 %v976, %v1264
  %v1266 = vpop.f32.mrb[0].mxu0
  %1267 = vmatprep.mubr.bf16.mxu0 0
  %1268 = vmatmul.mubr.bf16.gmra.mrb[0].mxu0 %v806
  %v1269 = vpop.f32.mrb[0].mxu0
  %v1270 = vadd.f32 %v981, %v1269
  %v1271 = vpop.f32.mrb[0].mxu0
  %v1272 = vpop.f32.mrb[0].mxu0
  %v1273 = vadd.f32 %v984, %v1272
  %v1274 = vpop.f32.mrb[0].mxu0
  %1275 = vmatprep.mubr.bf16.mxu0 0
  %1276 = vmatmul.mubr.bf16.gmra.mrb[0].mxu0 %v809
  %v1277 = vpop.f32.mrb[0].mxu0
  %v1278 = vadd.f32 %v989, %v1277
  %v1279 = vpop.f32.mrb[0].mxu0
  %v1280 = vpop.f32.mrb[0].mxu0
  %v1281 = vadd.f32 %v992, %v1280
  %v1282 = vpop.f32.mrb[0].mxu0
  %1283 = vmatprep.mubr.bf16.mxu0 0
  %1284 = vmatmul.mubr.bf16.gmra.mrb[0].mxu0 %v812
  %v1285 = vpop.f32.mrb[0].mxu0
  %v1286 = vadd.f32 %v997, %v1285
  %v1287 = vpop.f32.mrb[0].mxu0
  %v1288 = vpop.f32.mrb[0].mxu0
  %v1289 = vadd.f32 %v1000, %v1288
  %v1290 = vpop.f32.mrb[0].mxu0
  %1291 = vmatprep.mubr.bf16.mxu0 0
  %1292 = vmatmul.mubr.bf16.gmra.mrb[0].mxu0 %v815
  %v1293 = vpop.f32.mrb[0].mxu0
  %v1294 = vadd.f32 %v1005, %v1293
  %v1295 = vpop.f32.mrb[0].mxu0
  %v1296 = vpop.f32.mrb[0].mxu0
  %v1297 = vadd.f32 %v1008, %v1296
  %v1298 = vpop.f32.mrb[0].mxu0
  %1299 = vmatprep.mubr.bf16.mxu0 0
  %1300 = vmatmul.mubr.bf16.gmra.mrb[0].mxu0 %v818
  %v1301 = vpop.f32.mrb[0].mxu0
  %v1302 = vadd.f32 %v1013, %v1301
  %v1303 = vpop.f32.mrb[0].mxu0
  %v1304 = vpop.f32.mrb[0].mxu0
  %v1305 = vadd.f32 %v1016, %v1304
  %v1306 = vpop.f32.mrb[0].mxu0
  %1307 = vmatprep.mubr.bf16.mxu0 0
  %1308 = vmatmul.mubr.bf16.gmra.mrb[0].mxu0 %v821
  %v1309 = vpop.f32.mrb[0].mxu0
  %v1310 = vadd.f32 %v1021, %v1309
  %v1311 = vpop.f32.mrb[0].mxu0
  %v1312 = vpop.f32.mrb[0].mxu0
  %v1313 = vadd.f32 %v1024, %v1312
  %v1314 = vpop.f32.mrb[0].mxu0
  %1315 = vmatprep.mubr.bf16.mxu0 0
  %1316 = vmatmul.mubr.bf16.gmra.mrb[0].mxu0 %v824
  %v1317 = vpop.f32.mrb[0].mxu0
  %v1318 = vadd.f32 %v1029, %v1317
  %v1319 = vpop.f32.mrb[0].mxu0
  %v1320 = vpop.f32.mrb[0].mxu0
  %v1321 = vadd.f32 %v1032, %v1320
  %v1322 = vpop.f32.mrb[0].mxu0
  %1323 = vmatprep.mubr.bf16.mxu0 0
  %1324 = vmatmul.mubr.bf16.gmra.mrb[0].mxu0 %v827
  %v1325 = vpop.f32.mrb[0].mxu0
  %v1326 = vadd.f32 %v1037, %v1325
  %v1327 = vpop.f32.mrb[0].mxu0
  %v1328 = vpop.f32.mrb[0].mxu0
  %v1329 = vadd.f32 %v1040, %v1328
  %v1330 = vpop.f32.mrb[0].mxu0
  %1331 = vmatprep.mubr.bf16.mxu0 0
  %1332 = vmatmul.mubr.bf16.gmra.mrb[0].mxu0 %v830
  %v1333 = vpop.f32.mrb[0].mxu0
  %v1334 = vadd.f32 %v1045, %v1333
  %v1335 = vpop.f32.mrb[0].mxu0
  %v1336 = vpop.f32.mrb[0].mxu0
  %v1337 = vadd.f32 %v1048, %v1336
  %v1338 = vpop.f32.mrb[0].mxu0
  %1339 = vmatprep.mubr.bf16.mxu0 0
  %1340 = vmatmul.mubr.bf16.gmra.mrb[0].mxu0 %v833
  %v1341 = vpop.f32.mrb[0].mxu0
  %v1342 = vadd.f32 %v1053, %v1341
  %v1343 = vpop.f32.mrb[0].mxu0
  %v1344 = vpop.f32.mrb[0].mxu0
  %v1345 = vadd.f32 %v1056, %v1344
  %v1346 = vpop.f32.mrb[0].mxu0
  %1347 = vmatprep.mubr.bf16.mxu0 0
  %1348 = vmatmul.mubr.bf16.gmra.mrb[0].mxu0 %v836
  %v1349 = vpop.f32.mrb[0].mxu0
  %v1350 = vadd.f32 %v1061, %v1349
  %v1351 = vpop.f32.mrb[0].mxu0
  %v1352 = vpop.f32.mrb[0].mxu0
  %v1353 = vadd.f32 %v1064, %v1352
  %v1354 = vpop.f32.mrb[0].mxu0
  %1355 = vmatprep.mubr.bf16.mxu0 0
  %1356 = vmatmul.mubr.bf16.gmra.mrb[0].mxu0 %v839
  %v1357 = vpop.f32.mrb[0].mxu0
  %v1358 = vadd.f32 %v1069, %v1357
  %v1359 = vpop.f32.mrb[0].mxu0
  %v1360 = vpop.f32.mrb[0].mxu0
  %v1361 = vadd.f32 %v1072, %v1360
  %v1362 = vpop.f32.mrb[0].mxu0
  %1363 = vmatprep.mubr.bf16.mxu0 0
  %1364 = vmatmul.mubr.bf16.gmra.mrb[0].mxu0 %v842
  %v1365 = vpop.f32.mrb[0].mxu0
  %v1366 = vadd.f32 %v1077, %v1365
  %v1367 = vpop.f32.mrb[0].mxu0
  %v1368 = vpop.f32.mrb[0].mxu0
  %v1369 = vadd.f32 %v1080, %v1368
  %v1370 = vpop.f32.mrb[0].mxu0
  %1371 = vmatprep.mubr.bf16.mxu0 0
  %1372 = vmatmul.mubr.bf16.gmra.mrb[0].mxu0 %v845
  %v1373 = vpop.f32.mrb[0].mxu0
  %v1374 = vadd.f32 %v1085, %v1373
  %v1375 = vpop.f32.mrb[0].mxu0
  %v1376 = vpop.f32.mrb[0].mxu0
  %v1377 = vadd.f32 %v1088, %v1376
  %v1378 = vpop.f32.mrb[0].mxu0
  %1379 = vmatprep.mubr.bf16.mxu0 0
  %1380 = vmatmul.mubr.bf16.gmra.mrb[0].mxu0 %v848
  %v1381 = vpop.f32.mrb[0].mxu0
  %v1382 = vadd.f32 %v1093, %v1381
  %v1383 = vpop.f32.mrb[0].mxu0
  %v1384 = vpop.f32.mrb[0].mxu0
  %v1385 = vadd.f32 %v1096, %v1384
  %v1386 = vpop.f32.mrb[0].mxu0
  %1387 = vmatprep.mubr.bf16.mxu0 0
  %1388 = vmatmul.mubr.bf16.gmra.mrb[0].mxu0 %v851
  %v1389 = vpop.f32.mrb[0].mxu0
  %v1390 = vadd.f32 %v1101, %v1389
  %v1391 = vpop.f32.mrb[0].mxu0
  %v1392 = vpop.f32.mrb[0].mxu0
  %v1393 = vadd.f32 %v1104, %v1392
  %v1394 = vpop.f32.mrb[0].mxu0
  %1395 = vmatprep.mubr.bf16.mxu0 0
  %1396 = vmatmul.mubr.bf16.gmra.mrb[0].mxu0 %v854
  %v1397 = vpop.f32.mrb[0].mxu0
  %v1398 = vadd.f32 %v1109, %v1397
  %v1399 = vpop.f32.mrb[0].mxu0
  %v1400 = vpop.f32.mrb[0].mxu0
  %v1401 = vadd.f32 %v1112, %v1400
  %v1402 = vpop.f32.mrb[0].mxu0
  %1403 = vmatprep.mubr.bf16.mxu0 0
  %1404 = vmatmul.mubr.bf16.gmra.mrb[0].mxu0 %v857
  %v1405 = vpop.f32.mrb[0].mxu0
  %v1406 = vadd.f32 %v1117, %v1405
  %v1407 = vpop.f32.mrb[0].mxu0
  %v1408 = vpop.f32.mrb[0].mxu0
  %v1409 = vadd.f32 %v1120, %v1408
  %v1410 = vpop.f32.mrb[0].mxu0
  %1411 = vmatprep.mubr.bf16.mxu0 0
  %1412 = vmatmul.mubr.bf16.gmra.mrb[0].mxu0 %v860
  %v1413 = vpop.f32.mrb[0].mxu0
  %v1414 = vadd.f32 %v1125, %v1413
  %v1415 = vpop.f32.mrb[0].mxu0
  %v1416 = vpop.f32.mrb[0].mxu0
  %v1417 = vadd.f32 %v1128, %v1416
  %v1418 = vpop.f32.mrb[0].mxu0
  %1419 = vmatprep.mubr.bf16.mxu0 0
  %1420 = vmatmul.mubr.bf16.gmra.mrb[0].mxu0 %v863
  %v1421 = vpop.f32.mrb[0].mxu0
  %v1422 = vadd.f32 %v1133, %v1421
  %v1423 = vpop.f32.mrb[0].mxu0
  %v1424 = vpop.f32.mrb[0].mxu0
  %v1425 = vadd.f32 %v1136, %v1424
  %v1426 = vpop.f32.mrb[0].mxu0
  %1427 = vmatprep.mubr.bf16.mxu0 0
  %1428 = vmatmul.mubr.bf16.gmra.mrb[0].mxu0 %v866
  %v1429 = vpop.f32.mrb[0].mxu0
  %v1430 = vadd.f32 %v1141, %v1429
  %v1431 = vpop.f32.mrb[0].mxu0
  %v1432 = vpop.f32.mrb[0].mxu0
  %v1433 = vadd.f32 %v1144, %v1432
  %v1434 = vpop.f32.mrb[0].mxu0
  %1435 = vmatprep.mubr.bf16.mxu0 0
  %1436 = vmatmul.mubr.bf16.gmra.mrb[0].mxu0 %v869
  %v1437 = vpop.f32.mrb[0].mxu0
  %v1438 = vadd.f32 %v1149, %v1437
  %v1439 = vpop.f32.mrb[0].mxu0
  %v1440 = vpop.f32.mrb[0].mxu0
  %v1441 = vadd.f32 %v1152, %v1440
  %v1442 = vpop.f32.mrb[0].mxu0
  %1443 = vmatprep.mubr.bf16.mxu0 0
  %1444 = vmatmul.mubr.bf16.gmra.mrb[0].mxu0 %v872
  %v1445 = vpop.f32.mrb[0].mxu0
  %v1446 = vadd.f32 %v1157, %v1445
  %v1447 = vpop.f32.mrb[0].mxu0
  %v1448 = vpop.f32.mrb[0].mxu0
  %v1449 = vadd.f32 %v1160, %v1448
  %v1450 = vpop.f32.mrb[0].mxu0
  %1451 = vdwg.mxu0
  %v1452 = vpack.c.bf16 %v1201, %v1198
  %v1453 = vpack.c.bf16 %v1209, %v1206
  %v1454 = vpack.c.bf16 %v1217, %v1214
  %v1455 = vpack.c.bf16 %v1225, %v1222
  %v1456 = vpack.c.bf16 %v1233, %v1230
  %v1457 = vpack.c.bf16 %v1241, %v1238
  %v1458 = vpack.c.bf16 %v1249, %v1246
  %v1459 = vpack.c.bf16 %v1257, %v1254
  %v1460 = vpack.c.bf16 %v1265, %v1262
  %v1461 = vpack.c.bf16 %v1273, %v1270
  %v1462 = vpack.c.bf16 %v1281, %v1278
  %v1463 = vpack.c.bf16 %v1289, %v1286
  %v1464 = vpack.c.bf16 %v1297, %v1294
  %v1465 = vpack.c.bf16 %v1305, %v1302
  %v1466 = vpack.c.bf16 %v1313, %v1310
  %v1467 = vpack.c.bf16 %v1321, %v1318
  %v1468 = vpack.c.bf16 %v1329, %v1326
  %v1469 = vpack.c.bf16 %v1337, %v1334
  %v1470 = vpack.c.bf16 %v1345, %v1342
  %v1471 = vpack.c.bf16 %v1353, %v1350
  %v1472 = vpack.c.bf16 %v1361, %v1358
  %v1473 = vpack.c.bf16 %v1369, %v1366
  %v1474 = vpack.c.bf16 %v1377, %v1374
  %v1475 = vpack.c.bf16 %v1385, %v1382
  %v1476 = vpack.c.bf16 %v1393, %v1390
  %v1477 = vpack.c.bf16 %v1401, %v1398
  %v1478 = vpack.c.bf16 %v1409, %v1406
  %v1479 = vpack.c.bf16 %v1417, %v1414
  %v1480 = vpack.c.bf16 %v1425, %v1422
  %v1481 = vpack.c.bf16 %v1433, %v1430
  %v1482 = vpack.c.bf16 %v1441, %v1438
  %v1483 = vpack.c.bf16 %v1449, %v1446
  %v1516 = vunpack.c.l.b16 %v1452
  %v1517 = vunpack.c.h.b16 %v1452
  %v1518 = vunpack.c.l.b16 %v1453
  %v1519 = vunpack.c.h.b16 %v1453
  %v1520 = vunpack.c.l.b16 %v1454
  %v1521 = vunpack.c.h.b16 %v1454
  %v1522 = vunpack.c.l.b16 %v1455
  %v1523 = vunpack.c.h.b16 %v1455
  %v1524 = vunpack.c.l.b16 %v1456
  %v1525 = vunpack.c.h.b16 %v1456
  %v1526 = vunpack.c.l.b16 %v1457
  %v1527 = vunpack.c.h.b16 %v1457
  %v1528 = vunpack.c.l.b16 %v1458
  %v1529 = vunpack.c.h.b16 %v1458
  %v1530 = vunpack.c.l.b16 %v1459
  %v1531 = vunpack.c.h.b16 %v1459
  %v1532 = vunpack.c.l.b16 %v1460
  %v1533 = vunpack.c.h.b16 %v1460
  %v1534 = vunpack.c.l.b16 %v1461
  %v1535 = vunpack.c.h.b16 %v1461
  %v1536 = vunpack.c.l.b16 %v1462
  %v1537 = vunpack.c.h.b16 %v1462
  %v1538 = vunpack.c.l.b16 %v1463
  %v1539 = vunpack.c.h.b16 %v1463
  %v1540 = vunpack.c.l.b16 %v1464
  %v1541 = vunpack.c.h.b16 %v1464
  %v1542 = vunpack.c.l.b16 %v1465
  %v1543 = vunpack.c.h.b16 %v1465
  %v1544 = vunpack.c.l.b16 %v1466
  %v1545 = vunpack.c.h.b16 %v1466
  %v1546 = vunpack.c.l.b16 %v1467
  %v1547 = vunpack.c.h.b16 %v1467
  %v1548 = vunpack.c.l.b16 %v1468
  %v1549 = vunpack.c.h.b16 %v1468
  %v1550 = vunpack.c.l.b16 %v1469
  %v1551 = vunpack.c.h.b16 %v1469
  %v1552 = vunpack.c.l.b16 %v1470
  %v1553 = vunpack.c.h.b16 %v1470
  %v1554 = vunpack.c.l.b16 %v1471
  %v1555 = vunpack.c.h.b16 %v1471
  %v1556 = vunpack.c.l.b16 %v1472
  %v1557 = vunpack.c.h.b16 %v1472
  %v1558 = vunpack.c.l.b16 %v1473
  %v1559 = vunpack.c.h.b16 %v1473
  %v1560 = vunpack.c.l.b16 %v1474
  %v1561 = vunpack.c.h.b16 %v1474
  %v1562 = vunpack.c.l.b16 %v1475
  %v1563 = vunpack.c.h.b16 %v1475
  %v1564 = vunpack.c.l.b16 %v1476
  %v1565 = vunpack.c.h.b16 %v1476
  %v1566 = vunpack.c.l.b16 %v1477
  %v1567 = vunpack.c.h.b16 %v1477
  %v1568 = vunpack.c.l.b16 %v1478
  %v1569 = vunpack.c.h.b16 %v1478
  %v1570 = vunpack.c.l.b16 %v1479
  %v1571 = vunpack.c.h.b16 %v1479
  %v1572 = vunpack.c.l.b16 %v1480
  %v1573 = vunpack.c.h.b16 %v1480
  %v1574 = vunpack.c.l.b16 %v1481
  %v1575 = vunpack.c.h.b16 %v1481
  %v1576 = vunpack.c.l.b16 %v1482
  %v1577 = vunpack.c.h.b16 %v1482
  %v1578 = vunpack.c.l.b16 %v1483
  %v1579 = vunpack.c.h.b16 %v1483
  %v1580 = vpack.c.b16 %v1516, %v1516
  %v1581 = vpack.c.b16 %v1517, %v1517
  %v1582 = vpack.c.b16 %v1518, %v1518
  %v1583 = vpack.c.b16 %v1519, %v1519
  %v1584 = vpack.c.b16 %v1520, %v1520
  %v1585 = vpack.c.b16 %v1521, %v1521
  %v1586 = vpack.c.b16 %v1522, %v1522
  %v1587 = vpack.c.b16 %v1523, %v1523
  %v1588 = vpack.c.b16 %v1524, %v1524
  %v1589 = vpack.c.b16 %v1525, %v1525
  %v1590 = vpack.c.b16 %v1526, %v1526
  %v1591 = vpack.c.b16 %v1527, %v1527
  %v1592 = vpack.c.b16 %v1528, %v1528
  %v1593 = vpack.c.b16 %v1529, %v1529
  %v1594 = vpack.c.b16 %v1530, %v1530
  %v1595 = vpack.c.b16 %v1531, %v1531
  %v1596 = vpack.c.b16 %v1532, %v1532
  %v1597 = vpack.c.b16 %v1533, %v1533
  %v1598 = vpack.c.b16 %v1534, %v1534
  %v1599 = vpack.c.b16 %v1535, %v1535
  %v1600 = vpack.c.b16 %v1536, %v1536
  %v1601 = vpack.c.b16 %v1537, %v1537
  %v1602 = vpack.c.b16 %v1538, %v1538
  %v1603 = vpack.c.b16 %v1539, %v1539
  %v1604 = vpack.c.b16 %v1540, %v1540
  %v1605 = vpack.c.b16 %v1541, %v1541
  %v1606 = vpack.c.b16 %v1542, %v1542
  %v1607 = vpack.c.b16 %v1543, %v1543
  %v1608 = vpack.c.b16 %v1544, %v1544
  %v1609 = vpack.c.b16 %v1545, %v1545
  %v1610 = vpack.c.b16 %v1546, %v1546
  %v1611 = vpack.c.b16 %v1547, %v1547
  %v1612 = vpack.c.b16 %v1548, %v1548
  %v1613 = vpack.c.b16 %v1549, %v1549
  %v1614 = vpack.c.b16 %v1550, %v1550
  %v1615 = vpack.c.b16 %v1551, %v1551
  %v1616 = vpack.c.b16 %v1552, %v1552
  %v1617 = vpack.c.b16 %v1553, %v1553
  %v1618 = vpack.c.b16 %v1554, %v1554
  %v1619 = vpack.c.b16 %v1555, %v1555
  %v1620 = vpack.c.b16 %v1556, %v1556
  %v1621 = vpack.c.b16 %v1557, %v1557
  %v1622 = vpack.c.b16 %v1558, %v1558
  %v1623 = vpack.c.b16 %v1559, %v1559
  %v1624 = vpack.c.b16 %v1560, %v1560
  %v1625 = vpack.c.b16 %v1561, %v1561
  %v1626 = vpack.c.b16 %v1562, %v1562
  %v1627 = vpack.c.b16 %v1563, %v1563
  %v1628 = vpack.c.b16 %v1564, %v1564
  %v1629 = vpack.c.b16 %v1565, %v1565
  %v1630 = vpack.c.b16 %v1566, %v1566
  %v1631 = vpack.c.b16 %v1567, %v1567
  %v1632 = vpack.c.b16 %v1568, %v1568
  %v1633 = vpack.c.b16 %v1569, %v1569
  %v1634 = vpack.c.b16 %v1570, %v1570
  %v1635 = vpack.c.b16 %v1571, %v1571
  %v1636 = vpack.c.b16 %v1572, %v1572
  %v1637 = vpack.c.b16 %v1573, %v1573
  %v1638 = vpack.c.b16 %v1574, %v1574
  %v1639 = vpack.c.b16 %v1575, %v1575
  %v1640 = vpack.c.b16 %v1576, %v1576
  %v1641 = vpack.c.b16 %v1577, %v1577
  %v1642 = vpack.c.b16 %v1578, %v1578
  %v1643 = vpack.c.b16 %v1579, %v1579
  %vm1708 = vcmask 519168
  %1709 = vst.msk [vmem:[%s3] sm:$0xf] %vm1708, %v1580
  %1710 = vst.msk [vmem:[%s3 + $0x4] sm:$0xf] %vm1708, %v1581
  %1711 = vst.msk [vmem:[%s3 + $0x8] sm:$0xf] %vm1708, %v1582
  %1712 = vst.msk [vmem:[%s3 + $0xc] sm:$0xf] %vm1708, %v1583
  %1713 = vst.msk [vmem:[%s3 + $0x10] sm:$0xf] %vm1708, %v1584
  %1714 = vst.msk [vmem:[%s3 + $0x14] sm:$0xf] %vm1708, %v1585
  %1715 = vst.msk [vmem:[%s3 + $0x18] sm:$0xf] %vm1708, %v1586
  %1716 = vst.msk [vmem:[%s3 + $0x1c] sm:$0xf] %vm1708, %v1587
  %1717 = vst.msk [vmem:[%s3 + $0x20] sm:$0xf] %vm1708, %v1588
  %1718 = vst.msk [vmem:[%s3 + $0x24] sm:$0xf] %vm1708, %v1589
  %1719 = vst.msk [vmem:[%s3 + $0x28] sm:$0xf] %vm1708, %v1590
  %1720 = vst.msk [vmem:[%s3 + $0x2c] sm:$0xf] %vm1708, %v1591
  %1721 = vst.msk [vmem:[%s3 + $0x30] sm:$0xf] %vm1708, %v1592
  %1722 = vst.msk [vmem:[%s3 + $0x34] sm:$0xf] %vm1708, %v1593
  %1723 = vst.msk [vmem:[%s3 + $0x38] sm:$0xf] %vm1708, %v1594
  %1724 = vst.msk [vmem:[%s3 + $0x3c] sm:$0xf] %vm1708, %v1595
  %1725 = vst.msk [vmem:[%s3 + $0x40] sm:$0xf] %vm1708, %v1596
  %1726 = vst.msk [vmem:[%s3 + $0x44] sm:$0xf] %vm1708, %v1597
  %1727 = vst.msk [vmem:[%s3 + $0x48] sm:$0xf] %vm1708, %v1598
  %1728 = vst.msk [vmem:[%s3 + $0x4c] sm:$0xf] %vm1708, %v1599
  %1729 = vst.msk [vmem:[%s3 + $0x50] sm:$0xf] %vm1708, %v1600
  %1730 = vst.msk [vmem:[%s3 + $0x54] sm:$0xf] %vm1708, %v1601
  %1731 = vst.msk [vmem:[%s3 + $0x58] sm:$0xf] %vm1708, %v1602
  %1732 = vst.msk [vmem:[%s3 + $0x5c] sm:$0xf] %vm1708, %v1603
  %1733 = vst.msk [vmem:[%s3 + $0x60] sm:$0xf] %vm1708, %v1604
  %1734 = vst.msk [vmem:[%s3 + $0x64] sm:$0xf] %vm1708, %v1605
  %1735 = vst.msk [vmem:[%s3 + $0x68] sm:$0xf] %vm1708, %v1606
  %1736 = vst.msk [vmem:[%s3 + $0x6c] sm:$0xf] %vm1708, %v1607
  %1737 = vst.msk [vmem:[%s3 + $0x70] sm:$0xf] %vm1708, %v1608
  %1738 = vst.msk [vmem:[%s3 + $0x74] sm:$0xf] %vm1708, %v1609
  %1739 = vst.msk [vmem:[%s3 + $0x78] sm:$0xf] %vm1708, %v1610
  %1740 = vst.msk [vmem:[%s3 + $0x7c] sm:$0xf] %vm1708, %v1611
  %1741 = vst.msk [vmem:[%s3 + $0x80] sm:$0xf] %vm1708, %v1612
  %1742 = vst.msk [vmem:[%s3 + $0x84] sm:$0xf] %vm1708, %v1613
  %1743 = vst.msk [vmem:[%s3 + $0x88] sm:$0xf] %vm1708, %v1614
  %1744 = vst.msk [vmem:[%s3 + $0x8c] sm:$0xf] %vm1708, %v1615
  %1745 = vst.msk [vmem:[%s3 + $0x90] sm:$0xf] %vm1708, %v1616
  %1746 = vst.msk [vmem:[%s3 + $0x94] sm:$0xf] %vm1708, %v1617
  %1747 = vst.msk [vmem:[%s3 + $0x98] sm:$0xf] %vm1708, %v1618
  %1748 = vst.msk [vmem:[%s3 + $0x9c] sm:$0xf] %vm1708, %v1619
  %1749 = vst.msk [vmem:[%s3 + $0xa0] sm:$0xf] %vm1708, %v1620
  %1750 = vst.msk [vmem:[%s3 + $0xa4] sm:$0xf] %vm1708, %v1621
  %1751 = vst.msk [vmem:[%s3 + $0xa8] sm:$0xf] %vm1708, %v1622
  %1752 = vst.msk [vmem:[%s3 + $0xac] sm:$0xf] %vm1708, %v1623
  %1753 = vst.msk [vmem:[%s3 + $0xb0] sm:$0xf] %vm1708, %v1624
  %1754 = vst.msk [vmem:[%s3 + $0xb4] sm:$0xf] %vm1708, %v1625
  %1755 = vst.msk [vmem:[%s3 + $0xb8] sm:$0xf] %vm1708, %v1626
  %1756 = vst.msk [vmem:[%s3 + $0xbc] sm:$0xf] %vm1708, %v1627
  %1757 = vst.msk [vmem:[%s3 + $0xc0] sm:$0xf] %vm1708, %v1628
  %1758 = vst.msk [vmem:[%s3 + $0xc4] sm:$0xf] %vm1708, %v1629
  %1759 = vst.msk [vmem:[%s3 + $0xc8] sm:$0xf] %vm1708, %v1630
  %1760 = vst.msk [vmem:[%s3 + $0xcc] sm:$0xf] %vm1708, %v1631
  %1761 = vst.msk [vmem:[%s3 + $0xd0] sm:$0xf] %vm1708, %v1632
  %1762 = vst.msk [vmem:[%s3 + $0xd4] sm:$0xf] %vm1708, %v1633
  %1763 = vst.msk [vmem:[%s3 + $0xd8] sm:$0xf] %vm1708, %v1634
  %1764 = vst.msk [vmem:[%s3 + $0xdc] sm:$0xf] %vm1708, %v1635
  %1765 = vst.msk [vmem:[%s3 + $0xe0] sm:$0xf] %vm1708, %v1636
  %1766 = vst.msk [vmem:[%s3 + $0xe4] sm:$0xf] %vm1708, %v1637
  %1767 = vst.msk [vmem:[%s3 + $0xe8] sm:$0xf] %vm1708, %v1638
  %1768 = vst.msk [vmem:[%s3 + $0xec] sm:$0xf] %vm1708, %v1639
  %1769 = vst.msk [vmem:[%s3 + $0xf0] sm:$0xf] %vm1708, %v1640
  %1770 = vst.msk [vmem:[%s3 + $0xf4] sm:$0xf] %vm1708, %v1641
  %1771 = vst.msk [vmem:[%s3 + $0xf8] sm:$0xf] %vm1708, %v1642
  %1772 = vst.msk [vmem:[%s3 + $0xfc] sm:$0xf] %vm1708, %v1643
  %vm1773 = vcmask 523264
  %v1774 = vsel %vm1773, %v1198, 0.0
  %v1775 = vsel %vm1773, %v1201, 0.0
  %v1776 = vadd.f32 %v1774, %v1775
  %v1777 = vsel %vm1773, %v1206, 0.0
  %v1778 = vadd.f32 %v1776, %v1777
  %v1779 = vsel %vm1773, %v1209, 0.0
  %v1780 = vadd.f32 %v1778, %v1779
  %v1781 = vsel %vm1773, %v1214, 0.0
  %v1782 = vadd.f32 %v1780, %v1781
  %v1783 = vsel %vm1773, %v1217, 0.0
  %v1784 = vadd.f32 %v1782, %v1783
  %v1785 = vsel %vm1773, %v1222, 0.0
  %v1786 = vadd.f32 %v1784, %v1785
  %v1787 = vsel %vm1773, %v1225, 0.0
  %v1788 = vadd.f32 %v1786, %v1787
  %v1789 = vsel %vm1773, %v1230, 0.0
  %v1790 = vadd.f32 %v1788, %v1789
  %v1791 = vsel %vm1773, %v1233, 0.0
  %v1792 = vadd.f32 %v1790, %v1791
  %v1793 = vsel %vm1773, %v1238, 0.0
  %v1794 = vadd.f32 %v1792, %v1793
  %v1795 = vsel %vm1773, %v1241, 0.0
  %v1796 = vadd.f32 %v1794, %v1795
  %v1797 = vsel %vm1773, %v1246, 0.0
  %v1798 = vadd.f32 %v1796, %v1797
  %v1799 = vsel %vm1773, %v1249, 0.0
  %v1800 = vadd.f32 %v1798, %v1799
  %v1801 = vsel %vm1773, %v1254, 0.0
  %v1802 = vadd.f32 %v1800, %v1801
  %v1803 = vsel %vm1773, %v1257, 0.0
  %v1804 = vadd.f32 %v1802, %v1803
  %v1805 = vsel %vm1773, %v1262, 0.0
  %v1806 = vadd.f32 %v1804, %v1805
  %v1807 = vsel %vm1773, %v1265, 0.0
  %v1808 = vadd.f32 %v1806, %v1807
  %v1809 = vsel %vm1773, %v1270, 0.0
  %v1810 = vadd.f32 %v1808, %v1809
  %v1811 = vsel %vm1773, %v1273, 0.0
  %v1812 = vadd.f32 %v1810, %v1811
  %v1813 = vsel %vm1773, %v1278, 0.0
  %v1814 = vadd.f32 %v1812, %v1813
  %v1815 = vsel %vm1773, %v1281, 0.0
  %v1816 = vadd.f32 %v1814, %v1815
  %v1817 = vsel %vm1773, %v1286, 0.0
  %v1818 = vadd.f32 %v1816, %v1817
  %v1819 = vsel %vm1773, %v1289, 0.0
  %v1820 = vadd.f32 %v1818, %v1819
  %v1821 = vsel %vm1773, %v1294, 0.0
  %v1822 = vadd.f32 %v1820, %v1821
  %v1823 = vsel %vm1773, %v1297, 0.0
  %v1824 = vadd.f32 %v1822, %v1823
  %v1825 = vsel %vm1773, %v1302, 0.0
  %v1826 = vadd.f32 %v1824, %v1825
  %v1827 = vsel %vm1773, %v1305, 0.0
  %v1828 = vadd.f32 %v1826, %v1827
  %v1829 = vsel %vm1773, %v1310, 0.0
  %v1830 = vadd.f32 %v1828, %v1829
  %v1831 = vsel %vm1773, %v1313, 0.0
  %v1832 = vadd.f32 %v1830, %v1831
  %v1833 = vsel %vm1773, %v1318, 0.0
  %v1834 = vadd.f32 %v1832, %v1833
  %v1835 = vsel %vm1773, %v1321, 0.0
  %v1836 = vadd.f32 %v1834, %v1835
  %v1837 = vsel %vm1773, %v1326, 0.0
  %v1838 = vadd.f32 %v1836, %v1837
  %v1839 = vsel %vm1773, %v1329, 0.0
  %v1840 = vadd.f32 %v1838, %v1839
  %v1841 = vsel %vm1773, %v1334, 0.0
  %v1842 = vadd.f32 %v1840, %v1841
  %v1843 = vsel %vm1773, %v1337, 0.0
  %v1844 = vadd.f32 %v1842, %v1843
  %v1845 = vsel %vm1773, %v1342, 0.0
  %v1846 = vadd.f32 %v1844, %v1845
  %v1847 = vsel %vm1773, %v1345, 0.0
  %v1848 = vadd.f32 %v1846, %v1847
  %v1849 = vsel %vm1773, %v1350, 0.0
  %v1850 = vadd.f32 %v1848, %v1849
  %v1851 = vsel %vm1773, %v1353, 0.0
  %v1852 = vadd.f32 %v1850, %v1851
  %v1853 = vsel %vm1773, %v1358, 0.0
  %v1854 = vadd.f32 %v1852, %v1853
  %v1855 = vsel %vm1773, %v1361, 0.0
  %v1856 = vadd.f32 %v1854, %v1855
  %v1857 = vsel %vm1773, %v1366, 0.0
  %v1858 = vadd.f32 %v1856, %v1857
  %v1859 = vsel %vm1773, %v1369, 0.0
  %v1860 = vadd.f32 %v1858, %v1859
  %v1861 = vsel %vm1773, %v1374, 0.0
  %v1862 = vadd.f32 %v1860, %v1861
  %v1863 = vsel %vm1773, %v1377, 0.0
  %v1864 = vadd.f32 %v1862, %v1863
  %v1865 = vsel %vm1773, %v1382, 0.0
  %v1866 = vadd.f32 %v1864, %v1865
  %v1867 = vsel %vm1773, %v1385, 0.0
  %v1868 = vadd.f32 %v1866, %v1867
  %v1869 = vsel %vm1773, %v1390, 0.0
  %v1870 = vadd.f32 %v1868, %v1869
  %v1871 = vsel %vm1773, %v1393, 0.0
  %v1872 = vadd.f32 %v1870, %v1871
  %v1873 = vsel %vm1773, %v1398, 0.0
  %v1874 = vadd.f32 %v1872, %v1873
  %v1875 = vsel %vm1773, %v1401, 0.0
  %v1876 = vadd.f32 %v1874, %v1875
  %v1877 = vsel %vm1773, %v1406, 0.0
  %v1878 = vadd.f32 %v1876, %v1877
  %v1879 = vsel %vm1773, %v1409, 0.0
  %v1880 = vadd.f32 %v1878, %v1879
  %v1881 = vsel %vm1773, %v1414, 0.0
  %v1882 = vadd.f32 %v1880, %v1881
  %v1883 = vsel %vm1773, %v1417, 0.0
  %v1884 = vadd.f32 %v1882, %v1883
  %v1885 = vsel %vm1773, %v1422, 0.0
  %v1886 = vadd.f32 %v1884, %v1885
  %v1887 = vsel %vm1773, %v1425, 0.0
  %v1888 = vadd.f32 %v1886, %v1887
  %v1889 = vsel %vm1773, %v1430, 0.0
  %v1890 = vadd.f32 %v1888, %v1889
  %v1891 = vsel %vm1773, %v1433, 0.0
  %v1892 = vadd.f32 %v1890, %v1891
  %v1893 = vsel %vm1773, %v1438, 0.0
  %v1894 = vadd.f32 %v1892, %v1893
  %v1895 = vsel %vm1773, %v1441, 0.0
  %v1896 = vadd.f32 %v1894, %v1895
  %v1897 = vsel %vm1773, %v1446, 0.0
  %v1898 = vadd.f32 %v1896, %v1897
  %v1899 = vsel %vm1773, %v1449, 0.0
  %v1900 = vadd.f32 %v1898, %v1899
  %v1901 = vrot.slane %v1900, 4
  %v1902 = vadd.f32 %v1900, %v1901
  %v1903 = vrot.slane %v1902, 2
  %v1904 = vadd.f32 %v1902, %v1903
  %v1905 = vrot.slane %v1904, 1
  %v1906 = vadd.f32 %v1904, %v1905
  %v1907 = vmul.f32 %v1198, %v1198
  %v1908 = vmul.f32 %v1201, %v1201
  %v1909 = vmul.f32 %v1206, %v1206
  %v1910 = vmul.f32 %v1209, %v1209
  %v1911 = vmul.f32 %v1214, %v1214
  %v1912 = vmul.f32 %v1217, %v1217
  %v1913 = vmul.f32 %v1222, %v1222
  %v1914 = vmul.f32 %v1225, %v1225
  %v1915 = vmul.f32 %v1230, %v1230
  %v1916 = vmul.f32 %v1233, %v1233
  %v1917 = vmul.f32 %v1238, %v1238
  %v1918 = vmul.f32 %v1241, %v1241
  %v1919 = vmul.f32 %v1246, %v1246
  %v1920 = vmul.f32 %v1249, %v1249
  %v1921 = vmul.f32 %v1254, %v1254
  %v1922 = vmul.f32 %v1257, %v1257
  %v1923 = vmul.f32 %v1262, %v1262
  %v1924 = vmul.f32 %v1265, %v1265
  %v1925 = vmul.f32 %v1270, %v1270
  %v1926 = vmul.f32 %v1273, %v1273
  %v1927 = vmul.f32 %v1278, %v1278
  %v1928 = vmul.f32 %v1281, %v1281
  %v1929 = vmul.f32 %v1286, %v1286
  %v1930 = vmul.f32 %v1289, %v1289
  %v1931 = vmul.f32 %v1294, %v1294
  %v1932 = vmul.f32 %v1297, %v1297
  %v1933 = vmul.f32 %v1302, %v1302
  %v1934 = vmul.f32 %v1305, %v1305
  %v1935 = vmul.f32 %v1310, %v1310
  %v1936 = vmul.f32 %v1313, %v1313
  %v1937 = vmul.f32 %v1318, %v1318
  %v1938 = vmul.f32 %v1321, %v1321
  %v1939 = vmul.f32 %v1326, %v1326
  %v1940 = vmul.f32 %v1329, %v1329
  %v1941 = vmul.f32 %v1334, %v1334
  %v1942 = vmul.f32 %v1337, %v1337
  %v1943 = vmul.f32 %v1342, %v1342
  %v1944 = vmul.f32 %v1345, %v1345
  %v1945 = vmul.f32 %v1350, %v1350
  %v1946 = vmul.f32 %v1353, %v1353
  %v1947 = vmul.f32 %v1358, %v1358
  %v1948 = vmul.f32 %v1361, %v1361
  %v1949 = vmul.f32 %v1366, %v1366
  %v1950 = vmul.f32 %v1369, %v1369
  %v1951 = vmul.f32 %v1374, %v1374
  %v1952 = vmul.f32 %v1377, %v1377
  %v1953 = vmul.f32 %v1382, %v1382
  %v1954 = vmul.f32 %v1385, %v1385
  %v1955 = vmul.f32 %v1390, %v1390
  %v1956 = vmul.f32 %v1393, %v1393
  %v1957 = vmul.f32 %v1398, %v1398
  %v1958 = vmul.f32 %v1401, %v1401
  %v1959 = vmul.f32 %v1406, %v1406
  %v1960 = vmul.f32 %v1409, %v1409
  %v1961 = vmul.f32 %v1414, %v1414
  %v1962 = vmul.f32 %v1417, %v1417
  %v1963 = vmul.f32 %v1422, %v1422
  %v1964 = vmul.f32 %v1425, %v1425
  %v1965 = vmul.f32 %v1430, %v1430
  %v1966 = vmul.f32 %v1433, %v1433
  %v1967 = vmul.f32 %v1438, %v1438
  %v1968 = vmul.f32 %v1441, %v1441
  %v1969 = vmul.f32 %v1446, %v1446
  %v1970 = vmul.f32 %v1449, %v1449
  %v1971 = vsel %vm1773, %v1907, 0.0
  %v1972 = vsel %vm1773, %v1908, 0.0
  %v1973 = vadd.f32 %v1971, %v1972
  %v1974 = vsel %vm1773, %v1909, 0.0
  %v1975 = vadd.f32 %v1973, %v1974
  %v1976 = vsel %vm1773, %v1910, 0.0
  %v1977 = vadd.f32 %v1975, %v1976
  %v1978 = vsel %vm1773, %v1911, 0.0
  %v1979 = vadd.f32 %v1977, %v1978
  %v1980 = vsel %vm1773, %v1912, 0.0
  %v1981 = vadd.f32 %v1979, %v1980
  %v1982 = vsel %vm1773, %v1913, 0.0
  %v1983 = vadd.f32 %v1981, %v1982
  %v1984 = vsel %vm1773, %v1914, 0.0
  %v1985 = vadd.f32 %v1983, %v1984
  %v1986 = vsel %vm1773, %v1915, 0.0
  %v1987 = vadd.f32 %v1985, %v1986
  %v1988 = vsel %vm1773, %v1916, 0.0
  %v1989 = vadd.f32 %v1987, %v1988
  %v1990 = vsel %vm1773, %v1917, 0.0
  %v1991 = vadd.f32 %v1989, %v1990
  %v1992 = vsel %vm1773, %v1918, 0.0
  %v1993 = vadd.f32 %v1991, %v1992
  %v1994 = vsel %vm1773, %v1919, 0.0
  %v1995 = vadd.f32 %v1993, %v1994
  %v1996 = vsel %vm1773, %v1920, 0.0
  %v1997 = vadd.f32 %v1995, %v1996
  %v1998 = vsel %vm1773, %v1921, 0.0
  %v1999 = vadd.f32 %v1997, %v1998
  %v2000 = vsel %vm1773, %v1922, 0.0
  %v2001 = vadd.f32 %v1999, %v2000
  %v2002 = vsel %vm1773, %v1923, 0.0
  %v2003 = vadd.f32 %v2001, %v2002
  %v2004 = vsel %vm1773, %v1924, 0.0
  %v2005 = vadd.f32 %v2003, %v2004
  %v2006 = vsel %vm1773, %v1925, 0.0
  %v2007 = vadd.f32 %v2005, %v2006
  %v2008 = vsel %vm1773, %v1926, 0.0
  %v2009 = vadd.f32 %v2007, %v2008
  %v2010 = vsel %vm1773, %v1927, 0.0
  %v2011 = vadd.f32 %v2009, %v2010
  %v2012 = vsel %vm1773, %v1928, 0.0
  %v2013 = vadd.f32 %v2011, %v2012
  %v2014 = vsel %vm1773, %v1929, 0.0
  %v2015 = vadd.f32 %v2013, %v2014
  %v2016 = vsel %vm1773, %v1930, 0.0
  %v2017 = vadd.f32 %v2015, %v2016
  %v2018 = vsel %vm1773, %v1931, 0.0
  %v2019 = vadd.f32 %v2017, %v2018
  %v2020 = vsel %vm1773, %v1932, 0.0
  %v2021 = vadd.f32 %v2019, %v2020
  %v2022 = vsel %vm1773, %v1933, 0.0
  %v2023 = vadd.f32 %v2021, %v2022
  %v2024 = vsel %vm1773, %v1934, 0.0
  %v2025 = vadd.f32 %v2023, %v2024
  %v2026 = vsel %vm1773, %v1935, 0.0
  %v2027 = vadd.f32 %v2025, %v2026
  %v2028 = vsel %vm1773, %v1936, 0.0
  %v2029 = vadd.f32 %v2027, %v2028
  %v2030 = vsel %vm1773, %v1937, 0.0
  %v2031 = vadd.f32 %v2029, %v2030
  %v2032 = vsel %vm1773, %v1938, 0.0
  %v2033 = vadd.f32 %v2031, %v2032
  %v2034 = vsel %vm1773, %v1939, 0.0
  %v2035 = vadd.f32 %v2033, %v2034
  %v2036 = vsel %vm1773, %v1940, 0.0
  %v2037 = vadd.f32 %v2035, %v2036
  %v2038 = vsel %vm1773, %v1941, 0.0
  %v2039 = vadd.f32 %v2037, %v2038
  %v2040 = vsel %vm1773, %v1942, 0.0
  %v2041 = vadd.f32 %v2039, %v2040
  %v2042 = vsel %vm1773, %v1943, 0.0
  %v2043 = vadd.f32 %v2041, %v2042
  %v2044 = vsel %vm1773, %v1944, 0.0
  %v2045 = vadd.f32 %v2043, %v2044
  %v2046 = vsel %vm1773, %v1945, 0.0
  %v2047 = vadd.f32 %v2045, %v2046
  %v2048 = vsel %vm1773, %v1946, 0.0
  %v2049 = vadd.f32 %v2047, %v2048
  %v2050 = vsel %vm1773, %v1947, 0.0
  %v2051 = vadd.f32 %v2049, %v2050
  %v2052 = vsel %vm1773, %v1948, 0.0
  %v2053 = vadd.f32 %v2051, %v2052
  %v2054 = vsel %vm1773, %v1949, 0.0
  %v2055 = vadd.f32 %v2053, %v2054
  %v2056 = vsel %vm1773, %v1950, 0.0
  %v2057 = vadd.f32 %v2055, %v2056
  %v2058 = vsel %vm1773, %v1951, 0.0
  %v2059 = vadd.f32 %v2057, %v2058
  %v2060 = vsel %vm1773, %v1952, 0.0
  %v2061 = vadd.f32 %v2059, %v2060
  %v2062 = vsel %vm1773, %v1953, 0.0
  %v2063 = vadd.f32 %v2061, %v2062
  %v2064 = vsel %vm1773, %v1954, 0.0
  %v2065 = vadd.f32 %v2063, %v2064
  %v2066 = vsel %vm1773, %v1955, 0.0
  %v2067 = vadd.f32 %v2065, %v2066
  %v2068 = vsel %vm1773, %v1956, 0.0
  %v2069 = vadd.f32 %v2067, %v2068
  %v2070 = vsel %vm1773, %v1957, 0.0
  %v2071 = vadd.f32 %v2069, %v2070
  %v2072 = vsel %vm1773, %v1958, 0.0
  %v2073 = vadd.f32 %v2071, %v2072
  %v2074 = vsel %vm1773, %v1959, 0.0
  %v2075 = vadd.f32 %v2073, %v2074
  %v2076 = vsel %vm1773, %v1960, 0.0
  %v2077 = vadd.f32 %v2075, %v2076
  %v2078 = vsel %vm1773, %v1961, 0.0
  %v2079 = vadd.f32 %v2077, %v2078
  %v2080 = vsel %vm1773, %v1962, 0.0
  %v2081 = vadd.f32 %v2079, %v2080
  %v2082 = vsel %vm1773, %v1963, 0.0
  %v2083 = vadd.f32 %v2081, %v2082
  %v2084 = vsel %vm1773, %v1964, 0.0
  %v2085 = vadd.f32 %v2083, %v2084
  %v2086 = vsel %vm1773, %v1965, 0.0
  %v2087 = vadd.f32 %v2085, %v2086
  %v2088 = vsel %vm1773, %v1966, 0.0
  %v2089 = vadd.f32 %v2087, %v2088
  %v2090 = vsel %vm1773, %v1967, 0.0
  %v2091 = vadd.f32 %v2089, %v2090
  %v2092 = vsel %vm1773, %v1968, 0.0
  %v2093 = vadd.f32 %v2091, %v2092
  %v2094 = vsel %vm1773, %v1969, 0.0
  %v2095 = vadd.f32 %v2093, %v2094
  %v2096 = vsel %vm1773, %v1970, 0.0
  %v2097 = vadd.f32 %v2095, %v2096
  %v2098 = vrot.slane %v2097, 4
  %v2099 = vadd.f32 %v2097, %v2098
  %v2100 = vrot.slane %v2099, 2
  %v2101 = vadd.f32 %v2099, %v2100
  %v2102 = vrot.slane %v2101, 1
  %v2103 = vadd.f32 %v2101, %v2102
  %vm2104 = vcmask 516096
  %2105 = vst.msk [vmem:[%s4] sm:$0x1] %vm2104, %v1906
  %2106 = vst.msk [vmem:[%s5] sm:$0x1] %vm2104, %v2103
  // Predicated region
  $region14: #{dgr_cnn_forward.4} parent=0 // pred_check
    _
  $region15: #{dgr_cnn_forward.4} parent=0 // pred_check_branch
    %2108 = sbr.rel (0) target = $region17
  $region16: #{dgr_cnn_forward.4} parent=0 // pred_region
    _
  $region17: #{dgr_cnn_forward.4} parent=0 // pred_fallthru
    _
  // Predicated region
  $region18: #{dgr_cnn_forward.4} parent=0 // pred_check
    _
  $region19: #{dgr_cnn_forward.4} parent=0 // pred_check_branch
    %2110 = sbr.rel (0) target = $region21
  $region20: #{dgr_cnn_forward.4} parent=0 // pred_region
    _
  $region21: #{dgr_cnn_forward.4} parent=0 // pred_fallthru
    _
  // Predicated region
  $region22: #{dgr_cnn_forward.4} parent=0 // pred_check
    _
  $region23: #{dgr_cnn_forward.4} parent=0 // pred_check_branch
    %2112 = sbr.rel (0) target = $region25
  $region24: #{dgr_cnn_forward.4} parent=0 // pred_region
    _
  $region25: #{dgr_cnn_forward.4} parent=0 // pred_fallthru
    _
  // Predicated region
  $region26: #{dgr_cnn_forward.4} parent=0 // pred_check
    _
  $region27: #{dgr_cnn_forward.4} parent=0 // pred_check_branch
    %2114 = sbr.rel (0) target = $region29
  $region28: #{dgr_cnn_forward.4} parent=0 // pred_region
    _
  $region29: #{dgr_cnn_forward.4} parent=0 // pred_fallthru
    _
  // Predicated region
  $region30: #{dgr_cnn_forward.4} parent=0 // pred_check
    _
  $region31: #{dgr_cnn_forward.4} parent=0 // pred_check_branch
    %2116 = sbr.rel (0) target = $region33
  $region32: #{dgr_cnn_forward.4} parent=0 // pred_region
    _
  $region33: #{dgr_cnn_forward.4} parent=0 // pred_fallthru
    _
  // Predicated region
  $region34: #{dgr_cnn_forward.4} parent=0 // pred_check
    _
  $region35: #{dgr_cnn_forward.4} parent=0 // pred_check_branch
    %2118 = sbr.rel (0) target = $region37
  $region36: #{dgr_cnn_forward.4} parent=0 // pred_region
    _
  $region37: #{dgr_cnn_forward.4} parent=0 // pred_fallthru
    _

// kernel: tile.18
$region0: #{tile.18}
  #allocation0 [shape = 's32[1]{0}', space=sflag, size = 0x4, scoped, tag = 'scoped memory for tile.18']
  %s0 = inlined_call_operand.vmem [shape: f32[64], index: 0, kind: input, shape index: {}]
  %s1 = inlined_call_operand.vmem [shape: f32[256,64], index: 1, kind: output, shape index: {}]
  // Predicated region
  $region2: #{tile.18} parent=0 // pred_check
    _
  $region3: #{tile.18} parent=0 // pred_check_branch
    %3 = sbr.rel (0) target = $region5
  $region4: #{tile.18} parent=0 // pred_region
    _
  $region5: #{tile.18} parent=0 // pred_fallthru
    _
  %v4 = vld [vmem:[%s0] ss:$0 sm:$0xff]
  %5 = vst [vmem:[%s1] sm:$0xff] %v4
  %s6 = scalar_lea.vmem %s1, 8
  %7 = vst [vmem:[%s6] sm:$0xff] %v4
  %s8 = scalar_lea.vmem %s1, 16
  %9 = vst [vmem:[%s8] sm:$0xff] %v4
  %s10 = scalar_lea.vmem %s1, 24
  %11 = vst [vmem:[%s10] sm:$0xff] %v4
  %s12 = scalar_lea.vmem %s1, 32
  %13 = vst [vmem:[%s12] sm:$0xff] %v4
  %s14 = scalar_lea.vmem %s1, 40
  %15 = vst [vmem:[%s14] sm:$0xff] %v4
  %s16 = scalar_lea.vmem %s1, 48
  %17 = vst [vmem:[%s16] sm:$0xff] %v4
  %s18 = scalar_lea.vmem %s1, 56
  %19 = vst [vmem:[%s18] sm:$0xff] %v4
  %s20 = scalar_lea.vmem %s1, 64
  %21 = vst [vmem:[%s20] sm:$0xff] %v4
  %s22 = scalar_lea.vmem %s1, 72
  %23 = vst [vmem:[%s22] sm:$0xff] %v4
  %s24 = scalar_lea.vmem %s1, 80
  %25 = vst [vmem:[%s24] sm:$0xff] %v4
  %s26 = scalar_lea.vmem %s1, 88
  %27 = vst [vmem:[%s26] sm:$0xff] %v4
  %s28 = scalar_lea.vmem %s1, 96
  %29 = vst [vmem:[%s28] sm:$0xff] %v4
  %s30 = scalar_lea.vmem %s1, 104
  %31 = vst [vmem:[%s30] sm:$0xff] %v4
  %s32 = scalar_lea.vmem %s1, 112
  %33 = vst [vmem:[%s32] sm:$0xff] %v4
  %s34 = scalar_lea.vmem %s1, 120
  %35 = vst [vmem:[%s34] sm:$0xff] %v4
  %s36 = scalar_lea.vmem %s1, 128
  %37 = vst [vmem:[%s36] sm:$0xff] %v4
  %s38 = scalar_lea.vmem %s1, 136
  %39 = vst [vmem:[%s38] sm:$0xff] %v4
  %s40 = scalar_lea.vmem %s1, 144
  %41 = vst [vmem:[%s40] sm:$0xff] %v4
  %s42 = scalar_lea.vmem %s1, 152
  %43 = vst [vmem:[%s42] sm:$0xff] %v4
  %s44 = scalar_lea.vmem %s1, 160
  %45 = vst [vmem:[%s44] sm:$0xff] %v4
  %s46 = scalar_lea.vmem %s1, 168
  %47 = vst [vmem:[%s46] sm:$0xff] %v4
  %s48 = scalar_lea.vmem %s1, 176
  %49 = vst [vmem:[%s48] sm:$0xff] %v4
  %s50 = scalar_lea.vmem %s1, 184
  %51 = vst [vmem:[%s50] sm:$0xff] %v4
  %s52 = scalar_lea.vmem %s1, 192
  %53 = vst [vmem:[%s52] sm:$0xff] %v4
  %s54 = scalar_lea.vmem %s1, 200
  %55 = vst [vmem:[%s54] sm:$0xff] %v4
  %s56 = scalar_lea.vmem %s1, 208
  %57 = vst [vmem:[%s56] sm:$0xff] %v4
  %s58 = scalar_lea.vmem %s1, 216
  %59 = vst [vmem:[%s58] sm:$0xff] %v4
  %s60 = scalar_lea.vmem %s1, 224
  %61 = vst [vmem:[%s60] sm:$0xff] %v4
  %s62 = scalar_lea.vmem %s1, 232
  %63 = vst [vmem:[%s62] sm:$0xff] %v4
  %s64 = scalar_lea.vmem %s1, 240
  %65 = vst [vmem:[%s64] sm:$0xff] %v4
  %s66 = scalar_lea.vmem %s1, 248
  %67 = vst [vmem:[%s66] sm:$0xff] %v4

// kernel: tile.19
$region0: #{tile.19}
  %s0 = inlined_call_operand.vmem [shape: f32[256,64], index: 0, kind: input, shape index: {}]
  %s1 = inlined_call_operand.vmem [shape: f32[1,16384], index: 1, kind: output, shape index: {}]
  $region1: #{tile.19} parent=0
    #allocation0 [shape = 'u8[524288]{0}', space=vmem, size = 0x80000, scoped, tag = 'scoped mem for output reshape']
    %v2 = vld [vmem:[%s0] ss:$2 sm:$0xff]
    %vm3 = vcmask 523264
    %4 = vst.msk [vmem:[#allocation0] ss:$8 sm:$0xf] %vm3, %v2
    %5 = vst.msk [vmem:[#allocation0] ss:$8 sm:$0xf0] %vm3, %v2
    %s6 = scalar_lea.vmem %s0, 16
    %v7 = vld [vmem:[%s6] ss:$2 sm:$0xff]
    %vm8 = vcmask 523264
    %s9 = scalar_lea.vmem [#allocation0], 64
    %10 = vst.msk [vmem:[%s9] ss:$8 sm:$0xf] %vm8, %v7
    %s11 = scalar_lea.vmem [#allocation0], 64
    %12 = vst.msk [vmem:[%s11] ss:$8 sm:$0xf0] %vm8, %v7
    %s13 = scalar_lea.vmem %s0, 32
    %v14 = vld [vmem:[%s13] ss:$2 sm:$0xff]
    %vm15 = vcmask 523264
    %s16 = scalar_lea.vmem [#allocation0], 128
    %17 = vst.msk [vmem:[%s16] ss:$8 sm:$0xf] %vm15, %v14
    %s18 = scalar_lea.vmem [#allocation0], 128
    %19 = vst.msk [vmem:[%s18] ss:$8 sm:$0xf0] %vm15, %v14
    %s20 = scalar_lea.vmem %s0, 48
    %v21 = vld [vmem:[%s20] ss:$2 sm:$0xff]
    %vm22 = vcmask 523264
    %s23 = scalar_lea.vmem [#allocation0], 192
    %24 = vst.msk [vmem:[%s23] ss:$8 sm:$0xf] %vm22, %v21
    %s25 = scalar_lea.vmem [#allocation0], 192
    %26 = vst.msk [vmem:[%s25] ss:$8 sm:$0xf0] %vm22, %v21
    %s27 = scalar_lea.vmem %s0, 64
    %v28 = vld [vmem:[%s27] ss:$2 sm:$0xff]
    %vm29 = vcmask 523264
    %s30 = scalar_lea.vmem [#allocation0], 256
    %31 = vst.msk [vmem:[%s30] ss:$8 sm:$0xf] %vm29, %v28
    %s32 = scalar_lea.vmem [#allocation0], 256
    %33 = vst.msk [vmem:[%s32] ss:$8 sm:$0xf0] %vm29, %v28
    %s34 = scalar_lea.vmem %s0, 80
    %v35 = vld [vmem:[%s34] ss:$2 sm:$0xff]
    %vm36 = vcmask 523264
    %s37 = scalar_lea.vmem [#allocation0], 320
    %38 = vst.msk [vmem:[%s37] ss:$8 sm:$0xf] %vm36, %v35
    %s39 = scalar_lea.vmem [#allocation0], 320
    %40 = vst.msk [vmem:[%s39] ss:$8 sm:$0xf0] %vm36, %v35
    %s41 = scalar_lea.vmem %s0, 96
    %v42 = vld [vmem:[%s41] ss:$2 sm:$0xff]
    %vm43 = vcmask 523264
    %s44 = scalar_lea.vmem [#allocation0], 384
    %45 = vst.msk [vmem:[%s44] ss:$8 sm:$0xf] %vm43, %v42
    %s46 = scalar_lea.vmem [#allocation0], 384
    %47 = vst.msk [vmem:[%s46] ss:$8 sm:$0xf0] %vm43, %v42
    %s48 = scalar_lea.vmem %s0, 112
    %v49 = vld [vmem:[%s48] ss:$2 sm:$0xff]
    %vm50 = vcmask 523264
    %s51 = scalar_lea.vmem [#allocation0], 448
    %52 = vst.msk [vmem:[%s51] ss:$8 sm:$0xf] %vm50, %v49
    %s53 = scalar_lea.vmem [#allocation0], 448
    %54 = vst.msk [vmem:[%s53] ss:$8 sm:$0xf0] %vm50, %v49
    %s55 = scalar_lea.vmem %s0, 128
    %v56 = vld [vmem:[%s55] ss:$2 sm:$0xff]
    %vm57 = vcmask 523264
    %s58 = scalar_lea.vmem [#allocation0], 512
    %59 = vst.msk [vmem:[%s58] ss:$8 sm:$0xf] %vm57, %v56
    %s60 = scalar_lea.vmem [#allocation0], 512
    %61 = vst.msk [vmem:[%s60] ss:$8 sm:$0xf0] %vm57, %v56
    %s62 = scalar_lea.vmem %s0, 144
    %v63 = vld [vmem:[%s62] ss:$2 sm:$0xff]
    %vm64 = vcmask 523264
    %s65 = scalar_lea.vmem [#allocation0], 576
    %66 = vst.msk [vmem:[%s65] ss:$8 sm:$0xf] %vm64, %v63
    %s67 = scalar_lea.vmem [#allocation0], 576
    %68 = vst.msk [vmem:[%s67] ss:$8 sm:$0xf0] %vm64, %v63
    %s69 = scalar_lea.vmem %s0, 160
    %v70 = vld [vmem:[%s69] ss:$2 sm:$0xff]
    %vm71 = vcmask 523264
    %s72 = scalar_lea.vmem [#allocation0], 640
    %73 = vst.msk [vmem:[%s72] ss:$8 sm:$0xf] %vm71, %v70
    %s74 = scalar_lea.vmem [#allocation0], 640
    %75 = vst.msk [vmem:[%s74] ss:$8 sm:$0xf0] %vm71, %v70
    %s76 = scalar_lea.vmem %s0, 176
    %v77 = vld [vmem:[%s76] ss:$2 sm:$0xff]
    %vm78 = vcmask 523264
    %s79 = scalar_lea.vmem [#allocation0], 704
    %80 = vst.msk [vmem:[%s79] ss:$8 sm:$0xf] %vm78, %v77
    %s81 = scalar_lea.vmem [#allocation0], 704
    %82 = vst.msk [vmem:[%s81] ss:$8 sm:$0xf0] %vm78, %v77
    %s83 = scalar_lea.vmem %s0, 192
    %v84 = vld [vmem:[%s83] ss:$2 sm:$0xff]
    %vm85 = vcmask 523264
    %s86 = scalar_lea.vmem [#allocation0], 768
    %87 = vst.msk [vmem:[%s86] ss:$8 sm:$0xf] %vm85, %v84
    %s88 = scalar_lea.vmem [#allocation0], 768
    %89 = vst.msk [vmem:[%s88] ss:$8 sm:$0xf0] %vm85, %v84
    %s90 = scalar_lea.vmem %s0, 208
    %v91 = vld [vmem:[%s90] ss:$2 sm:$0xff]
    %vm92 = vcmask 523264
    %s93 = scalar_lea.vmem [#allocation0], 832
    %94 = vst.msk [vmem:[%s93] ss:$8 sm:$0xf] %vm92, %v91
    %s95 = scalar_lea.vmem [#allocation0], 832
    %96 = vst.msk [vmem:[%s95] ss:$8 sm:$0xf0] %vm92, %v91
    %s97 = scalar_lea.vmem %s0, 224
    %v98 = vld [vmem:[%s97] ss:$2 sm:$0xff]
    %vm99 = vcmask 523264
    %s100 = scalar_lea.vmem [#allocation0], 896
    %101 = vst.msk [vmem:[%s100] ss:$8 sm:$0xf] %vm99, %v98
    %s102 = scalar_lea.vmem [#allocation0], 896
    %103 = vst.msk [vmem:[%s102] ss:$8 sm:$0xf0] %vm99, %v98
    %s104 = scalar_lea.vmem %s0, 240
    %v105 = vld [vmem:[%s104] ss:$2 sm:$0xff]
    %vm106 = vcmask 523264
    %s107 = scalar_lea.vmem [#allocation0], 960
    %108 = vst.msk [vmem:[%s107] ss:$8 sm:$0xf] %vm106, %v105
    %s109 = scalar_lea.vmem [#allocation0], 960
    %110 = vst.msk [vmem:[%s109] ss:$8 sm:$0xf0] %vm106, %v105
    %s111 = scalar_lea.vmem %s0, 1
    %v112 = vld [vmem:[%s111] ss:$2 sm:$0xff]
    %113 = vrot.lane.b32.xlu0 %v112, 64
    %v114 = vpop.permute.xlu0 %113
    %vm115 = vcmask 1048064
    %116 = vst.msk [vmem:[#allocation0] ss:$8 sm:$0xf] %vm115, %v114
    %117 = vst.msk [vmem:[#allocation0] ss:$8 sm:$0xf0] %vm115, %v114
    %s118 = scalar_lea.vmem %s0, 17
    %v119 = vld [vmem:[%s118] ss:$2 sm:$0xff]
    %120 = vrot.lane.b32.xlu0 %v119, 64
    %v121 = vpop.permute.xlu0 %120
    %vm122 = vcmask 1048064
    %s123 = scalar_lea.vmem [#allocation0], 64
    %124 = vst.msk [vmem:[%s123] ss:$8 sm:$0xf] %vm122, %v121
    %s125 = scalar_lea.vmem [#allocation0], 64
    %126 = vst.msk [vmem:[%s125] ss:$8 sm:$0xf0] %vm122, %v121
    %s127 = scalar_lea.vmem %s0, 33
    %v128 = vld [vmem:[%s127] ss:$2 sm:$0xff]
    %129 = vrot.lane.b32.xlu0 %v128, 64
    %v130 = vpop.permute.xlu0 %129
    %vm131 = vcmask 1048064
    %s132 = scalar_lea.vmem [#allocation0], 128
    %133 = vst.msk [vmem:[%s132] ss:$8 sm:$0xf] %vm131, %v130
    %s134 = scalar_lea.vmem [#allocation0], 128
    %135 = vst.msk [vmem:[%s134] ss:$8 sm:$0xf0] %vm131, %v130
    %s136 = scalar_lea.vmem %s0, 49
    %v137 = vld [vmem:[%s136] ss:$2 sm:$0xff]
    %138 = vrot.lane.b32.xlu0 %v137, 64
    %v139 = vpop.permute.xlu0 %138
    %vm140 = vcmask 1048064
    %s141 = scalar_lea.vmem [#allocation0], 192
    %142 = vst.msk [vmem:[%s141] ss:$8 sm:$0xf] %vm140, %v139
    %s143 = scalar_lea.vmem [#allocation0], 192
    %144 = vst.msk [vmem:[%s143] ss:$8 sm:$0xf0] %vm140, %v139
    %s145 = scalar_lea.vmem %s0, 65
    %v146 = vld [vmem:[%s145] ss:$2 sm:$0xff]
    %147 = vrot.lane.b32.xlu0 %v146, 64
    %v148 = vpop.permute.xlu0 %147
    %vm149 = vcmask 1048064
    %s150 = scalar_lea.vmem [#allocation0], 256
    %151 = vst.msk [vmem:[%s150] ss:$8 sm:$0xf] %vm149, %v148
    %s152 = scalar_lea.vmem [#allocation0], 256
    %153 = vst.msk [vmem:[%s152] ss:$8 sm:$0xf0] %vm149, %v148
    %s154 = scalar_lea.vmem %s0, 81
    %v155 = vld [vmem:[%s154] ss:$2 sm:$0xff]
    %156 = vrot.lane.b32.xlu0 %v155, 64
    %v157 = vpop.permute.xlu0 %156
    %vm158 = vcmask 1048064
    %s159 = scalar_lea.vmem [#allocation0], 320
    %160 = vst.msk [vmem:[%s159] ss:$8 sm:$0xf] %vm158, %v157
    %s161 = scalar_lea.vmem [#allocation0], 320
    %162 = vst.msk [vmem:[%s161] ss:$8 sm:$0xf0] %vm158, %v157
    %s163 = scalar_lea.vmem %s0, 97
    %v164 = vld [vmem:[%s163] ss:$2 sm:$0xff]
    %165 = vrot.lane.b32.xlu0 %v164, 64
    %v166 = vpop.permute.xlu0 %165
    %vm167 = vcmask 1048064
    %s168 = scalar_lea.vmem [#allocation0], 384
    %169 = vst.msk [vmem:[%s168] ss:$8 sm:$0xf] %vm167, %v166
    %s170 = scalar_lea.vmem [#allocation0], 384
    %171 = vst.msk [vmem:[%s170] ss:$8 sm:$0xf0] %vm167, %v166
    %s172 = scalar_lea.vmem %s0, 113
    %v173 = vld [vmem:[%s172] ss:$2 sm:$0xff]
    %174 = vrot.lane.b32.xlu0 %v173, 64
    %v175 = vpop.permute.xlu0 %174
    %vm176 = vcmask 1048064
    %s177 = scalar_lea.vmem [#allocation0], 448
    %178 = vst.msk [vmem:[%s177] ss:$8 sm:$0xf] %vm176, %v175
    %s179 = scalar_lea.vmem [#allocation0], 448
    %180 = vst.msk [vmem:[%s179] ss:$8 sm:$0xf0] %vm176, %v175
    %s181 = scalar_lea.vmem %s0, 129
    %v182 = vld [vmem:[%s181] ss:$2 sm:$0xff]
    %183 = vrot.lane.b32.xlu0 %v182, 64
    %v184 = vpop.permute.xlu0 %183
    %vm185 = vcmask 1048064
    %s186 = scalar_lea.vmem [#allocation0], 512
    %187 = vst.msk [vmem:[%s186] ss:$8 sm:$0xf] %vm185, %v184
    %s188 = scalar_lea.vmem [#allocation0], 512
    %189 = vst.msk [vmem:[%s188] ss:$8 sm:$0xf0] %vm185, %v184
    %s190 = scalar_lea.vmem %s0, 145
    %v191 = vld [vmem:[%s190] ss:$2 sm:$0xff]
    %192 = vrot.lane.b32.xlu0 %v191, 64
    %v193 = vpop.permute.xlu0 %192
    %vm194 = vcmask 1048064
    %s195 = scalar_lea.vmem [#allocation0], 576
    %196 = vst.msk [vmem:[%s195] ss:$8 sm:$0xf] %vm194, %v193
    %s197 = scalar_lea.vmem [#allocation0], 576
    %198 = vst.msk [vmem:[%s197] ss:$8 sm:$0xf0] %vm194, %v193
    %s199 = scalar_lea.vmem %s0, 161
    %v200 = vld [vmem:[%s199] ss:$2 sm:$0xff]
    %201 = vrot.lane.b32.xlu0 %v200, 64
    %v202 = vpop.permute.xlu0 %201
    %vm203 = vcmask 1048064
    %s204 = scalar_lea.vmem [#allocation0], 640
    %205 = vst.msk [vmem:[%s204] ss:$8 sm:$0xf] %vm203, %v202
    %s206 = scalar_lea.vmem [#allocation0], 640
    %207 = vst.msk [vmem:[%s206] ss:$8 sm:$0xf0] %vm203, %v202
    %s208 = scalar_lea.vmem %s0, 177
    %v209 = vld [vmem:[%s208] ss:$2 sm:$0xff]
    %210 = vrot.lane.b32.xlu0 %v209, 64
    %v211 = vpop.permute.xlu0 %210
    %vm212 = vcmask 1048064
    %s213 = scalar_lea.vmem [#allocation0], 704
    %214 = vst.msk [vmem:[%s213] ss:$8 sm:$0xf] %vm212, %v211
    %s215 = scalar_lea.vmem [#allocation0], 704
    %216 = vst.msk [vmem:[%s215] ss:$8 sm:$0xf0] %vm212, %v211
    %s217 = scalar_lea.vmem %s0, 193
    %v218 = vld [vmem:[%s217] ss:$2 sm:$0xff]
    %219 = vrot.lane.b32.xlu0 %v218, 64
    %v220 = vpop.permute.xlu0 %219
    %vm221 = vcmask 1048064
    %s222 = scalar_lea.vmem [#allocation0], 768
    %223 = vst.msk [vmem:[%s222] ss:$8 sm:$0xf] %vm221, %v220
    %s224 = scalar_lea.vmem [#allocation0], 768
    %225 = vst.msk [vmem:[%s224] ss:$8 sm:$0xf0] %vm221, %v220
    %s226 = scalar_lea.vmem %s0, 209
    %v227 = vld [vmem:[%s226] ss:$2 sm:$0xff]
    %228 = vrot.lane.b32.xlu0 %v227, 64
    %v229 = vpop.permute.xlu0 %228
    %vm230 = vcmask 1048064
    %s231 = scalar_lea.vmem [#allocation0], 832
    %232 = vst.msk [vmem:[%s231] ss:$8 sm:$0xf] %vm230, %v229
    %s233 = scalar_lea.vmem [#allocation0], 832
    %234 = vst.msk [vmem:[%s233] ss:$8 sm:$0xf0] %vm230, %v229
    %s235 = scalar_lea.vmem %s0, 225
    %v236 = vld [vmem:[%s235] ss:$2 sm:$0xff]
    %237 = vrot.lane.b32.xlu0 %v236, 64
    %v238 = vpop.permute.xlu0 %237
    %vm239 = vcmask 1048064
    %s240 = scalar_lea.vmem [#allocation0], 896
    %241 = vst.msk [vmem:[%s240] ss:$8 sm:$0xf] %vm239, %v238
    %s242 = scalar_lea.vmem [#allocation0], 896
    %243 = vst.msk [vmem:[%s242] ss:$8 sm:$0xf0] %vm239, %v238
    %s244 = scalar_lea.vmem %s0, 241
    %v245 = vld [vmem:[%s244] ss:$2 sm:$0xff]
    %246 = vrot.lane.b32.xlu0 %v245, 64
    %v247 = vpop.permute.xlu0 %246
    %vm248 = vcmask 1048064
    %s249 = scalar_lea.vmem [#allocation0], 960
    %250 = vst.msk [vmem:[%s249] ss:$8 sm:$0xf] %vm248, %v247
    %s251 = scalar_lea.vmem [#allocation0], 960
    %252 = vst.msk [vmem:[%s251] ss:$8 sm:$0xf0] %vm248, %v247
    %s254 = sshllo.u32 0, 1
    %v256 = vld [vmem:[#allocation0] sm:%s254]
    %s257 = sshllo.u32 0, 1
    %258 = vst [vmem:[%s1] sm:%s257] %v256
    %s259 = scalar_lea.vmem [#allocation0], 8
    %v260 = vld [vmem:[%s259] sm:%s254]
    %s261 = sshllo.u32 0, 1
    %s262 = scalar_lea.vmem %s1, 1
    %263 = vst [vmem:[%s262] sm:%s261] %v260
    %s264 = scalar_lea.vmem [#allocation0], 16
    %v265 = vld [vmem:[%s264] sm:%s254]
    %s266 = sshllo.u32 0, 1
    %s267 = smul.addr 1, 2
    %s268 = scalar_lea.vmem %s1, %s267
    %269 = vst [vmem:[%s268] sm:%s266] %v265
    %s270 = scalar_lea.vmem [#allocation0], 24
    %v271 = vld [vmem:[%s270] sm:%s254]
    %s272 = sshllo.u32 0, 1
    %s273 = smul.addr 1, 3
    %s274 = scalar_lea.vmem %s1, %s273
    %275 = vst [vmem:[%s274] sm:%s272] %v271
    %s276 = scalar_lea.vmem [#allocation0], 32
    %v277 = vld [vmem:[%s276] sm:%s254]
    %s278 = sshllo.u32 0, 1
    %s279 = smul.addr 1, 4
    %s280 = scalar_lea.vmem %s1, %s279
    %281 = vst [vmem:[%s280] sm:%s278] %v277
    %s282 = scalar_lea.vmem [#allocation0], 40
    %v283 = vld [vmem:[%s282] sm:%s254]
    %s284 = sshllo.u32 0, 1
    %s285 = smul.addr 1, 5
    %s286 = scalar_lea.vmem %s1, %s285
    %287 = vst [vmem:[%s286] sm:%s284] %v283
    %s288 = scalar_lea.vmem [#allocation0], 48
    %v289 = vld [vmem:[%s288] sm:%s254]
    %s290 = sshllo.u32 0, 1
    %s291 = smul.addr 1, 6
    %s292 = scalar_lea.vmem %s1, %s291
    %293 = vst [vmem:[%s292] sm:%s290] %v289
    %s294 = scalar_lea.vmem [#allocation0], 56
    %v295 = vld [vmem:[%s294] sm:%s254]
    %s296 = sshllo.u32 0, 1
    %s297 = smul.addr 1, 7
    %s298 = scalar_lea.vmem %s1, %s297
    %299 = vst [vmem:[%s298] sm:%s296] %v295
    %s300 = scalar_lea.vmem [#allocation0], 64
    %v301 = vld [vmem:[%s300] sm:%s254]
    %s302 = sshllo.u32 0, 1
    %s303 = smul.addr 1, 8
    %s304 = scalar_lea.vmem %s1, %s303
    %305 = vst [vmem:[%s304] sm:%s302] %v301
    %s306 = scalar_lea.vmem [#allocation0], 72
    %v307 = vld [vmem:[%s306] sm:%s254]
    %s308 = sshllo.u32 0, 1
    %s309 = smul.addr 1, 9
    %s310 = scalar_lea.vmem %s1, %s309
    %311 = vst [vmem:[%s310] sm:%s308] %v307
    %s312 = scalar_lea.vmem [#allocation0], 80
    %v313 = vld [vmem:[%s312] sm:%s254]
    %s314 = sshllo.u32 0, 1
    %s315 = smul.addr 1, 10
    %s316 = scalar_lea.vmem %s1, %s315
    %317 = vst [vmem:[%s316] sm:%s314] %v313
    %s318 = scalar_lea.vmem [#allocation0], 88
    %v319 = vld [vmem:[%s318] sm:%s254]
    %s320 = sshllo.u32 0, 1
    %s321 = smul.addr 1, 11
    %s322 = scalar_lea.vmem %s1, %s321
    %323 = vst [vmem:[%s322] sm:%s320] %v319
    %s324 = scalar_lea.vmem [#allocation0], 96
    %v325 = vld [vmem:[%s324] sm:%s254]
    %s326 = sshllo.u32 0, 1
    %s327 = smul.addr 1, 12
    %s328 = scalar_lea.vmem %s1, %s327
    %329 = vst [vmem:[%s328] sm:%s326] %v325
    %s330 = scalar_lea.vmem [#allocation0], 104
    %v331 = vld [vmem:[%s330] sm:%s254]
    %s332 = sshllo.u32 0, 1
    %s333 = smul.addr 1, 13
    %s334 = scalar_lea.vmem %s1, %s333
    %335 = vst [vmem:[%s334] sm:%s332] %v331
    %s336 = scalar_lea.vmem [#allocation0], 112
    %v337 = vld [vmem:[%s336] sm:%s254]
    %s338 = sshllo.u32 0, 1
    %s339 = smul.addr 1, 14
    %s340 = scalar_lea.vmem %s1, %s339
    %341 = vst [vmem:[%s340] sm:%s338] %v337
    %s342 = scalar_lea.vmem [#allocation0], 120
    %v343 = vld [vmem:[%s342] sm:%s254]
    %s344 = sshllo.u32 0, 1
    %s345 = smul.addr 1, 15
    %s346 = scalar_lea.vmem %s1, %s345
    %347 = vst [vmem:[%s346] sm:%s344] %v343
    %s348 = scalar_lea.vmem [#allocation0], 128
    %v349 = vld [vmem:[%s348] sm:%s254]
    %s350 = sshllo.u32 0, 1
    %s351 = smul.addr 1, 16
    %s352 = scalar_lea.vmem %s1, %s351
    %353 = vst [vmem:[%s352] sm:%s350] %v349
    %s354 = scalar_lea.vmem [#allocation0], 136
    %v355 = vld [vmem:[%s354] sm:%s254]
    %s356 = sshllo.u32 0, 1
    %s357 = smul.addr 1, 17
    %s358 = scalar_lea.vmem %s1, %s357
    %359 = vst [vmem:[%s358] sm:%s356] %v355
    %s360 = scalar_lea.vmem [#allocation0], 144
    %v361 = vld [vmem:[%s360] sm:%s254]
    %s362 = sshllo.u32 0, 1
    %s363 = smul.addr 1, 18
    %s364 = scalar_lea.vmem %s1, %s363
    %365 = vst [vmem:[%s364] sm:%s362] %v361
    %s366 = scalar_lea.vmem [#allocation0], 152
    %v367 = vld [vmem:[%s366] sm:%s254]
    %s368 = sshllo.u32 0, 1
    %s369 = smul.addr 1, 19
    %s370 = scalar_lea.vmem %s1, %s369
    %371 = vst [vmem:[%s370] sm:%s368] %v367
    %s372 = scalar_lea.vmem [#allocation0], 160
    %v373 = vld [vmem:[%s372] sm:%s254]
    %s374 = sshllo.u32 0, 1
    %s375 = smul.addr 1, 20
    %s376 = scalar_lea.vmem %s1, %s375
    %377 = vst [vmem:[%s376] sm:%s374] %v373
    %s378 = scalar_lea.vmem [#allocation0], 168
    %v379 = vld [vmem:[%s378] sm:%s254]
    %s380 = sshllo.u32 0, 1
    %s381 = smul.addr 1, 21
    %s382 = scalar_lea.vmem %s1, %s381
    %383 = vst [vmem:[%s382] sm:%s380] %v379
    %s384 = scalar_lea.vmem [#allocation0], 176
    %v385 = vld [vmem:[%s384] sm:%s254]
    %s386 = sshllo.u32 0, 1
    %s387 = smul.addr 1, 22
    %s388 = scalar_lea.vmem %s1, %s387
    %389 = vst [vmem:[%s388] sm:%s386] %v385
    %s390 = scalar_lea.vmem [#allocation0], 184
    %v391 = vld [vmem:[%s390] sm:%s254]
    %s392 = sshllo.u32 0, 1
    %s393 = smul.addr 1, 23
    %s394 = scalar_lea.vmem %s1, %s393
    %395 = vst [vmem:[%s394] sm:%s392] %v391
    %s396 = scalar_lea.vmem [#allocation0], 192
    %v397 = vld [vmem:[%s396] sm:%s254]
    %s398 = sshllo.u32 0, 1
    %s399 = smul.addr 1, 24
    %s400 = scalar_lea.vmem %s1, %s399
    %401 = vst [vmem:[%s400] sm:%s398] %v397
    %s402 = scalar_lea.vmem [#allocation0], 200
    %v403 = vld [vmem:[%s402] sm:%s254]
    %s404 = sshllo.u32 0, 1
    %s405 = smul.addr 1, 25
    %s406 = scalar_lea.vmem %s1, %s405
    %407 = vst [vmem:[%s406] sm:%s404] %v403
    %s408 = scalar_lea.vmem [#allocation0], 208
    %v409 = vld [vmem:[%s408] sm:%s254]
    %s410 = sshllo.u32 0, 1
    %s411 = smul.addr 1, 26
    %s412 = scalar_lea.vmem %s1, %s411
    %413 = vst [vmem:[%s412] sm:%s410] %v409
    %s414 = scalar_lea.vmem [#allocation0], 216
    %v415 = vld [vmem:[%s414] sm:%s254]
    %s416 = sshllo.u32 0, 1
    %s417 = smul.addr 1, 27
    %s418 = scalar_lea.vmem %s1, %s417
    %419 = vst [vmem:[%s418] sm:%s416] %v415
    %s420 = scalar_lea.vmem [#allocation0], 224
    %v421 = vld [vmem:[%s420] sm:%s254]
    %s422 = sshllo.u32 0, 1
    %s423 = smul.addr 1, 28
    %s424 = scalar_lea.vmem %s1, %s423
    %425 = vst [vmem:[%s424] sm:%s422] %v421
    %s426 = scalar_lea.vmem [#allocation0], 232
    %v427 = vld [vmem:[%s426] sm:%s254]
    %s428 = sshllo.u32 0, 1
    %s429 = smul.addr 1, 29
    %s430 = scalar_lea.vmem %s1, %s429
    %431 = vst [vmem:[%s430] sm:%s428] %v427
    %s432 = scalar_lea.vmem [#allocation0], 240
    %v433 = vld [vmem:[%s432] sm:%s254]
    %s434 = sshllo.u32 0, 1
    %s435 = smul.addr 1, 30
    %s436 = scalar_lea.vmem %s1, %s435
    %437 = vst [vmem:[%s436] sm:%s434] %v433
    %s438 = scalar_lea.vmem [#allocation0], 248
    %v439 = vld [vmem:[%s438] sm:%s254]
    %s440 = sshllo.u32 0, 1
    %s441 = smul.addr 1, 31
    %s442 = scalar_lea.vmem %s1, %s441
    %443 = vst [vmem:[%s442] sm:%s440] %v439
    %s444 = scalar_lea.vmem [#allocation0], 256
    %v445 = vld [vmem:[%s444] sm:%s254]
    %s446 = sshllo.u32 0, 1
    %s447 = smul.addr 1, 32
    %s448 = scalar_lea.vmem %s1, %s447
    %449 = vst [vmem:[%s448] sm:%s446] %v445
    %s450 = scalar_lea.vmem [#allocation0], 264
    %v451 = vld [vmem:[%s450] sm:%s254]
    %s452 = sshllo.u32 0, 1
    %s453 = smul.addr 1, 33
    %s454 = scalar_lea.vmem %s1, %s453
    %455 = vst [vmem:[%s454] sm:%s452] %v451
    %s456 = scalar_lea.vmem [#allocation0], 272
    %v457 = vld [vmem:[%s456] sm:%s254]
    %s458 = sshllo.u32 0, 1
    %s459 = smul.addr 1, 34
    %s460 = scalar_lea.vmem %s1, %s459
    %461 = vst [vmem:[%s460] sm:%s458] %v457
    %s462 = scalar_lea.vmem [#allocation0], 280
    %v463 = vld [vmem:[%s462] sm:%s254]
    %s464 = sshllo.u32 0, 1
    %s465 = smul.addr 1, 35
    %s466 = scalar_lea.vmem %s1, %s465
    %467 = vst [vmem:[%s466] sm:%s464] %v463
    %s468 = scalar_lea.vmem [#allocation0], 288
    %v469 = vld [vmem:[%s468] sm:%s254]
    %s470 = sshllo.u32 0, 1
    %s471 = smul.addr 1, 36
    %s472 = scalar_lea.vmem %s1, %s471
    %473 = vst [vmem:[%s472] sm:%s470] %v469
    %s474 = scalar_lea.vmem [#allocation0], 296
    %v475 = vld [vmem:[%s474] sm:%s254]
    %s476 = sshllo.u32 0, 1
    %s477 = smul.addr 1, 37
    %s478 = scalar_lea.vmem %s1, %s477
    %479 = vst [vmem:[%s478] sm:%s476] %v475
    %s480 = scalar_lea.vmem [#allocation0], 304
    %v481 = vld [vmem:[%s480] sm:%s254]
    %s482 = sshllo.u32 0, 1
    %s483 = smul.addr 1, 38
    %s484 = scalar_lea.vmem %s1, %s483
    %485 = vst [vmem:[%s484] sm:%s482] %v481
    %s486 = scalar_lea.vmem [#allocation0], 312
    %v487 = vld [vmem:[%s486] sm:%s254]
    %s488 = sshllo.u32 0, 1
    %s489 = smul.addr 1, 39
    %s490 = scalar_lea.vmem %s1, %s489
    %491 = vst [vmem:[%s490] sm:%s488] %v487
    %s492 = scalar_lea.vmem [#allocation0], 320
    %v493 = vld [vmem:[%s492] sm:%s254]
    %s494 = sshllo.u32 0, 1
    %s495 = smul.addr 1, 40
    %s496 = scalar_lea.vmem %s1, %s495
    %497 = vst [vmem:[%s496] sm:%s494] %v493
    %s498 = scalar_lea.vmem [#allocation0], 328
    %v499 = vld [vmem:[%s498] sm:%s254]
    %s500 = sshllo.u32 0, 1
    %s501 = smul.addr 1, 41
    %s502 = scalar_lea.vmem %s1, %s501
    %503 = vst [vmem:[%s502] sm:%s500] %v499
    %s504 = scalar_lea.vmem [#allocation0], 336
    %v505 = vld [vmem:[%s504] sm:%s254]
    %s506 = sshllo.u32 0, 1
    %s507 = smul.addr 1, 42
    %s508 = scalar_lea.vmem %s1, %s507
    %509 = vst [vmem:[%s508] sm:%s506] %v505
    %s510 = scalar_lea.vmem [#allocation0], 344
    %v511 = vld [vmem:[%s510] sm:%s254]
    %s512 = sshllo.u32 0, 1
    %s513 = smul.addr 1, 43
    %s514 = scalar_lea.vmem %s1, %s513
    %515 = vst [vmem:[%s514] sm:%s512] %v511
    %s516 = scalar_lea.vmem [#allocation0], 352
    %v517 = vld [vmem:[%s516] sm:%s254]
    %s518 = sshllo.u32 0, 1
    %s519 = smul.addr 1, 44
    %s520 = scalar_lea.vmem %s1, %s519
    %521 = vst [vmem:[%s520] sm:%s518] %v517
    %s522 = scalar_lea.vmem [#allocation0], 360
    %v523 = vld [vmem:[%s522] sm:%s254]
    %s524 = sshllo.u32 0, 1
    %s525 = smul.addr 1, 45
    %s526 = scalar_lea.vmem %s1, %s525
    %527 = vst [vmem:[%s526] sm:%s524] %v523
    %s528 = scalar_lea.vmem [#allocation0], 368
    %v529 = vld [vmem:[%s528] sm:%s254]
    %s530 = sshllo.u32 0, 1
    %s531 = smul.addr 1, 46
    %s532 = scalar_lea.vmem %s1, %s531
    %533 = vst [vmem:[%s532] sm:%s530] %v529
    %s534 = scalar_lea.vmem [#allocation0], 376
    %v535 = vld [vmem:[%s534] sm:%s254]
    %s536 = sshllo.u32 0, 1
    %s537 = smul.addr 1, 47
    %s538 = scalar_lea.vmem %s1, %s537
    %539 = vst [vmem:[%s538] sm:%s536] %v535
    %s540 = scalar_lea.vmem [#allocation0], 384
    %v541 = vld [vmem:[%s540] sm:%s254]
    %s542 = sshllo.u32 0, 1
    %s543 = smul.addr 1, 48
    %s544 = scalar_lea.vmem %s1, %s543
    %545 = vst [vmem:[%s544] sm:%s542] %v541
    %s546 = scalar_lea.vmem [#allocation0], 392
    %v547 = vld [vmem:[%s546] sm:%s254]
    %s548 = sshllo.u32 0, 1
    %s549 = smul.addr 1, 49
    %s550 = scalar_lea.vmem %s1, %s549
    %551 = vst [vmem:[%s550] sm:%s548] %v547
    %s552 = scalar_lea.vmem [#allocation0], 400
    %v553 = vld [vmem:[%s552] sm:%s254]
    %s554 = sshllo.u32 0, 1
    %s555 = smul.addr 1, 50
    %s556 = scalar_lea.vmem %s1, %s555
    %557 = vst [vmem:[%s556] sm:%s554] %v553
    %s558 = scalar_lea.vmem [#allocation0], 408
    %v559 = vld [vmem:[%s558] sm:%s254]
    %s560 = sshllo.u32 0, 1
    %s561 = smul.addr 1, 51
    %s562 = scalar_lea.vmem %s1, %s561
    %563 = vst [vmem:[%s562] sm:%s560] %v559
    %s564 = scalar_lea.vmem [#allocation0], 416
    %v565 = vld [vmem:[%s564] sm:%s254]
    %s566 = sshllo.u32 0, 1
    %s567 = smul.addr 1, 52
    %s568 = scalar_lea.vmem %s1, %s567
    %569 = vst [vmem:[%s568] sm:%s566] %v565
    %s570 = scalar_lea.vmem [#allocation0], 424
    %v571 = vld [vmem:[%s570] sm:%s254]
    %s572 = sshllo.u32 0, 1
    %s573 = smul.addr 1, 53
    %s574 = scalar_lea.vmem %s1, %s573
    %575 = vst [vmem:[%s574] sm:%s572] %v571
    %s576 = scalar_lea.vmem [#allocation0], 432
    %v577 = vld [vmem:[%s576] sm:%s254]
    %s578 = sshllo.u32 0, 1
    %s579 = smul.addr 1, 54
    %s580 = scalar_lea.vmem %s1, %s579
    %581 = vst [vmem:[%s580] sm:%s578] %v577
    %s582 = scalar_lea.vmem [#allocation0], 440
    %v583 = vld [vmem:[%s582] sm:%s254]
    %s584 = sshllo.u32 0, 1
    %s585 = smul.addr 1, 55
    %s586 = scalar_lea.vmem %s1, %s585
    %587 = vst [vmem:[%s586] sm:%s584] %v583
    %s588 = scalar_lea.vmem [#allocation0], 448
    %v589 = vld [vmem:[%s588] sm:%s254]
    %s590 = sshllo.u32 0, 1
    %s591 = smul.addr 1, 56
    %s592 = scalar_lea.vmem %s1, %s591
    %593 = vst [vmem:[%s592] sm:%s590] %v589
    %s594 = scalar_lea.vmem [#allocation0], 456
    %v595 = vld [vmem:[%s594] sm:%s254]
    %s596 = sshllo.u32 0, 1
    %s597 = smul.addr 1, 57
    %s598 = scalar_lea.vmem %s1, %s597
    %599 = vst [vmem:[%s598] sm:%s596] %v595
    %s600 = scalar_lea.vmem [#allocation0], 464
    %v601 = vld [vmem:[%s600] sm:%s254]
    %s602 = sshllo.u32 0, 1
    %s603 = smul.addr 1, 58
    %s604 = scalar_lea.vmem %s1, %s603
    %605 = vst [vmem:[%s604] sm:%s602] %v601
    %s606 = scalar_lea.vmem [#allocation0], 472
    %v607 = vld [vmem:[%s606] sm:%s254]
    %s608 = sshllo.u32 0, 1
    %s609 = smul.addr 1, 59
    %s610 = scalar_lea.vmem %s1, %s609
    %611 = vst [vmem:[%s610] sm:%s608] %v607
    %s612 = scalar_lea.vmem [#allocation0], 480
    %v613 = vld [vmem:[%s612] sm:%s254]
    %s614 = sshllo.u32 0, 1
    %s615 = smul.addr 1, 60
    %s616 = scalar_lea.vmem %s1, %s615
    %617 = vst [vmem:[%s616] sm:%s614] %v613
    %s618 = scalar_lea.vmem [#allocation0], 488
    %v619 = vld [vmem:[%s618] sm:%s254]
    %s620 = sshllo.u32 0, 1
    %s621 = smul.addr 1, 61
    %s622 = scalar_lea.vmem %s1, %s621
    %623 = vst [vmem:[%s622] sm:%s620] %v619
    %s624 = scalar_lea.vmem [#allocation0], 496
    %v625 = vld [vmem:[%s624] sm:%s254]
    %s626 = sshllo.u32 0, 1
    %s627 = smul.addr 1, 62
    %s628 = scalar_lea.vmem %s1, %s627
    %629 = vst [vmem:[%s628] sm:%s626] %v625
    %s630 = scalar_lea.vmem [#allocation0], 504
    %v631 = vld [vmem:[%s630] sm:%s254]
    %s632 = sshllo.u32 0, 1
    %s633 = smul.addr 1, 63
    %s634 = scalar_lea.vmem %s1, %s633
    %635 = vst [vmem:[%s634] sm:%s632] %v631
    %s636 = scalar_lea.vmem [#allocation0], 512
    %v637 = vld [vmem:[%s636] sm:%s254]
    %s638 = sshllo.u32 0, 1
    %s639 = smul.addr 1, 64
    %s640 = scalar_lea.vmem %s1, %s639
    %641 = vst [vmem:[%s640] sm:%s638] %v637
    %s642 = scalar_lea.vmem [#allocation0], 520
    %v643 = vld [vmem:[%s642] sm:%s254]
    %s644 = sshllo.u32 0, 1
    %s645 = smul.addr 1, 65
    %s646 = scalar_lea.vmem %s1, %s645
    %647 = vst [vmem:[%s646] sm:%s644] %v643
    %s648 = scalar_lea.vmem [#allocation0], 528
    %v649 = vld [vmem:[%s648] sm:%s254]
    %s650 = sshllo.u32 0, 1
    %s651 = smul.addr 1, 66
    %s652 = scalar_lea.vmem %s1, %s651
    %653 = vst [vmem:[%s652] sm:%s650] %v649
    %s654 = scalar_lea.vmem [#allocation0], 536
    %v655 = vld [vmem:[%s654] sm:%s254]
    %s656 = sshllo.u32 0, 1
    %s657 = smul.addr 1, 67
    %s658 = scalar_lea.vmem %s1, %s657
    %659 = vst [vmem:[%s658] sm:%s656] %v655
    %s660 = scalar_lea.vmem [#allocation0], 544
    %v661 = vld [vmem:[%s660] sm:%s254]
    %s662 = sshllo.u32 0, 1
    %s663 = smul.addr 1, 68
    %s664 = scalar_lea.vmem %s1, %s663
    %665 = vst [vmem:[%s664] sm:%s662] %v661
    %s666 = scalar_lea.vmem [#allocation0], 552
    %v667 = vld [vmem:[%s666] sm:%s254]
    %s668 = sshllo.u32 0, 1
    %s669 = smul.addr 1, 69
    %s670 = scalar_lea.vmem %s1, %s669
    %671 = vst [vmem:[%s670] sm:%s668] %v667
    %s672 = scalar_lea.vmem [#allocation0], 560
    %v673 = vld [vmem:[%s672] sm:%s254]
    %s674 = sshllo.u32 0, 1
    %s675 = smul.addr 1, 70
    %s676 = scalar_lea.vmem %s1, %s675
    %677 = vst [vmem:[%s676] sm:%s674] %v673
    %s678 = scalar_lea.vmem [#allocation0], 568
    %v679 = vld [vmem:[%s678] sm:%s254]
    %s680 = sshllo.u32 0, 1
    %s681 = smul.addr 1, 71
    %s682 = scalar_lea.vmem %s1, %s681
    %683 = vst [vmem:[%s682] sm:%s680] %v679
    %s684 = scalar_lea.vmem [#allocation0], 576
    %v685 = vld [vmem:[%s684] sm:%s254]
    %s686 = sshllo.u32 0, 1
    %s687 = smul.addr 1, 72
    %s688 = scalar_lea.vmem %s1, %s687
    %689 = vst [vmem:[%s688] sm:%s686] %v685
    %s690 = scalar_lea.vmem [#allocation0], 584
    %v691 = vld [vmem:[%s690] sm:%s254]
    %s692 = sshllo.u32 0, 1
    %s693 = smul.addr 1, 73
    %s694 = scalar_lea.vmem %s1, %s693
    %695 = vst [vmem:[%s694] sm:%s692] %v691
    %s696 = scalar_lea.vmem [#allocation0], 592
    %v697 = vld [vmem:[%s696] sm:%s254]
    %s698 = sshllo.u32 0, 1
    %s699 = smul.addr 1, 74
    %s700 = scalar_lea.vmem %s1, %s699
    %701 = vst [vmem:[%s700] sm:%s698] %v697
    %s702 = scalar_lea.vmem [#allocation0], 600
    %v703 = vld [vmem:[%s702] sm:%s254]
    %s704 = sshllo.u32 0, 1
    %s705 = smul.addr 1, 75
    %s706 = scalar_lea.vmem %s1, %s705
    %707 = vst [vmem:[%s706] sm:%s704] %v703
    %s708 = scalar_lea.vmem [#allocation0], 608
    %v709 = vld [vmem:[%s708] sm:%s254]
    %s710 = sshllo.u32 0, 1
    %s711 = smul.addr 1, 76
    %s712 = scalar_lea.vmem %s1, %s711
    %713 = vst [vmem:[%s712] sm:%s710] %v709
    %s714 = scalar_lea.vmem [#allocation0], 616
    %v715 = vld [vmem:[%s714] sm:%s254]
    %s716 = sshllo.u32 0, 1
    %s717 = smul.addr 1, 77
    %s718 = scalar_lea.vmem %s1, %s717
    %719 = vst [vmem:[%s718] sm:%s716] %v715
    %s720 = scalar_lea.vmem [#allocation0], 624
    %v721 = vld [vmem:[%s720] sm:%s254]
    %s722 = sshllo.u32 0, 1
    %s723 = smul.addr 1, 78
    %s724 = scalar_lea.vmem %s1, %s723
    %725 = vst [vmem:[%s724] sm:%s722] %v721
    %s726 = scalar_lea.vmem [#allocation0], 632
    %v727 = vld [vmem:[%s726] sm:%s254]
    %s728 = sshllo.u32 0, 1
    %s729 = smul.addr 1, 79
    %s730 = scalar_lea.vmem %s1, %s729
    %731 = vst [vmem:[%s730] sm:%s728] %v727
    %s732 = scalar_lea.vmem [#allocation0], 640
    %v733 = vld [vmem:[%s732] sm:%s254]
    %s734 = sshllo.u32 0, 1
    %s735 = smul.addr 1, 80
    %s736 = scalar_lea.vmem %s1, %s735
    %737 = vst [vmem:[%s736] sm:%s734] %v733
    %s738 = scalar_lea.vmem [#allocation0], 648
    %v739 = vld [vmem:[%s738] sm:%s254]
    %s740 = sshllo.u32 0, 1
    %s741 = smul.addr 1, 81
    %s742 = scalar_lea.vmem %s1, %s741
    %743 = vst [vmem:[%s742] sm:%s740] %v739
    %s744 = scalar_lea.vmem [#allocation0], 656
    %v745 = vld [vmem:[%s744] sm:%s254]
    %s746 = sshllo.u32 0, 1
    %s747 = smul.addr 1, 82
    %s748 = scalar_lea.vmem %s1, %s747
    %749 = vst [vmem:[%s748] sm:%s746] %v745
    %s750 = scalar_lea.vmem [#allocation0], 664
    %v751 = vld [vmem:[%s750] sm:%s254]
    %s752 = sshllo.u32 0, 1
    %s753 = smul.addr 1, 83
    %s754 = scalar_lea.vmem %s1, %s753
    %755 = vst [vmem:[%s754] sm:%s752] %v751
    %s756 = scalar_lea.vmem [#allocation0], 672
    %v757 = vld [vmem:[%s756] sm:%s254]
    %s758 = sshllo.u32 0, 1
    %s759 = smul.addr 1, 84
    %s760 = scalar_lea.vmem %s1, %s759
    %761 = vst [vmem:[%s760] sm:%s758] %v757
    %s762 = scalar_lea.vmem [#allocation0], 680
    %v763 = vld [vmem:[%s762] sm:%s254]
    %s764 = sshllo.u32 0, 1
    %s765 = smul.addr 1, 85
    %s766 = scalar_lea.vmem %s1, %s765
    %767 = vst [vmem:[%s766] sm:%s764] %v763
    %s768 = scalar_lea.vmem [#allocation0], 688
    %v769 = vld [vmem:[%s768] sm:%s254]
    %s770 = sshllo.u32 0, 1
    %s771 = smul.addr 1, 86
    %s772 = scalar_lea.vmem %s1, %s771
    %773 = vst [vmem:[%s772] sm:%s770] %v769
    %s774 = scalar_lea.vmem [#allocation0], 696
    %v775 = vld [vmem:[%s774] sm:%s254]
    %s776 = sshllo.u32 0, 1
    %s777 = smul.addr 1, 87
    %s778 = scalar_lea.vmem %s1, %s777
    %779 = vst [vmem:[%s778] sm:%s776] %v775
    %s780 = scalar_lea.vmem [#allocation0], 704
    %v781 = vld [vmem:[%s780] sm:%s254]
    %s782 = sshllo.u32 0, 1
    %s783 = smul.addr 1, 88
    %s784 = scalar_lea.vmem %s1, %s783
    %785 = vst [vmem:[%s784] sm:%s782] %v781
    %s786 = scalar_lea.vmem [#allocation0], 712
    %v787 = vld [vmem:[%s786] sm:%s254]
    %s788 = sshllo.u32 0, 1
    %s789 = smul.addr 1, 89
    %s790 = scalar_lea.vmem %s1, %s789
    %791 = vst [vmem:[%s790] sm:%s788] %v787
    %s792 = scalar_lea.vmem [#allocation0], 720
    %v793 = vld [vmem:[%s792] sm:%s254]
    %s794 = sshllo.u32 0, 1
    %s795 = smul.addr 1, 90
    %s796 = scalar_lea.vmem %s1, %s795
    %797 = vst [vmem:[%s796] sm:%s794] %v793
    %s798 = scalar_lea.vmem [#allocation0], 728
    %v799 = vld [vmem:[%s798] sm:%s254]
    %s800 = sshllo.u32 0, 1
    %s801 = smul.addr 1, 91
    %s802 = scalar_lea.vmem %s1, %s801
    %803 = vst [vmem:[%s802] sm:%s800] %v799
    %s804 = scalar_lea.vmem [#allocation0], 736
    %v805 = vld [vmem:[%s804] sm:%s254]
    %s806 = sshllo.u32 0, 1
    %s807 = smul.addr 1, 92
    %s808 = scalar_lea.vmem %s1, %s807
    %809 = vst [vmem:[%s808] sm:%s806] %v805
    %s810 = scalar_lea.vmem [#allocation0], 744
    %v811 = vld [vmem:[%s810] sm:%s254]
    %s812 = sshllo.u32 0, 1
    %s813 = smul.addr 1, 93
    %s814 = scalar_lea.vmem %s1, %s813
    %815 = vst [vmem:[%s814] sm:%s812] %v811
    %s816 = scalar_lea.vmem [#allocation0], 752
    %v817 = vld [vmem:[%s816] sm:%s254]
    %s818 = sshllo.u32 0, 1
    %s819 = smul.addr 1, 94
    %s820 = scalar_lea.vmem %s1, %s819
    %821 = vst [vmem:[%s820] sm:%s818] %v817
    %s822 = scalar_lea.vmem [#allocation0], 760
    %v823 = vld [vmem:[%s822] sm:%s254]
    %s824 = sshllo.u32 0, 1
    %s825 = smul.addr 1, 95
    %s826 = scalar_lea.vmem %s1, %s825
    %827 = vst [vmem:[%s826] sm:%s824] %v823
    %s828 = scalar_lea.vmem [#allocation0], 768
    %v829 = vld [vmem:[%s828] sm:%s254]
    %s830 = sshllo.u32 0, 1
    %s831 = smul.addr 1, 96
    %s832 = scalar_lea.vmem %s1, %s831
    %833 = vst [vmem:[%s832] sm:%s830] %v829
    %s834 = scalar_lea.vmem [#allocation0], 776
    %v835 = vld [vmem:[%s834] sm:%s254]
    %s836 = sshllo.u32 0, 1
    %s837 = smul.addr 1, 97
    %s838 = scalar_lea.vmem %s1, %s837
    %839 = vst [vmem:[%s838] sm:%s836] %v835
    %s840 = scalar_lea.vmem [#allocation0], 784
    %v841 = vld [vmem:[%s840] sm:%s254]
    %s842 = sshllo.u32 0, 1
    %s843 = smul.addr 1, 98
    %s844 = scalar_lea.vmem %s1, %s843
    %845 = vst [vmem:[%s844] sm:%s842] %v841
    %s846 = scalar_lea.vmem [#allocation0], 792
    %v847 = vld [vmem:[%s846] sm:%s254]
    %s848 = sshllo.u32 0, 1
    %s849 = smul.addr 1, 99
    %s850 = scalar_lea.vmem %s1, %s849
    %851 = vst [vmem:[%s850] sm:%s848] %v847
    %s852 = scalar_lea.vmem [#allocation0], 800
    %v853 = vld [vmem:[%s852] sm:%s254]
    %s854 = sshllo.u32 0, 1
    %s855 = smul.addr 1, 100
    %s856 = scalar_lea.vmem %s1, %s855
    %857 = vst [vmem:[%s856] sm:%s854] %v853
    %s858 = scalar_lea.vmem [#allocation0], 808
    %v859 = vld [vmem:[%s858] sm:%s254]
    %s860 = sshllo.u32 0, 1
    %s861 = smul.addr 1, 101
    %s862 = scalar_lea.vmem %s1, %s861
    %863 = vst [vmem:[%s862] sm:%s860] %v859
    %s864 = scalar_lea.vmem [#allocation0], 816
    %v865 = vld [vmem:[%s864] sm:%s254]
    %s866 = sshllo.u32 0, 1
    %s867 = smul.addr 1, 102
    %s868 = scalar_lea.vmem %s1, %s867
    %869 = vst [vmem:[%s868] sm:%s866] %v865
    %s870 = scalar_lea.vmem [#allocation0], 824
    %v871 = vld [vmem:[%s870] sm:%s254]
    %s872 = sshllo.u32 0, 1
    %s873 = smul.addr 1, 103
    %s874 = scalar_lea.vmem %s1, %s873
    %875 = vst [vmem:[%s874] sm:%s872] %v871
    %s876 = scalar_lea.vmem [#allocation0], 832
    %v877 = vld [vmem:[%s876] sm:%s254]
    %s878 = sshllo.u32 0, 1
    %s879 = smul.addr 1, 104
    %s880 = scalar_lea.vmem %s1, %s879
    %881 = vst [vmem:[%s880] sm:%s878] %v877
    %s882 = scalar_lea.vmem [#allocation0], 840
    %v883 = vld [vmem:[%s882] sm:%s254]
    %s884 = sshllo.u32 0, 1
    %s885 = smul.addr 1, 105
    %s886 = scalar_lea.vmem %s1, %s885
    %887 = vst [vmem:[%s886] sm:%s884] %v883
    %s888 = scalar_lea.vmem [#allocation0], 848
    %v889 = vld [vmem:[%s888] sm:%s254]
    %s890 = sshllo.u32 0, 1
    %s891 = smul.addr 1, 106
    %s892 = scalar_lea.vmem %s1, %s891
    %893 = vst [vmem:[%s892] sm:%s890] %v889
    %s894 = scalar_lea.vmem [#allocation0], 856
    %v895 = vld [vmem:[%s894] sm:%s254]
    %s896 = sshllo.u32 0, 1
    %s897 = smul.addr 1, 107
    %s898 = scalar_lea.vmem %s1, %s897
    %899 = vst [vmem:[%s898] sm:%s896] %v895
    %s900 = scalar_lea.vmem [#allocation0], 864
    %v901 = vld [vmem:[%s900] sm:%s254]
    %s902 = sshllo.u32 0, 1
    %s903 = smul.addr 1, 108
    %s904 = scalar_lea.vmem %s1, %s903
    %905 = vst [vmem:[%s904] sm:%s902] %v901
    %s906 = scalar_lea.vmem [#allocation0], 872
    %v907 = vld [vmem:[%s906] sm:%s254]
    %s908 = sshllo.u32 0, 1
    %s909 = smul.addr 1, 109
    %s910 = scalar_lea.vmem %s1, %s909
    %911 = vst [vmem:[%s910] sm:%s908] %v907
    %s912 = scalar_lea.vmem [#allocation0], 880
    %v913 = vld [vmem:[%s912] sm:%s254]
    %s914 = sshllo.u32 0, 1
    %s915 = smul.addr 1, 110
    %s916 = scalar_lea.vmem %s1, %s915
    %917 = vst [vmem:[%s916] sm:%s914] %v913
    %s918 = scalar_lea.vmem [#allocation0], 888
    %v919 = vld [vmem:[%s918] sm:%s254]
    %s920 = sshllo.u32 0, 1
    %s921 = smul.addr 1, 111
    %s922 = scalar_lea.vmem %s1, %s921
    %923 = vst [vmem:[%s922] sm:%s920] %v919
    %s924 = scalar_lea.vmem [#allocation0], 896
    %v925 = vld [vmem:[%s924] sm:%s254]
    %s926 = sshllo.u32 0, 1
    %s927 = smul.addr 1, 112
    %s928 = scalar_lea.vmem %s1, %s927
    %929 = vst [vmem:[%s928] sm:%s926] %v925
    %s930 = scalar_lea.vmem [#allocation0], 904
    %v931 = vld [vmem:[%s930] sm:%s254]
    %s932 = sshllo.u32 0, 1
    %s933 = smul.addr 1, 113
    %s934 = scalar_lea.vmem %s1, %s933
    %935 = vst [vmem:[%s934] sm:%s932] %v931
    %s936 = scalar_lea.vmem [#allocation0], 912
    %v937 = vld [vmem:[%s936] sm:%s254]
    %s938 = sshllo.u32 0, 1
    %s939 = smul.addr 1, 114
    %s940 = scalar_lea.vmem %s1, %s939
    %941 = vst [vmem:[%s940] sm:%s938] %v937
    %s942 = scalar_lea.vmem [#allocation0], 920
    %v943 = vld [vmem:[%s942] sm:%s254]
    %s944 = sshllo.u32 0, 1
    %s945 = smul.addr 1, 115
    %s946 = scalar_lea.vmem %s1, %s945
    %947 = vst [vmem:[%s946] sm:%s944] %v943
    %s948 = scalar_lea.vmem [#allocation0], 928
    %v949 = vld [vmem:[%s948] sm:%s254]
    %s950 = sshllo.u32 0, 1
    %s951 = smul.addr 1, 116
    %s952 = scalar_lea.vmem %s1, %s951
    %953 = vst [vmem:[%s952] sm:%s950] %v949
    %s954 = scalar_lea.vmem [#allocation0], 936
    %v955 = vld [vmem:[%s954] sm:%s254]
    %s956 = sshllo.u32 0, 1
    %s957 = smul.addr 1, 117
    %s958 = scalar_lea.vmem %s1, %s957
    %959 = vst [vmem:[%s958] sm:%s956] %v955
    %s960 = scalar_lea.vmem [#allocation0], 944
    %v961 = vld [vmem:[%s960] sm:%s254]
    %s962 = sshllo.u32 0, 1
    %s963 = smul.addr 1, 118
    %s964 = scalar_lea.vmem %s1, %s963
    %965 = vst [vmem:[%s964] sm:%s962] %v961
    %s966 = scalar_lea.vmem [#allocation0], 952
    %v967 = vld [vmem:[%s966] sm:%s254]
    %s968 = sshllo.u32 0, 1
    %s969 = smul.addr 1, 119
    %s970 = scalar_lea.vmem %s1, %s969
    %971 = vst [vmem:[%s970] sm:%s968] %v967
    %s972 = scalar_lea.vmem [#allocation0], 960
    %v973 = vld [vmem:[%s972] sm:%s254]
    %s974 = sshllo.u32 0, 1
    %s975 = smul.addr 1, 120
    %s976 = scalar_lea.vmem %s1, %s975
    %977 = vst [vmem:[%s976] sm:%s974] %v973
    %s978 = scalar_lea.vmem [#allocation0], 968
    %v979 = vld [vmem:[%s978] sm:%s254]
    %s980 = sshllo.u32 0, 1
    %s981 = smul.addr 1, 121
    %s982 = scalar_lea.vmem %s1, %s981
    %983 = vst [vmem:[%s982] sm:%s980] %v979
    %s984 = scalar_lea.vmem [#allocation0], 976
    %v985 = vld [vmem:[%s984] sm:%s254]
    %s986 = sshllo.u32 0, 1
    %s987 = smul.addr 1, 122
    %s988 = scalar_lea.vmem %s1, %s987
    %989 = vst [vmem:[%s988] sm:%s986] %v985
    %s990 = scalar_lea.vmem [#allocation0], 984
    %v991 = vld [vmem:[%s990] sm:%s254]
    %s992 = sshllo.u32 0, 1
    %s993 = smul.addr 1, 123
    %s994 = scalar_lea.vmem %s1, %s993
    %995 = vst [vmem:[%s994] sm:%s992] %v991
    %s996 = scalar_lea.vmem [#allocation0], 992
    %v997 = vld [vmem:[%s996] sm:%s254]
    %s998 = sshllo.u32 0, 1
    %s999 = smul.addr 1, 124
    %s1000 = scalar_lea.vmem %s1, %s999
    %1001 = vst [vmem:[%s1000] sm:%s998] %v997
    %s1002 = scalar_lea.vmem [#allocation0], 1000
    %v1003 = vld [vmem:[%s1002] sm:%s254]
    %s1004 = sshllo.u32 0, 1
    %s1005 = smul.addr 1, 125
    %s1006 = scalar_lea.vmem %s1, %s1005
    %1007 = vst [vmem:[%s1006] sm:%s1004] %v1003
    %s1008 = scalar_lea.vmem [#allocation0], 1008
    %v1009 = vld [vmem:[%s1008] sm:%s254]
    %s1010 = sshllo.u32 0, 1
    %s1011 = smul.addr 1, 126
    %s1012 = scalar_lea.vmem %s1, %s1011
    %1013 = vst [vmem:[%s1012] sm:%s1010] %v1009
    %s1014 = scalar_lea.vmem [#allocation0], 1016
    %v1015 = vld [vmem:[%s1014] sm:%s254]
    %s1016 = sshllo.u32 0, 1
    %s1017 = smul.addr 1, 127
    %s1018 = scalar_lea.vmem %s1, %s1017
    %1019 = vst [vmem:[%s1018] sm:%s1016] %v1015

// kernel: dgr_cnn_forward.5
$region0: #{dgr_cnn_forward.5}
  #allocation0 [shape = 'u32[]', space=smem, size = 0x4, offset = 0x4, fixed_abs, tag = 'smem constant byte address 0x4 - core index']
  #allocation1 [shape = 'u32[144,128]{1,0:T(1,128)}', space=vmem, size = 0x12000, scoped, tag = 'internal scratch']
  %s0 = inlined_call_operand.vmem [shape: bf16[2,16384], index: 0, kind: input, shape index: {}]
  %s1 = inlined_call_operand.vmem [shape: f32[1,16384], index: 1, kind: input, shape index: {}]
  %s2 = inlined_call_operand.vmem [shape: f32[1,16384], index: 2, kind: input, shape index: {}]
  %s3 = inlined_call_operand.vmem [shape: bf16[16384,10], index: 3, kind: input, shape index: {}]
  %s4 = inlined_call_operand.vmem [shape: f32[1,10], index: 4, kind: input, shape index: {}]
  %s5 = inlined_call_operand.hbm [shape: f32[2,10], index: 5, kind: output, shape index: {}]
  %s6 = sld [smem:[#allocation0]]
  $region57: #{dgr_cnn_forward.5} parent=0
    _
  %s8 = ssub.s32 1, %s6
  %s9 = scalar_select 0, %s8, %s6
  $region1: #{dgr_cnn_forward.5} parent=0
    #allocation2 [shape = 'u8[1024]{0}', space=vmem, size = 0x400, scoped, tag = 'output window, operand 0, single buffered']
    #allocation3 [shape = 's32[2]{0}', space=sflag, size = 0x8, scoped, tag = 'scoped memory for dgr_cnn_forward.5']
    %10 = vsyncpa [#allocation3], 0
    loop: start=0, step=1, limit=4
    $region2: #{dgr_cnn_forward.5} parent=1 // loop_pre_header
      _
    $region3: #{dgr_cnn_forward.5} parent=1 // loop_header
      %s12 = sphi 0, %s16
      %p13 = scmp.ge.s32.totalorder %s12, 4
      %s22 = sphi 0, %s24
      %s25 = sphi 0, %s22
      %s26 = sphi 0, %s25
      %s42 = sphi 0, %s26
      %s48 = sphi 0, %s50
      %s51 = sphi 0, %s48
      %s52 = sphi 0, %s51
      %s68 = sphi 0, %s52
      %s74 = sphi 0, %s76
      %s77 = sphi 0, %s74
      %s78 = sphi 0, %s77
      %s94 = sphi 0, %s78
      %s100 = sphi 0, %s102
      %s103 = sphi 0, %s100
      %s104 = sphi 0, %s103
      %s120 = sphi 0, %s104
      %s124 = sphi 0, %s124
      %s126 = sphi 0, %s124
      %s127 = sphi 0, %s126
      %s141 = sphi 0, %s127
      %s145 = sphi 0, %s145
      %s147 = sphi 0, %s145
      %s148 = sphi 0, %s147
      %s162 = sphi 0, %s148
    $region4: #{dgr_cnn_forward.5} parent=1 // loop_header_branch
      %15 = sbr.rel (%p13) target = $region8
    $region5: #{dgr_cnn_forward.5} parent=1 // loop_body
      %s17 = ssub.s32 %s12, 1
      %s18 = ssub.s32 %s12, 2
      %s19 = sadd.s32 %s12, 1
      %s20 = ssub.s32 %s12, %s19
      %p21 = scmp.eq.s32.totalorder %s20, 0
      %s23 = sadd.s32 %s22, 1
      %s24 = scalar_select %p21, %s22, %s23
      %p27 = pneg %p21
      %p28 = scmp.eq.s32.totalorder %s12, 1
      %p29 = por %p27, %p28
      %p30 = scmp.ne.s32.totalorder %s22, %s25
      %p31 = scmp.eq.s32.totalorder %s12, 0
      %p32 = por %p30, %p31
      %p33 = scmp.ne.s32.totalorder %s22, %s25
      %p34 = scmp.eq.s32.totalorder %s17, 1
      %p35 = por %p33, %p34
      %p36 = scmp.ne.s32.totalorder %s25, %s26
      %p37 = scmp.eq.s32.totalorder %s17, 0
      %p38 = por %p36, %p37
      %p39 = scmp.ne.s32.totalorder %s25, %s26
      %p40 = scmp.eq.s32.totalorder %s18, 1
      %p41 = por %p39, %p40
      %p43 = scmp.ne.s32.totalorder %s26, %s42
      %p44 = scmp.eq.s32.totalorder %s18, 0
      %p45 = por %p43, %p44
      %s46 = ssub.s32 %s12, %s19
      %p47 = scmp.eq.s32.totalorder %s46, 0
      %s49 = sadd.s32 %s48, 1
      %s50 = scalar_select %p47, %s48, %s49
      %p53 = pneg %p47
      %p54 = scmp.eq.s32.totalorder %s12, 1
      %p55 = por %p53, %p54
      %p56 = scmp.ne.s32.totalorder %s48, %s51
      %p57 = scmp.eq.s32.totalorder %s12, 0
      %p58 = por %p56, %p57
      %p59 = scmp.ne.s32.totalorder %s48, %s51
      %p60 = scmp.eq.s32.totalorder %s17, 1
      %p61 = por %p59, %p60
      %p62 = scmp.ne.s32.totalorder %s51, %s52
      %p63 = scmp.eq.s32.totalorder %s17, 0
      %p64 = por %p62, %p63
      %p65 = scmp.ne.s32.totalorder %s51, %s52
      %p66 = scmp.eq.s32.totalorder %s18, 1
      %p67 = por %p65, %p66
      %p69 = scmp.ne.s32.totalorder %s52, %s68
      %p70 = scmp.eq.s32.totalorder %s18, 0
      %p71 = por %p69, %p70
      %s72 = ssub.s32 %s12, %s19
      %p73 = scmp.eq.s32.totalorder %s72, 0
      %s75 = sadd.s32 %s74, 1
      %s76 = scalar_select %p73, %s74, %s75
      %p79 = pneg %p73
      %p80 = scmp.eq.s32.totalorder %s12, 1
      %p81 = por %p79, %p80
      %p82 = scmp.ne.s32.totalorder %s74, %s77
      %p83 = scmp.eq.s32.totalorder %s12, 0
      %p84 = por %p82, %p83
      %p85 = scmp.ne.s32.totalorder %s74, %s77
      %p86 = scmp.eq.s32.totalorder %s17, 1
      %p87 = por %p85, %p86
      %p88 = scmp.ne.s32.totalorder %s77, %s78
      %p89 = scmp.eq.s32.totalorder %s17, 0
      %p90 = por %p88, %p89
      %p91 = scmp.ne.s32.totalorder %s77, %s78
      %p92 = scmp.eq.s32.totalorder %s18, 1
      %p93 = por %p91, %p92
      %p95 = scmp.ne.s32.totalorder %s78, %s94
      %p96 = scmp.eq.s32.totalorder %s18, 0
      %p97 = por %p95, %p96
      %s98 = ssub.s32 %s12, %s19
      %p99 = scmp.eq.s32.totalorder %s98, 0
      %s101 = sadd.s32 %s100, 1
      %s102 = scalar_select %p99, %s100, %s101
      %p105 = pneg %p99
      %p106 = scmp.eq.s32.totalorder %s12, 1
      %p107 = por %p105, %p106
      %p108 = scmp.ne.s32.totalorder %s100, %s103
      %p109 = scmp.eq.s32.totalorder %s12, 0
      %p110 = por %p108, %p109
      %p111 = scmp.ne.s32.totalorder %s100, %s103
      %p112 = scmp.eq.s32.totalorder %s17, 1
      %p113 = por %p111, %p112
      %p114 = scmp.ne.s32.totalorder %s103, %s104
      %p115 = scmp.eq.s32.totalorder %s17, 0
      %p116 = por %p114, %p115
      %p117 = scmp.ne.s32.totalorder %s103, %s104
      %p118 = scmp.eq.s32.totalorder %s18, 1
      %p119 = por %p117, %p118
      %p121 = scmp.ne.s32.totalorder %s104, %s120
      %p122 = scmp.eq.s32.totalorder %s18, 0
      %p123 = por %p121, %p122
      %s125 = sadd.s32 %s124, 1
      %p128 = scmp.eq.s32.totalorder %s12, 1
      %p129 = scmp.ne.s32.totalorder %s124, %s126
      %p130 = scmp.eq.s32.totalorder %s12, 0
      %p131 = por %p129, %p130
      %p132 = scmp.ne.s32.totalorder %s124, %s126
      %p133 = scmp.eq.s32.totalorder %s17, 1
      %p134 = por %p132, %p133
      %p135 = scmp.ne.s32.totalorder %s126, %s127
      %p136 = scmp.eq.s32.totalorder %s17, 0
      %p137 = por %p135, %p136
      %p138 = scmp.ne.s32.totalorder %s126, %s127
      %p139 = scmp.eq.s32.totalorder %s18, 1
      %p140 = por %p138, %p139
      %p142 = scmp.ne.s32.totalorder %s127, %s141
      %p143 = scmp.eq.s32.totalorder %s18, 0
      %p144 = por %p142, %p143
      %s146 = sadd.s32 %s145, 1
      %p149 = scmp.eq.s32.totalorder %s12, 1
      %p150 = scmp.ne.s32.totalorder %s145, %s147
      %p151 = scmp.eq.s32.totalorder %s12, 0
      %p152 = por %p150, %p151
      %p153 = scmp.ne.s32.totalorder %s145, %s147
      %p154 = scmp.eq.s32.totalorder %s17, 1
      %p155 = por %p153, %p154
      %p156 = scmp.ne.s32.totalorder %s147, %s148
      %p157 = scmp.eq.s32.totalorder %s17, 0
      %p158 = por %p156, %p157
      %p159 = scmp.ne.s32.totalorder %s147, %s148
      %p160 = scmp.eq.s32.totalorder %s18, 1
      %p161 = por %p159, %p160
      %p163 = scmp.ne.s32.totalorder %s148, %s162
      %p164 = scmp.eq.s32.totalorder %s18, 0
      %p165 = por %p163, %p164
      %p166 = scmp.le.s32.totalorder 1, %s12
      %p167 = scmp.lt.s32.totalorder %s12, 3
      %p168 = pnand %p166, %p167
      %p169 = pneg %p168
      // Predicated region
      $region9: #{dgr_cnn_forward.5} parent=5 // pred_check
        _
      $region10: #{dgr_cnn_forward.5} parent=5 // pred_check_branch
        %171 = sbr.rel (%p168) target = $region12
      $region11: #{dgr_cnn_forward.5} parent=5 // pred_region
        %s172 = ssub.s32 %s12, 1
        // Predicated region
        $region13: #{dgr_cnn_forward.5} parent=11 // pred_check
          %p173 = pneg %p137
        $region14: #{dgr_cnn_forward.5} parent=11 // pred_check_branch
          %175 = sbr.rel (%p173) target = $region16
        $region15: #{dgr_cnn_forward.5} parent=11 // pred_region
          _
        $region16: #{dgr_cnn_forward.5} parent=11 // pred_fallthru
          _
      $region12: #{dgr_cnn_forward.5} parent=5 // pred_fallthru
        _
      %p176 = scmp.lt.s32.totalorder %s12, 2
      // Predicated region
      $region17: #{dgr_cnn_forward.5} parent=5 // pred_check
        %p177 = pneg %p176
      $region18: #{dgr_cnn_forward.5} parent=5 // pred_check_branch
        %179 = sbr.rel (%p177) target = $region20
      $region19: #{dgr_cnn_forward.5} parent=5 // pred_region
        // Predicated region
        $region21: #{dgr_cnn_forward.5} parent=19 // pred_check
          %p180 = pneg %p32
        $region22: #{dgr_cnn_forward.5} parent=19 // pred_check_branch
          %182 = sbr.rel (%p180) target = $region24
        $region23: #{dgr_cnn_forward.5} parent=19 // pred_region
          %s183 = smul.u32 64, %s12
          %p184 = scmp.lt.s32.totalorder %s183, 127
          %s185 = scalar_select %p184, %s183, 127
          %s186 = scalar_lea.vmem %s0, %s185
          %s187 = smul.u32 64, %s12
        $region24: #{dgr_cnn_forward.5} parent=19 // pred_fallthru
          _
        // Predicated region
        $region25: #{dgr_cnn_forward.5} parent=19 // pred_check
          %p188 = pneg %p58
        $region26: #{dgr_cnn_forward.5} parent=19 // pred_check_branch
          %190 = sbr.rel (%p188) target = $region28
        $region27: #{dgr_cnn_forward.5} parent=19 // pred_region
          %s191 = smul.u32 64, %s12
          %p192 = scmp.lt.s32.totalorder %s191, 127
          %s193 = scalar_select %p192, %s191, 127
          %s194 = scalar_lea.vmem %s1, %s193
          %s195 = smul.u32 64, %s12
        $region28: #{dgr_cnn_forward.5} parent=19 // pred_fallthru
          _
        // Predicated region
        $region29: #{dgr_cnn_forward.5} parent=19 // pred_check
          %p196 = pneg %p84
        $region30: #{dgr_cnn_forward.5} parent=19 // pred_check_branch
          %198 = sbr.rel (%p196) target = $region32
        $region31: #{dgr_cnn_forward.5} parent=19 // pred_region
          %s199 = smul.u32 64, %s12
          %p200 = scmp.lt.s32.totalorder %s199, 127
          %s201 = scalar_select %p200, %s199, 127
          %s202 = scalar_lea.vmem %s2, %s201
          %s203 = smul.u32 64, %s12
        $region32: #{dgr_cnn_forward.5} parent=19 // pred_fallthru
          _
        // Predicated region
        $region33: #{dgr_cnn_forward.5} parent=19 // pred_check
          %p204 = pneg %p110
        $region34: #{dgr_cnn_forward.5} parent=19 // pred_check_branch
          %206 = sbr.rel (%p204) target = $region36
        $region35: #{dgr_cnn_forward.5} parent=19 // pred_region
          %s207 = smul.u32 1024, %s12
          %p208 = scmp.lt.s32.totalorder %s207, 2047
          %s209 = scalar_select %p208, %s207, 2047
          %s210 = smul.addr %s209, 4
          %s211 = scalar_lea.vmem %s3, %s210
          %s212 = smul.u32 1024, %s12
        $region36: #{dgr_cnn_forward.5} parent=19 // pred_fallthru
          _
      $region20: #{dgr_cnn_forward.5} parent=5 // pred_fallthru
        _
      %p213 = scmp.le.s32.totalorder 1, %s12
      %p214 = scmp.lt.s32.totalorder %s12, 3
      %p215 = pnand %p213, %p214
      %p216 = pneg %p215
      // Predicated region
      $region37: #{dgr_cnn_forward.5} parent=5 // pred_check
        _
      $region38: #{dgr_cnn_forward.5} parent=5 // pred_check_branch
        %218 = sbr.rel (%p215) target = $region40
      $region39: #{dgr_cnn_forward.5} parent=5 // pred_region
        %s219 = ssub.s32 %s12, 1
        %s220 = smul.u32 64, %s17
        %p221 = scmp.lt.s32.totalorder %s220, 127
        %s222 = scalar_select %p221, %s220, 127
        %s223 = scalar_lea.vmem %s0, %s222
        %p224 = pneg %p38
        %p225 = pneg %p35
        %s226 = smul.u32 64, %s17
        %p227 = scmp.lt.s32.totalorder %s226, 127
        %s228 = scalar_select %p227, %s226, 127
        %s229 = scalar_lea.vmem %s1, %s228
        %p230 = pneg %p64
        %p231 = pneg %p61
        %s232 = smul.u32 64, %s17
        %p233 = scmp.lt.s32.totalorder %s232, 127
        %s234 = scalar_select %p233, %s232, 127
        %s235 = scalar_lea.vmem %s2, %s234
        %p236 = pneg %p90
        %p237 = pneg %p87
        %s238 = smul.u32 1024, %s17
        %p239 = scmp.lt.s32.totalorder %s238, 2047
        %s240 = scalar_select %p239, %s238, 2047
        %s241 = smul.addr %s240, 4
        %s242 = scalar_lea.vmem %s3, %s241
        %p243 = pneg %p116
        %p244 = pneg %p113
        %p245 = pneg %p137
        %p246 = pneg %p134
        %p247 = pneg %p158
        %p248 = pneg %p155
        %s249 = smul.u32 64, %s17
        %p250 = scmp.lt.s32.totalorder %s249, 127
        %s251 = scalar_select %p250, %s249, 127
        %s252 = scalar_lea.vmem %s0, %s251
        %s253 = smul.u32 64, %s17
        %s254 = smul.u32 64, %s17
        %p255 = scmp.lt.s32.totalorder %s254, 127
        %s256 = scalar_select %p255, %s254, 127
        %s257 = scalar_lea.vmem %s1, %s256
        %s258 = smul.u32 64, %s17
        %s259 = smul.u32 64, %s17
        %p260 = scmp.lt.s32.totalorder %s259, 127
        %s261 = scalar_select %p260, %s259, 127
        %s262 = scalar_lea.vmem %s2, %s261
        %s263 = smul.u32 64, %s17
        %s264 = smul.u32 1024, %s17
        %p265 = scmp.lt.s32.totalorder %s264, 2047
        %s266 = scalar_select %p265, %s264, 2047
        %s267 = smul.addr %s266, 4
        %s268 = scalar_lea.vmem %s3, %s267
        %s269 = smul.u32 1024, %s17
        %p271 = scmp.eq.s32.totalorder %s17, 0
        // Predicated region
        $region41: #{dgr_cnn_forward.5} parent=39 // pred_check
          %p272 = pneg %p271
        $region42: #{dgr_cnn_forward.5} parent=39 // pred_check_branch
          %274 = sbr.rel (%p272) target = $region44
        $region43: #{dgr_cnn_forward.5} parent=39 // pred_region
          %v275 = vld [vmem:[%s4] sm:$0x1]
          %v277 = vlaneseq
          %v278 = vshrl.u32 %v277, 7
          %v279 = vsub.s32 0, %v278
          %v280 = vrot.slane %v275, %v279
          %v282 = vadd.f32 %v280, 0.0
          %vm283 = vcmask 74752
          %284 = vst.msk [vmem:[#allocation2] sm:$0x3] %vm283, %v282
        $region44: #{dgr_cnn_forward.5} parent=39 // pred_fallthru
          _
        %v285 = vld [vmem:[%s252] sm:$0xff]
        %v286 = vld [vmem:[%s252 + $0x8] sm:$0xff]
        %v287 = vld [vmem:[%s252 + $0x10] sm:$0xff]
        %v288 = vld [vmem:[%s252 + $0x18] sm:$0xff]
        %v289 = vld [vmem:[%s252 + $0x20] sm:$0xff]
        %v290 = vld [vmem:[%s252 + $0x28] sm:$0xff]
        %v291 = vld [vmem:[%s252 + $0x30] sm:$0xff]
        %v292 = vld [vmem:[%s252 + $0x38] sm:$0xff]
        %v293 = vunpack.c.l.bf16 %v285
        %v294 = vunpack.c.h.bf16 %v285
        %v295 = vunpack.c.l.bf16 %v286
        %v296 = vunpack.c.h.bf16 %v286
        %v297 = vunpack.c.l.bf16 %v287
        %v298 = vunpack.c.h.bf16 %v287
        %v299 = vunpack.c.l.bf16 %v288
        %v300 = vunpack.c.h.bf16 %v288
        %v301 = vunpack.c.l.bf16 %v289
        %v302 = vunpack.c.h.bf16 %v289
        %v303 = vunpack.c.l.bf16 %v290
        %v304 = vunpack.c.h.bf16 %v290
        %v305 = vunpack.c.l.bf16 %v291
        %v306 = vunpack.c.h.bf16 %v291
        %v307 = vunpack.c.l.bf16 %v292
        %v308 = vunpack.c.h.bf16 %v292
        %v309 = vld [vmem:[%s257] sm:$0xff]
        %v310 = vld [vmem:[%s257 + $0x8] sm:$0xff]
        %v311 = vld [vmem:[%s257 + $0x10] sm:$0xff]
        %v312 = vld [vmem:[%s257 + $0x18] sm:$0xff]
        %v313 = vld [vmem:[%s257 + $0x20] sm:$0xff]
        %v314 = vld [vmem:[%s257 + $0x28] sm:$0xff]
        %v315 = vld [vmem:[%s257 + $0x30] sm:$0xff]
        %v316 = vld [vmem:[%s257 + $0x38] sm:$0xff]
        %v325 = vlaneseq
        %v326 = vshrl.u32 %v325, 7
        %v327 = vsub.s32 0, %v326
        %v328 = vrot.slane %v309, %v327
        %v329 = vlaneseq
        %v330 = vshrl.u32 %v329, 7
        %v331 = vsub.s32 1, %v330
        %v332 = vrot.slane %v309, %v331
        %v333 = vlaneseq
        %v334 = vshrl.u32 %v333, 7
        %v335 = vsub.s32 2, %v334
        %v336 = vrot.slane %v309, %v335
        %v337 = vlaneseq
        %v338 = vshrl.u32 %v337, 7
        %v339 = vsub.s32 3, %v338
        %v340 = vrot.slane %v309, %v339
        %v341 = vlaneseq
        %v342 = vshrl.u32 %v341, 7
        %v343 = vsub.s32 4, %v342
        %v344 = vrot.slane %v309, %v343
        %v345 = vlaneseq
        %v346 = vshrl.u32 %v345, 7
        %v347 = vsub.s32 5, %v346
        %v348 = vrot.slane %v309, %v347
        %v349 = vlaneseq
        %v350 = vshrl.u32 %v349, 7
        %v351 = vsub.s32 6, %v350
        %v352 = vrot.slane %v309, %v351
        %v353 = vlaneseq
        %v354 = vshrl.u32 %v353, 7
        %v355 = vsub.s32 7, %v354
        %v356 = vrot.slane %v309, %v355
        %v357 = vlaneseq
        %v358 = vshrl.u32 %v357, 7
        %v359 = vsub.s32 0, %v358
        %v360 = vrot.slane %v310, %v359
        %v361 = vlaneseq
        %v362 = vshrl.u32 %v361, 7
        %v363 = vsub.s32 1, %v362
        %v364 = vrot.slane %v310, %v363
        %v365 = vlaneseq
        %v366 = vshrl.u32 %v365, 7
        %v367 = vsub.s32 2, %v366
        %v368 = vrot.slane %v310, %v367
        %v369 = vlaneseq
        %v370 = vshrl.u32 %v369, 7
        %v371 = vsub.s32 3, %v370
        %v372 = vrot.slane %v310, %v371
        %v373 = vlaneseq
        %v374 = vshrl.u32 %v373, 7
        %v375 = vsub.s32 4, %v374
        %v376 = vrot.slane %v310, %v375
        %v377 = vlaneseq
        %v378 = vshrl.u32 %v377, 7
        %v379 = vsub.s32 5, %v378
        %v380 = vrot.slane %v310, %v379
        %v381 = vlaneseq
        %v382 = vshrl.u32 %v381, 7
        %v383 = vsub.s32 6, %v382
        %v384 = vrot.slane %v310, %v383
        %v385 = vlaneseq
        %v386 = vshrl.u32 %v385, 7
        %v387 = vsub.s32 7, %v386
        %v388 = vrot.slane %v310, %v387
        %v389 = vlaneseq
        %v390 = vshrl.u32 %v389, 7
        %v391 = vsub.s32 0, %v390
        %v392 = vrot.slane %v311, %v391
        %v393 = vlaneseq
        %v394 = vshrl.u32 %v393, 7
        %v395 = vsub.s32 1, %v394
        %v396 = vrot.slane %v311, %v395
        %v397 = vlaneseq
        %v398 = vshrl.u32 %v397, 7
        %v399 = vsub.s32 2, %v398
        %v400 = vrot.slane %v311, %v399
        %v401 = vlaneseq
        %v402 = vshrl.u32 %v401, 7
        %v403 = vsub.s32 3, %v402
        %v404 = vrot.slane %v311, %v403
        %v405 = vlaneseq
        %v406 = vshrl.u32 %v405, 7
        %v407 = vsub.s32 4, %v406
        %v408 = vrot.slane %v311, %v407
        %v409 = vlaneseq
        %v410 = vshrl.u32 %v409, 7
        %v411 = vsub.s32 5, %v410
        %v412 = vrot.slane %v311, %v411
        %v413 = vlaneseq
        %v414 = vshrl.u32 %v413, 7
        %v415 = vsub.s32 6, %v414
        %v416 = vrot.slane %v311, %v415
        %v417 = vlaneseq
        %v418 = vshrl.u32 %v417, 7
        %v419 = vsub.s32 7, %v418
        %v420 = vrot.slane %v311, %v419
        %v421 = vlaneseq
        %v422 = vshrl.u32 %v421, 7
        %v423 = vsub.s32 0, %v422
        %v424 = vrot.slane %v312, %v423
        %v425 = vlaneseq
        %v426 = vshrl.u32 %v425, 7
        %v427 = vsub.s32 1, %v426
        %v428 = vrot.slane %v312, %v427
        %v429 = vlaneseq
        %v430 = vshrl.u32 %v429, 7
        %v431 = vsub.s32 2, %v430
        %v432 = vrot.slane %v312, %v431
        %v433 = vlaneseq
        %v434 = vshrl.u32 %v433, 7
        %v435 = vsub.s32 3, %v434
        %v436 = vrot.slane %v312, %v435
        %v437 = vlaneseq
        %v438 = vshrl.u32 %v437, 7
        %v439 = vsub.s32 4, %v438
        %v440 = vrot.slane %v312, %v439
        %v441 = vlaneseq
        %v442 = vshrl.u32 %v441, 7
        %v443 = vsub.s32 5, %v442
        %v444 = vrot.slane %v312, %v443
        %v445 = vlaneseq
        %v446 = vshrl.u32 %v445, 7
        %v447 = vsub.s32 6, %v446
        %v448 = vrot.slane %v312, %v447
        %v449 = vlaneseq
        %v450 = vshrl.u32 %v449, 7
        %v451 = vsub.s32 7, %v450
        %v452 = vrot.slane %v312, %v451
        %v453 = vlaneseq
        %v454 = vshrl.u32 %v453, 7
        %v455 = vsub.s32 0, %v454
        %v456 = vrot.slane %v313, %v455
        %v457 = vlaneseq
        %v458 = vshrl.u32 %v457, 7
        %v459 = vsub.s32 1, %v458
        %v460 = vrot.slane %v313, %v459
        %v461 = vlaneseq
        %v462 = vshrl.u32 %v461, 7
        %v463 = vsub.s32 2, %v462
        %v464 = vrot.slane %v313, %v463
        %v465 = vlaneseq
        %v466 = vshrl.u32 %v465, 7
        %v467 = vsub.s32 3, %v466
        %v468 = vrot.slane %v313, %v467
        %v469 = vlaneseq
        %v470 = vshrl.u32 %v469, 7
        %v471 = vsub.s32 4, %v470
        %v472 = vrot.slane %v313, %v471
        %v473 = vlaneseq
        %v474 = vshrl.u32 %v473, 7
        %v475 = vsub.s32 5, %v474
        %v476 = vrot.slane %v313, %v475
        %v477 = vlaneseq
        %v478 = vshrl.u32 %v477, 7
        %v479 = vsub.s32 6, %v478
        %v480 = vrot.slane %v313, %v479
        %v481 = vlaneseq
        %v482 = vshrl.u32 %v481, 7
        %v483 = vsub.s32 7, %v482
        %v484 = vrot.slane %v313, %v483
        %v485 = vlaneseq
        %v486 = vshrl.u32 %v485, 7
        %v487 = vsub.s32 0, %v486
        %v488 = vrot.slane %v314, %v487
        %v489 = vlaneseq
        %v490 = vshrl.u32 %v489, 7
        %v491 = vsub.s32 1, %v490
        %v492 = vrot.slane %v314, %v491
        %v493 = vlaneseq
        %v494 = vshrl.u32 %v493, 7
        %v495 = vsub.s32 2, %v494
        %v496 = vrot.slane %v314, %v495
        %v497 = vlaneseq
        %v498 = vshrl.u32 %v497, 7
        %v499 = vsub.s32 3, %v498
        %v500 = vrot.slane %v314, %v499
        %v501 = vlaneseq
        %v502 = vshrl.u32 %v501, 7
        %v503 = vsub.s32 4, %v502
        %v504 = vrot.slane %v314, %v503
        %v505 = vlaneseq
        %v506 = vshrl.u32 %v505, 7
        %v507 = vsub.s32 5, %v506
        %v508 = vrot.slane %v314, %v507
        %v509 = vlaneseq
        %v510 = vshrl.u32 %v509, 7
        %v511 = vsub.s32 6, %v510
        %v512 = vrot.slane %v314, %v511
        %v513 = vlaneseq
        %v514 = vshrl.u32 %v513, 7
        %v515 = vsub.s32 7, %v514
        %v516 = vrot.slane %v314, %v515
        %v517 = vlaneseq
        %v518 = vshrl.u32 %v517, 7
        %v519 = vsub.s32 0, %v518
        %v520 = vrot.slane %v315, %v519
        %v521 = vlaneseq
        %v522 = vshrl.u32 %v521, 7
        %v523 = vsub.s32 1, %v522
        %v524 = vrot.slane %v315, %v523
        %v525 = vlaneseq
        %v526 = vshrl.u32 %v525, 7
        %v527 = vsub.s32 2, %v526
        %v528 = vrot.slane %v315, %v527
        %v529 = vlaneseq
        %v530 = vshrl.u32 %v529, 7
        %v531 = vsub.s32 3, %v530
        %v532 = vrot.slane %v315, %v531
        %v533 = vlaneseq
        %v534 = vshrl.u32 %v533, 7
        %v535 = vsub.s32 4, %v534
        %v536 = vrot.slane %v315, %v535
        %v537 = vlaneseq
        %v538 = vshrl.u32 %v537, 7
        %v539 = vsub.s32 5, %v538
        %v540 = vrot.slane %v315, %v539
        %v541 = vlaneseq
        %v542 = vshrl.u32 %v541, 7
        %v543 = vsub.s32 6, %v542
        %v544 = vrot.slane %v315, %v543
        %v545 = vlaneseq
        %v546 = vshrl.u32 %v545, 7
        %v547 = vsub.s32 7, %v546
        %v548 = vrot.slane %v315, %v547
        %v549 = vlaneseq
        %v550 = vshrl.u32 %v549, 7
        %v551 = vsub.s32 0, %v550
        %v552 = vrot.slane %v316, %v551
        %v553 = vlaneseq
        %v554 = vshrl.u32 %v553, 7
        %v555 = vsub.s32 1, %v554
        %v556 = vrot.slane %v316, %v555
        %v557 = vlaneseq
        %v558 = vshrl.u32 %v557, 7
        %v559 = vsub.s32 2, %v558
        %v560 = vrot.slane %v316, %v559
        %v561 = vlaneseq
        %v562 = vshrl.u32 %v561, 7
        %v563 = vsub.s32 3, %v562
        %v564 = vrot.slane %v316, %v563
        %v565 = vlaneseq
        %v566 = vshrl.u32 %v565, 7
        %v567 = vsub.s32 4, %v566
        %v568 = vrot.slane %v316, %v567
        %v569 = vlaneseq
        %v570 = vshrl.u32 %v569, 7
        %v571 = vsub.s32 5, %v570
        %v572 = vrot.slane %v316, %v571
        %v573 = vlaneseq
        %v574 = vshrl.u32 %v573, 7
        %v575 = vsub.s32 6, %v574
        %v576 = vrot.slane %v316, %v575
        %v577 = vlaneseq
        %v578 = vshrl.u32 %v577, 7
        %v579 = vsub.s32 7, %v578
        %v580 = vrot.slane %v316, %v579
        %v581 = vcombine.low %v328, %v332
        %v582 = vcombine.low %v336, %v340
        %v584 = vunpack.c.l.s4 1983009808
        %v585 = vunpack.c.0.s8 %v584
        %v586 = vlaneseq
        %v587 = vshrl.u32 %v586, 7
        %v588 = vsub.s32 %v585, %v587
        %v589 = vrot.slane %v581, %v588
        %v591 = vunpack.c.l.s4 1983009808
        %v592 = vunpack.c.0.s8 %v591
        %v593 = vlaneseq
        %v594 = vshrl.u32 %v593, 7
        %v595 = vsub.s32 %v592, %v594
        %v596 = vrot.slane %v582, %v595
        %v597 = vcombine.low %v589, %v596
        %v598 = vcombine.low %v344, %v348
        %v599 = vcombine.low %v352, %v356
        %v601 = vunpack.c.l.s4 1983009808
        %v602 = vunpack.c.0.s8 %v601
        %v603 = vlaneseq
        %v604 = vshrl.u32 %v603, 7
        %v605 = vsub.s32 %v602, %v604
        %v606 = vrot.slane %v598, %v605
        %v608 = vunpack.c.l.s4 1983009808
        %v609 = vunpack.c.0.s8 %v608
        %v610 = vlaneseq
        %v611 = vshrl.u32 %v610, 7
        %v612 = vsub.s32 %v609, %v611
        %v613 = vrot.slane %v599, %v612
        %v614 = vcombine.low %v606, %v613
        %v615 = vcombine.low %v360, %v364
        %v616 = vcombine.low %v368, %v372
        %v618 = vunpack.c.l.s4 1983009808
        %v619 = vunpack.c.0.s8 %v618
        %v620 = vlaneseq
        %v621 = vshrl.u32 %v620, 7
        %v622 = vsub.s32 %v619, %v621
        %v623 = vrot.slane %v615, %v622
        %v625 = vunpack.c.l.s4 1983009808
        %v626 = vunpack.c.0.s8 %v625
        %v627 = vlaneseq
        %v628 = vshrl.u32 %v627, 7
        %v629 = vsub.s32 %v626, %v628
        %v630 = vrot.slane %v616, %v629
        %v631 = vcombine.low %v623, %v630
        %v632 = vcombine.low %v376, %v380
        %v633 = vcombine.low %v384, %v388
        %v635 = vunpack.c.l.s4 1983009808
        %v636 = vunpack.c.0.s8 %v635
        %v637 = vlaneseq
        %v638 = vshrl.u32 %v637, 7
        %v639 = vsub.s32 %v636, %v638
        %v640 = vrot.slane %v632, %v639
        %v642 = vunpack.c.l.s4 1983009808
        %v643 = vunpack.c.0.s8 %v642
        %v644 = vlaneseq
        %v645 = vshrl.u32 %v644, 7
        %v646 = vsub.s32 %v643, %v645
        %v647 = vrot.slane %v633, %v646
        %v648 = vcombine.low %v640, %v647
        %v649 = vcombine.low %v392, %v396
        %v650 = vcombine.low %v400, %v404
        %v652 = vunpack.c.l.s4 1983009808
        %v653 = vunpack.c.0.s8 %v652
        %v654 = vlaneseq
        %v655 = vshrl.u32 %v654, 7
        %v656 = vsub.s32 %v653, %v655
        %v657 = vrot.slane %v649, %v656
        %v659 = vunpack.c.l.s4 1983009808
        %v660 = vunpack.c.0.s8 %v659
        %v661 = vlaneseq
        %v662 = vshrl.u32 %v661, 7
        %v663 = vsub.s32 %v660, %v662
        %v664 = vrot.slane %v650, %v663
        %v665 = vcombine.low %v657, %v664
        %v666 = vcombine.low %v408, %v412
        %v667 = vcombine.low %v416, %v420
        %v669 = vunpack.c.l.s4 1983009808
        %v670 = vunpack.c.0.s8 %v669
        %v671 = vlaneseq
        %v672 = vshrl.u32 %v671, 7
        %v673 = vsub.s32 %v670, %v672
        %v674 = vrot.slane %v666, %v673
        %v676 = vunpack.c.l.s4 1983009808
        %v677 = vunpack.c.0.s8 %v676
        %v678 = vlaneseq
        %v679 = vshrl.u32 %v678, 7
        %v680 = vsub.s32 %v677, %v679
        %v681 = vrot.slane %v667, %v680
        %v682 = vcombine.low %v674, %v681
        %v683 = vcombine.low %v424, %v428
        %v684 = vcombine.low %v432, %v436
        %v686 = vunpack.c.l.s4 1983009808
        %v687 = vunpack.c.0.s8 %v686
        %v688 = vlaneseq
        %v689 = vshrl.u32 %v688, 7
        %v690 = vsub.s32 %v687, %v689
        %v691 = vrot.slane %v683, %v690
        %v693 = vunpack.c.l.s4 1983009808
        %v694 = vunpack.c.0.s8 %v693
        %v695 = vlaneseq
        %v696 = vshrl.u32 %v695, 7
        %v697 = vsub.s32 %v694, %v696
        %v698 = vrot.slane %v684, %v697
        %v699 = vcombine.low %v691, %v698
        %v700 = vcombine.low %v440, %v444
        %v701 = vcombine.low %v448, %v452
        %v703 = vunpack.c.l.s4 1983009808
        %v704 = vunpack.c.0.s8 %v703
        %v705 = vlaneseq
        %v706 = vshrl.u32 %v705, 7
        %v707 = vsub.s32 %v704, %v706
        %v708 = vrot.slane %v700, %v707
        %v710 = vunpack.c.l.s4 1983009808
        %v711 = vunpack.c.0.s8 %v710
        %v712 = vlaneseq
        %v713 = vshrl.u32 %v712, 7
        %v714 = vsub.s32 %v711, %v713
        %v715 = vrot.slane %v701, %v714
        %v716 = vcombine.low %v708, %v715
        %v717 = vcombine.low %v456, %v460
        %v718 = vcombine.low %v464, %v468
        %v720 = vunpack.c.l.s4 1983009808
        %v721 = vunpack.c.0.s8 %v720
        %v722 = vlaneseq
        %v723 = vshrl.u32 %v722, 7
        %v724 = vsub.s32 %v721, %v723
        %v725 = vrot.slane %v717, %v724
        %v727 = vunpack.c.l.s4 1983009808
        %v728 = vunpack.c.0.s8 %v727
        %v729 = vlaneseq
        %v730 = vshrl.u32 %v729, 7
        %v731 = vsub.s32 %v728, %v730
        %v732 = vrot.slane %v718, %v731
        %v733 = vcombine.low %v725, %v732
        %v734 = vcombine.low %v472, %v476
        %v735 = vcombine.low %v480, %v484
        %v737 = vunpack.c.l.s4 1983009808
        %v738 = vunpack.c.0.s8 %v737
        %v739 = vlaneseq
        %v740 = vshrl.u32 %v739, 7
        %v741 = vsub.s32 %v738, %v740
        %v742 = vrot.slane %v734, %v741
        %v744 = vunpack.c.l.s4 1983009808
        %v745 = vunpack.c.0.s8 %v744
        %v746 = vlaneseq
        %v747 = vshrl.u32 %v746, 7
        %v748 = vsub.s32 %v745, %v747
        %v749 = vrot.slane %v735, %v748
        %v750 = vcombine.low %v742, %v749
        %v751 = vcombine.low %v488, %v492
        %v752 = vcombine.low %v496, %v500
        %v754 = vunpack.c.l.s4 1983009808
        %v755 = vunpack.c.0.s8 %v754
        %v756 = vlaneseq
        %v757 = vshrl.u32 %v756, 7
        %v758 = vsub.s32 %v755, %v757
        %v759 = vrot.slane %v751, %v758
        %v761 = vunpack.c.l.s4 1983009808
        %v762 = vunpack.c.0.s8 %v761
        %v763 = vlaneseq
        %v764 = vshrl.u32 %v763, 7
        %v765 = vsub.s32 %v762, %v764
        %v766 = vrot.slane %v752, %v765
        %v767 = vcombine.low %v759, %v766
        %v768 = vcombine.low %v504, %v508
        %v769 = vcombine.low %v512, %v516
        %v771 = vunpack.c.l.s4 1983009808
        %v772 = vunpack.c.0.s8 %v771
        %v773 = vlaneseq
        %v774 = vshrl.u32 %v773, 7
        %v775 = vsub.s32 %v772, %v774
        %v776 = vrot.slane %v768, %v775
        %v778 = vunpack.c.l.s4 1983009808
        %v779 = vunpack.c.0.s8 %v778
        %v780 = vlaneseq
        %v781 = vshrl.u32 %v780, 7
        %v782 = vsub.s32 %v779, %v781
        %v783 = vrot.slane %v769, %v782
        %v784 = vcombine.low %v776, %v783
        %v785 = vcombine.low %v520, %v524
        %v786 = vcombine.low %v528, %v532
        %v788 = vunpack.c.l.s4 1983009808
        %v789 = vunpack.c.0.s8 %v788
        %v790 = vlaneseq
        %v791 = vshrl.u32 %v790, 7
        %v792 = vsub.s32 %v789, %v791
        %v793 = vrot.slane %v785, %v792
        %v795 = vunpack.c.l.s4 1983009808
        %v796 = vunpack.c.0.s8 %v795
        %v797 = vlaneseq
        %v798 = vshrl.u32 %v797, 7
        %v799 = vsub.s32 %v796, %v798
        %v800 = vrot.slane %v786, %v799
        %v801 = vcombine.low %v793, %v800
        %v802 = vcombine.low %v536, %v540
        %v803 = vcombine.low %v544, %v548
        %v805 = vunpack.c.l.s4 1983009808
        %v806 = vunpack.c.0.s8 %v805
        %v807 = vlaneseq
        %v808 = vshrl.u32 %v807, 7
        %v809 = vsub.s32 %v806, %v808
        %v810 = vrot.slane %v802, %v809
        %v812 = vunpack.c.l.s4 1983009808
        %v813 = vunpack.c.0.s8 %v812
        %v814 = vlaneseq
        %v815 = vshrl.u32 %v814, 7
        %v816 = vsub.s32 %v813, %v815
        %v817 = vrot.slane %v803, %v816
        %v818 = vcombine.low %v810, %v817
        %v819 = vcombine.low %v552, %v556
        %v820 = vcombine.low %v560, %v564
        %v822 = vunpack.c.l.s4 1983009808
        %v823 = vunpack.c.0.s8 %v822
        %v824 = vlaneseq
        %v825 = vshrl.u32 %v824, 7
        %v826 = vsub.s32 %v823, %v825
        %v827 = vrot.slane %v819, %v826
        %v829 = vunpack.c.l.s4 1983009808
        %v830 = vunpack.c.0.s8 %v829
        %v831 = vlaneseq
        %v832 = vshrl.u32 %v831, 7
        %v833 = vsub.s32 %v830, %v832
        %v834 = vrot.slane %v820, %v833
        %v835 = vcombine.low %v827, %v834
        %v836 = vcombine.low %v568, %v572
        %v837 = vcombine.low %v576, %v580
        %v839 = vunpack.c.l.s4 1983009808
        %v840 = vunpack.c.0.s8 %v839
        %v841 = vlaneseq
        %v842 = vshrl.u32 %v841, 7
        %v843 = vsub.s32 %v840, %v842
        %v844 = vrot.slane %v836, %v843
        %v846 = vunpack.c.l.s4 1983009808
        %v847 = vunpack.c.0.s8 %v846
        %v848 = vlaneseq
        %v849 = vshrl.u32 %v848, 7
        %v850 = vsub.s32 %v847, %v849
        %v851 = vrot.slane %v837, %v850
        %v852 = vcombine.low %v844, %v851
        %v869 = vmul.f32 %v293, %v597
        %v870 = vmul.f32 %v294, %v614
        %v871 = vmul.f32 %v295, %v631
        %v872 = vmul.f32 %v296, %v648
        %v873 = vmul.f32 %v297, %v665
        %v874 = vmul.f32 %v298, %v682
        %v875 = vmul.f32 %v299, %v699
        %v876 = vmul.f32 %v300, %v716
        %v877 = vmul.f32 %v301, %v733
        %v878 = vmul.f32 %v302, %v750
        %v879 = vmul.f32 %v303, %v767
        %v880 = vmul.f32 %v304, %v784
        %v881 = vmul.f32 %v305, %v801
        %v882 = vmul.f32 %v306, %v818
        %v883 = vmul.f32 %v307, %v835
        %v884 = vmul.f32 %v308, %v852
        %v885 = vld [vmem:[%s262] sm:$0xff]
        %v886 = vld [vmem:[%s262 + $0x8] sm:$0xff]
        %v887 = vld [vmem:[%s262 + $0x10] sm:$0xff]
        %v888 = vld [vmem:[%s262 + $0x18] sm:$0xff]
        %v889 = vld [vmem:[%s262 + $0x20] sm:$0xff]
        %v890 = vld [vmem:[%s262 + $0x28] sm:$0xff]
        %v891 = vld [vmem:[%s262 + $0x30] sm:$0xff]
        %v892 = vld [vmem:[%s262 + $0x38] sm:$0xff]
        %v901 = vlaneseq
        %v902 = vshrl.u32 %v901, 7
        %v903 = vsub.s32 0, %v902
        %v904 = vrot.slane %v885, %v903
        %v905 = vlaneseq
        %v906 = vshrl.u32 %v905, 7
        %v907 = vsub.s32 1, %v906
        %v908 = vrot.slane %v885, %v907
        %v909 = vlaneseq
        %v910 = vshrl.u32 %v909, 7
        %v911 = vsub.s32 2, %v910
        %v912 = vrot.slane %v885, %v911
        %v913 = vlaneseq
        %v914 = vshrl.u32 %v913, 7
        %v915 = vsub.s32 3, %v914
        %v916 = vrot.slane %v885, %v915
        %v917 = vlaneseq
        %v918 = vshrl.u32 %v917, 7
        %v919 = vsub.s32 4, %v918
        %v920 = vrot.slane %v885, %v919
        %v921 = vlaneseq
        %v922 = vshrl.u32 %v921, 7
        %v923 = vsub.s32 5, %v922
        %v924 = vrot.slane %v885, %v923
        %v925 = vlaneseq
        %v926 = vshrl.u32 %v925, 7
        %v927 = vsub.s32 6, %v926
        %v928 = vrot.slane %v885, %v927
        %v929 = vlaneseq
        %v930 = vshrl.u32 %v929, 7
        %v931 = vsub.s32 7, %v930
        %v932 = vrot.slane %v885, %v931
        %v933 = vlaneseq
        %v934 = vshrl.u32 %v933, 7
        %v935 = vsub.s32 0, %v934
        %v936 = vrot.slane %v886, %v935
        %v937 = vlaneseq
        %v938 = vshrl.u32 %v937, 7
        %v939 = vsub.s32 1, %v938
        %v940 = vrot.slane %v886, %v939
        %v941 = vlaneseq
        %v942 = vshrl.u32 %v941, 7
        %v943 = vsub.s32 2, %v942
        %v944 = vrot.slane %v886, %v943
        %v945 = vlaneseq
        %v946 = vshrl.u32 %v945, 7
        %v947 = vsub.s32 3, %v946
        %v948 = vrot.slane %v886, %v947
        %v949 = vlaneseq
        %v950 = vshrl.u32 %v949, 7
        %v951 = vsub.s32 4, %v950
        %v952 = vrot.slane %v886, %v951
        %v953 = vlaneseq
        %v954 = vshrl.u32 %v953, 7
        %v955 = vsub.s32 5, %v954
        %v956 = vrot.slane %v886, %v955
        %v957 = vlaneseq
        %v958 = vshrl.u32 %v957, 7
        %v959 = vsub.s32 6, %v958
        %v960 = vrot.slane %v886, %v959
        %v961 = vlaneseq
        %v962 = vshrl.u32 %v961, 7
        %v963 = vsub.s32 7, %v962
        %v964 = vrot.slane %v886, %v963
        %v965 = vlaneseq
        %v966 = vshrl.u32 %v965, 7
        %v967 = vsub.s32 0, %v966
        %v968 = vrot.slane %v887, %v967
        %v969 = vlaneseq
        %v970 = vshrl.u32 %v969, 7
        %v971 = vsub.s32 1, %v970
        %v972 = vrot.slane %v887, %v971
        %v973 = vlaneseq
        %v974 = vshrl.u32 %v973, 7
        %v975 = vsub.s32 2, %v974
        %v976 = vrot.slane %v887, %v975
        %v977 = vlaneseq
        %v978 = vshrl.u32 %v977, 7
        %v979 = vsub.s32 3, %v978
        %v980 = vrot.slane %v887, %v979
        %v981 = vlaneseq
        %v982 = vshrl.u32 %v981, 7
        %v983 = vsub.s32 4, %v982
        %v984 = vrot.slane %v887, %v983
        %v985 = vlaneseq
        %v986 = vshrl.u32 %v985, 7
        %v987 = vsub.s32 5, %v986
        %v988 = vrot.slane %v887, %v987
        %v989 = vlaneseq
        %v990 = vshrl.u32 %v989, 7
        %v991 = vsub.s32 6, %v990
        %v992 = vrot.slane %v887, %v991
        %v993 = vlaneseq
        %v994 = vshrl.u32 %v993, 7
        %v995 = vsub.s32 7, %v994
        %v996 = vrot.slane %v887, %v995
        %v997 = vlaneseq
        %v998 = vshrl.u32 %v997, 7
        %v999 = vsub.s32 0, %v998
        %v1000 = vrot.slane %v888, %v999
        %v1001 = vlaneseq
        %v1002 = vshrl.u32 %v1001, 7
        %v1003 = vsub.s32 1, %v1002
        %v1004 = vrot.slane %v888, %v1003
        %v1005 = vlaneseq
        %v1006 = vshrl.u32 %v1005, 7
        %v1007 = vsub.s32 2, %v1006
        %v1008 = vrot.slane %v888, %v1007
        %v1009 = vlaneseq
        %v1010 = vshrl.u32 %v1009, 7
        %v1011 = vsub.s32 3, %v1010
        %v1012 = vrot.slane %v888, %v1011
        %v1013 = vlaneseq
        %v1014 = vshrl.u32 %v1013, 7
        %v1015 = vsub.s32 4, %v1014
        %v1016 = vrot.slane %v888, %v1015
        %v1017 = vlaneseq
        %v1018 = vshrl.u32 %v1017, 7
        %v1019 = vsub.s32 5, %v1018
        %v1020 = vrot.slane %v888, %v1019
        %v1021 = vlaneseq
        %v1022 = vshrl.u32 %v1021, 7
        %v1023 = vsub.s32 6, %v1022
        %v1024 = vrot.slane %v888, %v1023
        %v1025 = vlaneseq
        %v1026 = vshrl.u32 %v1025, 7
        %v1027 = vsub.s32 7, %v1026
        %v1028 = vrot.slane %v888, %v1027
        %v1029 = vlaneseq
        %v1030 = vshrl.u32 %v1029, 7
        %v1031 = vsub.s32 0, %v1030
        %v1032 = vrot.slane %v889, %v1031
        %v1033 = vlaneseq
        %v1034 = vshrl.u32 %v1033, 7
        %v1035 = vsub.s32 1, %v1034
        %v1036 = vrot.slane %v889, %v1035
        %v1037 = vlaneseq
        %v1038 = vshrl.u32 %v1037, 7
        %v1039 = vsub.s32 2, %v1038
        %v1040 = vrot.slane %v889, %v1039
        %v1041 = vlaneseq
        %v1042 = vshrl.u32 %v1041, 7
        %v1043 = vsub.s32 3, %v1042
        %v1044 = vrot.slane %v889, %v1043
        %v1045 = vlaneseq
        %v1046 = vshrl.u32 %v1045, 7
        %v1047 = vsub.s32 4, %v1046
        %v1048 = vrot.slane %v889, %v1047
        %v1049 = vlaneseq
        %v1050 = vshrl.u32 %v1049, 7
        %v1051 = vsub.s32 5, %v1050
        %v1052 = vrot.slane %v889, %v1051
        %v1053 = vlaneseq
        %v1054 = vshrl.u32 %v1053, 7
        %v1055 = vsub.s32 6, %v1054
        %v1056 = vrot.slane %v889, %v1055
        %v1057 = vlaneseq
        %v1058 = vshrl.u32 %v1057, 7
        %v1059 = vsub.s32 7, %v1058
        %v1060 = vrot.slane %v889, %v1059
        %v1061 = vlaneseq
        %v1062 = vshrl.u32 %v1061, 7
        %v1063 = vsub.s32 0, %v1062
        %v1064 = vrot.slane %v890, %v1063
        %v1065 = vlaneseq
        %v1066 = vshrl.u32 %v1065, 7
        %v1067 = vsub.s32 1, %v1066
        %v1068 = vrot.slane %v890, %v1067
        %v1069 = vlaneseq
        %v1070 = vshrl.u32 %v1069, 7
        %v1071 = vsub.s32 2, %v1070
        %v1072 = vrot.slane %v890, %v1071
        %v1073 = vlaneseq
        %v1074 = vshrl.u32 %v1073, 7
        %v1075 = vsub.s32 3, %v1074
        %v1076 = vrot.slane %v890, %v1075
        %v1077 = vlaneseq
        %v1078 = vshrl.u32 %v1077, 7
        %v1079 = vsub.s32 4, %v1078
        %v1080 = vrot.slane %v890, %v1079
        %v1081 = vlaneseq
        %v1082 = vshrl.u32 %v1081, 7
        %v1083 = vsub.s32 5, %v1082
        %v1084 = vrot.slane %v890, %v1083
        %v1085 = vlaneseq
        %v1086 = vshrl.u32 %v1085, 7
        %v1087 = vsub.s32 6, %v1086
        %v1088 = vrot.slane %v890, %v1087
        %v1089 = vlaneseq
        %v1090 = vshrl.u32 %v1089, 7
        %v1091 = vsub.s32 7, %v1090
        %v1092 = vrot.slane %v890, %v1091
        %v1093 = vlaneseq
        %v1094 = vshrl.u32 %v1093, 7
        %v1095 = vsub.s32 0, %v1094
        %v1096 = vrot.slane %v891, %v1095
        %v1097 = vlaneseq
        %v1098 = vshrl.u32 %v1097, 7
        %v1099 = vsub.s32 1, %v1098
        %v1100 = vrot.slane %v891, %v1099
        %v1101 = vlaneseq
        %v1102 = vshrl.u32 %v1101, 7
        %v1103 = vsub.s32 2, %v1102
        %v1104 = vrot.slane %v891, %v1103
        %v1105 = vlaneseq
        %v1106 = vshrl.u32 %v1105, 7
        %v1107 = vsub.s32 3, %v1106
        %v1108 = vrot.slane %v891, %v1107
        %v1109 = vlaneseq
        %v1110 = vshrl.u32 %v1109, 7
        %v1111 = vsub.s32 4, %v1110
        %v1112 = vrot.slane %v891, %v1111
        %v1113 = vlaneseq
        %v1114 = vshrl.u32 %v1113, 7
        %v1115 = vsub.s32 5, %v1114
        %v1116 = vrot.slane %v891, %v1115
        %v1117 = vlaneseq
        %v1118 = vshrl.u32 %v1117, 7
        %v1119 = vsub.s32 6, %v1118
        %v1120 = vrot.slane %v891, %v1119
        %v1121 = vlaneseq
        %v1122 = vshrl.u32 %v1121, 7
        %v1123 = vsub.s32 7, %v1122
        %v1124 = vrot.slane %v891, %v1123
        %v1125 = vlaneseq
        %v1126 = vshrl.u32 %v1125, 7
        %v1127 = vsub.s32 0, %v1126
        %v1128 = vrot.slane %v892, %v1127
        %v1129 = vlaneseq
        %v1130 = vshrl.u32 %v1129, 7
        %v1131 = vsub.s32 1, %v1130
        %v1132 = vrot.slane %v892, %v1131
        %v1133 = vlaneseq
        %v1134 = vshrl.u32 %v1133, 7
        %v1135 = vsub.s32 2, %v1134
        %v1136 = vrot.slane %v892, %v1135
        %v1137 = vlaneseq
        %v1138 = vshrl.u32 %v1137, 7
        %v1139 = vsub.s32 3, %v1138
        %v1140 = vrot.slane %v892, %v1139
        %v1141 = vlaneseq
        %v1142 = vshrl.u32 %v1141, 7
        %v1143 = vsub.s32 4, %v1142
        %v1144 = vrot.slane %v892, %v1143
        %v1145 = vlaneseq
        %v1146 = vshrl.u32 %v1145, 7
        %v1147 = vsub.s32 5, %v1146
        %v1148 = vrot.slane %v892, %v1147
        %v1149 = vlaneseq
        %v1150 = vshrl.u32 %v1149, 7
        %v1151 = vsub.s32 6, %v1150
        %v1152 = vrot.slane %v892, %v1151
        %v1153 = vlaneseq
        %v1154 = vshrl.u32 %v1153, 7
        %v1155 = vsub.s32 7, %v1154
        %v1156 = vrot.slane %v892, %v1155
        %v1157 = vcombine.low %v904, %v908
        %v1158 = vcombine.low %v912, %v916
        %v1160 = vunpack.c.l.s4 1983009808
        %v1161 = vunpack.c.0.s8 %v1160
        %v1162 = vlaneseq
        %v1163 = vshrl.u32 %v1162, 7
        %v1164 = vsub.s32 %v1161, %v1163
        %v1165 = vrot.slane %v1157, %v1164
        %v1167 = vunpack.c.l.s4 1983009808
        %v1168 = vunpack.c.0.s8 %v1167
        %v1169 = vlaneseq
        %v1170 = vshrl.u32 %v1169, 7
        %v1171 = vsub.s32 %v1168, %v1170
        %v1172 = vrot.slane %v1158, %v1171
        %v1173 = vcombine.low %v1165, %v1172
        %v1174 = vcombine.low %v920, %v924
        %v1175 = vcombine.low %v928, %v932
        %v1177 = vunpack.c.l.s4 1983009808
        %v1178 = vunpack.c.0.s8 %v1177
        %v1179 = vlaneseq
        %v1180 = vshrl.u32 %v1179, 7
        %v1181 = vsub.s32 %v1178, %v1180
        %v1182 = vrot.slane %v1174, %v1181
        %v1184 = vunpack.c.l.s4 1983009808
        %v1185 = vunpack.c.0.s8 %v1184
        %v1186 = vlaneseq
        %v1187 = vshrl.u32 %v1186, 7
        %v1188 = vsub.s32 %v1185, %v1187
        %v1189 = vrot.slane %v1175, %v1188
        %v1190 = vcombine.low %v1182, %v1189
        %v1191 = vcombine.low %v936, %v940
        %v1192 = vcombine.low %v944, %v948
        %v1194 = vunpack.c.l.s4 1983009808
        %v1195 = vunpack.c.0.s8 %v1194
        %v1196 = vlaneseq
        %v1197 = vshrl.u32 %v1196, 7
        %v1198 = vsub.s32 %v1195, %v1197
        %v1199 = vrot.slane %v1191, %v1198
        %v1201 = vunpack.c.l.s4 1983009808
        %v1202 = vunpack.c.0.s8 %v1201
        %v1203 = vlaneseq
        %v1204 = vshrl.u32 %v1203, 7
        %v1205 = vsub.s32 %v1202, %v1204
        %v1206 = vrot.slane %v1192, %v1205
        %v1207 = vcombine.low %v1199, %v1206
        %v1208 = vcombine.low %v952, %v956
        %v1209 = vcombine.low %v960, %v964
        %v1211 = vunpack.c.l.s4 1983009808
        %v1212 = vunpack.c.0.s8 %v1211
        %v1213 = vlaneseq
        %v1214 = vshrl.u32 %v1213, 7
        %v1215 = vsub.s32 %v1212, %v1214
        %v1216 = vrot.slane %v1208, %v1215
        %v1218 = vunpack.c.l.s4 1983009808
        %v1219 = vunpack.c.0.s8 %v1218
        %v1220 = vlaneseq
        %v1221 = vshrl.u32 %v1220, 7
        %v1222 = vsub.s32 %v1219, %v1221
        %v1223 = vrot.slane %v1209, %v1222
        %v1224 = vcombine.low %v1216, %v1223
        %v1225 = vcombine.low %v968, %v972
        %v1226 = vcombine.low %v976, %v980
        %v1228 = vunpack.c.l.s4 1983009808
        %v1229 = vunpack.c.0.s8 %v1228
        %v1230 = vlaneseq
        %v1231 = vshrl.u32 %v1230, 7
        %v1232 = vsub.s32 %v1229, %v1231
        %v1233 = vrot.slane %v1225, %v1232
        %v1235 = vunpack.c.l.s4 1983009808
        %v1236 = vunpack.c.0.s8 %v1235
        %v1237 = vlaneseq
        %v1238 = vshrl.u32 %v1237, 7
        %v1239 = vsub.s32 %v1236, %v1238
        %v1240 = vrot.slane %v1226, %v1239
        %v1241 = vcombine.low %v1233, %v1240
        %v1242 = vcombine.low %v984, %v988
        %v1243 = vcombine.low %v992, %v996
        %v1245 = vunpack.c.l.s4 1983009808
        %v1246 = vunpack.c.0.s8 %v1245
        %v1247 = vlaneseq
        %v1248 = vshrl.u32 %v1247, 7
        %v1249 = vsub.s32 %v1246, %v1248
        %v1250 = vrot.slane %v1242, %v1249
        %v1252 = vunpack.c.l.s4 1983009808
        %v1253 = vunpack.c.0.s8 %v1252
        %v1254 = vlaneseq
        %v1255 = vshrl.u32 %v1254, 7
        %v1256 = vsub.s32 %v1253, %v1255
        %v1257 = vrot.slane %v1243, %v1256
        %v1258 = vcombine.low %v1250, %v1257
        %v1259 = vcombine.low %v1000, %v1004
        %v1260 = vcombine.low %v1008, %v1012
        %v1262 = vunpack.c.l.s4 1983009808
        %v1263 = vunpack.c.0.s8 %v1262
        %v1264 = vlaneseq
        %v1265 = vshrl.u32 %v1264, 7
        %v1266 = vsub.s32 %v1263, %v1265
        %v1267 = vrot.slane %v1259, %v1266
        %v1269 = vunpack.c.l.s4 1983009808
        %v1270 = vunpack.c.0.s8 %v1269
        %v1271 = vlaneseq
        %v1272 = vshrl.u32 %v1271, 7
        %v1273 = vsub.s32 %v1270, %v1272
        %v1274 = vrot.slane %v1260, %v1273
        %v1275 = vcombine.low %v1267, %v1274
        %v1276 = vcombine.low %v1016, %v1020
        %v1277 = vcombine.low %v1024, %v1028
        %v1279 = vunpack.c.l.s4 1983009808
        %v1280 = vunpack.c.0.s8 %v1279
        %v1281 = vlaneseq
        %v1282 = vshrl.u32 %v1281, 7
        %v1283 = vsub.s32 %v1280, %v1282
        %v1284 = vrot.slane %v1276, %v1283
        %v1286 = vunpack.c.l.s4 1983009808
        %v1287 = vunpack.c.0.s8 %v1286
        %v1288 = vlaneseq
        %v1289 = vshrl.u32 %v1288, 7
        %v1290 = vsub.s32 %v1287, %v1289
        %v1291 = vrot.slane %v1277, %v1290
        %v1292 = vcombine.low %v1284, %v1291
        %v1293 = vcombine.low %v1032, %v1036
        %v1294 = vcombine.low %v1040, %v1044
        %v1296 = vunpack.c.l.s4 1983009808
        %v1297 = vunpack.c.0.s8 %v1296
        %v1298 = vlaneseq
        %v1299 = vshrl.u32 %v1298, 7
        %v1300 = vsub.s32 %v1297, %v1299
        %v1301 = vrot.slane %v1293, %v1300
        %v1303 = vunpack.c.l.s4 1983009808
        %v1304 = vunpack.c.0.s8 %v1303
        %v1305 = vlaneseq
        %v1306 = vshrl.u32 %v1305, 7
        %v1307 = vsub.s32 %v1304, %v1306
        %v1308 = vrot.slane %v1294, %v1307
        %v1309 = vcombine.low %v1301, %v1308
        %v1310 = vcombine.low %v1048, %v1052
        %v1311 = vcombine.low %v1056, %v1060
        %v1313 = vunpack.c.l.s4 1983009808
        %v1314 = vunpack.c.0.s8 %v1313
        %v1315 = vlaneseq
        %v1316 = vshrl.u32 %v1315, 7
        %v1317 = vsub.s32 %v1314, %v1316
        %v1318 = vrot.slane %v1310, %v1317
        %v1320 = vunpack.c.l.s4 1983009808
        %v1321 = vunpack.c.0.s8 %v1320
        %v1322 = vlaneseq
        %v1323 = vshrl.u32 %v1322, 7
        %v1324 = vsub.s32 %v1321, %v1323
        %v1325 = vrot.slane %v1311, %v1324
        %v1326 = vcombine.low %v1318, %v1325
        %v1327 = vcombine.low %v1064, %v1068
        %v1328 = vcombine.low %v1072, %v1076
        %v1330 = vunpack.c.l.s4 1983009808
        %v1331 = vunpack.c.0.s8 %v1330
        %v1332 = vlaneseq
        %v1333 = vshrl.u32 %v1332, 7
        %v1334 = vsub.s32 %v1331, %v1333
        %v1335 = vrot.slane %v1327, %v1334
        %v1337 = vunpack.c.l.s4 1983009808
        %v1338 = vunpack.c.0.s8 %v1337
        %v1339 = vlaneseq
        %v1340 = vshrl.u32 %v1339, 7
        %v1341 = vsub.s32 %v1338, %v1340
        %v1342 = vrot.slane %v1328, %v1341
        %v1343 = vcombine.low %v1335, %v1342
        %v1344 = vcombine.low %v1080, %v1084
        %v1345 = vcombine.low %v1088, %v1092
        %v1347 = vunpack.c.l.s4 1983009808
        %v1348 = vunpack.c.0.s8 %v1347
        %v1349 = vlaneseq
        %v1350 = vshrl.u32 %v1349, 7
        %v1351 = vsub.s32 %v1348, %v1350
        %v1352 = vrot.slane %v1344, %v1351
        %v1354 = vunpack.c.l.s4 1983009808
        %v1355 = vunpack.c.0.s8 %v1354
        %v1356 = vlaneseq
        %v1357 = vshrl.u32 %v1356, 7
        %v1358 = vsub.s32 %v1355, %v1357
        %v1359 = vrot.slane %v1345, %v1358
        %v1360 = vcombine.low %v1352, %v1359
        %v1361 = vcombine.low %v1096, %v1100
        %v1362 = vcombine.low %v1104, %v1108
        %v1364 = vunpack.c.l.s4 1983009808
        %v1365 = vunpack.c.0.s8 %v1364
        %v1366 = vlaneseq
        %v1367 = vshrl.u32 %v1366, 7
        %v1368 = vsub.s32 %v1365, %v1367
        %v1369 = vrot.slane %v1361, %v1368
        %v1371 = vunpack.c.l.s4 1983009808
        %v1372 = vunpack.c.0.s8 %v1371
        %v1373 = vlaneseq
        %v1374 = vshrl.u32 %v1373, 7
        %v1375 = vsub.s32 %v1372, %v1374
        %v1376 = vrot.slane %v1362, %v1375
        %v1377 = vcombine.low %v1369, %v1376
        %v1378 = vcombine.low %v1112, %v1116
        %v1379 = vcombine.low %v1120, %v1124
        %v1381 = vunpack.c.l.s4 1983009808
        %v1382 = vunpack.c.0.s8 %v1381
        %v1383 = vlaneseq
        %v1384 = vshrl.u32 %v1383, 7
        %v1385 = vsub.s32 %v1382, %v1384
        %v1386 = vrot.slane %v1378, %v1385
        %v1388 = vunpack.c.l.s4 1983009808
        %v1389 = vunpack.c.0.s8 %v1388
        %v1390 = vlaneseq
        %v1391 = vshrl.u32 %v1390, 7
        %v1392 = vsub.s32 %v1389, %v1391
        %v1393 = vrot.slane %v1379, %v1392
        %v1394 = vcombine.low %v1386, %v1393
        %v1395 = vcombine.low %v1128, %v1132
        %v1396 = vcombine.low %v1136, %v1140
        %v1398 = vunpack.c.l.s4 1983009808
        %v1399 = vunpack.c.0.s8 %v1398
        %v1400 = vlaneseq
        %v1401 = vshrl.u32 %v1400, 7
        %v1402 = vsub.s32 %v1399, %v1401
        %v1403 = vrot.slane %v1395, %v1402
        %v1405 = vunpack.c.l.s4 1983009808
        %v1406 = vunpack.c.0.s8 %v1405
        %v1407 = vlaneseq
        %v1408 = vshrl.u32 %v1407, 7
        %v1409 = vsub.s32 %v1406, %v1408
        %v1410 = vrot.slane %v1396, %v1409
        %v1411 = vcombine.low %v1403, %v1410
        %v1412 = vcombine.low %v1144, %v1148
        %v1413 = vcombine.low %v1152, %v1156
        %v1415 = vunpack.c.l.s4 1983009808
        %v1416 = vunpack.c.0.s8 %v1415
        %v1417 = vlaneseq
        %v1418 = vshrl.u32 %v1417, 7
        %v1419 = vsub.s32 %v1416, %v1418
        %v1420 = vrot.slane %v1412, %v1419
        %v1422 = vunpack.c.l.s4 1983009808
        %v1423 = vunpack.c.0.s8 %v1422
        %v1424 = vlaneseq
        %v1425 = vshrl.u32 %v1424, 7
        %v1426 = vsub.s32 %v1423, %v1425
        %v1427 = vrot.slane %v1413, %v1426
        %v1428 = vcombine.low %v1420, %v1427
        %v1445 = vadd.f32 %v869, %v1173
        %v1446 = vadd.f32 %v870, %v1190
        %v1447 = vadd.f32 %v871, %v1207
        %v1448 = vadd.f32 %v872, %v1224
        %v1449 = vadd.f32 %v873, %v1241
        %v1450 = vadd.f32 %v874, %v1258
        %v1451 = vadd.f32 %v875, %v1275
        %v1452 = vadd.f32 %v876, %v1292
        %v1453 = vadd.f32 %v877, %v1309
        %v1454 = vadd.f32 %v878, %v1326
        %v1455 = vadd.f32 %v879, %v1343
        %v1456 = vadd.f32 %v880, %v1360
        %v1457 = vadd.f32 %v881, %v1377
        %v1458 = vadd.f32 %v882, %v1394
        %v1459 = vadd.f32 %v883, %v1411
        %v1460 = vadd.f32 %v884, %v1428
        %v1461 = vmax.f32 %v1445, 0.0
        %v1462 = vmax.f32 %v1446, 0.0
        %v1463 = vmax.f32 %v1447, 0.0
        %v1464 = vmax.f32 %v1448, 0.0
        %v1465 = vmax.f32 %v1449, 0.0
        %v1466 = vmax.f32 %v1450, 0.0
        %v1467 = vmax.f32 %v1451, 0.0
        %v1468 = vmax.f32 %v1452, 0.0
        %v1469 = vmax.f32 %v1453, 0.0
        %v1470 = vmax.f32 %v1454, 0.0
        %v1471 = vmax.f32 %v1455, 0.0
        %v1472 = vmax.f32 %v1456, 0.0
        %v1473 = vmax.f32 %v1457, 0.0
        %v1474 = vmax.f32 %v1458, 0.0
        %v1475 = vmax.f32 %v1459, 0.0
        %v1476 = vmax.f32 %v1460, 0.0
        %v1477 = vld [vmem:[#allocation2] sm:$0x3]
        %v1494 = vcombine.high %v1461, %v1461
        %v1496 = vunpack.c.l.s4 1983009808
        %v1497 = vunpack.c.0.s8 %v1496
        %v1498 = vlaneseq
        %v1499 = vshrl.u32 %v1498, 7
        %v1500 = vsub.s32 %v1497, %v1499
        %v1501 = vrot.slane %v1461, %v1500
        %v1503 = vunpack.c.l.s4 1983009808
        %v1504 = vunpack.c.0.s8 %v1503
        %v1505 = vlaneseq
        %v1506 = vshrl.u32 %v1505, 7
        %v1507 = vsub.s32 %v1504, %v1506
        %v1508 = vrot.slane %v1494, %v1507
        %v1509 = vcombine.high %v1501, %v1501
        %v1510 = vcombine.high %v1508, %v1508
        %v1511 = vcombine.high %v1462, %v1462
        %v1513 = vunpack.c.l.s4 1983009808
        %v1514 = vunpack.c.0.s8 %v1513
        %v1515 = vlaneseq
        %v1516 = vshrl.u32 %v1515, 7
        %v1517 = vsub.s32 %v1514, %v1516
        %v1518 = vrot.slane %v1462, %v1517
        %v1520 = vunpack.c.l.s4 1983009808
        %v1521 = vunpack.c.0.s8 %v1520
        %v1522 = vlaneseq
        %v1523 = vshrl.u32 %v1522, 7
        %v1524 = vsub.s32 %v1521, %v1523
        %v1525 = vrot.slane %v1511, %v1524
        %v1526 = vcombine.high %v1518, %v1518
        %v1527 = vcombine.high %v1525, %v1525
        %v1528 = vcombine.high %v1463, %v1463
        %v1530 = vunpack.c.l.s4 1983009808
        %v1531 = vunpack.c.0.s8 %v1530
        %v1532 = vlaneseq
        %v1533 = vshrl.u32 %v1532, 7
        %v1534 = vsub.s32 %v1531, %v1533
        %v1535 = vrot.slane %v1463, %v1534
        %v1537 = vunpack.c.l.s4 1983009808
        %v1538 = vunpack.c.0.s8 %v1537
        %v1539 = vlaneseq
        %v1540 = vshrl.u32 %v1539, 7
        %v1541 = vsub.s32 %v1538, %v1540
        %v1542 = vrot.slane %v1528, %v1541
        %v1543 = vcombine.high %v1535, %v1535
        %v1544 = vcombine.high %v1542, %v1542
        %v1545 = vcombine.high %v1464, %v1464
        %v1547 = vunpack.c.l.s4 1983009808
        %v1548 = vunpack.c.0.s8 %v1547
        %v1549 = vlaneseq
        %v1550 = vshrl.u32 %v1549, 7
        %v1551 = vsub.s32 %v1548, %v1550
        %v1552 = vrot.slane %v1464, %v1551
        %v1554 = vunpack.c.l.s4 1983009808
        %v1555 = vunpack.c.0.s8 %v1554
        %v1556 = vlaneseq
        %v1557 = vshrl.u32 %v1556, 7
        %v1558 = vsub.s32 %v1555, %v1557
        %v1559 = vrot.slane %v1545, %v1558
        %v1560 = vcombine.high %v1552, %v1552
        %v1561 = vcombine.high %v1559, %v1559
        %v1562 = vcombine.high %v1465, %v1465
        %v1564 = vunpack.c.l.s4 1983009808
        %v1565 = vunpack.c.0.s8 %v1564
        %v1566 = vlaneseq
        %v1567 = vshrl.u32 %v1566, 7
        %v1568 = vsub.s32 %v1565, %v1567
        %v1569 = vrot.slane %v1465, %v1568
        %v1571 = vunpack.c.l.s4 1983009808
        %v1572 = vunpack.c.0.s8 %v1571
        %v1573 = vlaneseq
        %v1574 = vshrl.u32 %v1573, 7
        %v1575 = vsub.s32 %v1572, %v1574
        %v1576 = vrot.slane %v1562, %v1575
        %v1577 = vcombine.high %v1569, %v1569
        %v1578 = vcombine.high %v1576, %v1576
        %v1579 = vcombine.high %v1466, %v1466
        %v1581 = vunpack.c.l.s4 1983009808
        %v1582 = vunpack.c.0.s8 %v1581
        %v1583 = vlaneseq
        %v1584 = vshrl.u32 %v1583, 7
        %v1585 = vsub.s32 %v1582, %v1584
        %v1586 = vrot.slane %v1466, %v1585
        %v1588 = vunpack.c.l.s4 1983009808
        %v1589 = vunpack.c.0.s8 %v1588
        %v1590 = vlaneseq
        %v1591 = vshrl.u32 %v1590, 7
        %v1592 = vsub.s32 %v1589, %v1591
        %v1593 = vrot.slane %v1579, %v1592
        %v1594 = vcombine.high %v1586, %v1586
        %v1595 = vcombine.high %v1593, %v1593
        %v1596 = vcombine.high %v1467, %v1467
        %v1598 = vunpack.c.l.s4 1983009808
        %v1599 = vunpack.c.0.s8 %v1598
        %v1600 = vlaneseq
        %v1601 = vshrl.u32 %v1600, 7
        %v1602 = vsub.s32 %v1599, %v1601
        %v1603 = vrot.slane %v1467, %v1602
        %v1605 = vunpack.c.l.s4 1983009808
        %v1606 = vunpack.c.0.s8 %v1605
        %v1607 = vlaneseq
        %v1608 = vshrl.u32 %v1607, 7
        %v1609 = vsub.s32 %v1606, %v1608
        %v1610 = vrot.slane %v1596, %v1609
        %v1611 = vcombine.high %v1603, %v1603
        %v1612 = vcombine.high %v1610, %v1610
        %v1613 = vcombine.high %v1468, %v1468
        %v1615 = vunpack.c.l.s4 1983009808
        %v1616 = vunpack.c.0.s8 %v1615
        %v1617 = vlaneseq
        %v1618 = vshrl.u32 %v1617, 7
        %v1619 = vsub.s32 %v1616, %v1618
        %v1620 = vrot.slane %v1468, %v1619
        %v1622 = vunpack.c.l.s4 1983009808
        %v1623 = vunpack.c.0.s8 %v1622
        %v1624 = vlaneseq
        %v1625 = vshrl.u32 %v1624, 7
        %v1626 = vsub.s32 %v1623, %v1625
        %v1627 = vrot.slane %v1613, %v1626
        %v1628 = vcombine.high %v1620, %v1620
        %v1629 = vcombine.high %v1627, %v1627
        %v1630 = vcombine.high %v1469, %v1469
        %v1632 = vunpack.c.l.s4 1983009808
        %v1633 = vunpack.c.0.s8 %v1632
        %v1634 = vlaneseq
        %v1635 = vshrl.u32 %v1634, 7
        %v1636 = vsub.s32 %v1633, %v1635
        %v1637 = vrot.slane %v1469, %v1636
        %v1639 = vunpack.c.l.s4 1983009808
        %v1640 = vunpack.c.0.s8 %v1639
        %v1641 = vlaneseq
        %v1642 = vshrl.u32 %v1641, 7
        %v1643 = vsub.s32 %v1640, %v1642
        %v1644 = vrot.slane %v1630, %v1643
        %v1645 = vcombine.high %v1637, %v1637
        %v1646 = vcombine.high %v1644, %v1644
        %v1647 = vcombine.high %v1470, %v1470
        %v1649 = vunpack.c.l.s4 1983009808
        %v1650 = vunpack.c.0.s8 %v1649
        %v1651 = vlaneseq
        %v1652 = vshrl.u32 %v1651, 7
        %v1653 = vsub.s32 %v1650, %v1652
        %v1654 = vrot.slane %v1470, %v1653
        %v1656 = vunpack.c.l.s4 1983009808
        %v1657 = vunpack.c.0.s8 %v1656
        %v1658 = vlaneseq
        %v1659 = vshrl.u32 %v1658, 7
        %v1660 = vsub.s32 %v1657, %v1659
        %v1661 = vrot.slane %v1647, %v1660
        %v1662 = vcombine.high %v1654, %v1654
        %v1663 = vcombine.high %v1661, %v1661
        %v1664 = vcombine.high %v1471, %v1471
        %v1666 = vunpack.c.l.s4 1983009808
        %v1667 = vunpack.c.0.s8 %v1666
        %v1668 = vlaneseq
        %v1669 = vshrl.u32 %v1668, 7
        %v1670 = vsub.s32 %v1667, %v1669
        %v1671 = vrot.slane %v1471, %v1670
        %v1673 = vunpack.c.l.s4 1983009808
        %v1674 = vunpack.c.0.s8 %v1673
        %v1675 = vlaneseq
        %v1676 = vshrl.u32 %v1675, 7
        %v1677 = vsub.s32 %v1674, %v1676
        %v1678 = vrot.slane %v1664, %v1677
        %v1679 = vcombine.high %v1671, %v1671
        %v1680 = vcombine.high %v1678, %v1678
        %v1681 = vcombine.high %v1472, %v1472
        %v1683 = vunpack.c.l.s4 1983009808
        %v1684 = vunpack.c.0.s8 %v1683
        %v1685 = vlaneseq
        %v1686 = vshrl.u32 %v1685, 7
        %v1687 = vsub.s32 %v1684, %v1686
        %v1688 = vrot.slane %v1472, %v1687
        %v1690 = vunpack.c.l.s4 1983009808
        %v1691 = vunpack.c.0.s8 %v1690
        %v1692 = vlaneseq
        %v1693 = vshrl.u32 %v1692, 7
        %v1694 = vsub.s32 %v1691, %v1693
        %v1695 = vrot.slane %v1681, %v1694
        %v1696 = vcombine.high %v1688, %v1688
        %v1697 = vcombine.high %v1695, %v1695
        %v1698 = vcombine.high %v1473, %v1473
        %v1700 = vunpack.c.l.s4 1983009808
        %v1701 = vunpack.c.0.s8 %v1700
        %v1702 = vlaneseq
        %v1703 = vshrl.u32 %v1702, 7
        %v1704 = vsub.s32 %v1701, %v1703
        %v1705 = vrot.slane %v1473, %v1704
        %v1707 = vunpack.c.l.s4 1983009808
        %v1708 = vunpack.c.0.s8 %v1707
        %v1709 = vlaneseq
        %v1710 = vshrl.u32 %v1709, 7
        %v1711 = vsub.s32 %v1708, %v1710
        %v1712 = vrot.slane %v1698, %v1711
        %v1713 = vcombine.high %v1705, %v1705
        %v1714 = vcombine.high %v1712, %v1712
        %v1715 = vcombine.high %v1474, %v1474
        %v1717 = vunpack.c.l.s4 1983009808
        %v1718 = vunpack.c.0.s8 %v1717
        %v1719 = vlaneseq
        %v1720 = vshrl.u32 %v1719, 7
        %v1721 = vsub.s32 %v1718, %v1720
        %v1722 = vrot.slane %v1474, %v1721
        %v1724 = vunpack.c.l.s4 1983009808
        %v1725 = vunpack.c.0.s8 %v1724
        %v1726 = vlaneseq
        %v1727 = vshrl.u32 %v1726, 7
        %v1728 = vsub.s32 %v1725, %v1727
        %v1729 = vrot.slane %v1715, %v1728
        %v1730 = vcombine.high %v1722, %v1722
        %v1731 = vcombine.high %v1729, %v1729
        %v1732 = vcombine.high %v1475, %v1475
        %v1734 = vunpack.c.l.s4 1983009808
        %v1735 = vunpack.c.0.s8 %v1734
        %v1736 = vlaneseq
        %v1737 = vshrl.u32 %v1736, 7
        %v1738 = vsub.s32 %v1735, %v1737
        %v1739 = vrot.slane %v1475, %v1738
        %v1741 = vunpack.c.l.s4 1983009808
        %v1742 = vunpack.c.0.s8 %v1741
        %v1743 = vlaneseq
        %v1744 = vshrl.u32 %v1743, 7
        %v1745 = vsub.s32 %v1742, %v1744
        %v1746 = vrot.slane %v1732, %v1745
        %v1747 = vcombine.high %v1739, %v1739
        %v1748 = vcombine.high %v1746, %v1746
        %v1749 = vcombine.high %v1476, %v1476
        %v1751 = vunpack.c.l.s4 1983009808
        %v1752 = vunpack.c.0.s8 %v1751
        %v1753 = vlaneseq
        %v1754 = vshrl.u32 %v1753, 7
        %v1755 = vsub.s32 %v1752, %v1754
        %v1756 = vrot.slane %v1476, %v1755
        %v1758 = vunpack.c.l.s4 1983009808
        %v1759 = vunpack.c.0.s8 %v1758
        %v1760 = vlaneseq
        %v1761 = vshrl.u32 %v1760, 7
        %v1762 = vsub.s32 %v1759, %v1761
        %v1763 = vrot.slane %v1749, %v1762
        %v1764 = vcombine.high %v1756, %v1756
        %v1765 = vcombine.high %v1763, %v1763
        %v1830 = vpack.c.bf16 %v1501, %v1501
        %v1831 = vpack.c.bf16 %v1509, %v1509
        %v1832 = vpack.c.bf16 %v1508, %v1508
        %v1833 = vpack.c.bf16 %v1510, %v1510
        %v1834 = vpack.c.bf16 %v1518, %v1518
        %v1835 = vpack.c.bf16 %v1526, %v1526
        %v1836 = vpack.c.bf16 %v1525, %v1525
        %v1837 = vpack.c.bf16 %v1527, %v1527
        %v1838 = vpack.c.bf16 %v1535, %v1535
        %v1839 = vpack.c.bf16 %v1543, %v1543
        %v1840 = vpack.c.bf16 %v1542, %v1542
        %v1841 = vpack.c.bf16 %v1544, %v1544
        %v1842 = vpack.c.bf16 %v1552, %v1552
        %v1843 = vpack.c.bf16 %v1560, %v1560
        %v1844 = vpack.c.bf16 %v1559, %v1559
        %v1845 = vpack.c.bf16 %v1561, %v1561
        %v1846 = vpack.c.bf16 %v1569, %v1569
        %v1847 = vpack.c.bf16 %v1577, %v1577
        %v1848 = vpack.c.bf16 %v1576, %v1576
        %v1849 = vpack.c.bf16 %v1578, %v1578
        %v1850 = vpack.c.bf16 %v1586, %v1586
        %v1851 = vpack.c.bf16 %v1594, %v1594
        %v1852 = vpack.c.bf16 %v1593, %v1593
        %v1853 = vpack.c.bf16 %v1595, %v1595
        %v1854 = vpack.c.bf16 %v1603, %v1603
        %v1855 = vpack.c.bf16 %v1611, %v1611
        %v1856 = vpack.c.bf16 %v1610, %v1610
        %v1857 = vpack.c.bf16 %v1612, %v1612
        %v1858 = vpack.c.bf16 %v1620, %v1620
        %v1859 = vpack.c.bf16 %v1628, %v1628
        %v1860 = vpack.c.bf16 %v1627, %v1627
        %v1861 = vpack.c.bf16 %v1629, %v1629
        %v1862 = vpack.c.bf16 %v1637, %v1637
        %v1863 = vpack.c.bf16 %v1645, %v1645
        %v1864 = vpack.c.bf16 %v1644, %v1644
        %v1865 = vpack.c.bf16 %v1646, %v1646
        %v1866 = vpack.c.bf16 %v1654, %v1654
        %v1867 = vpack.c.bf16 %v1662, %v1662
        %v1868 = vpack.c.bf16 %v1661, %v1661
        %v1869 = vpack.c.bf16 %v1663, %v1663
        %v1870 = vpack.c.bf16 %v1671, %v1671
        %v1871 = vpack.c.bf16 %v1679, %v1679
        %v1872 = vpack.c.bf16 %v1678, %v1678
        %v1873 = vpack.c.bf16 %v1680, %v1680
        %v1874 = vpack.c.bf16 %v1688, %v1688
        %v1875 = vpack.c.bf16 %v1696, %v1696
        %v1876 = vpack.c.bf16 %v1695, %v1695
        %v1877 = vpack.c.bf16 %v1697, %v1697
        %v1878 = vpack.c.bf16 %v1705, %v1705
        %v1879 = vpack.c.bf16 %v1713, %v1713
        %v1880 = vpack.c.bf16 %v1712, %v1712
        %v1881 = vpack.c.bf16 %v1714, %v1714
        %v1882 = vpack.c.bf16 %v1722, %v1722
        %v1883 = vpack.c.bf16 %v1730, %v1730
        %v1884 = vpack.c.bf16 %v1729, %v1729
        %v1885 = vpack.c.bf16 %v1731, %v1731
        %v1886 = vpack.c.bf16 %v1739, %v1739
        %v1887 = vpack.c.bf16 %v1747, %v1747
        %v1888 = vpack.c.bf16 %v1746, %v1746
        %v1889 = vpack.c.bf16 %v1748, %v1748
        %v1890 = vpack.c.bf16 %v1756, %v1756
        %v1891 = vpack.c.bf16 %v1764, %v1764
        %v1892 = vpack.c.bf16 %v1763, %v1763
        %v1893 = vpack.c.bf16 %v1765, %v1765
        %v1894 = vld [vmem:[%s268] sm:$0xf]
        %v1895 = vld [vmem:[%s268 + $0x4] sm:$0xf]
        %v1896 = vld [vmem:[%s268 + $0x8] sm:$0xf]
        %v1897 = vld [vmem:[%s268 + $0xc] sm:$0xf]
        %v1898 = vld [vmem:[%s268 + $0x10] sm:$0xf]
        %v1899 = vld [vmem:[%s268 + $0x14] sm:$0xf]
        %v1900 = vld [vmem:[%s268 + $0x18] sm:$0xf]
        %v1901 = vld [vmem:[%s268 + $0x1c] sm:$0xf]
        %v1902 = vld [vmem:[%s268 + $0x20] sm:$0xf]
        %v1903 = vld [vmem:[%s268 + $0x24] sm:$0xf]
        %v1904 = vld [vmem:[%s268 + $0x28] sm:$0xf]
        %v1905 = vld [vmem:[%s268 + $0x2c] sm:$0xf]
        %v1906 = vld [vmem:[%s268 + $0x30] sm:$0xf]
        %v1907 = vld [vmem:[%s268 + $0x34] sm:$0xf]
        %v1908 = vld [vmem:[%s268 + $0x38] sm:$0xf]
        %v1909 = vld [vmem:[%s268 + $0x3c] sm:$0xf]
        %v1910 = vld [vmem:[%s268 + $0x40] sm:$0xf]
        %v1911 = vld [vmem:[%s268 + $0x44] sm:$0xf]
        %v1912 = vld [vmem:[%s268 + $0x48] sm:$0xf]
        %v1913 = vld [vmem:[%s268 + $0x4c] sm:$0xf]
        %v1914 = vld [vmem:[%s268 + $0x50] sm:$0xf]
        %v1915 = vld [vmem:[%s268 + $0x54] sm:$0xf]
        %v1916 = vld [vmem:[%s268 + $0x58] sm:$0xf]
        %v1917 = vld [vmem:[%s268 + $0x5c] sm:$0xf]
        %v1918 = vld [vmem:[%s268 + $0x60] sm:$0xf]
        %v1919 = vld [vmem:[%s268 + $0x64] sm:$0xf]
        %v1920 = vld [vmem:[%s268 + $0x68] sm:$0xf]
        %v1921 = vld [vmem:[%s268 + $0x6c] sm:$0xf]
        %v1922 = vld [vmem:[%s268 + $0x70] sm:$0xf]
        %v1923 = vld [vmem:[%s268 + $0x74] sm:$0xf]
        %v1924 = vld [vmem:[%s268 + $0x78] sm:$0xf]
        %v1925 = vld [vmem:[%s268 + $0x7c] sm:$0xf]
        %v1926 = vld [vmem:[%s268 + $0x80] sm:$0xf]
        %v1927 = vld [vmem:[%s268 + $0x84] sm:$0xf]
        %v1928 = vld [vmem:[%s268 + $0x88] sm:$0xf]
        %v1929 = vld [vmem:[%s268 + $0x8c] sm:$0xf]
        %v1930 = vld [vmem:[%s268 + $0x90] sm:$0xf]
        %v1931 = vld [vmem:[%s268 + $0x94] sm:$0xf]
        %v1932 = vld [vmem:[%s268 + $0x98] sm:$0xf]
        %v1933 = vld [vmem:[%s268 + $0x9c] sm:$0xf]
        %v1934 = vld [vmem:[%s268 + $0xa0] sm:$0xf]
        %v1935 = vld [vmem:[%s268 + $0xa4] sm:$0xf]
        %v1936 = vld [vmem:[%s268 + $0xa8] sm:$0xf]
        %v1937 = vld [vmem:[%s268 + $0xac] sm:$0xf]
        %v1938 = vld [vmem:[%s268 + $0xb0] sm:$0xf]
        %v1939 = vld [vmem:[%s268 + $0xb4] sm:$0xf]
        %v1940 = vld [vmem:[%s268 + $0xb8] sm:$0xf]
        %v1941 = vld [vmem:[%s268 + $0xbc] sm:$0xf]
        %v1942 = vld [vmem:[%s268 + $0xc0] sm:$0xf]
        %v1943 = vld [vmem:[%s268 + $0xc4] sm:$0xf]
        %v1944 = vld [vmem:[%s268 + $0xc8] sm:$0xf]
        %v1945 = vld [vmem:[%s268 + $0xcc] sm:$0xf]
        %v1946 = vld [vmem:[%s268 + $0xd0] sm:$0xf]
        %v1947 = vld [vmem:[%s268 + $0xd4] sm:$0xf]
        %v1948 = vld [vmem:[%s268 + $0xd8] sm:$0xf]
        %v1949 = vld [vmem:[%s268 + $0xdc] sm:$0xf]
        %v1950 = vld [vmem:[%s268 + $0xe0] sm:$0xf]
        %v1951 = vld [vmem:[%s268 + $0xe4] sm:$0xf]
        %v1952 = vld [vmem:[%s268 + $0xe8] sm:$0xf]
        %v1953 = vld [vmem:[%s268 + $0xec] sm:$0xf]
        %v1954 = vld [vmem:[%s268 + $0xf0] sm:$0xf]
        %v1955 = vld [vmem:[%s268 + $0xf4] sm:$0xf]
        %v1956 = vld [vmem:[%s268 + $0xf8] sm:$0xf]
        %v1957 = vld [vmem:[%s268 + $0xfc] sm:$0xf]
        %v1958 = vld [vmem:[%s268 + $0x100] sm:$0xf]
        %v1959 = vld [vmem:[%s268 + $0x104] sm:$0xf]
        %v1960 = vld [vmem:[%s268 + $0x108] sm:$0xf]
        %v1961 = vld [vmem:[%s268 + $0x10c] sm:$0xf]
        %v1962 = vld [vmem:[%s268 + $0x110] sm:$0xf]
        %v1963 = vld [vmem:[%s268 + $0x114] sm:$0xf]
        %v1964 = vld [vmem:[%s268 + $0x118] sm:$0xf]
        %v1965 = vld [vmem:[%s268 + $0x11c] sm:$0xf]
        %v1966 = vld [vmem:[%s268 + $0x120] sm:$0xf]
        %v1967 = vld [vmem:[%s268 + $0x124] sm:$0xf]
        %v1968 = vld [vmem:[%s268 + $0x128] sm:$0xf]
        %v1969 = vld [vmem:[%s268 + $0x12c] sm:$0xf]
        %v1970 = vld [vmem:[%s268 + $0x130] sm:$0xf]
        %v1971 = vld [vmem:[%s268 + $0x134] sm:$0xf]
        %v1972 = vld [vmem:[%s268 + $0x138] sm:$0xf]
        %v1973 = vld [vmem:[%s268 + $0x13c] sm:$0xf]
        %v1974 = vld [vmem:[%s268 + $0x140] sm:$0xf]
        %v1975 = vld [vmem:[%s268 + $0x144] sm:$0xf]
        %v1976 = vld [vmem:[%s268 + $0x148] sm:$0xf]
        %v1977 = vld [vmem:[%s268 + $0x14c] sm:$0xf]
        %v1978 = vld [vmem:[%s268 + $0x150] sm:$0xf]
        %v1979 = vld [vmem:[%s268 + $0x154] sm:$0xf]
        %v1980 = vld [vmem:[%s268 + $0x158] sm:$0xf]
        %v1981 = vld [vmem:[%s268 + $0x15c] sm:$0xf]
        %v1982 = vld [vmem:[%s268 + $0x160] sm:$0xf]
        %v1983 = vld [vmem:[%s268 + $0x164] sm:$0xf]
        %v1984 = vld [vmem:[%s268 + $0x168] sm:$0xf]
        %v1985 = vld [vmem:[%s268 + $0x16c] sm:$0xf]
        %v1986 = vld [vmem:[%s268 + $0x170] sm:$0xf]
        %v1987 = vld [vmem:[%s268 + $0x174] sm:$0xf]
        %v1988 = vld [vmem:[%s268 + $0x178] sm:$0xf]
        %v1989 = vld [vmem:[%s268 + $0x17c] sm:$0xf]
        %v1990 = vld [vmem:[%s268 + $0x180] sm:$0xf]
        %v1991 = vld [vmem:[%s268 + $0x184] sm:$0xf]
        %v1992 = vld [vmem:[%s268 + $0x188] sm:$0xf]
        %v1993 = vld [vmem:[%s268 + $0x18c] sm:$0xf]
        %v1994 = vld [vmem:[%s268 + $0x190] sm:$0xf]
        %v1995 = vld [vmem:[%s268 + $0x194] sm:$0xf]
        %v1996 = vld [vmem:[%s268 + $0x198] sm:$0xf]
        %v1997 = vld [vmem:[%s268 + $0x19c] sm:$0xf]
        %v1998 = vld [vmem:[%s268 + $0x1a0] sm:$0xf]
        %v1999 = vld [vmem:[%s268 + $0x1a4] sm:$0xf]
        %v2000 = vld [vmem:[%s268 + $0x1a8] sm:$0xf]
        %v2001 = vld [vmem:[%s268 + $0x1ac] sm:$0xf]
        %v2002 = vld [vmem:[%s268 + $0x1b0] sm:$0xf]
        %v2003 = vld [vmem:[%s268 + $0x1b4] sm:$0xf]
        %v2004 = vld [vmem:[%s268 + $0x1b8] sm:$0xf]
        %v2005 = vld [vmem:[%s268 + $0x1bc] sm:$0xf]
        %v2006 = vld [vmem:[%s268 + $0x1c0] sm:$0xf]
        %v2007 = vld [vmem:[%s268 + $0x1c4] sm:$0xf]
        %v2008 = vld [vmem:[%s268 + $0x1c8] sm:$0xf]
        %v2009 = vld [vmem:[%s268 + $0x1cc] sm:$0xf]
        %v2010 = vld [vmem:[%s268 + $0x1d0] sm:$0xf]
        %v2011 = vld [vmem:[%s268 + $0x1d4] sm:$0xf]
        %v2012 = vld [vmem:[%s268 + $0x1d8] sm:$0xf]
        %v2013 = vld [vmem:[%s268 + $0x1dc] sm:$0xf]
        %v2014 = vld [vmem:[%s268 + $0x1e0] sm:$0xf]
        %v2015 = vld [vmem:[%s268 + $0x1e4] sm:$0xf]
        %v2016 = vld [vmem:[%s268 + $0x1e8] sm:$0xf]
        %v2017 = vld [vmem:[%s268 + $0x1ec] sm:$0xf]
        %v2018 = vld [vmem:[%s268 + $0x1f0] sm:$0xf]
        %v2019 = vld [vmem:[%s268 + $0x1f4] sm:$0xf]
        %v2020 = vld [vmem:[%s268 + $0x1f8] sm:$0xf]
        %v2021 = vld [vmem:[%s268 + $0x1fc] sm:$0xf]
        %v2022 = vld [vmem:[%s268 + $0x200] sm:$0xf]
        %v2023 = vld [vmem:[%s268 + $0x204] sm:$0xf]
        %v2024 = vld [vmem:[%s268 + $0x208] sm:$0xf]
        %v2025 = vld [vmem:[%s268 + $0x20c] sm:$0xf]
        %v2026 = vld [vmem:[%s268 + $0x210] sm:$0xf]
        %v2027 = vld [vmem:[%s268 + $0x214] sm:$0xf]
        %v2028 = vld [vmem:[%s268 + $0x218] sm:$0xf]
        %v2029 = vld [vmem:[%s268 + $0x21c] sm:$0xf]
        %v2030 = vld [vmem:[%s268 + $0x220] sm:$0xf]
        %v2031 = vld [vmem:[%s268 + $0x224] sm:$0xf]
        %v2032 = vld [vmem:[%s268 + $0x228] sm:$0xf]
        %v2033 = vld [vmem:[%s268 + $0x22c] sm:$0xf]
        %v2034 = vld [vmem:[%s268 + $0x230] sm:$0xf]
        %v2035 = vld [vmem:[%s268 + $0x234] sm:$0xf]
        %v2036 = vld [vmem:[%s268 + $0x238] sm:$0xf]
        %v2037 = vld [vmem:[%s268 + $0x23c] sm:$0xf]
        %v2038 = vld [vmem:[%s268 + $0x240] sm:$0xf]
        %v2039 = vld [vmem:[%s268 + $0x244] sm:$0xf]
        %v2040 = vld [vmem:[%s268 + $0x248] sm:$0xf]
        %v2041 = vld [vmem:[%s268 + $0x24c] sm:$0xf]
        %v2042 = vld [vmem:[%s268 + $0x250] sm:$0xf]
        %v2043 = vld [vmem:[%s268 + $0x254] sm:$0xf]
        %v2044 = vld [vmem:[%s268 + $0x258] sm:$0xf]
        %v2045 = vld [vmem:[%s268 + $0x25c] sm:$0xf]
        %v2046 = vld [vmem:[%s268 + $0x260] sm:$0xf]
        %v2047 = vld [vmem:[%s268 + $0x264] sm:$0xf]
        %v2048 = vld [vmem:[%s268 + $0x268] sm:$0xf]
        %v2049 = vld [vmem:[%s268 + $0x26c] sm:$0xf]
        %v2050 = vld [vmem:[%s268 + $0x270] sm:$0xf]
        %v2051 = vld [vmem:[%s268 + $0x274] sm:$0xf]
        %v2052 = vld [vmem:[%s268 + $0x278] sm:$0xf]
        %v2053 = vld [vmem:[%s268 + $0x27c] sm:$0xf]
        %v2054 = vld [vmem:[%s268 + $0x280] sm:$0xf]
        %v2055 = vld [vmem:[%s268 + $0x284] sm:$0xf]
        %v2056 = vld [vmem:[%s268 + $0x288] sm:$0xf]
        %v2057 = vld [vmem:[%s268 + $0x28c] sm:$0xf]
        %v2058 = vld [vmem:[%s268 + $0x290] sm:$0xf]
        %v2059 = vld [vmem:[%s268 + $0x294] sm:$0xf]
        %v2060 = vld [vmem:[%s268 + $0x298] sm:$0xf]
        %v2061 = vld [vmem:[%s268 + $0x29c] sm:$0xf]
        %v2062 = vld [vmem:[%s268 + $0x2a0] sm:$0xf]
        %v2063 = vld [vmem:[%s268 + $0x2a4] sm:$0xf]
        %v2064 = vld [vmem:[%s268 + $0x2a8] sm:$0xf]
        %v2065 = vld [vmem:[%s268 + $0x2ac] sm:$0xf]
        %v2066 = vld [vmem:[%s268 + $0x2b0] sm:$0xf]
        %v2067 = vld [vmem:[%s268 + $0x2b4] sm:$0xf]
        %v2068 = vld [vmem:[%s268 + $0x2b8] sm:$0xf]
        %v2069 = vld [vmem:[%s268 + $0x2bc] sm:$0xf]
        %v2070 = vld [vmem:[%s268 + $0x2c0] sm:$0xf]
        %v2071 = vld [vmem:[%s268 + $0x2c4] sm:$0xf]
        %v2072 = vld [vmem:[%s268 + $0x2c8] sm:$0xf]
        %v2073 = vld [vmem:[%s268 + $0x2cc] sm:$0xf]
        %v2074 = vld [vmem:[%s268 + $0x2d0] sm:$0xf]
        %v2075 = vld [vmem:[%s268 + $0x2d4] sm:$0xf]
        %v2076 = vld [vmem:[%s268 + $0x2d8] sm:$0xf]
        %v2077 = vld [vmem:[%s268 + $0x2dc] sm:$0xf]
        %v2078 = vld [vmem:[%s268 + $0x2e0] sm:$0xf]
        %v2079 = vld [vmem:[%s268 + $0x2e4] sm:$0xf]
        %v2080 = vld [vmem:[%s268 + $0x2e8] sm:$0xf]
        %v2081 = vld [vmem:[%s268 + $0x2ec] sm:$0xf]
        %v2082 = vld [vmem:[%s268 + $0x2f0] sm:$0xf]
        %v2083 = vld [vmem:[%s268 + $0x2f4] sm:$0xf]
        %v2084 = vld [vmem:[%s268 + $0x2f8] sm:$0xf]
        %v2085 = vld [vmem:[%s268 + $0x2fc] sm:$0xf]
        %v2086 = vld [vmem:[%s268 + $0x300] sm:$0xf]
        %v2087 = vld [vmem:[%s268 + $0x304] sm:$0xf]
        %v2088 = vld [vmem:[%s268 + $0x308] sm:$0xf]
        %v2089 = vld [vmem:[%s268 + $0x30c] sm:$0xf]
        %v2090 = vld [vmem:[%s268 + $0x310] sm:$0xf]
        %v2091 = vld [vmem:[%s268 + $0x314] sm:$0xf]
        %v2092 = vld [vmem:[%s268 + $0x318] sm:$0xf]
        %v2093 = vld [vmem:[%s268 + $0x31c] sm:$0xf]
        %v2094 = vld [vmem:[%s268 + $0x320] sm:$0xf]
        %v2095 = vld [vmem:[%s268 + $0x324] sm:$0xf]
        %v2096 = vld [vmem:[%s268 + $0x328] sm:$0xf]
        %v2097 = vld [vmem:[%s268 + $0x32c] sm:$0xf]
        %v2098 = vld [vmem:[%s268 + $0x330] sm:$0xf]
        %v2099 = vld [vmem:[%s268 + $0x334] sm:$0xf]
        %v2100 = vld [vmem:[%s268 + $0x338] sm:$0xf]
        %v2101 = vld [vmem:[%s268 + $0x33c] sm:$0xf]
        %v2102 = vld [vmem:[%s268 + $0x340] sm:$0xf]
        %v2103 = vld [vmem:[%s268 + $0x344] sm:$0xf]
        %v2104 = vld [vmem:[%s268 + $0x348] sm:$0xf]
        %v2105 = vld [vmem:[%s268 + $0x34c] sm:$0xf]
        %v2106 = vld [vmem:[%s268 + $0x350] sm:$0xf]
        %v2107 = vld [vmem:[%s268 + $0x354] sm:$0xf]
        %v2108 = vld [vmem:[%s268 + $0x358] sm:$0xf]
        %v2109 = vld [vmem:[%s268 + $0x35c] sm:$0xf]
        %v2110 = vld [vmem:[%s268 + $0x360] sm:$0xf]
        %v2111 = vld [vmem:[%s268 + $0x364] sm:$0xf]
        %v2112 = vld [vmem:[%s268 + $0x368] sm:$0xf]
        %v2113 = vld [vmem:[%s268 + $0x36c] sm:$0xf]
        %v2114 = vld [vmem:[%s268 + $0x370] sm:$0xf]
        %v2115 = vld [vmem:[%s268 + $0x374] sm:$0xf]
        %v2116 = vld [vmem:[%s268 + $0x378] sm:$0xf]
        %v2117 = vld [vmem:[%s268 + $0x37c] sm:$0xf]
        %v2118 = vld [vmem:[%s268 + $0x380] sm:$0xf]
        %v2119 = vld [vmem:[%s268 + $0x384] sm:$0xf]
        %v2120 = vld [vmem:[%s268 + $0x388] sm:$0xf]
        %v2121 = vld [vmem:[%s268 + $0x38c] sm:$0xf]
        %v2122 = vld [vmem:[%s268 + $0x390] sm:$0xf]
        %v2123 = vld [vmem:[%s268 + $0x394] sm:$0xf]
        %v2124 = vld [vmem:[%s268 + $0x398] sm:$0xf]
        %v2125 = vld [vmem:[%s268 + $0x39c] sm:$0xf]
        %v2126 = vld [vmem:[%s268 + $0x3a0] sm:$0xf]
        %v2127 = vld [vmem:[%s268 + $0x3a4] sm:$0xf]
        %v2128 = vld [vmem:[%s268 + $0x3a8] sm:$0xf]
        %v2129 = vld [vmem:[%s268 + $0x3ac] sm:$0xf]
        %v2130 = vld [vmem:[%s268 + $0x3b0] sm:$0xf]
        %v2131 = vld [vmem:[%s268 + $0x3b4] sm:$0xf]
        %v2132 = vld [vmem:[%s268 + $0x3b8] sm:$0xf]
        %v2133 = vld [vmem:[%s268 + $0x3bc] sm:$0xf]
        %v2134 = vld [vmem:[%s268 + $0x3c0] sm:$0xf]
        %v2135 = vld [vmem:[%s268 + $0x3c4] sm:$0xf]
        %v2136 = vld [vmem:[%s268 + $0x3c8] sm:$0xf]
        %v2137 = vld [vmem:[%s268 + $0x3cc] sm:$0xf]
        %v2138 = vld [vmem:[%s268 + $0x3d0] sm:$0xf]
        %v2139 = vld [vmem:[%s268 + $0x3d4] sm:$0xf]
        %v2140 = vld [vmem:[%s268 + $0x3d8] sm:$0xf]
        %v2141 = vld [vmem:[%s268 + $0x3dc] sm:$0xf]
        %v2142 = vld [vmem:[%s268 + $0x3e0] sm:$0xf]
        %v2143 = vld [vmem:[%s268 + $0x3e4] sm:$0xf]
        %v2144 = vld [vmem:[%s268 + $0x3e8] sm:$0xf]
        %v2145 = vld [vmem:[%s268 + $0x3ec] sm:$0xf]
        %v2146 = vld [vmem:[%s268 + $0x3f0] sm:$0xf]
        %v2147 = vld [vmem:[%s268 + $0x3f4] sm:$0xf]
        %v2148 = vld [vmem:[%s268 + $0x3f8] sm:$0xf]
        %v2149 = vld [vmem:[%s268 + $0x3fc] sm:$0xf]
        %v2150 = vld [vmem:[%s268 + $0x400] sm:$0xf]
        %v2151 = vld [vmem:[%s268 + $0x404] sm:$0xf]
        %v2152 = vld [vmem:[%s268 + $0x408] sm:$0xf]
        %v2153 = vld [vmem:[%s268 + $0x40c] sm:$0xf]
        %v2154 = vld [vmem:[%s268 + $0x410] sm:$0xf]
        %v2155 = vld [vmem:[%s268 + $0x414] sm:$0xf]
        %v2156 = vld [vmem:[%s268 + $0x418] sm:$0xf]
        %v2157 = vld [vmem:[%s268 + $0x41c] sm:$0xf]
        %v2158 = vld [vmem:[%s268 + $0x420] sm:$0xf]
        %v2159 = vld [vmem:[%s268 + $0x424] sm:$0xf]
        %v2160 = vld [vmem:[%s268 + $0x428] sm:$0xf]
        %v2161 = vld [vmem:[%s268 + $0x42c] sm:$0xf]
        %v2162 = vld [vmem:[%s268 + $0x430] sm:$0xf]
        %v2163 = vld [vmem:[%s268 + $0x434] sm:$0xf]
        %v2164 = vld [vmem:[%s268 + $0x438] sm:$0xf]
        %v2165 = vld [vmem:[%s268 + $0x43c] sm:$0xf]
        %v2166 = vld [vmem:[%s268 + $0x440] sm:$0xf]
        %v2167 = vld [vmem:[%s268 + $0x444] sm:$0xf]
        %v2168 = vld [vmem:[%s268 + $0x448] sm:$0xf]
        %v2169 = vld [vmem:[%s268 + $0x44c] sm:$0xf]
        %v2170 = vld [vmem:[%s268 + $0x450] sm:$0xf]
        %v2171 = vld [vmem:[%s268 + $0x454] sm:$0xf]
        %v2172 = vld [vmem:[%s268 + $0x458] sm:$0xf]
        %v2173 = vld [vmem:[%s268 + $0x45c] sm:$0xf]
        %v2174 = vld [vmem:[%s268 + $0x460] sm:$0xf]
        %v2175 = vld [vmem:[%s268 + $0x464] sm:$0xf]
        %v2176 = vld [vmem:[%s268 + $0x468] sm:$0xf]
        %v2177 = vld [vmem:[%s268 + $0x46c] sm:$0xf]
        %v2178 = vld [vmem:[%s268 + $0x470] sm:$0xf]
        %v2179 = vld [vmem:[%s268 + $0x474] sm:$0xf]
        %v2180 = vld [vmem:[%s268 + $0x478] sm:$0xf]
        %v2181 = vld [vmem:[%s268 + $0x47c] sm:$0xf]
        %v2182 = vld [vmem:[%s268 + $0x480] sm:$0xf]
        %v2183 = vld [vmem:[%s268 + $0x484] sm:$0xf]
        %v2184 = vld [vmem:[%s268 + $0x488] sm:$0xf]
        %v2185 = vld [vmem:[%s268 + $0x48c] sm:$0xf]
        %v2186 = vld [vmem:[%s268 + $0x490] sm:$0xf]
        %v2187 = vld [vmem:[%s268 + $0x494] sm:$0xf]
        %v2188 = vld [vmem:[%s268 + $0x498] sm:$0xf]
        %v2189 = vld [vmem:[%s268 + $0x49c] sm:$0xf]
        %v2190 = vld [vmem:[%s268 + $0x4a0] sm:$0xf]
        %v2191 = vld [vmem:[%s268 + $0x4a4] sm:$0xf]
        %v2192 = vld [vmem:[%s268 + $0x4a8] sm:$0xf]
        %v2193 = vld [vmem:[%s268 + $0x4ac] sm:$0xf]
        %v2194 = vld [vmem:[%s268 + $0x4b0] sm:$0xf]
        %v2195 = vld [vmem:[%s268 + $0x4b4] sm:$0xf]
        %v2196 = vld [vmem:[%s268 + $0x4b8] sm:$0xf]
        %v2197 = vld [vmem:[%s268 + $0x4bc] sm:$0xf]
        %v2198 = vld [vmem:[%s268 + $0x4c0] sm:$0xf]
        %v2199 = vld [vmem:[%s268 + $0x4c4] sm:$0xf]
        %v2200 = vld [vmem:[%s268 + $0x4c8] sm:$0xf]
        %v2201 = vld [vmem:[%s268 + $0x4cc] sm:$0xf]
        %v2202 = vld [vmem:[%s268 + $0x4d0] sm:$0xf]
        %v2203 = vld [vmem:[%s268 + $0x4d4] sm:$0xf]
        %v2204 = vld [vmem:[%s268 + $0x4d8] sm:$0xf]
        %v2205 = vld [vmem:[%s268 + $0x4dc] sm:$0xf]
        %v2206 = vld [vmem:[%s268 + $0x4e0] sm:$0xf]
        %v2207 = vld [vmem:[%s268 + $0x4e4] sm:$0xf]
        %v2208 = vld [vmem:[%s268 + $0x4e8] sm:$0xf]
        %v2209 = vld [vmem:[%s268 + $0x4ec] sm:$0xf]
        %v2210 = vld [vmem:[%s268 + $0x4f0] sm:$0xf]
        %v2211 = vld [vmem:[%s268 + $0x4f4] sm:$0xf]
        %v2212 = vld [vmem:[%s268 + $0x4f8] sm:$0xf]
        %v2213 = vld [vmem:[%s268 + $0x4fc] sm:$0xf]
        %v2214 = vld [vmem:[%s268 + $0x500] sm:$0xf]
        %v2215 = vld [vmem:[%s268 + $0x504] sm:$0xf]
        %v2216 = vld [vmem:[%s268 + $0x508] sm:$0xf]
        %v2217 = vld [vmem:[%s268 + $0x50c] sm:$0xf]
        %v2218 = vld [vmem:[%s268 + $0x510] sm:$0xf]
        %v2219 = vld [vmem:[%s268 + $0x514] sm:$0xf]
        %v2220 = vld [vmem:[%s268 + $0x518] sm:$0xf]
        %v2221 = vld [vmem:[%s268 + $0x51c] sm:$0xf]
        %v2222 = vld [vmem:[%s268 + $0x520] sm:$0xf]
        %v2223 = vld [vmem:[%s268 + $0x524] sm:$0xf]
        %v2224 = vld [vmem:[%s268 + $0x528] sm:$0xf]
        %v2225 = vld [vmem:[%s268 + $0x52c] sm:$0xf]
        %v2226 = vld [vmem:[%s268 + $0x530] sm:$0xf]
        %v2227 = vld [vmem:[%s268 + $0x534] sm:$0xf]
        %v2228 = vld [vmem:[%s268 + $0x538] sm:$0xf]
        %v2229 = vld [vmem:[%s268 + $0x53c] sm:$0xf]
        %v2230 = vld [vmem:[%s268 + $0x540] sm:$0xf]
        %v2231 = vld [vmem:[%s268 + $0x544] sm:$0xf]
        %v2232 = vld [vmem:[%s268 + $0x548] sm:$0xf]
        %v2233 = vld [vmem:[%s268 + $0x54c] sm:$0xf]
        %v2234 = vld [vmem:[%s268 + $0x550] sm:$0xf]
        %v2235 = vld [vmem:[%s268 + $0x554] sm:$0xf]
        %v2236 = vld [vmem:[%s268 + $0x558] sm:$0xf]
        %v2237 = vld [vmem:[%s268 + $0x55c] sm:$0xf]
        %v2238 = vld [vmem:[%s268 + $0x560] sm:$0xf]
        %v2239 = vld [vmem:[%s268 + $0x564] sm:$0xf]
        %v2240 = vld [vmem:[%s268 + $0x568] sm:$0xf]
        %v2241 = vld [vmem:[%s268 + $0x56c] sm:$0xf]
        %v2242 = vld [vmem:[%s268 + $0x570] sm:$0xf]
        %v2243 = vld [vmem:[%s268 + $0x574] sm:$0xf]
        %v2244 = vld [vmem:[%s268 + $0x578] sm:$0xf]
        %v2245 = vld [vmem:[%s268 + $0x57c] sm:$0xf]
        %v2246 = vld [vmem:[%s268 + $0x580] sm:$0xf]
        %v2247 = vld [vmem:[%s268 + $0x584] sm:$0xf]
        %v2248 = vld [vmem:[%s268 + $0x588] sm:$0xf]
        %v2249 = vld [vmem:[%s268 + $0x58c] sm:$0xf]
        %v2250 = vld [vmem:[%s268 + $0x590] sm:$0xf]
        %v2251 = vld [vmem:[%s268 + $0x594] sm:$0xf]
        %v2252 = vld [vmem:[%s268 + $0x598] sm:$0xf]
        %v2253 = vld [vmem:[%s268 + $0x59c] sm:$0xf]
        %v2254 = vld [vmem:[%s268 + $0x5a0] sm:$0xf]
        %v2255 = vld [vmem:[%s268 + $0x5a4] sm:$0xf]
        %v2256 = vld [vmem:[%s268 + $0x5a8] sm:$0xf]
        %v2257 = vld [vmem:[%s268 + $0x5ac] sm:$0xf]
        %v2258 = vld [vmem:[%s268 + $0x5b0] sm:$0xf]
        %v2259 = vld [vmem:[%s268 + $0x5b4] sm:$0xf]
        %v2260 = vld [vmem:[%s268 + $0x5b8] sm:$0xf]
        %v2261 = vld [vmem:[%s268 + $0x5bc] sm:$0xf]
        %v2262 = vld [vmem:[%s268 + $0x5c0] sm:$0xf]
        %v2263 = vld [vmem:[%s268 + $0x5c4] sm:$0xf]
        %v2264 = vld [vmem:[%s268 + $0x5c8] sm:$0xf]
        %v2265 = vld [vmem:[%s268 + $0x5cc] sm:$0xf]
        %v2266 = vld [vmem:[%s268 + $0x5d0] sm:$0xf]
        %v2267 = vld [vmem:[%s268 + $0x5d4] sm:$0xf]
        %v2268 = vld [vmem:[%s268 + $0x5d8] sm:$0xf]
        %v2269 = vld [vmem:[%s268 + $0x5dc] sm:$0xf]
        %v2270 = vld [vmem:[%s268 + $0x5e0] sm:$0xf]
        %v2271 = vld [vmem:[%s268 + $0x5e4] sm:$0xf]
        %v2272 = vld [vmem:[%s268 + $0x5e8] sm:$0xf]
        %v2273 = vld [vmem:[%s268 + $0x5ec] sm:$0xf]
        %v2274 = vld [vmem:[%s268 + $0x5f0] sm:$0xf]
        %v2275 = vld [vmem:[%s268 + $0x5f4] sm:$0xf]
        %v2276 = vld [vmem:[%s268 + $0x5f8] sm:$0xf]
        %v2277 = vld [vmem:[%s268 + $0x5fc] sm:$0xf]
        %v2278 = vld [vmem:[%s268 + $0x600] sm:$0xf]
        %v2279 = vld [vmem:[%s268 + $0x604] sm:$0xf]
        %v2280 = vld [vmem:[%s268 + $0x608] sm:$0xf]
        %v2281 = vld [vmem:[%s268 + $0x60c] sm:$0xf]
        %v2282 = vld [vmem:[%s268 + $0x610] sm:$0xf]
        %v2283 = vld [vmem:[%s268 + $0x614] sm:$0xf]
        %v2284 = vld [vmem:[%s268 + $0x618] sm:$0xf]
        %v2285 = vld [vmem:[%s268 + $0x61c] sm:$0xf]
        %v2286 = vld [vmem:[%s268 + $0x620] sm:$0xf]
        %v2287 = vld [vmem:[%s268 + $0x624] sm:$0xf]
        %v2288 = vld [vmem:[%s268 + $0x628] sm:$0xf]
        %v2289 = vld [vmem:[%s268 + $0x62c] sm:$0xf]
        %v2290 = vld [vmem:[%s268 + $0x630] sm:$0xf]
        %v2291 = vld [vmem:[%s268 + $0x634] sm:$0xf]
        %v2292 = vld [vmem:[%s268 + $0x638] sm:$0xf]
        %v2293 = vld [vmem:[%s268 + $0x63c] sm:$0xf]
        %v2294 = vld [vmem:[%s268 + $0x640] sm:$0xf]
        %v2295 = vld [vmem:[%s268 + $0x644] sm:$0xf]
        %v2296 = vld [vmem:[%s268 + $0x648] sm:$0xf]
        %v2297 = vld [vmem:[%s268 + $0x64c] sm:$0xf]
        %v2298 = vld [vmem:[%s268 + $0x650] sm:$0xf]
        %v2299 = vld [vmem:[%s268 + $0x654] sm:$0xf]
        %v2300 = vld [vmem:[%s268 + $0x658] sm:$0xf]
        %v2301 = vld [vmem:[%s268 + $0x65c] sm:$0xf]
        %v2302 = vld [vmem:[%s268 + $0x660] sm:$0xf]
        %v2303 = vld [vmem:[%s268 + $0x664] sm:$0xf]
        %v2304 = vld [vmem:[%s268 + $0x668] sm:$0xf]
        %v2305 = vld [vmem:[%s268 + $0x66c] sm:$0xf]
        %v2306 = vld [vmem:[%s268 + $0x670] sm:$0xf]
        %v2307 = vld [vmem:[%s268 + $0x674] sm:$0xf]
        %v2308 = vld [vmem:[%s268 + $0x678] sm:$0xf]
        %v2309 = vld [vmem:[%s268 + $0x67c] sm:$0xf]
        %v2310 = vld [vmem:[%s268 + $0x680] sm:$0xf]
        %v2311 = vld [vmem:[%s268 + $0x684] sm:$0xf]
        %v2312 = vld [vmem:[%s268 + $0x688] sm:$0xf]
        %v2313 = vld [vmem:[%s268 + $0x68c] sm:$0xf]
        %v2314 = vld [vmem:[%s268 + $0x690] sm:$0xf]
        %v2315 = vld [vmem:[%s268 + $0x694] sm:$0xf]
        %v2316 = vld [vmem:[%s268 + $0x698] sm:$0xf]
        %v2317 = vld [vmem:[%s268 + $0x69c] sm:$0xf]
        %v2318 = vld [vmem:[%s268 + $0x6a0] sm:$0xf]
        %v2319 = vld [vmem:[%s268 + $0x6a4] sm:$0xf]
        %v2320 = vld [vmem:[%s268 + $0x6a8] sm:$0xf]
        %v2321 = vld [vmem:[%s268 + $0x6ac] sm:$0xf]
        %v2322 = vld [vmem:[%s268 + $0x6b0] sm:$0xf]
        %v2323 = vld [vmem:[%s268 + $0x6b4] sm:$0xf]
        %v2324 = vld [vmem:[%s268 + $0x6b8] sm:$0xf]
        %v2325 = vld [vmem:[%s268 + $0x6bc] sm:$0xf]
        %v2326 = vld [vmem:[%s268 + $0x6c0] sm:$0xf]
        %v2327 = vld [vmem:[%s268 + $0x6c4] sm:$0xf]
        %v2328 = vld [vmem:[%s268 + $0x6c8] sm:$0xf]
        %v2329 = vld [vmem:[%s268 + $0x6cc] sm:$0xf]
        %v2330 = vld [vmem:[%s268 + $0x6d0] sm:$0xf]
        %v2331 = vld [vmem:[%s268 + $0x6d4] sm:$0xf]
        %v2332 = vld [vmem:[%s268 + $0x6d8] sm:$0xf]
        %v2333 = vld [vmem:[%s268 + $0x6dc] sm:$0xf]
        %v2334 = vld [vmem:[%s268 + $0x6e0] sm:$0xf]
        %v2335 = vld [vmem:[%s268 + $0x6e4] sm:$0xf]
        %v2336 = vld [vmem:[%s268 + $0x6e8] sm:$0xf]
        %v2337 = vld [vmem:[%s268 + $0x6ec] sm:$0xf]
        %v2338 = vld [vmem:[%s268 + $0x6f0] sm:$0xf]
        %v2339 = vld [vmem:[%s268 + $0x6f4] sm:$0xf]
        %v2340 = vld [vmem:[%s268 + $0x6f8] sm:$0xf]
        %v2341 = vld [vmem:[%s268 + $0x6fc] sm:$0xf]
        %v2342 = vld [vmem:[%s268 + $0x700] sm:$0xf]
        %v2343 = vld [vmem:[%s268 + $0x704] sm:$0xf]
        %v2344 = vld [vmem:[%s268 + $0x708] sm:$0xf]
        %v2345 = vld [vmem:[%s268 + $0x70c] sm:$0xf]
        %v2346 = vld [vmem:[%s268 + $0x710] sm:$0xf]
        %v2347 = vld [vmem:[%s268 + $0x714] sm:$0xf]
        %v2348 = vld [vmem:[%s268 + $0x718] sm:$0xf]
        %v2349 = vld [vmem:[%s268 + $0x71c] sm:$0xf]
        %v2350 = vld [vmem:[%s268 + $0x720] sm:$0xf]
        %v2351 = vld [vmem:[%s268 + $0x724] sm:$0xf]
        %v2352 = vld [vmem:[%s268 + $0x728] sm:$0xf]
        %v2353 = vld [vmem:[%s268 + $0x72c] sm:$0xf]
        %v2354 = vld [vmem:[%s268 + $0x730] sm:$0xf]
        %v2355 = vld [vmem:[%s268 + $0x734] sm:$0xf]
        %v2356 = vld [vmem:[%s268 + $0x738] sm:$0xf]
        %v2357 = vld [vmem:[%s268 + $0x73c] sm:$0xf]
        %v2358 = vld [vmem:[%s268 + $0x740] sm:$0xf]
        %v2359 = vld [vmem:[%s268 + $0x744] sm:$0xf]
        %v2360 = vld [vmem:[%s268 + $0x748] sm:$0xf]
        %v2361 = vld [vmem:[%s268 + $0x74c] sm:$0xf]
        %v2362 = vld [vmem:[%s268 + $0x750] sm:$0xf]
        %v2363 = vld [vmem:[%s268 + $0x754] sm:$0xf]
        %v2364 = vld [vmem:[%s268 + $0x758] sm:$0xf]
        %v2365 = vld [vmem:[%s268 + $0x75c] sm:$0xf]
        %v2366 = vld [vmem:[%s268 + $0x760] sm:$0xf]
        %v2367 = vld [vmem:[%s268 + $0x764] sm:$0xf]
        %v2368 = vld [vmem:[%s268 + $0x768] sm:$0xf]
        %v2369 = vld [vmem:[%s268 + $0x76c] sm:$0xf]
        %v2370 = vld [vmem:[%s268 + $0x770] sm:$0xf]
        %v2371 = vld [vmem:[%s268 + $0x774] sm:$0xf]
        %v2372 = vld [vmem:[%s268 + $0x778] sm:$0xf]
        %v2373 = vld [vmem:[%s268 + $0x77c] sm:$0xf]
        %v2374 = vld [vmem:[%s268 + $0x780] sm:$0xf]
        %v2375 = vld [vmem:[%s268 + $0x784] sm:$0xf]
        %v2376 = vld [vmem:[%s268 + $0x788] sm:$0xf]
        %v2377 = vld [vmem:[%s268 + $0x78c] sm:$0xf]
        %v2378 = vld [vmem:[%s268 + $0x790] sm:$0xf]
        %v2379 = vld [vmem:[%s268 + $0x794] sm:$0xf]
        %v2380 = vld [vmem:[%s268 + $0x798] sm:$0xf]
        %v2381 = vld [vmem:[%s268 + $0x79c] sm:$0xf]
        %v2382 = vld [vmem:[%s268 + $0x7a0] sm:$0xf]
        %v2383 = vld [vmem:[%s268 + $0x7a4] sm:$0xf]
        %v2384 = vld [vmem:[%s268 + $0x7a8] sm:$0xf]
        %v2385 = vld [vmem:[%s268 + $0x7ac] sm:$0xf]
        %v2386 = vld [vmem:[%s268 + $0x7b0] sm:$0xf]
        %v2387 = vld [vmem:[%s268 + $0x7b4] sm:$0xf]
        %v2388 = vld [vmem:[%s268 + $0x7b8] sm:$0xf]
        %v2389 = vld [vmem:[%s268 + $0x7bc] sm:$0xf]
        %v2390 = vld [vmem:[%s268 + $0x7c0] sm:$0xf]
        %v2391 = vld [vmem:[%s268 + $0x7c4] sm:$0xf]
        %v2392 = vld [vmem:[%s268 + $0x7c8] sm:$0xf]
        %v2393 = vld [vmem:[%s268 + $0x7cc] sm:$0xf]
        %v2394 = vld [vmem:[%s268 + $0x7d0] sm:$0xf]
        %v2395 = vld [vmem:[%s268 + $0x7d4] sm:$0xf]
        %v2396 = vld [vmem:[%s268 + $0x7d8] sm:$0xf]
        %v2397 = vld [vmem:[%s268 + $0x7dc] sm:$0xf]
        %v2398 = vld [vmem:[%s268 + $0x7e0] sm:$0xf]
        %v2399 = vld [vmem:[%s268 + $0x7e4] sm:$0xf]
        %v2400 = vld [vmem:[%s268 + $0x7e8] sm:$0xf]
        %v2401 = vld [vmem:[%s268 + $0x7ec] sm:$0xf]
        %v2402 = vld [vmem:[%s268 + $0x7f0] sm:$0xf]
        %v2403 = vld [vmem:[%s268 + $0x7f4] sm:$0xf]
        %v2404 = vld [vmem:[%s268 + $0x7f8] sm:$0xf]
        %v2405 = vld [vmem:[%s268 + $0x7fc] sm:$0xf]
        %v2406 = vld [vmem:[%s268 + $0x800] sm:$0xf]
        %v2407 = vld [vmem:[%s268 + $0x804] sm:$0xf]
        %v2408 = vld [vmem:[%s268 + $0x808] sm:$0xf]
        %v2409 = vld [vmem:[%s268 + $0x80c] sm:$0xf]
        %v2410 = vld [vmem:[%s268 + $0x810] sm:$0xf]
        %v2411 = vld [vmem:[%s268 + $0x814] sm:$0xf]
        %v2412 = vld [vmem:[%s268 + $0x818] sm:$0xf]
        %v2413 = vld [vmem:[%s268 + $0x81c] sm:$0xf]
        %v2414 = vld [vmem:[%s268 + $0x820] sm:$0xf]
        %v2415 = vld [vmem:[%s268 + $0x824] sm:$0xf]
        %v2416 = vld [vmem:[%s268 + $0x828] sm:$0xf]
        %v2417 = vld [vmem:[%s268 + $0x82c] sm:$0xf]
        %v2418 = vld [vmem:[%s268 + $0x830] sm:$0xf]
        %v2419 = vld [vmem:[%s268 + $0x834] sm:$0xf]
        %v2420 = vld [vmem:[%s268 + $0x838] sm:$0xf]
        %v2421 = vld [vmem:[%s268 + $0x83c] sm:$0xf]
        %v2422 = vld [vmem:[%s268 + $0x840] sm:$0xf]
        %v2423 = vld [vmem:[%s268 + $0x844] sm:$0xf]
        %v2424 = vld [vmem:[%s268 + $0x848] sm:$0xf]
        %v2425 = vld [vmem:[%s268 + $0x84c] sm:$0xf]
        %v2426 = vld [vmem:[%s268 + $0x850] sm:$0xf]
        %v2427 = vld [vmem:[%s268 + $0x854] sm:$0xf]
        %v2428 = vld [vmem:[%s268 + $0x858] sm:$0xf]
        %v2429 = vld [vmem:[%s268 + $0x85c] sm:$0xf]
        %v2430 = vld [vmem:[%s268 + $0x860] sm:$0xf]
        %v2431 = vld [vmem:[%s268 + $0x864] sm:$0xf]
        %v2432 = vld [vmem:[%s268 + $0x868] sm:$0xf]
        %v2433 = vld [vmem:[%s268 + $0x86c] sm:$0xf]
        %v2434 = vld [vmem:[%s268 + $0x870] sm:$0xf]
        %v2435 = vld [vmem:[%s268 + $0x874] sm:$0xf]
        %v2436 = vld [vmem:[%s268 + $0x878] sm:$0xf]
        %v2437 = vld [vmem:[%s268 + $0x87c] sm:$0xf]
        %v2438 = vld [vmem:[%s268 + $0x880] sm:$0xf]
        %v2439 = vld [vmem:[%s268 + $0x884] sm:$0xf]
        %v2440 = vld [vmem:[%s268 + $0x888] sm:$0xf]
        %v2441 = vld [vmem:[%s268 + $0x88c] sm:$0xf]
        %v2442 = vld [vmem:[%s268 + $0x890] sm:$0xf]
        %v2443 = vld [vmem:[%s268 + $0x894] sm:$0xf]
        %v2444 = vld [vmem:[%s268 + $0x898] sm:$0xf]
        %v2445 = vld [vmem:[%s268 + $0x89c] sm:$0xf]
        %v2446 = vld [vmem:[%s268 + $0x8a0] sm:$0xf]
        %v2447 = vld [vmem:[%s268 + $0x8a4] sm:$0xf]
        %v2448 = vld [vmem:[%s268 + $0x8a8] sm:$0xf]
        %v2449 = vld [vmem:[%s268 + $0x8ac] sm:$0xf]
        %v2450 = vld [vmem:[%s268 + $0x8b0] sm:$0xf]
        %v2451 = vld [vmem:[%s268 + $0x8b4] sm:$0xf]
        %v2452 = vld [vmem:[%s268 + $0x8b8] sm:$0xf]
        %v2453 = vld [vmem:[%s268 + $0x8bc] sm:$0xf]
        %v2454 = vld [vmem:[%s268 + $0x8c0] sm:$0xf]
        %v2455 = vld [vmem:[%s268 + $0x8c4] sm:$0xf]
        %v2456 = vld [vmem:[%s268 + $0x8c8] sm:$0xf]
        %v2457 = vld [vmem:[%s268 + $0x8cc] sm:$0xf]
        %v2458 = vld [vmem:[%s268 + $0x8d0] sm:$0xf]
        %v2459 = vld [vmem:[%s268 + $0x8d4] sm:$0xf]
        %v2460 = vld [vmem:[%s268 + $0x8d8] sm:$0xf]
        %v2461 = vld [vmem:[%s268 + $0x8dc] sm:$0xf]
        %v2462 = vld [vmem:[%s268 + $0x8e0] sm:$0xf]
        %v2463 = vld [vmem:[%s268 + $0x8e4] sm:$0xf]
        %v2464 = vld [vmem:[%s268 + $0x8e8] sm:$0xf]
        %v2465 = vld [vmem:[%s268 + $0x8ec] sm:$0xf]
        %v2466 = vld [vmem:[%s268 + $0x8f0] sm:$0xf]
        %v2467 = vld [vmem:[%s268 + $0x8f4] sm:$0xf]
        %v2468 = vld [vmem:[%s268 + $0x8f8] sm:$0xf]
        %v2469 = vld [vmem:[%s268 + $0x8fc] sm:$0xf]
        %v2470 = vld [vmem:[%s268 + $0x900] sm:$0xf]
        %v2471 = vld [vmem:[%s268 + $0x904] sm:$0xf]
        %v2472 = vld [vmem:[%s268 + $0x908] sm:$0xf]
        %v2473 = vld [vmem:[%s268 + $0x90c] sm:$0xf]
        %v2474 = vld [vmem:[%s268 + $0x910] sm:$0xf]
        %v2475 = vld [vmem:[%s268 + $0x914] sm:$0xf]
        %v2476 = vld [vmem:[%s268 + $0x918] sm:$0xf]
        %v2477 = vld [vmem:[%s268 + $0x91c] sm:$0xf]
        %v2478 = vld [vmem:[%s268 + $0x920] sm:$0xf]
        %v2479 = vld [vmem:[%s268 + $0x924] sm:$0xf]
        %v2480 = vld [vmem:[%s268 + $0x928] sm:$0xf]
        %v2481 = vld [vmem:[%s268 + $0x92c] sm:$0xf]
        %v2482 = vld [vmem:[%s268 + $0x930] sm:$0xf]
        %v2483 = vld [vmem:[%s268 + $0x934] sm:$0xf]
        %v2484 = vld [vmem:[%s268 + $0x938] sm:$0xf]
        %v2485 = vld [vmem:[%s268 + $0x93c] sm:$0xf]
        %v2486 = vld [vmem:[%s268 + $0x940] sm:$0xf]
        %v2487 = vld [vmem:[%s268 + $0x944] sm:$0xf]
        %v2488 = vld [vmem:[%s268 + $0x948] sm:$0xf]
        %v2489 = vld [vmem:[%s268 + $0x94c] sm:$0xf]
        %v2490 = vld [vmem:[%s268 + $0x950] sm:$0xf]
        %v2491 = vld [vmem:[%s268 + $0x954] sm:$0xf]
        %v2492 = vld [vmem:[%s268 + $0x958] sm:$0xf]
        %v2493 = vld [vmem:[%s268 + $0x95c] sm:$0xf]
        %v2494 = vld [vmem:[%s268 + $0x960] sm:$0xf]
        %v2495 = vld [vmem:[%s268 + $0x964] sm:$0xf]
        %v2496 = vld [vmem:[%s268 + $0x968] sm:$0xf]
        %v2497 = vld [vmem:[%s268 + $0x96c] sm:$0xf]
        %v2498 = vld [vmem:[%s268 + $0x970] sm:$0xf]
        %v2499 = vld [vmem:[%s268 + $0x974] sm:$0xf]
        %v2500 = vld [vmem:[%s268 + $0x978] sm:$0xf]
        %v2501 = vld [vmem:[%s268 + $0x97c] sm:$0xf]
        %v2502 = vld [vmem:[%s268 + $0x980] sm:$0xf]
        %v2503 = vld [vmem:[%s268 + $0x984] sm:$0xf]
        %v2504 = vld [vmem:[%s268 + $0x988] sm:$0xf]
        %v2505 = vld [vmem:[%s268 + $0x98c] sm:$0xf]
        %v2506 = vld [vmem:[%s268 + $0x990] sm:$0xf]
        %v2507 = vld [vmem:[%s268 + $0x994] sm:$0xf]
        %v2508 = vld [vmem:[%s268 + $0x998] sm:$0xf]
        %v2509 = vld [vmem:[%s268 + $0x99c] sm:$0xf]
        %v2510 = vld [vmem:[%s268 + $0x9a0] sm:$0xf]
        %v2511 = vld [vmem:[%s268 + $0x9a4] sm:$0xf]
        %v2512 = vld [vmem:[%s268 + $0x9a8] sm:$0xf]
        %v2513 = vld [vmem:[%s268 + $0x9ac] sm:$0xf]
        %v2514 = vld [vmem:[%s268 + $0x9b0] sm:$0xf]
        %v2515 = vld [vmem:[%s268 + $0x9b4] sm:$0xf]
        %v2516 = vld [vmem:[%s268 + $0x9b8] sm:$0xf]
        %v2517 = vld [vmem:[%s268 + $0x9bc] sm:$0xf]
        %v2518 = vld [vmem:[%s268 + $0x9c0] sm:$0xf]
        %v2519 = vld [vmem:[%s268 + $0x9c4] sm:$0xf]
        %v2520 = vld [vmem:[%s268 + $0x9c8] sm:$0xf]
        %v2521 = vld [vmem:[%s268 + $0x9cc] sm:$0xf]
        %v2522 = vld [vmem:[%s268 + $0x9d0] sm:$0xf]
        %v2523 = vld [vmem:[%s268 + $0x9d4] sm:$0xf]
        %v2524 = vld [vmem:[%s268 + $0x9d8] sm:$0xf]
        %v2525 = vld [vmem:[%s268 + $0x9dc] sm:$0xf]
        %v2526 = vld [vmem:[%s268 + $0x9e0] sm:$0xf]
        %v2527 = vld [vmem:[%s268 + $0x9e4] sm:$0xf]
        %v2528 = vld [vmem:[%s268 + $0x9e8] sm:$0xf]
        %v2529 = vld [vmem:[%s268 + $0x9ec] sm:$0xf]
        %v2530 = vld [vmem:[%s268 + $0x9f0] sm:$0xf]
        %v2531 = vld [vmem:[%s268 + $0x9f4] sm:$0xf]
        %v2532 = vld [vmem:[%s268 + $0x9f8] sm:$0xf]
        %v2533 = vld [vmem:[%s268 + $0x9fc] sm:$0xf]
        %v2534 = vld [vmem:[%s268 + $0xa00] sm:$0xf]
        %v2535 = vld [vmem:[%s268 + $0xa04] sm:$0xf]
        %v2536 = vld [vmem:[%s268 + $0xa08] sm:$0xf]
        %v2537 = vld [vmem:[%s268 + $0xa0c] sm:$0xf]
        %v2538 = vld [vmem:[%s268 + $0xa10] sm:$0xf]
        %v2539 = vld [vmem:[%s268 + $0xa14] sm:$0xf]
        %v2540 = vld [vmem:[%s268 + $0xa18] sm:$0xf]
        %v2541 = vld [vmem:[%s268 + $0xa1c] sm:$0xf]
        %v2542 = vld [vmem:[%s268 + $0xa20] sm:$0xf]
        %v2543 = vld [vmem:[%s268 + $0xa24] sm:$0xf]
        %v2544 = vld [vmem:[%s268 + $0xa28] sm:$0xf]
        %v2545 = vld [vmem:[%s268 + $0xa2c] sm:$0xf]
        %v2546 = vld [vmem:[%s268 + $0xa30] sm:$0xf]
        %v2547 = vld [vmem:[%s268 + $0xa34] sm:$0xf]
        %v2548 = vld [vmem:[%s268 + $0xa38] sm:$0xf]
        %v2549 = vld [vmem:[%s268 + $0xa3c] sm:$0xf]
        %v2550 = vld [vmem:[%s268 + $0xa40] sm:$0xf]
        %v2551 = vld [vmem:[%s268 + $0xa44] sm:$0xf]
        %v2552 = vld [vmem:[%s268 + $0xa48] sm:$0xf]
        %v2553 = vld [vmem:[%s268 + $0xa4c] sm:$0xf]
        %v2554 = vld [vmem:[%s268 + $0xa50] sm:$0xf]
        %v2555 = vld [vmem:[%s268 + $0xa54] sm:$0xf]
        %v2556 = vld [vmem:[%s268 + $0xa58] sm:$0xf]
        %v2557 = vld [vmem:[%s268 + $0xa5c] sm:$0xf]
        %v2558 = vld [vmem:[%s268 + $0xa60] sm:$0xf]
        %v2559 = vld [vmem:[%s268 + $0xa64] sm:$0xf]
        %v2560 = vld [vmem:[%s268 + $0xa68] sm:$0xf]
        %v2561 = vld [vmem:[%s268 + $0xa6c] sm:$0xf]
        %v2562 = vld [vmem:[%s268 + $0xa70] sm:$0xf]
        %v2563 = vld [vmem:[%s268 + $0xa74] sm:$0xf]
        %v2564 = vld [vmem:[%s268 + $0xa78] sm:$0xf]
        %v2565 = vld [vmem:[%s268 + $0xa7c] sm:$0xf]
        %v2566 = vld [vmem:[%s268 + $0xa80] sm:$0xf]
        %v2567 = vld [vmem:[%s268 + $0xa84] sm:$0xf]
        %v2568 = vld [vmem:[%s268 + $0xa88] sm:$0xf]
        %v2569 = vld [vmem:[%s268 + $0xa8c] sm:$0xf]
        %v2570 = vld [vmem:[%s268 + $0xa90] sm:$0xf]
        %v2571 = vld [vmem:[%s268 + $0xa94] sm:$0xf]
        %v2572 = vld [vmem:[%s268 + $0xa98] sm:$0xf]
        %v2573 = vld [vmem:[%s268 + $0xa9c] sm:$0xf]
        %v2574 = vld [vmem:[%s268 + $0xaa0] sm:$0xf]
        %v2575 = vld [vmem:[%s268 + $0xaa4] sm:$0xf]
        %v2576 = vld [vmem:[%s268 + $0xaa8] sm:$0xf]
        %v2577 = vld [vmem:[%s268 + $0xaac] sm:$0xf]
        %v2578 = vld [vmem:[%s268 + $0xab0] sm:$0xf]
        %v2579 = vld [vmem:[%s268 + $0xab4] sm:$0xf]
        %v2580 = vld [vmem:[%s268 + $0xab8] sm:$0xf]
        %v2581 = vld [vmem:[%s268 + $0xabc] sm:$0xf]
        %v2582 = vld [vmem:[%s268 + $0xac0] sm:$0xf]
        %v2583 = vld [vmem:[%s268 + $0xac4] sm:$0xf]
        %v2584 = vld [vmem:[%s268 + $0xac8] sm:$0xf]
        %v2585 = vld [vmem:[%s268 + $0xacc] sm:$0xf]
        %v2586 = vld [vmem:[%s268 + $0xad0] sm:$0xf]
        %v2587 = vld [vmem:[%s268 + $0xad4] sm:$0xf]
        %v2588 = vld [vmem:[%s268 + $0xad8] sm:$0xf]
        %v2589 = vld [vmem:[%s268 + $0xadc] sm:$0xf]
        %v2590 = vld [vmem:[%s268 + $0xae0] sm:$0xf]
        %v2591 = vld [vmem:[%s268 + $0xae4] sm:$0xf]
        %v2592 = vld [vmem:[%s268 + $0xae8] sm:$0xf]
        %v2593 = vld [vmem:[%s268 + $0xaec] sm:$0xf]
        %v2594 = vld [vmem:[%s268 + $0xaf0] sm:$0xf]
        %v2595 = vld [vmem:[%s268 + $0xaf4] sm:$0xf]
        %v2596 = vld [vmem:[%s268 + $0xaf8] sm:$0xf]
        %v2597 = vld [vmem:[%s268 + $0xafc] sm:$0xf]
        %v2598 = vld [vmem:[%s268 + $0xb00] sm:$0xf]
        %v2599 = vld [vmem:[%s268 + $0xb04] sm:$0xf]
        %v2600 = vld [vmem:[%s268 + $0xb08] sm:$0xf]
        %v2601 = vld [vmem:[%s268 + $0xb0c] sm:$0xf]
        %v2602 = vld [vmem:[%s268 + $0xb10] sm:$0xf]
        %v2603 = vld [vmem:[%s268 + $0xb14] sm:$0xf]
        %v2604 = vld [vmem:[%s268 + $0xb18] sm:$0xf]
        %v2605 = vld [vmem:[%s268 + $0xb1c] sm:$0xf]
        %v2606 = vld [vmem:[%s268 + $0xb20] sm:$0xf]
        %v2607 = vld [vmem:[%s268 + $0xb24] sm:$0xf]
        %v2608 = vld [vmem:[%s268 + $0xb28] sm:$0xf]
        %v2609 = vld [vmem:[%s268 + $0xb2c] sm:$0xf]
        %v2610 = vld [vmem:[%s268 + $0xb30] sm:$0xf]
        %v2611 = vld [vmem:[%s268 + $0xb34] sm:$0xf]
        %v2612 = vld [vmem:[%s268 + $0xb38] sm:$0xf]
        %v2613 = vld [vmem:[%s268 + $0xb3c] sm:$0xf]
        %v2614 = vld [vmem:[%s268 + $0xb40] sm:$0xf]
        %v2615 = vld [vmem:[%s268 + $0xb44] sm:$0xf]
        %v2616 = vld [vmem:[%s268 + $0xb48] sm:$0xf]
        %v2617 = vld [vmem:[%s268 + $0xb4c] sm:$0xf]
        %v2618 = vld [vmem:[%s268 + $0xb50] sm:$0xf]
        %v2619 = vld [vmem:[%s268 + $0xb54] sm:$0xf]
        %v2620 = vld [vmem:[%s268 + $0xb58] sm:$0xf]
        %v2621 = vld [vmem:[%s268 + $0xb5c] sm:$0xf]
        %v2622 = vld [vmem:[%s268 + $0xb60] sm:$0xf]
        %v2623 = vld [vmem:[%s268 + $0xb64] sm:$0xf]
        %v2624 = vld [vmem:[%s268 + $0xb68] sm:$0xf]
        %v2625 = vld [vmem:[%s268 + $0xb6c] sm:$0xf]
        %v2626 = vld [vmem:[%s268 + $0xb70] sm:$0xf]
        %v2627 = vld [vmem:[%s268 + $0xb74] sm:$0xf]
        %v2628 = vld [vmem:[%s268 + $0xb78] sm:$0xf]
        %v2629 = vld [vmem:[%s268 + $0xb7c] sm:$0xf]
        %v2630 = vld [vmem:[%s268 + $0xb80] sm:$0xf]
        %v2631 = vld [vmem:[%s268 + $0xb84] sm:$0xf]
        %v2632 = vld [vmem:[%s268 + $0xb88] sm:$0xf]
        %v2633 = vld [vmem:[%s268 + $0xb8c] sm:$0xf]
        %v2634 = vld [vmem:[%s268 + $0xb90] sm:$0xf]
        %v2635 = vld [vmem:[%s268 + $0xb94] sm:$0xf]
        %v2636 = vld [vmem:[%s268 + $0xb98] sm:$0xf]
        %v2637 = vld [vmem:[%s268 + $0xb9c] sm:$0xf]
        %v2638 = vld [vmem:[%s268 + $0xba0] sm:$0xf]
        %v2639 = vld [vmem:[%s268 + $0xba4] sm:$0xf]
        %v2640 = vld [vmem:[%s268 + $0xba8] sm:$0xf]
        %v2641 = vld [vmem:[%s268 + $0xbac] sm:$0xf]
        %v2642 = vld [vmem:[%s268 + $0xbb0] sm:$0xf]
        %v2643 = vld [vmem:[%s268 + $0xbb4] sm:$0xf]
        %v2644 = vld [vmem:[%s268 + $0xbb8] sm:$0xf]
        %v2645 = vld [vmem:[%s268 + $0xbbc] sm:$0xf]
        %v2646 = vld [vmem:[%s268 + $0xbc0] sm:$0xf]
        %v2647 = vld [vmem:[%s268 + $0xbc4] sm:$0xf]
        %v2648 = vld [vmem:[%s268 + $0xbc8] sm:$0xf]
        %v2649 = vld [vmem:[%s268 + $0xbcc] sm:$0xf]
        %v2650 = vld [vmem:[%s268 + $0xbd0] sm:$0xf]
        %v2651 = vld [vmem:[%s268 + $0xbd4] sm:$0xf]
        %v2652 = vld [vmem:[%s268 + $0xbd8] sm:$0xf]
        %v2653 = vld [vmem:[%s268 + $0xbdc] sm:$0xf]
        %v2654 = vld [vmem:[%s268 + $0xbe0] sm:$0xf]
        %v2655 = vld [vmem:[%s268 + $0xbe4] sm:$0xf]
        %v2656 = vld [vmem:[%s268 + $0xbe8] sm:$0xf]
        %v2657 = vld [vmem:[%s268 + $0xbec] sm:$0xf]
        %v2658 = vld [vmem:[%s268 + $0xbf0] sm:$0xf]
        %v2659 = vld [vmem:[%s268 + $0xbf4] sm:$0xf]
        %v2660 = vld [vmem:[%s268 + $0xbf8] sm:$0xf]
        %v2661 = vld [vmem:[%s268 + $0xbfc] sm:$0xf]
        %v2662 = vld [vmem:[%s268 + $0xc00] sm:$0xf]
        %v2663 = vld [vmem:[%s268 + $0xc04] sm:$0xf]
        %v2664 = vld [vmem:[%s268 + $0xc08] sm:$0xf]
        %v2665 = vld [vmem:[%s268 + $0xc0c] sm:$0xf]
        %v2666 = vld [vmem:[%s268 + $0xc10] sm:$0xf]
        %v2667 = vld [vmem:[%s268 + $0xc14] sm:$0xf]
        %v2668 = vld [vmem:[%s268 + $0xc18] sm:$0xf]
        %v2669 = vld [vmem:[%s268 + $0xc1c] sm:$0xf]
        %v2670 = vld [vmem:[%s268 + $0xc20] sm:$0xf]
        %v2671 = vld [vmem:[%s268 + $0xc24] sm:$0xf]
        %v2672 = vld [vmem:[%s268 + $0xc28] sm:$0xf]
        %v2673 = vld [vmem:[%s268 + $0xc2c] sm:$0xf]
        %v2674 = vld [vmem:[%s268 + $0xc30] sm:$0xf]
        %v2675 = vld [vmem:[%s268 + $0xc34] sm:$0xf]
        %v2676 = vld [vmem:[%s268 + $0xc38] sm:$0xf]
        %v2677 = vld [vmem:[%s268 + $0xc3c] sm:$0xf]
        %v2678 = vld [vmem:[%s268 + $0xc40] sm:$0xf]
        %v2679 = vld [vmem:[%s268 + $0xc44] sm:$0xf]
        %v2680 = vld [vmem:[%s268 + $0xc48] sm:$0xf]
        %v2681 = vld [vmem:[%s268 + $0xc4c] sm:$0xf]
        %v2682 = vld [vmem:[%s268 + $0xc50] sm:$0xf]
        %v2683 = vld [vmem:[%s268 + $0xc54] sm:$0xf]
        %v2684 = vld [vmem:[%s268 + $0xc58] sm:$0xf]
        %v2685 = vld [vmem:[%s268 + $0xc5c] sm:$0xf]
        %v2686 = vld [vmem:[%s268 + $0xc60] sm:$0xf]
        %v2687 = vld [vmem:[%s268 + $0xc64] sm:$0xf]
        %v2688 = vld [vmem:[%s268 + $0xc68] sm:$0xf]
        %v2689 = vld [vmem:[%s268 + $0xc6c] sm:$0xf]
        %v2690 = vld [vmem:[%s268 + $0xc70] sm:$0xf]
        %v2691 = vld [vmem:[%s268 + $0xc74] sm:$0xf]
        %v2692 = vld [vmem:[%s268 + $0xc78] sm:$0xf]
        %v2693 = vld [vmem:[%s268 + $0xc7c] sm:$0xf]
        %v2694 = vld [vmem:[%s268 + $0xc80] sm:$0xf]
        %v2695 = vld [vmem:[%s268 + $0xc84] sm:$0xf]
        %v2696 = vld [vmem:[%s268 + $0xc88] sm:$0xf]
        %v2697 = vld [vmem:[%s268 + $0xc8c] sm:$0xf]
        %v2698 = vld [vmem:[%s268 + $0xc90] sm:$0xf]
        %v2699 = vld [vmem:[%s268 + $0xc94] sm:$0xf]
        %v2700 = vld [vmem:[%s268 + $0xc98] sm:$0xf]
        %v2701 = vld [vmem:[%s268 + $0xc9c] sm:$0xf]
        %v2702 = vld [vmem:[%s268 + $0xca0] sm:$0xf]
        %v2703 = vld [vmem:[%s268 + $0xca4] sm:$0xf]
        %v2704 = vld [vmem:[%s268 + $0xca8] sm:$0xf]
        %v2705 = vld [vmem:[%s268 + $0xcac] sm:$0xf]
        %v2706 = vld [vmem:[%s268 + $0xcb0] sm:$0xf]
        %v2707 = vld [vmem:[%s268 + $0xcb4] sm:$0xf]
        %v2708 = vld [vmem:[%s268 + $0xcb8] sm:$0xf]
        %v2709 = vld [vmem:[%s268 + $0xcbc] sm:$0xf]
        %v2710 = vld [vmem:[%s268 + $0xcc0] sm:$0xf]
        %v2711 = vld [vmem:[%s268 + $0xcc4] sm:$0xf]
        %v2712 = vld [vmem:[%s268 + $0xcc8] sm:$0xf]
        %v2713 = vld [vmem:[%s268 + $0xccc] sm:$0xf]
        %v2714 = vld [vmem:[%s268 + $0xcd0] sm:$0xf]
        %v2715 = vld [vmem:[%s268 + $0xcd4] sm:$0xf]
        %v2716 = vld [vmem:[%s268 + $0xcd8] sm:$0xf]
        %v2717 = vld [vmem:[%s268 + $0xcdc] sm:$0xf]
        %v2718 = vld [vmem:[%s268 + $0xce0] sm:$0xf]
        %v2719 = vld [vmem:[%s268 + $0xce4] sm:$0xf]
        %v2720 = vld [vmem:[%s268 + $0xce8] sm:$0xf]
        %v2721 = vld [vmem:[%s268 + $0xcec] sm:$0xf]
        %v2722 = vld [vmem:[%s268 + $0xcf0] sm:$0xf]
        %v2723 = vld [vmem:[%s268 + $0xcf4] sm:$0xf]
        %v2724 = vld [vmem:[%s268 + $0xcf8] sm:$0xf]
        %v2725 = vld [vmem:[%s268 + $0xcfc] sm:$0xf]
        %v2726 = vld [vmem:[%s268 + $0xd00] sm:$0xf]
        %v2727 = vld [vmem:[%s268 + $0xd04] sm:$0xf]
        %v2728 = vld [vmem:[%s268 + $0xd08] sm:$0xf]
        %v2729 = vld [vmem:[%s268 + $0xd0c] sm:$0xf]
        %v2730 = vld [vmem:[%s268 + $0xd10] sm:$0xf]
        %v2731 = vld [vmem:[%s268 + $0xd14] sm:$0xf]
        %v2732 = vld [vmem:[%s268 + $0xd18] sm:$0xf]
        %v2733 = vld [vmem:[%s268 + $0xd1c] sm:$0xf]
        %v2734 = vld [vmem:[%s268 + $0xd20] sm:$0xf]
        %v2735 = vld [vmem:[%s268 + $0xd24] sm:$0xf]
        %v2736 = vld [vmem:[%s268 + $0xd28] sm:$0xf]
        %v2737 = vld [vmem:[%s268 + $0xd2c] sm:$0xf]
        %v2738 = vld [vmem:[%s268 + $0xd30] sm:$0xf]
        %v2739 = vld [vmem:[%s268 + $0xd34] sm:$0xf]
        %v2740 = vld [vmem:[%s268 + $0xd38] sm:$0xf]
        %v2741 = vld [vmem:[%s268 + $0xd3c] sm:$0xf]
        %v2742 = vld [vmem:[%s268 + $0xd40] sm:$0xf]
        %v2743 = vld [vmem:[%s268 + $0xd44] sm:$0xf]
        %v2744 = vld [vmem:[%s268 + $0xd48] sm:$0xf]
        %v2745 = vld [vmem:[%s268 + $0xd4c] sm:$0xf]
        %v2746 = vld [vmem:[%s268 + $0xd50] sm:$0xf]
        %v2747 = vld [vmem:[%s268 + $0xd54] sm:$0xf]
        %v2748 = vld [vmem:[%s268 + $0xd58] sm:$0xf]
        %v2749 = vld [vmem:[%s268 + $0xd5c] sm:$0xf]
        %v2750 = vld [vmem:[%s268 + $0xd60] sm:$0xf]
        %v2751 = vld [vmem:[%s268 + $0xd64] sm:$0xf]
        %v2752 = vld [vmem:[%s268 + $0xd68] sm:$0xf]
        %v2753 = vld [vmem:[%s268 + $0xd6c] sm:$0xf]
        %v2754 = vld [vmem:[%s268 + $0xd70] sm:$0xf]
        %v2755 = vld [vmem:[%s268 + $0xd74] sm:$0xf]
        %v2756 = vld [vmem:[%s268 + $0xd78] sm:$0xf]
        %v2757 = vld [vmem:[%s268 + $0xd7c] sm:$0xf]
        %v2758 = vld [vmem:[%s268 + $0xd80] sm:$0xf]
        %v2759 = vld [vmem:[%s268 + $0xd84] sm:$0xf]
        %v2760 = vld [vmem:[%s268 + $0xd88] sm:$0xf]
        %v2761 = vld [vmem:[%s268 + $0xd8c] sm:$0xf]
        %v2762 = vld [vmem:[%s268 + $0xd90] sm:$0xf]
        %v2763 = vld [vmem:[%s268 + $0xd94] sm:$0xf]
        %v2764 = vld [vmem:[%s268 + $0xd98] sm:$0xf]
        %v2765 = vld [vmem:[%s268 + $0xd9c] sm:$0xf]
        %v2766 = vld [vmem:[%s268 + $0xda0] sm:$0xf]
        %v2767 = vld [vmem:[%s268 + $0xda4] sm:$0xf]
        %v2768 = vld [vmem:[%s268 + $0xda8] sm:$0xf]
        %v2769 = vld [vmem:[%s268 + $0xdac] sm:$0xf]
        %v2770 = vld [vmem:[%s268 + $0xdb0] sm:$0xf]
        %v2771 = vld [vmem:[%s268 + $0xdb4] sm:$0xf]
        %v2772 = vld [vmem:[%s268 + $0xdb8] sm:$0xf]
        %v2773 = vld [vmem:[%s268 + $0xdbc] sm:$0xf]
        %v2774 = vld [vmem:[%s268 + $0xdc0] sm:$0xf]
        %v2775 = vld [vmem:[%s268 + $0xdc4] sm:$0xf]
        %v2776 = vld [vmem:[%s268 + $0xdc8] sm:$0xf]
        %v2777 = vld [vmem:[%s268 + $0xdcc] sm:$0xf]
        %v2778 = vld [vmem:[%s268 + $0xdd0] sm:$0xf]
        %v2779 = vld [vmem:[%s268 + $0xdd4] sm:$0xf]
        %v2780 = vld [vmem:[%s268 + $0xdd8] sm:$0xf]
        %v2781 = vld [vmem:[%s268 + $0xddc] sm:$0xf]
        %v2782 = vld [vmem:[%s268 + $0xde0] sm:$0xf]
        %v2783 = vld [vmem:[%s268 + $0xde4] sm:$0xf]
        %v2784 = vld [vmem:[%s268 + $0xde8] sm:$0xf]
        %v2785 = vld [vmem:[%s268 + $0xdec] sm:$0xf]
        %v2786 = vld [vmem:[%s268 + $0xdf0] sm:$0xf]
        %v2787 = vld [vmem:[%s268 + $0xdf4] sm:$0xf]
        %v2788 = vld [vmem:[%s268 + $0xdf8] sm:$0xf]
        %v2789 = vld [vmem:[%s268 + $0xdfc] sm:$0xf]
        %v2790 = vld [vmem:[%s268 + $0xe00] sm:$0xf]
        %v2791 = vld [vmem:[%s268 + $0xe04] sm:$0xf]
        %v2792 = vld [vmem:[%s268 + $0xe08] sm:$0xf]
        %v2793 = vld [vmem:[%s268 + $0xe0c] sm:$0xf]
        %v2794 = vld [vmem:[%s268 + $0xe10] sm:$0xf]
        %v2795 = vld [vmem:[%s268 + $0xe14] sm:$0xf]
        %v2796 = vld [vmem:[%s268 + $0xe18] sm:$0xf]
        %v2797 = vld [vmem:[%s268 + $0xe1c] sm:$0xf]
        %v2798 = vld [vmem:[%s268 + $0xe20] sm:$0xf]
        %v2799 = vld [vmem:[%s268 + $0xe24] sm:$0xf]
        %v2800 = vld [vmem:[%s268 + $0xe28] sm:$0xf]
        %v2801 = vld [vmem:[%s268 + $0xe2c] sm:$0xf]
        %v2802 = vld [vmem:[%s268 + $0xe30] sm:$0xf]
        %v2803 = vld [vmem:[%s268 + $0xe34] sm:$0xf]
        %v2804 = vld [vmem:[%s268 + $0xe38] sm:$0xf]
        %v2805 = vld [vmem:[%s268 + $0xe3c] sm:$0xf]
        %v2806 = vld [vmem:[%s268 + $0xe40] sm:$0xf]
        %v2807 = vld [vmem:[%s268 + $0xe44] sm:$0xf]
        %v2808 = vld [vmem:[%s268 + $0xe48] sm:$0xf]
        %v2809 = vld [vmem:[%s268 + $0xe4c] sm:$0xf]
        %v2810 = vld [vmem:[%s268 + $0xe50] sm:$0xf]
        %v2811 = vld [vmem:[%s268 + $0xe54] sm:$0xf]
        %v2812 = vld [vmem:[%s268 + $0xe58] sm:$0xf]
        %v2813 = vld [vmem:[%s268 + $0xe5c] sm:$0xf]
        %v2814 = vld [vmem:[%s268 + $0xe60] sm:$0xf]
        %v2815 = vld [vmem:[%s268 + $0xe64] sm:$0xf]
        %v2816 = vld [vmem:[%s268 + $0xe68] sm:$0xf]
        %v2817 = vld [vmem:[%s268 + $0xe6c] sm:$0xf]
        %v2818 = vld [vmem:[%s268 + $0xe70] sm:$0xf]
        %v2819 = vld [vmem:[%s268 + $0xe74] sm:$0xf]
        %v2820 = vld [vmem:[%s268 + $0xe78] sm:$0xf]
        %v2821 = vld [vmem:[%s268 + $0xe7c] sm:$0xf]
        %v2822 = vld [vmem:[%s268 + $0xe80] sm:$0xf]
        %v2823 = vld [vmem:[%s268 + $0xe84] sm:$0xf]
        %v2824 = vld [vmem:[%s268 + $0xe88] sm:$0xf]
        %v2825 = vld [vmem:[%s268 + $0xe8c] sm:$0xf]
        %v2826 = vld [vmem:[%s268 + $0xe90] sm:$0xf]
        %v2827 = vld [vmem:[%s268 + $0xe94] sm:$0xf]
        %v2828 = vld [vmem:[%s268 + $0xe98] sm:$0xf]
        %v2829 = vld [vmem:[%s268 + $0xe9c] sm:$0xf]
        %v2830 = vld [vmem:[%s268 + $0xea0] sm:$0xf]
        %v2831 = vld [vmem:[%s268 + $0xea4] sm:$0xf]
        %v2832 = vld [vmem:[%s268 + $0xea8] sm:$0xf]
        %v2833 = vld [vmem:[%s268 + $0xeac] sm:$0xf]
        %v2834 = vld [vmem:[%s268 + $0xeb0] sm:$0xf]
        %v2835 = vld [vmem:[%s268 + $0xeb4] sm:$0xf]
        %v2836 = vld [vmem:[%s268 + $0xeb8] sm:$0xf]
        %v2837 = vld [vmem:[%s268 + $0xebc] sm:$0xf]
        %v2838 = vld [vmem:[%s268 + $0xec0] sm:$0xf]
        %v2839 = vld [vmem:[%s268 + $0xec4] sm:$0xf]
        %v2840 = vld [vmem:[%s268 + $0xec8] sm:$0xf]
        %v2841 = vld [vmem:[%s268 + $0xecc] sm:$0xf]
        %v2842 = vld [vmem:[%s268 + $0xed0] sm:$0xf]
        %v2843 = vld [vmem:[%s268 + $0xed4] sm:$0xf]
        %v2844 = vld [vmem:[%s268 + $0xed8] sm:$0xf]
        %v2845 = vld [vmem:[%s268 + $0xedc] sm:$0xf]
        %v2846 = vld [vmem:[%s268 + $0xee0] sm:$0xf]
        %v2847 = vld [vmem:[%s268 + $0xee4] sm:$0xf]
        %v2848 = vld [vmem:[%s268 + $0xee8] sm:$0xf]
        %v2849 = vld [vmem:[%s268 + $0xeec] sm:$0xf]
        %v2850 = vld [vmem:[%s268 + $0xef0] sm:$0xf]
        %v2851 = vld [vmem:[%s268 + $0xef4] sm:$0xf]
        %v2852 = vld [vmem:[%s268 + $0xef8] sm:$0xf]
        %v2853 = vld [vmem:[%s268 + $0xefc] sm:$0xf]
        %v2854 = vld [vmem:[%s268 + $0xf00] sm:$0xf]
        %v2855 = vld [vmem:[%s268 + $0xf04] sm:$0xf]
        %v2856 = vld [vmem:[%s268 + $0xf08] sm:$0xf]
        %v2857 = vld [vmem:[%s268 + $0xf0c] sm:$0xf]
        %v2858 = vld [vmem:[%s268 + $0xf10] sm:$0xf]
        %v2859 = vld [vmem:[%s268 + $0xf14] sm:$0xf]
        %v2860 = vld [vmem:[%s268 + $0xf18] sm:$0xf]
        %v2861 = vld [vmem:[%s268 + $0xf1c] sm:$0xf]
        %v2862 = vld [vmem:[%s268 + $0xf20] sm:$0xf]
        %v2863 = vld [vmem:[%s268 + $0xf24] sm:$0xf]
        %v2864 = vld [vmem:[%s268 + $0xf28] sm:$0xf]
        %v2865 = vld [vmem:[%s268 + $0xf2c] sm:$0xf]
        %v2866 = vld [vmem:[%s268 + $0xf30] sm:$0xf]
        %v2867 = vld [vmem:[%s268 + $0xf34] sm:$0xf]
        %v2868 = vld [vmem:[%s268 + $0xf38] sm:$0xf]
        %v2869 = vld [vmem:[%s268 + $0xf3c] sm:$0xf]
        %v2870 = vld [vmem:[%s268 + $0xf40] sm:$0xf]
        %v2871 = vld [vmem:[%s268 + $0xf44] sm:$0xf]
        %v2872 = vld [vmem:[%s268 + $0xf48] sm:$0xf]
        %v2873 = vld [vmem:[%s268 + $0xf4c] sm:$0xf]
        %v2874 = vld [vmem:[%s268 + $0xf50] sm:$0xf]
        %v2875 = vld [vmem:[%s268 + $0xf54] sm:$0xf]
        %v2876 = vld [vmem:[%s268 + $0xf58] sm:$0xf]
        %v2877 = vld [vmem:[%s268 + $0xf5c] sm:$0xf]
        %v2878 = vld [vmem:[%s268 + $0xf60] sm:$0xf]
        %v2879 = vld [vmem:[%s268 + $0xf64] sm:$0xf]
        %v2880 = vld [vmem:[%s268 + $0xf68] sm:$0xf]
        %v2881 = vld [vmem:[%s268 + $0xf6c] sm:$0xf]
        %v2882 = vld [vmem:[%s268 + $0xf70] sm:$0xf]
        %v2883 = vld [vmem:[%s268 + $0xf74] sm:$0xf]
        %v2884 = vld [vmem:[%s268 + $0xf78] sm:$0xf]
        %v2885 = vld [vmem:[%s268 + $0xf7c] sm:$0xf]
        %v2886 = vld [vmem:[%s268 + $0xf80] sm:$0xf]
        %v2887 = vld [vmem:[%s268 + $0xf84] sm:$0xf]
        %v2888 = vld [vmem:[%s268 + $0xf88] sm:$0xf]
        %v2889 = vld [vmem:[%s268 + $0xf8c] sm:$0xf]
        %v2890 = vld [vmem:[%s268 + $0xf90] sm:$0xf]
        %v2891 = vld [vmem:[%s268 + $0xf94] sm:$0xf]
        %v2892 = vld [vmem:[%s268 + $0xf98] sm:$0xf]
        %v2893 = vld [vmem:[%s268 + $0xf9c] sm:$0xf]
        %v2894 = vld [vmem:[%s268 + $0xfa0] sm:$0xf]
        %v2895 = vld [vmem:[%s268 + $0xfa4] sm:$0xf]
        %v2896 = vld [vmem:[%s268 + $0xfa8] sm:$0xf]
        %v2897 = vld [vmem:[%s268 + $0xfac] sm:$0xf]
        %v2898 = vld [vmem:[%s268 + $0xfb0] sm:$0xf]
        %v2899 = vld [vmem:[%s268 + $0xfb4] sm:$0xf]
        %v2900 = vld [vmem:[%s268 + $0xfb8] sm:$0xf]
        %v2901 = vld [vmem:[%s268 + $0xfbc] sm:$0xf]
        %v2902 = vld [vmem:[%s268 + $0xfc0] sm:$0xf]
        %v2903 = vld [vmem:[%s268 + $0xfc4] sm:$0xf]
        %v2904 = vld [vmem:[%s268 + $0xfc8] sm:$0xf]
        %v2905 = vld [vmem:[%s268 + $0xfcc] sm:$0xf]
        %v2906 = vld [vmem:[%s268 + $0xfd0] sm:$0xf]
        %v2907 = vld [vmem:[%s268 + $0xfd4] sm:$0xf]
        %v2908 = vld [vmem:[%s268 + $0xfd8] sm:$0xf]
        %v2909 = vld [vmem:[%s268 + $0xfdc] sm:$0xf]
        %v2910 = vld [vmem:[%s268 + $0xfe0] sm:$0xf]
        %v2911 = vld [vmem:[%s268 + $0xfe4] sm:$0xf]
        %v2912 = vld [vmem:[%s268 + $0xfe8] sm:$0xf]
        %v2913 = vld [vmem:[%s268 + $0xfec] sm:$0xf]
        %v2914 = vld [vmem:[%s268 + $0xff0] sm:$0xf]
        %v2915 = vld [vmem:[%s268 + $0xff4] sm:$0xf]
        %v2916 = vld [vmem:[%s268 + $0xff8] sm:$0xf]
        %v2917 = vld [vmem:[%s268 + $0xffc] sm:$0xf]
        %v3942 = vunpack.c.l.b16 %v1894
        %v3943 = vunpack.c.l.b16 %v1895
        %v3944 = vunpack.c.l.b16 %v1896
        %v3945 = vunpack.c.l.b16 %v1897
        %v3946 = vunpack.c.l.b16 %v1898
        %v3947 = vunpack.c.l.b16 %v1899
        %v3948 = vunpack.c.l.b16 %v1900
        %v3949 = vunpack.c.l.b16 %v1901
        %v3950 = vunpack.c.l.b16 %v1902
        %v3951 = vunpack.c.l.b16 %v1903
        %v3952 = vunpack.c.l.b16 %v1904
        %v3953 = vunpack.c.l.b16 %v1905
        %v3954 = vunpack.c.l.b16 %v1906
        %v3955 = vunpack.c.l.b16 %v1907
        %v3956 = vunpack.c.l.b16 %v1908
        %v3957 = vunpack.c.l.b16 %v1909
        %v3958 = vunpack.c.l.b16 %v1910
        %v3959 = vunpack.c.l.b16 %v1911
        %v3960 = vunpack.c.l.b16 %v1912
        %v3961 = vunpack.c.l.b16 %v1913
        %v3962 = vunpack.c.l.b16 %v1914
        %v3963 = vunpack.c.l.b16 %v1915
        %v3964 = vunpack.c.l.b16 %v1916
        %v3965 = vunpack.c.l.b16 %v1917
        %v3966 = vunpack.c.l.b16 %v1918
        %v3967 = vunpack.c.l.b16 %v1919
        %v3968 = vunpack.c.l.b16 %v1920
        %v3969 = vunpack.c.l.b16 %v1921
        %v3970 = vunpack.c.l.b16 %v1922
        %v3971 = vunpack.c.l.b16 %v1923
        %v3972 = vunpack.c.l.b16 %v1924
        %v3973 = vunpack.c.l.b16 %v1925
        %v3974 = vunpack.c.l.b16 %v1926
        %v3975 = vunpack.c.l.b16 %v1927
        %v3976 = vunpack.c.l.b16 %v1928
        %v3977 = vunpack.c.l.b16 %v1929
        %v3978 = vunpack.c.l.b16 %v1930
        %v3979 = vunpack.c.l.b16 %v1931
        %v3980 = vunpack.c.l.b16 %v1932
        %v3981 = vunpack.c.l.b16 %v1933
        %v3982 = vunpack.c.l.b16 %v1934
        %v3983 = vunpack.c.l.b16 %v1935
        %v3984 = vunpack.c.l.b16 %v1936
        %v3985 = vunpack.c.l.b16 %v1937
        %v3986 = vunpack.c.l.b16 %v1938
        %v3987 = vunpack.c.l.b16 %v1939
        %v3988 = vunpack.c.l.b16 %v1940
        %v3989 = vunpack.c.l.b16 %v1941
        %v3990 = vunpack.c.l.b16 %v1942
        %v3991 = vunpack.c.l.b16 %v1943
        %v3992 = vunpack.c.l.b16 %v1944
        %v3993 = vunpack.c.l.b16 %v1945
        %v3994 = vunpack.c.l.b16 %v1946
        %v3995 = vunpack.c.l.b16 %v1947
        %v3996 = vunpack.c.l.b16 %v1948
        %v3997 = vunpack.c.l.b16 %v1949
        %v3998 = vunpack.c.l.b16 %v1950
        %v3999 = vunpack.c.l.b16 %v1951
        %v4000 = vunpack.c.l.b16 %v1952
        %v4001 = vunpack.c.l.b16 %v1953
        %v4002 = vunpack.c.l.b16 %v1954
        %v4003 = vunpack.c.l.b16 %v1955
        %v4004 = vunpack.c.l.b16 %v1956
        %v4005 = vunpack.c.l.b16 %v1957
        %v4006 = vunpack.c.l.b16 %v1958
        %v4007 = vunpack.c.l.b16 %v1959
        %v4008 = vunpack.c.l.b16 %v1960
        %v4009 = vunpack.c.l.b16 %v1961
        %v4010 = vunpack.c.l.b16 %v1962
        %v4011 = vunpack.c.l.b16 %v1963
        %v4012 = vunpack.c.l.b16 %v1964
        %v4013 = vunpack.c.l.b16 %v1965
        %v4014 = vunpack.c.l.b16 %v1966
        %v4015 = vunpack.c.l.b16 %v1967
        %v4016 = vunpack.c.l.b16 %v1968
        %v4017 = vunpack.c.l.b16 %v1969
        %v4018 = vunpack.c.l.b16 %v1970
        %v4019 = vunpack.c.l.b16 %v1971
        %v4020 = vunpack.c.l.b16 %v1972
        %v4021 = vunpack.c.l.b16 %v1973
        %v4022 = vunpack.c.l.b16 %v1974
        %v4023 = vunpack.c.l.b16 %v1975
        %v4024 = vunpack.c.l.b16 %v1976
        %v4025 = vunpack.c.l.b16 %v1977
        %v4026 = vunpack.c.l.b16 %v1978
        %v4027 = vunpack.c.l.b16 %v1979
        %v4028 = vunpack.c.l.b16 %v1980
        %v4029 = vunpack.c.l.b16 %v1981
        %v4030 = vunpack.c.l.b16 %v1982
        %v4031 = vunpack.c.l.b16 %v1983
        %v4032 = vunpack.c.l.b16 %v1984
        %v4033 = vunpack.c.l.b16 %v1985
        %v4034 = vunpack.c.l.b16 %v1986
        %v4035 = vunpack.c.l.b16 %v1987
        %v4036 = vunpack.c.l.b16 %v1988
        %v4037 = vunpack.c.l.b16 %v1989
        %v4038 = vunpack.c.l.b16 %v1990
        %v4039 = vunpack.c.l.b16 %v1991
        %v4040 = vunpack.c.l.b16 %v1992
        %v4041 = vunpack.c.l.b16 %v1993
        %v4042 = vunpack.c.l.b16 %v1994
        %v4043 = vunpack.c.l.b16 %v1995
        %v4044 = vunpack.c.l.b16 %v1996
        %v4045 = vunpack.c.l.b16 %v1997
        %v4046 = vunpack.c.l.b16 %v1998
        %v4047 = vunpack.c.l.b16 %v1999
        %v4048 = vunpack.c.l.b16 %v2000
        %v4049 = vunpack.c.l.b16 %v2001
        %v4050 = vunpack.c.l.b16 %v2002
        %v4051 = vunpack.c.l.b16 %v2003
        %v4052 = vunpack.c.l.b16 %v2004
        %v4053 = vunpack.c.l.b16 %v2005
        %v4054 = vunpack.c.l.b16 %v2006
        %v4055 = vunpack.c.l.b16 %v2007
        %v4056 = vunpack.c.l.b16 %v2008
        %v4057 = vunpack.c.l.b16 %v2009
        %v4058 = vunpack.c.l.b16 %v2010
        %v4059 = vunpack.c.l.b16 %v2011
        %v4060 = vunpack.c.l.b16 %v2012
        %v4061 = vunpack.c.l.b16 %v2013
        %v4062 = vunpack.c.l.b16 %v2014
        %v4063 = vunpack.c.l.b16 %v2015
        %v4064 = vunpack.c.l.b16 %v2016
        %v4065 = vunpack.c.l.b16 %v2017
        %v4066 = vunpack.c.l.b16 %v2018
        %v4067 = vunpack.c.l.b16 %v2019
        %v4068 = vunpack.c.l.b16 %v2020
        %v4069 = vunpack.c.l.b16 %v2021
        %v4070 = vunpack.c.l.b16 %v2022
        %v4071 = vunpack.c.l.b16 %v2023
        %v4072 = vunpack.c.l.b16 %v2024
        %v4073 = vunpack.c.l.b16 %v2025
        %v4074 = vunpack.c.l.b16 %v2026
        %v4075 = vunpack.c.l.b16 %v2027
        %v4076 = vunpack.c.l.b16 %v2028
        %v4077 = vunpack.c.l.b16 %v2029
        %v4078 = vunpack.c.l.b16 %v2030
        %v4079 = vunpack.c.l.b16 %v2031
        %v4080 = vunpack.c.l.b16 %v2032
        %v4081 = vunpack.c.l.b16 %v2033
        %v4082 = vunpack.c.l.b16 %v2034
        %v4083 = vunpack.c.l.b16 %v2035
        %v4084 = vunpack.c.l.b16 %v2036
        %v4085 = vunpack.c.l.b16 %v2037
        %v4086 = vunpack.c.l.b16 %v2038
        %v4087 = vunpack.c.l.b16 %v2039
        %v4088 = vunpack.c.l.b16 %v2040
        %v4089 = vunpack.c.l.b16 %v2041
        %v4090 = vunpack.c.l.b16 %v2042
        %v4091 = vunpack.c.l.b16 %v2043
        %v4092 = vunpack.c.l.b16 %v2044
        %v4093 = vunpack.c.l.b16 %v2045
        %v4094 = vunpack.c.l.b16 %v2046
        %v4095 = vunpack.c.l.b16 %v2047
        %v4096 = vunpack.c.l.b16 %v2048
        %v4097 = vunpack.c.l.b16 %v2049
        %v4098 = vunpack.c.l.b16 %v2050
        %v4099 = vunpack.c.l.b16 %v2051
        %v4100 = vunpack.c.l.b16 %v2052
        %v4101 = vunpack.c.l.b16 %v2053
        %v4102 = vunpack.c.l.b16 %v2054
        %v4103 = vunpack.c.l.b16 %v2055
        %v4104 = vunpack.c.l.b16 %v2056
        %v4105 = vunpack.c.l.b16 %v2057
        %v4106 = vunpack.c.l.b16 %v2058
        %v4107 = vunpack.c.l.b16 %v2059
        %v4108 = vunpack.c.l.b16 %v2060
        %v4109 = vunpack.c.l.b16 %v2061
        %v4110 = vunpack.c.l.b16 %v2062
        %v4111 = vunpack.c.l.b16 %v2063
        %v4112 = vunpack.c.l.b16 %v2064
        %v4113 = vunpack.c.l.b16 %v2065
        %v4114 = vunpack.c.l.b16 %v2066
        %v4115 = vunpack.c.l.b16 %v2067
        %v4116 = vunpack.c.l.b16 %v2068
        %v4117 = vunpack.c.l.b16 %v2069
        %v4118 = vunpack.c.l.b16 %v2070
        %v4119 = vunpack.c.l.b16 %v2071
        %v4120 = vunpack.c.l.b16 %v2072
        %v4121 = vunpack.c.l.b16 %v2073
        %v4122 = vunpack.c.l.b16 %v2074
        %v4123 = vunpack.c.l.b16 %v2075
        %v4124 = vunpack.c.l.b16 %v2076
        %v4125 = vunpack.c.l.b16 %v2077
        %v4126 = vunpack.c.l.b16 %v2078
        %v4127 = vunpack.c.l.b16 %v2079
        %v4128 = vunpack.c.l.b16 %v2080
        %v4129 = vunpack.c.l.b16 %v2081
        %v4130 = vunpack.c.l.b16 %v2082
        %v4131 = vunpack.c.l.b16 %v2083
        %v4132 = vunpack.c.l.b16 %v2084
        %v4133 = vunpack.c.l.b16 %v2085
        %v4134 = vunpack.c.l.b16 %v2086
        %v4135 = vunpack.c.l.b16 %v2087
        %v4136 = vunpack.c.l.b16 %v2088
        %v4137 = vunpack.c.l.b16 %v2089
        %v4138 = vunpack.c.l.b16 %v2090
        %v4139 = vunpack.c.l.b16 %v2091
        %v4140 = vunpack.c.l.b16 %v2092
        %v4141 = vunpack.c.l.b16 %v2093
        %v4142 = vunpack.c.l.b16 %v2094
        %v4143 = vunpack.c.l.b16 %v2095
        %v4144 = vunpack.c.l.b16 %v2096
        %v4145 = vunpack.c.l.b16 %v2097
        %v4146 = vunpack.c.l.b16 %v2098
        %v4147 = vunpack.c.l.b16 %v2099
        %v4148 = vunpack.c.l.b16 %v2100
        %v4149 = vunpack.c.l.b16 %v2101
        %v4150 = vunpack.c.l.b16 %v2102
        %v4151 = vunpack.c.l.b16 %v2103
        %v4152 = vunpack.c.l.b16 %v2104
        %v4153 = vunpack.c.l.b16 %v2105
        %v4154 = vunpack.c.l.b16 %v2106
        %v4155 = vunpack.c.l.b16 %v2107
        %v4156 = vunpack.c.l.b16 %v2108
        %v4157 = vunpack.c.l.b16 %v2109
        %v4158 = vunpack.c.l.b16 %v2110
        %v4159 = vunpack.c.l.b16 %v2111
        %v4160 = vunpack.c.l.b16 %v2112
        %v4161 = vunpack.c.l.b16 %v2113
        %v4162 = vunpack.c.l.b16 %v2114
        %v4163 = vunpack.c.l.b16 %v2115
        %v4164 = vunpack.c.l.b16 %v2116
        %v4165 = vunpack.c.l.b16 %v2117
        %v4166 = vunpack.c.l.b16 %v2118
        %v4167 = vunpack.c.l.b16 %v2119
        %v4168 = vunpack.c.l.b16 %v2120
        %v4169 = vunpack.c.l.b16 %v2121
        %v4170 = vunpack.c.l.b16 %v2122
        %v4171 = vunpack.c.l.b16 %v2123
        %v4172 = vunpack.c.l.b16 %v2124
        %v4173 = vunpack.c.l.b16 %v2125
        %v4174 = vunpack.c.l.b16 %v2126
        %v4175 = vunpack.c.l.b16 %v2127
        %v4176 = vunpack.c.l.b16 %v2128
        %v4177 = vunpack.c.l.b16 %v2129
        %v4178 = vunpack.c.l.b16 %v2130
        %v4179 = vunpack.c.l.b16 %v2131
        %v4180 = vunpack.c.l.b16 %v2132
        %v4181 = vunpack.c.l.b16 %v2133
        %v4182 = vunpack.c.l.b16 %v2134
        %v4183 = vunpack.c.l.b16 %v2135
        %v4184 = vunpack.c.l.b16 %v2136
        %v4185 = vunpack.c.l.b16 %v2137
        %v4186 = vunpack.c.l.b16 %v2138
        %v4187 = vunpack.c.l.b16 %v2139
        %v4188 = vunpack.c.l.b16 %v2140
        %v4189 = vunpack.c.l.b16 %v2141
        %v4190 = vunpack.c.l.b16 %v2142
        %v4191 = vunpack.c.l.b16 %v2143
        %v4192 = vunpack.c.l.b16 %v2144
        %v4193 = vunpack.c.l.b16 %v2145
        %v4194 = vunpack.c.l.b16 %v2146
        %v4195 = vunpack.c.l.b16 %v2147
        %v4196 = vunpack.c.l.b16 %v2148
        %v4197 = vunpack.c.l.b16 %v2149
        %v4198 = vunpack.c.l.b16 %v2150
        %v4199 = vunpack.c.l.b16 %v2151
        %v4200 = vunpack.c.l.b16 %v2152
        %v4201 = vunpack.c.l.b16 %v2153
        %v4202 = vunpack.c.l.b16 %v2154
        %v4203 = vunpack.c.l.b16 %v2155
        %v4204 = vunpack.c.l.b16 %v2156
        %v4205 = vunpack.c.l.b16 %v2157
        %v4206 = vunpack.c.l.b16 %v2158
        %v4207 = vunpack.c.l.b16 %v2159
        %v4208 = vunpack.c.l.b16 %v2160
        %v4209 = vunpack.c.l.b16 %v2161
        %v4210 = vunpack.c.l.b16 %v2162
        %v4211 = vunpack.c.l.b16 %v2163
        %v4212 = vunpack.c.l.b16 %v2164
        %v4213 = vunpack.c.l.b16 %v2165
        %v4214 = vunpack.c.l.b16 %v2166
        %v4215 = vunpack.c.l.b16 %v2167
        %v4216 = vunpack.c.l.b16 %v2168
        %v4217 = vunpack.c.l.b16 %v2169
        %v4218 = vunpack.c.l.b16 %v2170
        %v4219 = vunpack.c.l.b16 %v2171
        %v4220 = vunpack.c.l.b16 %v2172
        %v4221 = vunpack.c.l.b16 %v2173
        %v4222 = vunpack.c.l.b16 %v2174
        %v4223 = vunpack.c.l.b16 %v2175
        %v4224 = vunpack.c.l.b16 %v2176
        %v4225 = vunpack.c.l.b16 %v2177
        %v4226 = vunpack.c.l.b16 %v2178
        %v4227 = vunpack.c.l.b16 %v2179
        %v4228 = vunpack.c.l.b16 %v2180
        %v4229 = vunpack.c.l.b16 %v2181
        %v4230 = vunpack.c.l.b16 %v2182
        %v4231 = vunpack.c.l.b16 %v2183
        %v4232 = vunpack.c.l.b16 %v2184
        %v4233 = vunpack.c.l.b16 %v2185
        %v4234 = vunpack.c.l.b16 %v2186
        %v4235 = vunpack.c.l.b16 %v2187
        %v4236 = vunpack.c.l.b16 %v2188
        %v4237 = vunpack.c.l.b16 %v2189
        %v4238 = vunpack.c.l.b16 %v2190
        %v4239 = vunpack.c.l.b16 %v2191
        %v4240 = vunpack.c.l.b16 %v2192
        %v4241 = vunpack.c.l.b16 %v2193
        %v4242 = vunpack.c.l.b16 %v2194
        %v4243 = vunpack.c.l.b16 %v2195
        %v4244 = vunpack.c.l.b16 %v2196
        %v4245 = vunpack.c.l.b16 %v2197
        %v4246 = vunpack.c.l.b16 %v2198
        %v4247 = vunpack.c.l.b16 %v2199
        %v4248 = vunpack.c.l.b16 %v2200
        %v4249 = vunpack.c.l.b16 %v2201
        %v4250 = vunpack.c.l.b16 %v2202
        %v4251 = vunpack.c.l.b16 %v2203
        %v4252 = vunpack.c.l.b16 %v2204
        %v4253 = vunpack.c.l.b16 %v2205
        %v4254 = vunpack.c.l.b16 %v2206
        %v4255 = vunpack.c.l.b16 %v2207
        %v4256 = vunpack.c.l.b16 %v2208
        %v4257 = vunpack.c.l.b16 %v2209
        %v4258 = vunpack.c.l.b16 %v2210
        %v4259 = vunpack.c.l.b16 %v2211
        %v4260 = vunpack.c.l.b16 %v2212
        %v4261 = vunpack.c.l.b16 %v2213
        %v4262 = vunpack.c.l.b16 %v2214
        %v4263 = vunpack.c.l.b16 %v2215
        %v4264 = vunpack.c.l.b16 %v2216
        %v4265 = vunpack.c.l.b16 %v2217
        %v4266 = vunpack.c.l.b16 %v2218
        %v4267 = vunpack.c.l.b16 %v2219
        %v4268 = vunpack.c.l.b16 %v2220
        %v4269 = vunpack.c.l.b16 %v2221
        %v4270 = vunpack.c.l.b16 %v2222
        %v4271 = vunpack.c.l.b16 %v2223
        %v4272 = vunpack.c.l.b16 %v2224
        %v4273 = vunpack.c.l.b16 %v2225
        %v4274 = vunpack.c.l.b16 %v2226
        %v4275 = vunpack.c.l.b16 %v2227
        %v4276 = vunpack.c.l.b16 %v2228
        %v4277 = vunpack.c.l.b16 %v2229
        %v4278 = vunpack.c.l.b16 %v2230
        %v4279 = vunpack.c.l.b16 %v2231
        %v4280 = vunpack.c.l.b16 %v2232
        %v4281 = vunpack.c.l.b16 %v2233
        %v4282 = vunpack.c.l.b16 %v2234
        %v4283 = vunpack.c.l.b16 %v2235
        %v4284 = vunpack.c.l.b16 %v2236
        %v4285 = vunpack.c.l.b16 %v2237
        %v4286 = vunpack.c.l.b16 %v2238
        %v4287 = vunpack.c.l.b16 %v2239
        %v4288 = vunpack.c.l.b16 %v2240
        %v4289 = vunpack.c.l.b16 %v2241
        %v4290 = vunpack.c.l.b16 %v2242
        %v4291 = vunpack.c.l.b16 %v2243
        %v4292 = vunpack.c.l.b16 %v2244
        %v4293 = vunpack.c.l.b16 %v2245
        %v4294 = vunpack.c.l.b16 %v2246
        %v4295 = vunpack.c.l.b16 %v2247
        %v4296 = vunpack.c.l.b16 %v2248
        %v4297 = vunpack.c.l.b16 %v2249
        %v4298 = vunpack.c.l.b16 %v2250
        %v4299 = vunpack.c.l.b16 %v2251
        %v4300 = vunpack.c.l.b16 %v2252
        %v4301 = vunpack.c.l.b16 %v2253
        %v4302 = vunpack.c.l.b16 %v2254
        %v4303 = vunpack.c.l.b16 %v2255
        %v4304 = vunpack.c.l.b16 %v2256
        %v4305 = vunpack.c.l.b16 %v2257
        %v4306 = vunpack.c.l.b16 %v2258
        %v4307 = vunpack.c.l.b16 %v2259
        %v4308 = vunpack.c.l.b16 %v2260
        %v4309 = vunpack.c.l.b16 %v2261
        %v4310 = vunpack.c.l.b16 %v2262
        %v4311 = vunpack.c.l.b16 %v2263
        %v4312 = vunpack.c.l.b16 %v2264
        %v4313 = vunpack.c.l.b16 %v2265
        %v4314 = vunpack.c.l.b16 %v2266
        %v4315 = vunpack.c.l.b16 %v2267
        %v4316 = vunpack.c.l.b16 %v2268
        %v4317 = vunpack.c.l.b16 %v2269
        %v4318 = vunpack.c.l.b16 %v2270
        %v4319 = vunpack.c.l.b16 %v2271
        %v4320 = vunpack.c.l.b16 %v2272
        %v4321 = vunpack.c.l.b16 %v2273
        %v4322 = vunpack.c.l.b16 %v2274
        %v4323 = vunpack.c.l.b16 %v2275
        %v4324 = vunpack.c.l.b16 %v2276
        %v4325 = vunpack.c.l.b16 %v2277
        %v4326 = vunpack.c.l.b16 %v2278
        %v4327 = vunpack.c.l.b16 %v2279
        %v4328 = vunpack.c.l.b16 %v2280
        %v4329 = vunpack.c.l.b16 %v2281
        %v4330 = vunpack.c.l.b16 %v2282
        %v4331 = vunpack.c.l.b16 %v2283
        %v4332 = vunpack.c.l.b16 %v2284
        %v4333 = vunpack.c.l.b16 %v2285
        %v4334 = vunpack.c.l.b16 %v2286
        %v4335 = vunpack.c.l.b16 %v2287
        %v4336 = vunpack.c.l.b16 %v2288
        %v4337 = vunpack.c.l.b16 %v2289
        %v4338 = vunpack.c.l.b16 %v2290
        %v4339 = vunpack.c.l.b16 %v2291
        %v4340 = vunpack.c.l.b16 %v2292
        %v4341 = vunpack.c.l.b16 %v2293
        %v4342 = vunpack.c.l.b16 %v2294
        %v4343 = vunpack.c.l.b16 %v2295
        %v4344 = vunpack.c.l.b16 %v2296
        %v4345 = vunpack.c.l.b16 %v2297
        %v4346 = vunpack.c.l.b16 %v2298
        %v4347 = vunpack.c.l.b16 %v2299
        %v4348 = vunpack.c.l.b16 %v2300
        %v4349 = vunpack.c.l.b16 %v2301
        %v4350 = vunpack.c.l.b16 %v2302
        %v4351 = vunpack.c.l.b16 %v2303
        %v4352 = vunpack.c.l.b16 %v2304
        %v4353 = vunpack.c.l.b16 %v2305
        %v4354 = vunpack.c.l.b16 %v2306
        %v4355 = vunpack.c.l.b16 %v2307
        %v4356 = vunpack.c.l.b16 %v2308
        %v4357 = vunpack.c.l.b16 %v2309
        %v4358 = vunpack.c.l.b16 %v2310
        %v4359 = vunpack.c.l.b16 %v2311
        %v4360 = vunpack.c.l.b16 %v2312
        %v4361 = vunpack.c.l.b16 %v2313
        %v4362 = vunpack.c.l.b16 %v2314
        %v4363 = vunpack.c.l.b16 %v2315
        %v4364 = vunpack.c.l.b16 %v2316
        %v4365 = vunpack.c.l.b16 %v2317
        %v4366 = vunpack.c.l.b16 %v2318
        %v4367 = vunpack.c.l.b16 %v2319
        %v4368 = vunpack.c.l.b16 %v2320
        %v4369 = vunpack.c.l.b16 %v2321
        %v4370 = vunpack.c.l.b16 %v2322
        %v4371 = vunpack.c.l.b16 %v2323
        %v4372 = vunpack.c.l.b16 %v2324
        %v4373 = vunpack.c.l.b16 %v2325
        %v4374 = vunpack.c.l.b16 %v2326
        %v4375 = vunpack.c.l.b16 %v2327
        %v4376 = vunpack.c.l.b16 %v2328
        %v4377 = vunpack.c.l.b16 %v2329
        %v4378 = vunpack.c.l.b16 %v2330
        %v4379 = vunpack.c.l.b16 %v2331
        %v4380 = vunpack.c.l.b16 %v2332
        %v4381 = vunpack.c.l.b16 %v2333
        %v4382 = vunpack.c.l.b16 %v2334
        %v4383 = vunpack.c.l.b16 %v2335
        %v4384 = vunpack.c.l.b16 %v2336
        %v4385 = vunpack.c.l.b16 %v2337
        %v4386 = vunpack.c.l.b16 %v2338
        %v4387 = vunpack.c.l.b16 %v2339
        %v4388 = vunpack.c.l.b16 %v2340
        %v4389 = vunpack.c.l.b16 %v2341
        %v4390 = vunpack.c.l.b16 %v2342
        %v4391 = vunpack.c.l.b16 %v2343
        %v4392 = vunpack.c.l.b16 %v2344
        %v4393 = vunpack.c.l.b16 %v2345
        %v4394 = vunpack.c.l.b16 %v2346
        %v4395 = vunpack.c.l.b16 %v2347
        %v4396 = vunpack.c.l.b16 %v2348
        %v4397 = vunpack.c.l.b16 %v2349
        %v4398 = vunpack.c.l.b16 %v2350
        %v4399 = vunpack.c.l.b16 %v2351
        %v4400 = vunpack.c.l.b16 %v2352
        %v4401 = vunpack.c.l.b16 %v2353
        %v4402 = vunpack.c.l.b16 %v2354
        %v4403 = vunpack.c.l.b16 %v2355
        %v4404 = vunpack.c.l.b16 %v2356
        %v4405 = vunpack.c.l.b16 %v2357
        %v4406 = vunpack.c.l.b16 %v2358
        %v4407 = vunpack.c.l.b16 %v2359
        %v4408 = vunpack.c.l.b16 %v2360
        %v4409 = vunpack.c.l.b16 %v2361
        %v4410 = vunpack.c.l.b16 %v2362
        %v4411 = vunpack.c.l.b16 %v2363
        %v4412 = vunpack.c.l.b16 %v2364
        %v4413 = vunpack.c.l.b16 %v2365
        %v4414 = vunpack.c.l.b16 %v2366
        %v4415 = vunpack.c.l.b16 %v2367
        %v4416 = vunpack.c.l.b16 %v2368
        %v4417 = vunpack.c.l.b16 %v2369
        %v4418 = vunpack.c.l.b16 %v2370
        %v4419 = vunpack.c.l.b16 %v2371
        %v4420 = vunpack.c.l.b16 %v2372
        %v4421 = vunpack.c.l.b16 %v2373
        %v4422 = vunpack.c.l.b16 %v2374
        %v4423 = vunpack.c.l.b16 %v2375
        %v4424 = vunpack.c.l.b16 %v2376
        %v4425 = vunpack.c.l.b16 %v2377
        %v4426 = vunpack.c.l.b16 %v2378
        %v4427 = vunpack.c.l.b16 %v2379
        %v4428 = vunpack.c.l.b16 %v2380
        %v4429 = vunpack.c.l.b16 %v2381
        %v4430 = vunpack.c.l.b16 %v2382
        %v4431 = vunpack.c.l.b16 %v2383
        %v4432 = vunpack.c.l.b16 %v2384
        %v4433 = vunpack.c.l.b16 %v2385
        %v4434 = vunpack.c.l.b16 %v2386
        %v4435 = vunpack.c.l.b16 %v2387
        %v4436 = vunpack.c.l.b16 %v2388
        %v4437 = vunpack.c.l.b16 %v2389
        %v4438 = vunpack.c.l.b16 %v2390
        %v4439 = vunpack.c.l.b16 %v2391
        %v4440 = vunpack.c.l.b16 %v2392
        %v4441 = vunpack.c.l.b16 %v2393
        %v4442 = vunpack.c.l.b16 %v2394
        %v4443 = vunpack.c.l.b16 %v2395
        %v4444 = vunpack.c.l.b16 %v2396
        %v4445 = vunpack.c.l.b16 %v2397
        %v4446 = vunpack.c.l.b16 %v2398
        %v4447 = vunpack.c.l.b16 %v2399
        %v4448 = vunpack.c.l.b16 %v2400
        %v4449 = vunpack.c.l.b16 %v2401
        %v4450 = vunpack.c.l.b16 %v2402
        %v4451 = vunpack.c.l.b16 %v2403
        %v4452 = vunpack.c.l.b16 %v2404
        %v4453 = vunpack.c.l.b16 %v2405
        %v4454 = vunpack.c.l.b16 %v2406
        %v4455 = vunpack.c.l.b16 %v2407
        %v4456 = vunpack.c.l.b16 %v2408
        %v4457 = vunpack.c.l.b16 %v2409
        %v4458 = vunpack.c.l.b16 %v2410
        %v4459 = vunpack.c.l.b16 %v2411
        %v4460 = vunpack.c.l.b16 %v2412
        %v4461 = vunpack.c.l.b16 %v2413
        %v4462 = vunpack.c.l.b16 %v2414
        %v4463 = vunpack.c.l.b16 %v2415
        %v4464 = vunpack.c.l.b16 %v2416
        %v4465 = vunpack.c.l.b16 %v2417
        %v4466 = vunpack.c.l.b16 %v2418
        %v4467 = vunpack.c.l.b16 %v2419
        %v4468 = vunpack.c.l.b16 %v2420
        %v4469 = vunpack.c.l.b16 %v2421
        %v4470 = vunpack.c.l.b16 %v2422
        %v4471 = vunpack.c.l.b16 %v2423
        %v4472 = vunpack.c.l.b16 %v2424
        %v4473 = vunpack.c.l.b16 %v2425
        %v4474 = vunpack.c.l.b16 %v2426
        %v4475 = vunpack.c.l.b16 %v2427
        %v4476 = vunpack.c.l.b16 %v2428
        %v4477 = vunpack.c.l.b16 %v2429
        %v4478 = vunpack.c.l.b16 %v2430
        %v4479 = vunpack.c.l.b16 %v2431
        %v4480 = vunpack.c.l.b16 %v2432
        %v4481 = vunpack.c.l.b16 %v2433
        %v4482 = vunpack.c.l.b16 %v2434
        %v4483 = vunpack.c.l.b16 %v2435
        %v4484 = vunpack.c.l.b16 %v2436
        %v4485 = vunpack.c.l.b16 %v2437
        %v4486 = vunpack.c.l.b16 %v2438
        %v4487 = vunpack.c.l.b16 %v2439
        %v4488 = vunpack.c.l.b16 %v2440
        %v4489 = vunpack.c.l.b16 %v2441
        %v4490 = vunpack.c.l.b16 %v2442
        %v4491 = vunpack.c.l.b16 %v2443
        %v4492 = vunpack.c.l.b16 %v2444
        %v4493 = vunpack.c.l.b16 %v2445
        %v4494 = vunpack.c.l.b16 %v2446
        %v4495 = vunpack.c.l.b16 %v2447
        %v4496 = vunpack.c.l.b16 %v2448
        %v4497 = vunpack.c.l.b16 %v2449
        %v4498 = vunpack.c.l.b16 %v2450
        %v4499 = vunpack.c.l.b16 %v2451
        %v4500 = vunpack.c.l.b16 %v2452
        %v4501 = vunpack.c.l.b16 %v2453
        %v4502 = vunpack.c.l.b16 %v2454
        %v4503 = vunpack.c.l.b16 %v2455
        %v4504 = vunpack.c.l.b16 %v2456
        %v4505 = vunpack.c.l.b16 %v2457
        %v4506 = vunpack.c.l.b16 %v2458
        %v4507 = vunpack.c.l.b16 %v2459
        %v4508 = vunpack.c.l.b16 %v2460
        %v4509 = vunpack.c.l.b16 %v2461
        %v4510 = vunpack.c.l.b16 %v2462
        %v4511 = vunpack.c.l.b16 %v2463
        %v4512 = vunpack.c.l.b16 %v2464
        %v4513 = vunpack.c.l.b16 %v2465
        %v4514 = vunpack.c.l.b16 %v2466
        %v4515 = vunpack.c.l.b16 %v2467
        %v4516 = vunpack.c.l.b16 %v2468
        %v4517 = vunpack.c.l.b16 %v2469
        %v4518 = vunpack.c.l.b16 %v2470
        %v4519 = vunpack.c.l.b16 %v2471
        %v4520 = vunpack.c.l.b16 %v2472
        %v4521 = vunpack.c.l.b16 %v2473
        %v4522 = vunpack.c.l.b16 %v2474
        %v4523 = vunpack.c.l.b16 %v2475
        %v4524 = vunpack.c.l.b16 %v2476
        %v4525 = vunpack.c.l.b16 %v2477
        %v4526 = vunpack.c.l.b16 %v2478
        %v4527 = vunpack.c.l.b16 %v2479
        %v4528 = vunpack.c.l.b16 %v2480
        %v4529 = vunpack.c.l.b16 %v2481
        %v4530 = vunpack.c.l.b16 %v2482
        %v4531 = vunpack.c.l.b16 %v2483
        %v4532 = vunpack.c.l.b16 %v2484
        %v4533 = vunpack.c.l.b16 %v2485
        %v4534 = vunpack.c.l.b16 %v2486
        %v4535 = vunpack.c.l.b16 %v2487
        %v4536 = vunpack.c.l.b16 %v2488
        %v4537 = vunpack.c.l.b16 %v2489
        %v4538 = vunpack.c.l.b16 %v2490
        %v4539 = vunpack.c.l.b16 %v2491
        %v4540 = vunpack.c.l.b16 %v2492
        %v4541 = vunpack.c.l.b16 %v2493
        %v4542 = vunpack.c.l.b16 %v2494
        %v4543 = vunpack.c.l.b16 %v2495
        %v4544 = vunpack.c.l.b16 %v2496
        %v4545 = vunpack.c.l.b16 %v2497
        %v4546 = vunpack.c.l.b16 %v2498
        %v4547 = vunpack.c.l.b16 %v2499
        %v4548 = vunpack.c.l.b16 %v2500
        %v4549 = vunpack.c.l.b16 %v2501
        %v4550 = vunpack.c.l.b16 %v2502
        %v4551 = vunpack.c.l.b16 %v2503
        %v4552 = vunpack.c.l.b16 %v2504
        %v4553 = vunpack.c.l.b16 %v2505
        %v4554 = vunpack.c.l.b16 %v2506
        %v4555 = vunpack.c.l.b16 %v2507
        %v4556 = vunpack.c.l.b16 %v2508
        %v4557 = vunpack.c.l.b16 %v2509
        %v4558 = vunpack.c.l.b16 %v2510
        %v4559 = vunpack.c.l.b16 %v2511
        %v4560 = vunpack.c.l.b16 %v2512
        %v4561 = vunpack.c.l.b16 %v2513
        %v4562 = vunpack.c.l.b16 %v2514
        %v4563 = vunpack.c.l.b16 %v2515
        %v4564 = vunpack.c.l.b16 %v2516
        %v4565 = vunpack.c.l.b16 %v2517
        %v4566 = vunpack.c.l.b16 %v2518
        %v4567 = vunpack.c.l.b16 %v2519
        %v4568 = vunpack.c.l.b16 %v2520
        %v4569 = vunpack.c.l.b16 %v2521
        %v4570 = vunpack.c.l.b16 %v2522
        %v4571 = vunpack.c.l.b16 %v2523
        %v4572 = vunpack.c.l.b16 %v2524
        %v4573 = vunpack.c.l.b16 %v2525
        %v4574 = vunpack.c.l.b16 %v2526
        %v4575 = vunpack.c.l.b16 %v2527
        %v4576 = vunpack.c.l.b16 %v2528
        %v4577 = vunpack.c.l.b16 %v2529
        %v4578 = vunpack.c.l.b16 %v2530
        %v4579 = vunpack.c.l.b16 %v2531
        %v4580 = vunpack.c.l.b16 %v2532
        %v4581 = vunpack.c.l.b16 %v2533
        %v4582 = vunpack.c.l.b16 %v2534
        %v4583 = vunpack.c.l.b16 %v2535
        %v4584 = vunpack.c.l.b16 %v2536
        %v4585 = vunpack.c.l.b16 %v2537
        %v4586 = vunpack.c.l.b16 %v2538
        %v4587 = vunpack.c.l.b16 %v2539
        %v4588 = vunpack.c.l.b16 %v2540
        %v4589 = vunpack.c.l.b16 %v2541
        %v4590 = vunpack.c.l.b16 %v2542
        %v4591 = vunpack.c.l.b16 %v2543
        %v4592 = vunpack.c.l.b16 %v2544
        %v4593 = vunpack.c.l.b16 %v2545
        %v4594 = vunpack.c.l.b16 %v2546
        %v4595 = vunpack.c.l.b16 %v2547
        %v4596 = vunpack.c.l.b16 %v2548
        %v4597 = vunpack.c.l.b16 %v2549
        %v4598 = vunpack.c.l.b16 %v2550
        %v4599 = vunpack.c.l.b16 %v2551
        %v4600 = vunpack.c.l.b16 %v2552
        %v4601 = vunpack.c.l.b16 %v2553
        %v4602 = vunpack.c.l.b16 %v2554
        %v4603 = vunpack.c.l.b16 %v2555
        %v4604 = vunpack.c.l.b16 %v2556
        %v4605 = vunpack.c.l.b16 %v2557
        %v4606 = vunpack.c.l.b16 %v2558
        %v4607 = vunpack.c.l.b16 %v2559
        %v4608 = vunpack.c.l.b16 %v2560
        %v4609 = vunpack.c.l.b16 %v2561
        %v4610 = vunpack.c.l.b16 %v2562
        %v4611 = vunpack.c.l.b16 %v2563
        %v4612 = vunpack.c.l.b16 %v2564
        %v4613 = vunpack.c.l.b16 %v2565
        %v4614 = vunpack.c.l.b16 %v2566
        %v4615 = vunpack.c.l.b16 %v2567
        %v4616 = vunpack.c.l.b16 %v2568
        %v4617 = vunpack.c.l.b16 %v2569
        %v4618 = vunpack.c.l.b16 %v2570
        %v4619 = vunpack.c.l.b16 %v2571
        %v4620 = vunpack.c.l.b16 %v2572
        %v4621 = vunpack.c.l.b16 %v2573
        %v4622 = vunpack.c.l.b16 %v2574
        %v4623 = vunpack.c.l.b16 %v2575
        %v4624 = vunpack.c.l.b16 %v2576
        %v4625 = vunpack.c.l.b16 %v2577
        %v4626 = vunpack.c.l.b16 %v2578
        %v4627 = vunpack.c.l.b16 %v2579
        %v4628 = vunpack.c.l.b16 %v2580
        %v4629 = vunpack.c.l.b16 %v2581
        %v4630 = vunpack.c.l.b16 %v2582
        %v4631 = vunpack.c.l.b16 %v2583
        %v4632 = vunpack.c.l.b16 %v2584
        %v4633 = vunpack.c.l.b16 %v2585
        %v4634 = vunpack.c.l.b16 %v2586
        %v4635 = vunpack.c.l.b16 %v2587
        %v4636 = vunpack.c.l.b16 %v2588
        %v4637 = vunpack.c.l.b16 %v2589
        %v4638 = vunpack.c.l.b16 %v2590
        %v4639 = vunpack.c.l.b16 %v2591
        %v4640 = vunpack.c.l.b16 %v2592
        %v4641 = vunpack.c.l.b16 %v2593
        %v4642 = vunpack.c.l.b16 %v2594
        %v4643 = vunpack.c.l.b16 %v2595
        %v4644 = vunpack.c.l.b16 %v2596
        %v4645 = vunpack.c.l.b16 %v2597
        %v4646 = vunpack.c.l.b16 %v2598
        %v4647 = vunpack.c.l.b16 %v2599
        %v4648 = vunpack.c.l.b16 %v2600
        %v4649 = vunpack.c.l.b16 %v2601
        %v4650 = vunpack.c.l.b16 %v2602
        %v4651 = vunpack.c.l.b16 %v2603
        %v4652 = vunpack.c.l.b16 %v2604
        %v4653 = vunpack.c.l.b16 %v2605
        %v4654 = vunpack.c.l.b16 %v2606
        %v4655 = vunpack.c.l.b16 %v2607
        %v4656 = vunpack.c.l.b16 %v2608
        %v4657 = vunpack.c.l.b16 %v2609
        %v4658 = vunpack.c.l.b16 %v2610
        %v4659 = vunpack.c.l.b16 %v2611
        %v4660 = vunpack.c.l.b16 %v2612
        %v4661 = vunpack.c.l.b16 %v2613
        %v4662 = vunpack.c.l.b16 %v2614
        %v4663 = vunpack.c.l.b16 %v2615
        %v4664 = vunpack.c.l.b16 %v2616
        %v4665 = vunpack.c.l.b16 %v2617
        %v4666 = vunpack.c.l.b16 %v2618
        %v4667 = vunpack.c.l.b16 %v2619
        %v4668 = vunpack.c.l.b16 %v2620
        %v4669 = vunpack.c.l.b16 %v2621
        %v4670 = vunpack.c.l.b16 %v2622
        %v4671 = vunpack.c.l.b16 %v2623
        %v4672 = vunpack.c.l.b16 %v2624
        %v4673 = vunpack.c.l.b16 %v2625
        %v4674 = vunpack.c.l.b16 %v2626
        %v4675 = vunpack.c.l.b16 %v2627
        %v4676 = vunpack.c.l.b16 %v2628
        %v4677 = vunpack.c.l.b16 %v2629
        %v4678 = vunpack.c.l.b16 %v2630
        %v4679 = vunpack.c.l.b16 %v2631
        %v4680 = vunpack.c.l.b16 %v2632
        %v4681 = vunpack.c.l.b16 %v2633
        %v4682 = vunpack.c.l.b16 %v2634
        %v4683 = vunpack.c.l.b16 %v2635
        %v4684 = vunpack.c.l.b16 %v2636
        %v4685 = vunpack.c.l.b16 %v2637
        %v4686 = vunpack.c.l.b16 %v2638
        %v4687 = vunpack.c.l.b16 %v2639
        %v4688 = vunpack.c.l.b16 %v2640
        %v4689 = vunpack.c.l.b16 %v2641
        %v4690 = vunpack.c.l.b16 %v2642
        %v4691 = vunpack.c.l.b16 %v2643
        %v4692 = vunpack.c.l.b16 %v2644
        %v4693 = vunpack.c.l.b16 %v2645
        %v4694 = vunpack.c.l.b16 %v2646
        %v4695 = vunpack.c.l.b16 %v2647
        %v4696 = vunpack.c.l.b16 %v2648
        %v4697 = vunpack.c.l.b16 %v2649
        %v4698 = vunpack.c.l.b16 %v2650
        %v4699 = vunpack.c.l.b16 %v2651
        %v4700 = vunpack.c.l.b16 %v2652
        %v4701 = vunpack.c.l.b16 %v2653
        %v4702 = vunpack.c.l.b16 %v2654
        %v4703 = vunpack.c.l.b16 %v2655
        %v4704 = vunpack.c.l.b16 %v2656
        %v4705 = vunpack.c.l.b16 %v2657
        %v4706 = vunpack.c.l.b16 %v2658
        %v4707 = vunpack.c.l.b16 %v2659
        %v4708 = vunpack.c.l.b16 %v2660
        %v4709 = vunpack.c.l.b16 %v2661
        %v4710 = vunpack.c.l.b16 %v2662
        %v4711 = vunpack.c.l.b16 %v2663
        %v4712 = vunpack.c.l.b16 %v2664
        %v4713 = vunpack.c.l.b16 %v2665
        %v4714 = vunpack.c.l.b16 %v2666
        %v4715 = vunpack.c.l.b16 %v2667
        %v4716 = vunpack.c.l.b16 %v2668
        %v4717 = vunpack.c.l.b16 %v2669
        %v4718 = vunpack.c.l.b16 %v2670
        %v4719 = vunpack.c.l.b16 %v2671
        %v4720 = vunpack.c.l.b16 %v2672
        %v4721 = vunpack.c.l.b16 %v2673
        %v4722 = vunpack.c.l.b16 %v2674
        %v4723 = vunpack.c.l.b16 %v2675
        %v4724 = vunpack.c.l.b16 %v2676
        %v4725 = vunpack.c.l.b16 %v2677
        %v4726 = vunpack.c.l.b16 %v2678
        %v4727 = vunpack.c.l.b16 %v2679
        %v4728 = vunpack.c.l.b16 %v2680
        %v4729 = vunpack.c.l.b16 %v2681
        %v4730 = vunpack.c.l.b16 %v2682
        %v4731 = vunpack.c.l.b16 %v2683
        %v4732 = vunpack.c.l.b16 %v2684
        %v4733 = vunpack.c.l.b16 %v2685
        %v4734 = vunpack.c.l.b16 %v2686
        %v4735 = vunpack.c.l.b16 %v2687
        %v4736 = vunpack.c.l.b16 %v2688
        %v4737 = vunpack.c.l.b16 %v2689
        %v4738 = vunpack.c.l.b16 %v2690
        %v4739 = vunpack.c.l.b16 %v2691
        %v4740 = vunpack.c.l.b16 %v2692
        %v4741 = vunpack.c.l.b16 %v2693
        %v4742 = vunpack.c.l.b16 %v2694
        %v4743 = vunpack.c.l.b16 %v2695
        %v4744 = vunpack.c.l.b16 %v2696
        %v4745 = vunpack.c.l.b16 %v2697
        %v4746 = vunpack.c.l.b16 %v2698
        %v4747 = vunpack.c.l.b16 %v2699
        %v4748 = vunpack.c.l.b16 %v2700
        %v4749 = vunpack.c.l.b16 %v2701
        %v4750 = vunpack.c.l.b16 %v2702
        %v4751 = vunpack.c.l.b16 %v2703
        %v4752 = vunpack.c.l.b16 %v2704
        %v4753 = vunpack.c.l.b16 %v2705
        %v4754 = vunpack.c.l.b16 %v2706
        %v4755 = vunpack.c.l.b16 %v2707
        %v4756 = vunpack.c.l.b16 %v2708
        %v4757 = vunpack.c.l.b16 %v2709
        %v4758 = vunpack.c.l.b16 %v2710
        %v4759 = vunpack.c.l.b16 %v2711
        %v4760 = vunpack.c.l.b16 %v2712
        %v4761 = vunpack.c.l.b16 %v2713
        %v4762 = vunpack.c.l.b16 %v2714
        %v4763 = vunpack.c.l.b16 %v2715
        %v4764 = vunpack.c.l.b16 %v2716
        %v4765 = vunpack.c.l.b16 %v2717
        %v4766 = vunpack.c.l.b16 %v2718
        %v4767 = vunpack.c.l.b16 %v2719
        %v4768 = vunpack.c.l.b16 %v2720
        %v4769 = vunpack.c.l.b16 %v2721
        %v4770 = vunpack.c.l.b16 %v2722
        %v4771 = vunpack.c.l.b16 %v2723
        %v4772 = vunpack.c.l.b16 %v2724
        %v4773 = vunpack.c.l.b16 %v2725
        %v4774 = vunpack.c.l.b16 %v2726
        %v4775 = vunpack.c.l.b16 %v2727
        %v4776 = vunpack.c.l.b16 %v2728
        %v4777 = vunpack.c.l.b16 %v2729
        %v4778 = vunpack.c.l.b16 %v2730
        %v4779 = vunpack.c.l.b16 %v2731
        %v4780 = vunpack.c.l.b16 %v2732
        %v4781 = vunpack.c.l.b16 %v2733
        %v4782 = vunpack.c.l.b16 %v2734
        %v4783 = vunpack.c.l.b16 %v2735
        %v4784 = vunpack.c.l.b16 %v2736
        %v4785 = vunpack.c.l.b16 %v2737
        %v4786 = vunpack.c.l.b16 %v2738
        %v4787 = vunpack.c.l.b16 %v2739
        %v4788 = vunpack.c.l.b16 %v2740
        %v4789 = vunpack.c.l.b16 %v2741
        %v4790 = vunpack.c.l.b16 %v2742
        %v4791 = vunpack.c.l.b16 %v2743
        %v4792 = vunpack.c.l.b16 %v2744
        %v4793 = vunpack.c.l.b16 %v2745
        %v4794 = vunpack.c.l.b16 %v2746
        %v4795 = vunpack.c.l.b16 %v2747
        %v4796 = vunpack.c.l.b16 %v2748
        %v4797 = vunpack.c.l.b16 %v2749
        %v4798 = vunpack.c.l.b16 %v2750
        %v4799 = vunpack.c.l.b16 %v2751
        %v4800 = vunpack.c.l.b16 %v2752
        %v4801 = vunpack.c.l.b16 %v2753
        %v4802 = vunpack.c.l.b16 %v2754
        %v4803 = vunpack.c.l.b16 %v2755
        %v4804 = vunpack.c.l.b16 %v2756
        %v4805 = vunpack.c.l.b16 %v2757
        %v4806 = vunpack.c.l.b16 %v2758
        %v4807 = vunpack.c.l.b16 %v2759
        %v4808 = vunpack.c.l.b16 %v2760
        %v4809 = vunpack.c.l.b16 %v2761
        %v4810 = vunpack.c.l.b16 %v2762
        %v4811 = vunpack.c.l.b16 %v2763
        %v4812 = vunpack.c.l.b16 %v2764
        %v4813 = vunpack.c.l.b16 %v2765
        %v4814 = vunpack.c.l.b16 %v2766
        %v4815 = vunpack.c.l.b16 %v2767
        %v4816 = vunpack.c.l.b16 %v2768
        %v4817 = vunpack.c.l.b16 %v2769
        %v4818 = vunpack.c.l.b16 %v2770
        %v4819 = vunpack.c.l.b16 %v2771
        %v4820 = vunpack.c.l.b16 %v2772
        %v4821 = vunpack.c.l.b16 %v2773
        %v4822 = vunpack.c.l.b16 %v2774
        %v4823 = vunpack.c.l.b16 %v2775
        %v4824 = vunpack.c.l.b16 %v2776
        %v4825 = vunpack.c.l.b16 %v2777
        %v4826 = vunpack.c.l.b16 %v2778
        %v4827 = vunpack.c.l.b16 %v2779
        %v4828 = vunpack.c.l.b16 %v2780
        %v4829 = vunpack.c.l.b16 %v2781
        %v4830 = vunpack.c.l.b16 %v2782
        %v4831 = vunpack.c.l.b16 %v2783
        %v4832 = vunpack.c.l.b16 %v2784
        %v4833 = vunpack.c.l.b16 %v2785
        %v4834 = vunpack.c.l.b16 %v2786
        %v4835 = vunpack.c.l.b16 %v2787
        %v4836 = vunpack.c.l.b16 %v2788
        %v4837 = vunpack.c.l.b16 %v2789
        %v4838 = vunpack.c.l.b16 %v2790
        %v4839 = vunpack.c.l.b16 %v2791
        %v4840 = vunpack.c.l.b16 %v2792
        %v4841 = vunpack.c.l.b16 %v2793
        %v4842 = vunpack.c.l.b16 %v2794
        %v4843 = vunpack.c.l.b16 %v2795
        %v4844 = vunpack.c.l.b16 %v2796
        %v4845 = vunpack.c.l.b16 %v2797
        %v4846 = vunpack.c.l.b16 %v2798
        %v4847 = vunpack.c.l.b16 %v2799
        %v4848 = vunpack.c.l.b16 %v2800
        %v4849 = vunpack.c.l.b16 %v2801
        %v4850 = vunpack.c.l.b16 %v2802
        %v4851 = vunpack.c.l.b16 %v2803
        %v4852 = vunpack.c.l.b16 %v2804
        %v4853 = vunpack.c.l.b16 %v2805
        %v4854 = vunpack.c.l.b16 %v2806
        %v4855 = vunpack.c.l.b16 %v2807
        %v4856 = vunpack.c.l.b16 %v2808
        %v4857 = vunpack.c.l.b16 %v2809
        %v4858 = vunpack.c.l.b16 %v2810
        %v4859 = vunpack.c.l.b16 %v2811
        %v4860 = vunpack.c.l.b16 %v2812
        %v4861 = vunpack.c.l.b16 %v2813
        %v4862 = vunpack.c.l.b16 %v2814
        %v4863 = vunpack.c.l.b16 %v2815
        %v4864 = vunpack.c.l.b16 %v2816
        %v4865 = vunpack.c.l.b16 %v2817
        %v4866 = vunpack.c.l.b16 %v2818
        %v4867 = vunpack.c.l.b16 %v2819
        %v4868 = vunpack.c.l.b16 %v2820
        %v4869 = vunpack.c.l.b16 %v2821
        %v4870 = vunpack.c.l.b16 %v2822
        %v4871 = vunpack.c.l.b16 %v2823
        %v4872 = vunpack.c.l.b16 %v2824
        %v4873 = vunpack.c.l.b16 %v2825
        %v4874 = vunpack.c.l.b16 %v2826
        %v4875 = vunpack.c.l.b16 %v2827
        %v4876 = vunpack.c.l.b16 %v2828
        %v4877 = vunpack.c.l.b16 %v2829
        %v4878 = vunpack.c.l.b16 %v2830
        %v4879 = vunpack.c.l.b16 %v2831
        %v4880 = vunpack.c.l.b16 %v2832
        %v4881 = vunpack.c.l.b16 %v2833
        %v4882 = vunpack.c.l.b16 %v2834
        %v4883 = vunpack.c.l.b16 %v2835
        %v4884 = vunpack.c.l.b16 %v2836
        %v4885 = vunpack.c.l.b16 %v2837
        %v4886 = vunpack.c.l.b16 %v2838
        %v4887 = vunpack.c.l.b16 %v2839
        %v4888 = vunpack.c.l.b16 %v2840
        %v4889 = vunpack.c.l.b16 %v2841
        %v4890 = vunpack.c.l.b16 %v2842
        %v4891 = vunpack.c.l.b16 %v2843
        %v4892 = vunpack.c.l.b16 %v2844
        %v4893 = vunpack.c.l.b16 %v2845
        %v4894 = vunpack.c.l.b16 %v2846
        %v4895 = vunpack.c.l.b16 %v2847
        %v4896 = vunpack.c.l.b16 %v2848
        %v4897 = vunpack.c.l.b16 %v2849
        %v4898 = vunpack.c.l.b16 %v2850
        %v4899 = vunpack.c.l.b16 %v2851
        %v4900 = vunpack.c.l.b16 %v2852
        %v4901 = vunpack.c.l.b16 %v2853
        %v4902 = vunpack.c.l.b16 %v2854
        %v4903 = vunpack.c.l.b16 %v2855
        %v4904 = vunpack.c.l.b16 %v2856
        %v4905 = vunpack.c.l.b16 %v2857
        %v4906 = vunpack.c.l.b16 %v2858
        %v4907 = vunpack.c.l.b16 %v2859
        %v4908 = vunpack.c.l.b16 %v2860
        %v4909 = vunpack.c.l.b16 %v2861
        %v4910 = vunpack.c.l.b16 %v2862
        %v4911 = vunpack.c.l.b16 %v2863
        %v4912 = vunpack.c.l.b16 %v2864
        %v4913 = vunpack.c.l.b16 %v2865
        %v4914 = vunpack.c.l.b16 %v2866
        %v4915 = vunpack.c.l.b16 %v2867
        %v4916 = vunpack.c.l.b16 %v2868
        %v4917 = vunpack.c.l.b16 %v2869
        %v4918 = vunpack.c.l.b16 %v2870
        %v4919 = vunpack.c.l.b16 %v2871
        %v4920 = vunpack.c.l.b16 %v2872
        %v4921 = vunpack.c.l.b16 %v2873
        %v4922 = vunpack.c.l.b16 %v2874
        %v4923 = vunpack.c.l.b16 %v2875
        %v4924 = vunpack.c.l.b16 %v2876
        %v4925 = vunpack.c.l.b16 %v2877
        %v4926 = vunpack.c.l.b16 %v2878
        %v4927 = vunpack.c.l.b16 %v2879
        %v4928 = vunpack.c.l.b16 %v2880
        %v4929 = vunpack.c.l.b16 %v2881
        %v4930 = vunpack.c.l.b16 %v2882
        %v4931 = vunpack.c.l.b16 %v2883
        %v4932 = vunpack.c.l.b16 %v2884
        %v4933 = vunpack.c.l.b16 %v2885
        %v4934 = vunpack.c.l.b16 %v2886
        %v4935 = vunpack.c.l.b16 %v2887
        %v4936 = vunpack.c.l.b16 %v2888
        %v4937 = vunpack.c.l.b16 %v2889
        %v4938 = vunpack.c.l.b16 %v2890
        %v4939 = vunpack.c.l.b16 %v2891
        %v4940 = vunpack.c.l.b16 %v2892
        %v4941 = vunpack.c.l.b16 %v2893
        %v4942 = vunpack.c.l.b16 %v2894
        %v4943 = vunpack.c.l.b16 %v2895
        %v4944 = vunpack.c.l.b16 %v2896
        %v4945 = vunpack.c.l.b16 %v2897
        %v4946 = vunpack.c.l.b16 %v2898
        %v4947 = vunpack.c.l.b16 %v2899
        %v4948 = vunpack.c.l.b16 %v2900
        %v4949 = vunpack.c.l.b16 %v2901
        %v4950 = vunpack.c.l.b16 %v2902
        %v4951 = vunpack.c.l.b16 %v2903
        %v4952 = vunpack.c.l.b16 %v2904
        %v4953 = vunpack.c.l.b16 %v2905
        %v4954 = vunpack.c.l.b16 %v2906
        %v4955 = vunpack.c.l.b16 %v2907
        %v4956 = vunpack.c.l.b16 %v2908
        %v4957 = vunpack.c.l.b16 %v2909
        %v4958 = vunpack.c.l.b16 %v2910
        %v4959 = vunpack.c.l.b16 %v2911
        %v4960 = vunpack.c.l.b16 %v2912
        %v4961 = vunpack.c.l.b16 %v2913
        %v4962 = vunpack.c.l.b16 %v2914
        %v4963 = vunpack.c.l.b16 %v2915
        %v4964 = vunpack.c.l.b16 %v2916
        %v4965 = vunpack.c.l.b16 %v2917
        %v4966 = vpack.c.b16 %v3943, %v3942
        %v4967 = vpack.c.b16 %v3945, %v3944
        %v4968 = vpack.c.b16 %v3947, %v3946
        %v4969 = vpack.c.b16 %v3949, %v3948
        %v4970 = vpack.c.b16 %v3951, %v3950
        %v4971 = vpack.c.b16 %v3953, %v3952
        %v4972 = vpack.c.b16 %v3955, %v3954
        %v4973 = vpack.c.b16 %v3957, %v3956
        %v4974 = vpack.c.b16 %v3959, %v3958
        %v4975 = vpack.c.b16 %v3961, %v3960
        %v4976 = vpack.c.b16 %v3963, %v3962
        %v4977 = vpack.c.b16 %v3965, %v3964
        %v4978 = vpack.c.b16 %v3967, %v3966
        %v4979 = vpack.c.b16 %v3969, %v3968
        %v4980 = vpack.c.b16 %v3971, %v3970
        %v4981 = vpack.c.b16 %v3973, %v3972
        %v4982 = vpack.c.b16 %v3975, %v3974
        %v4983 = vpack.c.b16 %v3977, %v3976
        %v4984 = vpack.c.b16 %v3979, %v3978
        %v4985 = vpack.c.b16 %v3981, %v3980
        %v4986 = vpack.c.b16 %v3983, %v3982
        %v4987 = vpack.c.b16 %v3985, %v3984
        %v4988 = vpack.c.b16 %v3987, %v3986
        %v4989 = vpack.c.b16 %v3989, %v3988
        %v4990 = vpack.c.b16 %v3991, %v3990
        %v4991 = vpack.c.b16 %v3993, %v3992
        %v4992 = vpack.c.b16 %v3995, %v3994
        %v4993 = vpack.c.b16 %v3997, %v3996
        %v4994 = vpack.c.b16 %v3999, %v3998
        %v4995 = vpack.c.b16 %v4001, %v4000
        %v4996 = vpack.c.b16 %v4003, %v4002
        %v4997 = vpack.c.b16 %v4005, %v4004
        %v4998 = vpack.c.b16 %v4007, %v4006
        %v4999 = vpack.c.b16 %v4009, %v4008
        %v5000 = vpack.c.b16 %v4011, %v4010
        %v5001 = vpack.c.b16 %v4013, %v4012
        %v5002 = vpack.c.b16 %v4015, %v4014
        %v5003 = vpack.c.b16 %v4017, %v4016
        %v5004 = vpack.c.b16 %v4019, %v4018
        %v5005 = vpack.c.b16 %v4021, %v4020
        %v5006 = vpack.c.b16 %v4023, %v4022
        %v5007 = vpack.c.b16 %v4025, %v4024
        %v5008 = vpack.c.b16 %v4027, %v4026
        %v5009 = vpack.c.b16 %v4029, %v4028
        %v5010 = vpack.c.b16 %v4031, %v4030
        %v5011 = vpack.c.b16 %v4033, %v4032
        %v5012 = vpack.c.b16 %v4035, %v4034
        %v5013 = vpack.c.b16 %v4037, %v4036
        %v5014 = vpack.c.b16 %v4039, %v4038
        %v5015 = vpack.c.b16 %v4041, %v4040
        %v5016 = vpack.c.b16 %v4043, %v4042
        %v5017 = vpack.c.b16 %v4045, %v4044
        %v5018 = vpack.c.b16 %v4047, %v4046
        %v5019 = vpack.c.b16 %v4049, %v4048
        %v5020 = vpack.c.b16 %v4051, %v4050
        %v5021 = vpack.c.b16 %v4053, %v4052
        %v5022 = vpack.c.b16 %v4055, %v4054
        %v5023 = vpack.c.b16 %v4057, %v4056
        %v5024 = vpack.c.b16 %v4059, %v4058
        %v5025 = vpack.c.b16 %v4061, %v4060
        %v5026 = vpack.c.b16 %v4063, %v4062
        %v5027 = vpack.c.b16 %v4065, %v4064
        %v5028 = vpack.c.b16 %v4067, %v4066
        %v5029 = vpack.c.b16 %v4069, %v4068
        %v5030 = vpack.c.b16 %v4071, %v4070
        %v5031 = vpack.c.b16 %v4073, %v4072
        %v5032 = vpack.c.b16 %v4075, %v4074
        %v5033 = vpack.c.b16 %v4077, %v4076
        %v5034 = vpack.c.b16 %v4079, %v4078
        %v5035 = vpack.c.b16 %v4081, %v4080
        %v5036 = vpack.c.b16 %v4083, %v4082
        %v5037 = vpack.c.b16 %v4085, %v4084
        %v5038 = vpack.c.b16 %v4087, %v4086
        %v5039 = vpack.c.b16 %v4089, %v4088
        %v5040 = vpack.c.b16 %v4091, %v4090
        %v5041 = vpack.c.b16 %v4093, %v4092
        %v5042 = vpack.c.b16 %v4095, %v4094
        %v5043 = vpack.c.b16 %v4097, %v4096
        %v5044 = vpack.c.b16 %v4099, %v4098
        %v5045 = vpack.c.b16 %v4101, %v4100
        %v5046 = vpack.c.b16 %v4103, %v4102
        %v5047 = vpack.c.b16 %v4105, %v4104
        %v5048 = vpack.c.b16 %v4107, %v4106
        %v5049 = vpack.c.b16 %v4109, %v4108
        %v5050 = vpack.c.b16 %v4111, %v4110
        %v5051 = vpack.c.b16 %v4113, %v4112
        %v5052 = vpack.c.b16 %v4115, %v4114
        %v5053 = vpack.c.b16 %v4117, %v4116
        %v5054 = vpack.c.b16 %v4119, %v4118
        %v5055 = vpack.c.b16 %v4121, %v4120
        %v5056 = vpack.c.b16 %v4123, %v4122
        %v5057 = vpack.c.b16 %v4125, %v4124
        %v5058 = vpack.c.b16 %v4127, %v4126
        %v5059 = vpack.c.b16 %v4129, %v4128
        %v5060 = vpack.c.b16 %v4131, %v4130
        %v5061 = vpack.c.b16 %v4133, %v4132
        %v5062 = vpack.c.b16 %v4135, %v4134
        %v5063 = vpack.c.b16 %v4137, %v4136
        %v5064 = vpack.c.b16 %v4139, %v4138
        %v5065 = vpack.c.b16 %v4141, %v4140
        %v5066 = vpack.c.b16 %v4143, %v4142
        %v5067 = vpack.c.b16 %v4145, %v4144
        %v5068 = vpack.c.b16 %v4147, %v4146
        %v5069 = vpack.c.b16 %v4149, %v4148
        %v5070 = vpack.c.b16 %v4151, %v4150
        %v5071 = vpack.c.b16 %v4153, %v4152
        %v5072 = vpack.c.b16 %v4155, %v4154
        %v5073 = vpack.c.b16 %v4157, %v4156
        %v5074 = vpack.c.b16 %v4159, %v4158
        %v5075 = vpack.c.b16 %v4161, %v4160
        %v5076 = vpack.c.b16 %v4163, %v4162
        %v5077 = vpack.c.b16 %v4165, %v4164
        %v5078 = vpack.c.b16 %v4167, %v4166
        %v5079 = vpack.c.b16 %v4169, %v4168
        %v5080 = vpack.c.b16 %v4171, %v4170
        %v5081 = vpack.c.b16 %v4173, %v4172
        %v5082 = vpack.c.b16 %v4175, %v4174
        %v5083 = vpack.c.b16 %v4177, %v4176
        %v5084 = vpack.c.b16 %v4179, %v4178
        %v5085 = vpack.c.b16 %v4181, %v4180
        %v5086 = vpack.c.b16 %v4183, %v4182
        %v5087 = vpack.c.b16 %v4185, %v4184
        %v5088 = vpack.c.b16 %v4187, %v4186
        %v5089 = vpack.c.b16 %v4189, %v4188
        %v5090 = vpack.c.b16 %v4191, %v4190
        %v5091 = vpack.c.b16 %v4193, %v4192
        %v5092 = vpack.c.b16 %v4195, %v4194
        %v5093 = vpack.c.b16 %v4197, %v4196
        %v5094 = vpack.c.b16 %v4199, %v4198
        %v5095 = vpack.c.b16 %v4201, %v4200
        %v5096 = vpack.c.b16 %v4203, %v4202
        %v5097 = vpack.c.b16 %v4205, %v4204
        %v5098 = vpack.c.b16 %v4207, %v4206
        %v5099 = vpack.c.b16 %v4209, %v4208
        %v5100 = vpack.c.b16 %v4211, %v4210
        %v5101 = vpack.c.b16 %v4213, %v4212
        %v5102 = vpack.c.b16 %v4215, %v4214
        %v5103 = vpack.c.b16 %v4217, %v4216
        %v5104 = vpack.c.b16 %v4219, %v4218
        %v5105 = vpack.c.b16 %v4221, %v4220
        %v5106 = vpack.c.b16 %v4223, %v4222
        %v5107 = vpack.c.b16 %v4225, %v4224
        %v5108 = vpack.c.b16 %v4227, %v4226
        %v5109 = vpack.c.b16 %v4229, %v4228
        %v5110 = vpack.c.b16 %v4231, %v4230
        %v5111 = vpack.c.b16 %v4233, %v4232
        %v5112 = vpack.c.b16 %v4235, %v4234
        %v5113 = vpack.c.b16 %v4237, %v4236
        %v5114 = vpack.c.b16 %v4239, %v4238
        %v5115 = vpack.c.b16 %v4241, %v4240
        %v5116 = vpack.c.b16 %v4243, %v4242
        %v5117 = vpack.c.b16 %v4245, %v4244
        %v5118 = vpack.c.b16 %v4247, %v4246
        %v5119 = vpack.c.b16 %v4249, %v4248
        %v5120 = vpack.c.b16 %v4251, %v4250
        %v5121 = vpack.c.b16 %v4253, %v4252
        %v5122 = vpack.c.b16 %v4255, %v4254
        %v5123 = vpack.c.b16 %v4257, %v4256
        %v5124 = vpack.c.b16 %v4259, %v4258
        %v5125 = vpack.c.b16 %v4261, %v4260
        %v5126 = vpack.c.b16 %v4263, %v4262
        %v5127 = vpack.c.b16 %v4265, %v4264
        %v5128 = vpack.c.b16 %v4267, %v4266
        %v5129 = vpack.c.b16 %v4269, %v4268
        %v5130 = vpack.c.b16 %v4271, %v4270
        %v5131 = vpack.c.b16 %v4273, %v4272
        %v5132 = vpack.c.b16 %v4275, %v4274
        %v5133 = vpack.c.b16 %v4277, %v4276
        %v5134 = vpack.c.b16 %v4279, %v4278
        %v5135 = vpack.c.b16 %v4281, %v4280
        %v5136 = vpack.c.b16 %v4283, %v4282
        %v5137 = vpack.c.b16 %v4285, %v4284
        %v5138 = vpack.c.b16 %v4287, %v4286
        %v5139 = vpack.c.b16 %v4289, %v4288
        %v5140 = vpack.c.b16 %v4291, %v4290
        %v5141 = vpack.c.b16 %v4293, %v4292
        %v5142 = vpack.c.b16 %v4295, %v4294
        %v5143 = vpack.c.b16 %v4297, %v4296
        %v5144 = vpack.c.b16 %v4299, %v4298
        %v5145 = vpack.c.b16 %v4301, %v4300
        %v5146 = vpack.c.b16 %v4303, %v4302
        %v5147 = vpack.c.b16 %v4305, %v4304
        %v5148 = vpack.c.b16 %v4307, %v4306
        %v5149 = vpack.c.b16 %v4309, %v4308
        %v5150 = vpack.c.b16 %v4311, %v4310
        %v5151 = vpack.c.b16 %v4313, %v4312
        %v5152 = vpack.c.b16 %v4315, %v4314
        %v5153 = vpack.c.b16 %v4317, %v4316
        %v5154 = vpack.c.b16 %v4319, %v4318
        %v5155 = vpack.c.b16 %v4321, %v4320
        %v5156 = vpack.c.b16 %v4323, %v4322
        %v5157 = vpack.c.b16 %v4325, %v4324
        %v5158 = vpack.c.b16 %v4327, %v4326
        %v5159 = vpack.c.b16 %v4329, %v4328
        %v5160 = vpack.c.b16 %v4331, %v4330
        %v5161 = vpack.c.b16 %v4333, %v4332
        %v5162 = vpack.c.b16 %v4335, %v4334
        %v5163 = vpack.c.b16 %v4337, %v4336
        %v5164 = vpack.c.b16 %v4339, %v4338
        %v5165 = vpack.c.b16 %v4341, %v4340
        %v5166 = vpack.c.b16 %v4343, %v4342
        %v5167 = vpack.c.b16 %v4345, %v4344
        %v5168 = vpack.c.b16 %v4347, %v4346
        %v5169 = vpack.c.b16 %v4349, %v4348
        %v5170 = vpack.c.b16 %v4351, %v4350
        %v5171 = vpack.c.b16 %v4353, %v4352
        %v5172 = vpack.c.b16 %v4355, %v4354
        %v5173 = vpack.c.b16 %v4357, %v4356
        %v5174 = vpack.c.b16 %v4359, %v4358
        %v5175 = vpack.c.b16 %v4361, %v4360
        %v5176 = vpack.c.b16 %v4363, %v4362
        %v5177 = vpack.c.b16 %v4365, %v4364
        %v5178 = vpack.c.b16 %v4367, %v4366
        %v5179 = vpack.c.b16 %v4369, %v4368
        %v5180 = vpack.c.b16 %v4371, %v4370
        %v5181 = vpack.c.b16 %v4373, %v4372
        %v5182 = vpack.c.b16 %v4375, %v4374
        %v5183 = vpack.c.b16 %v4377, %v4376
        %v5184 = vpack.c.b16 %v4379, %v4378
        %v5185 = vpack.c.b16 %v4381, %v4380
        %v5186 = vpack.c.b16 %v4383, %v4382
        %v5187 = vpack.c.b16 %v4385, %v4384
        %v5188 = vpack.c.b16 %v4387, %v4386
        %v5189 = vpack.c.b16 %v4389, %v4388
        %v5190 = vpack.c.b16 %v4391, %v4390
        %v5191 = vpack.c.b16 %v4393, %v4392
        %v5192 = vpack.c.b16 %v4395, %v4394
        %v5193 = vpack.c.b16 %v4397, %v4396
        %v5194 = vpack.c.b16 %v4399, %v4398
        %v5195 = vpack.c.b16 %v4401, %v4400
        %v5196 = vpack.c.b16 %v4403, %v4402
        %v5197 = vpack.c.b16 %v4405, %v4404
        %v5198 = vpack.c.b16 %v4407, %v4406
        %v5199 = vpack.c.b16 %v4409, %v4408
        %v5200 = vpack.c.b16 %v4411, %v4410
        %v5201 = vpack.c.b16 %v4413, %v4412
        %v5202 = vpack.c.b16 %v4415, %v4414
        %v5203 = vpack.c.b16 %v4417, %v4416
        %v5204 = vpack.c.b16 %v4419, %v4418
        %v5205 = vpack.c.b16 %v4421, %v4420
        %v5206 = vpack.c.b16 %v4423, %v4422
        %v5207 = vpack.c.b16 %v4425, %v4424
        %v5208 = vpack.c.b16 %v4427, %v4426
        %v5209 = vpack.c.b16 %v4429, %v4428
        %v5210 = vpack.c.b16 %v4431, %v4430
        %v5211 = vpack.c.b16 %v4433, %v4432
        %v5212 = vpack.c.b16 %v4435, %v4434
        %v5213 = vpack.c.b16 %v4437, %v4436
        %v5214 = vpack.c.b16 %v4439, %v4438
        %v5215 = vpack.c.b16 %v4441, %v4440
        %v5216 = vpack.c.b16 %v4443, %v4442
        %v5217 = vpack.c.b16 %v4445, %v4444
        %v5218 = vpack.c.b16 %v4447, %v4446
        %v5219 = vpack.c.b16 %v4449, %v4448
        %v5220 = vpack.c.b16 %v4451, %v4450
        %v5221 = vpack.c.b16 %v4453, %v4452
        %v5222 = vpack.c.b16 %v4455, %v4454
        %v5223 = vpack.c.b16 %v4457, %v4456
        %v5224 = vpack.c.b16 %v4459, %v4458
        %v5225 = vpack.c.b16 %v4461, %v4460
        %v5226 = vpack.c.b16 %v4463, %v4462
        %v5227 = vpack.c.b16 %v4465, %v4464
        %v5228 = vpack.c.b16 %v4467, %v4466
        %v5229 = vpack.c.b16 %v4469, %v4468
        %v5230 = vpack.c.b16 %v4471, %v4470
        %v5231 = vpack.c.b16 %v4473, %v4472
        %v5232 = vpack.c.b16 %v4475, %v4474
        %v5233 = vpack.c.b16 %v4477, %v4476
        %v5234 = vpack.c.b16 %v4479, %v4478
        %v5235 = vpack.c.b16 %v4481, %v4480
        %v5236 = vpack.c.b16 %v4483, %v4482
        %v5237 = vpack.c.b16 %v4485, %v4484
        %v5238 = vpack.c.b16 %v4487, %v4486
        %v5239 = vpack.c.b16 %v4489, %v4488
        %v5240 = vpack.c.b16 %v4491, %v4490
        %v5241 = vpack.c.b16 %v4493, %v4492
        %v5242 = vpack.c.b16 %v4495, %v4494
        %v5243 = vpack.c.b16 %v4497, %v4496
        %v5244 = vpack.c.b16 %v4499, %v4498
        %v5245 = vpack.c.b16 %v4501, %v4500
        %v5246 = vpack.c.b16 %v4503, %v4502
        %v5247 = vpack.c.b16 %v4505, %v4504
        %v5248 = vpack.c.b16 %v4507, %v4506
        %v5249 = vpack.c.b16 %v4509, %v4508
        %v5250 = vpack.c.b16 %v4511, %v4510
        %v5251 = vpack.c.b16 %v4513, %v4512
        %v5252 = vpack.c.b16 %v4515, %v4514
        %v5253 = vpack.c.b16 %v4517, %v4516
        %v5254 = vpack.c.b16 %v4519, %v4518
        %v5255 = vpack.c.b16 %v4521, %v4520
        %v5256 = vpack.c.b16 %v4523, %v4522
        %v5257 = vpack.c.b16 %v4525, %v4524
        %v5258 = vpack.c.b16 %v4527, %v4526
        %v5259 = vpack.c.b16 %v4529, %v4528
        %v5260 = vpack.c.b16 %v4531, %v4530
        %v5261 = vpack.c.b16 %v4533, %v4532
        %v5262 = vpack.c.b16 %v4535, %v4534
        %v5263 = vpack.c.b16 %v4537, %v4536
        %v5264 = vpack.c.b16 %v4539, %v4538
        %v5265 = vpack.c.b16 %v4541, %v4540
        %v5266 = vpack.c.b16 %v4543, %v4542
        %v5267 = vpack.c.b16 %v4545, %v4544
        %v5268 = vpack.c.b16 %v4547, %v4546
        %v5269 = vpack.c.b16 %v4549, %v4548
        %v5270 = vpack.c.b16 %v4551, %v4550
        %v5271 = vpack.c.b16 %v4553, %v4552
        %v5272 = vpack.c.b16 %v4555, %v4554
        %v5273 = vpack.c.b16 %v4557, %v4556
        %v5274 = vpack.c.b16 %v4559, %v4558
        %v5275 = vpack.c.b16 %v4561, %v4560
        %v5276 = vpack.c.b16 %v4563, %v4562
        %v5277 = vpack.c.b16 %v4565, %v4564
        %v5278 = vpack.c.b16 %v4567, %v4566
        %v5279 = vpack.c.b16 %v4569, %v4568
        %v5280 = vpack.c.b16 %v4571, %v4570
        %v5281 = vpack.c.b16 %v4573, %v4572
        %v5282 = vpack.c.b16 %v4575, %v4574
        %v5283 = vpack.c.b16 %v4577, %v4576
        %v5284 = vpack.c.b16 %v4579, %v4578
        %v5285 = vpack.c.b16 %v4581, %v4580
        %v5286 = vpack.c.b16 %v4583, %v4582
        %v5287 = vpack.c.b16 %v4585, %v4584
        %v5288 = vpack.c.b16 %v4587, %v4586
        %v5289 = vpack.c.b16 %v4589, %v4588
        %v5290 = vpack.c.b16 %v4591, %v4590
        %v5291 = vpack.c.b16 %v4593, %v4592
        %v5292 = vpack.c.b16 %v4595, %v4594
        %v5293 = vpack.c.b16 %v4597, %v4596
        %v5294 = vpack.c.b16 %v4599, %v4598
        %v5295 = vpack.c.b16 %v4601, %v4600
        %v5296 = vpack.c.b16 %v4603, %v4602
        %v5297 = vpack.c.b16 %v4605, %v4604
        %v5298 = vpack.c.b16 %v4607, %v4606
        %v5299 = vpack.c.b16 %v4609, %v4608
        %v5300 = vpack.c.b16 %v4611, %v4610
        %v5301 = vpack.c.b16 %v4613, %v4612
        %v5302 = vpack.c.b16 %v4615, %v4614
        %v5303 = vpack.c.b16 %v4617, %v4616
        %v5304 = vpack.c.b16 %v4619, %v4618
        %v5305 = vpack.c.b16 %v4621, %v4620
        %v5306 = vpack.c.b16 %v4623, %v4622
        %v5307 = vpack.c.b16 %v4625, %v4624
        %v5308 = vpack.c.b16 %v4627, %v4626
        %v5309 = vpack.c.b16 %v4629, %v4628
        %v5310 = vpack.c.b16 %v4631, %v4630
        %v5311 = vpack.c.b16 %v4633, %v4632
        %v5312 = vpack.c.b16 %v4635, %v4634
        %v5313 = vpack.c.b16 %v4637, %v4636
        %v5314 = vpack.c.b16 %v4639, %v4638
        %v5315 = vpack.c.b16 %v4641, %v4640
        %v5316 = vpack.c.b16 %v4643, %v4642
        %v5317 = vpack.c.b16 %v4645, %v4644
        %v5318 = vpack.c.b16 %v4647, %v4646
        %v5319 = vpack.c.b16 %v4649, %v4648
        %v5320 = vpack.c.b16 %v4651, %v4650
        %v5321 = vpack.c.b16 %v4653, %v4652
        %v5322 = vpack.c.b16 %v4655, %v4654
        %v5323 = vpack.c.b16 %v4657, %v4656
        %v5324 = vpack.c.b16 %v4659, %v4658
        %v5325 = vpack.c.b16 %v4661, %v4660
        %v5326 = vpack.c.b16 %v4663, %v4662
        %v5327 = vpack.c.b16 %v4665, %v4664
        %v5328 = vpack.c.b16 %v4667, %v4666
        %v5329 = vpack.c.b16 %v4669, %v4668
        %v5330 = vpack.c.b16 %v4671, %v4670
        %v5331 = vpack.c.b16 %v4673, %v4672
        %v5332 = vpack.c.b16 %v4675, %v4674
        %v5333 = vpack.c.b16 %v4677, %v4676
        %v5334 = vpack.c.b16 %v4679, %v4678
        %v5335 = vpack.c.b16 %v4681, %v4680
        %v5336 = vpack.c.b16 %v4683, %v4682
        %v5337 = vpack.c.b16 %v4685, %v4684
        %v5338 = vpack.c.b16 %v4687, %v4686
        %v5339 = vpack.c.b16 %v4689, %v4688
        %v5340 = vpack.c.b16 %v4691, %v4690
        %v5341 = vpack.c.b16 %v4693, %v4692
        %v5342 = vpack.c.b16 %v4695, %v4694
        %v5343 = vpack.c.b16 %v4697, %v4696
        %v5344 = vpack.c.b16 %v4699, %v4698
        %v5345 = vpack.c.b16 %v4701, %v4700
        %v5346 = vpack.c.b16 %v4703, %v4702
        %v5347 = vpack.c.b16 %v4705, %v4704
        %v5348 = vpack.c.b16 %v4707, %v4706
        %v5349 = vpack.c.b16 %v4709, %v4708
        %v5350 = vpack.c.b16 %v4711, %v4710
        %v5351 = vpack.c.b16 %v4713, %v4712
        %v5352 = vpack.c.b16 %v4715, %v4714
        %v5353 = vpack.c.b16 %v4717, %v4716
        %v5354 = vpack.c.b16 %v4719, %v4718
        %v5355 = vpack.c.b16 %v4721, %v4720
        %v5356 = vpack.c.b16 %v4723, %v4722
        %v5357 = vpack.c.b16 %v4725, %v4724
        %v5358 = vpack.c.b16 %v4727, %v4726
        %v5359 = vpack.c.b16 %v4729, %v4728
        %v5360 = vpack.c.b16 %v4731, %v4730
        %v5361 = vpack.c.b16 %v4733, %v4732
        %v5362 = vpack.c.b16 %v4735, %v4734
        %v5363 = vpack.c.b16 %v4737, %v4736
        %v5364 = vpack.c.b16 %v4739, %v4738
        %v5365 = vpack.c.b16 %v4741, %v4740
        %v5366 = vpack.c.b16 %v4743, %v4742
        %v5367 = vpack.c.b16 %v4745, %v4744
        %v5368 = vpack.c.b16 %v4747, %v4746
        %v5369 = vpack.c.b16 %v4749, %v4748
        %v5370 = vpack.c.b16 %v4751, %v4750
        %v5371 = vpack.c.b16 %v4753, %v4752
        %v5372 = vpack.c.b16 %v4755, %v4754
        %v5373 = vpack.c.b16 %v4757, %v4756
        %v5374 = vpack.c.b16 %v4759, %v4758
        %v5375 = vpack.c.b16 %v4761, %v4760
        %v5376 = vpack.c.b16 %v4763, %v4762
        %v5377 = vpack.c.b16 %v4765, %v4764
        %v5378 = vpack.c.b16 %v4767, %v4766
        %v5379 = vpack.c.b16 %v4769, %v4768
        %v5380 = vpack.c.b16 %v4771, %v4770
        %v5381 = vpack.c.b16 %v4773, %v4772
        %v5382 = vpack.c.b16 %v4775, %v4774
        %v5383 = vpack.c.b16 %v4777, %v4776
        %v5384 = vpack.c.b16 %v4779, %v4778
        %v5385 = vpack.c.b16 %v4781, %v4780
        %v5386 = vpack.c.b16 %v4783, %v4782
        %v5387 = vpack.c.b16 %v4785, %v4784
        %v5388 = vpack.c.b16 %v4787, %v4786
        %v5389 = vpack.c.b16 %v4789, %v4788
        %v5390 = vpack.c.b16 %v4791, %v4790
        %v5391 = vpack.c.b16 %v4793, %v4792
        %v5392 = vpack.c.b16 %v4795, %v4794
        %v5393 = vpack.c.b16 %v4797, %v4796
        %v5394 = vpack.c.b16 %v4799, %v4798
        %v5395 = vpack.c.b16 %v4801, %v4800
        %v5396 = vpack.c.b16 %v4803, %v4802
        %v5397 = vpack.c.b16 %v4805, %v4804
        %v5398 = vpack.c.b16 %v4807, %v4806
        %v5399 = vpack.c.b16 %v4809, %v4808
        %v5400 = vpack.c.b16 %v4811, %v4810
        %v5401 = vpack.c.b16 %v4813, %v4812
        %v5402 = vpack.c.b16 %v4815, %v4814
        %v5403 = vpack.c.b16 %v4817, %v4816
        %v5404 = vpack.c.b16 %v4819, %v4818
        %v5405 = vpack.c.b16 %v4821, %v4820
        %v5406 = vpack.c.b16 %v4823, %v4822
        %v5407 = vpack.c.b16 %v4825, %v4824
        %v5408 = vpack.c.b16 %v4827, %v4826
        %v5409 = vpack.c.b16 %v4829, %v4828
        %v5410 = vpack.c.b16 %v4831, %v4830
        %v5411 = vpack.c.b16 %v4833, %v4832
        %v5412 = vpack.c.b16 %v4835, %v4834
        %v5413 = vpack.c.b16 %v4837, %v4836
        %v5414 = vpack.c.b16 %v4839, %v4838
        %v5415 = vpack.c.b16 %v4841, %v4840
        %v5416 = vpack.c.b16 %v4843, %v4842
        %v5417 = vpack.c.b16 %v4845, %v4844
        %v5418 = vpack.c.b16 %v4847, %v4846
        %v5419 = vpack.c.b16 %v4849, %v4848
        %v5420 = vpack.c.b16 %v4851, %v4850
        %v5421 = vpack.c.b16 %v4853, %v4852
        %v5422 = vpack.c.b16 %v4855, %v4854
        %v5423 = vpack.c.b16 %v4857, %v4856
        %v5424 = vpack.c.b16 %v4859, %v4858
        %v5425 = vpack.c.b16 %v4861, %v4860
        %v5426 = vpack.c.b16 %v4863, %v4862
        %v5427 = vpack.c.b16 %v4865, %v4864
        %v5428 = vpack.c.b16 %v4867, %v4866
        %v5429 = vpack.c.b16 %v4869, %v4868
        %v5430 = vpack.c.b16 %v4871, %v4870
        %v5431 = vpack.c.b16 %v4873, %v4872
        %v5432 = vpack.c.b16 %v4875, %v4874
        %v5433 = vpack.c.b16 %v4877, %v4876
        %v5434 = vpack.c.b16 %v4879, %v4878
        %v5435 = vpack.c.b16 %v4881, %v4880
        %v5436 = vpack.c.b16 %v4883, %v4882
        %v5437 = vpack.c.b16 %v4885, %v4884
        %v5438 = vpack.c.b16 %v4887, %v4886
        %v5439 = vpack.c.b16 %v4889, %v4888
        %v5440 = vpack.c.b16 %v4891, %v4890
        %v5441 = vpack.c.b16 %v4893, %v4892
        %v5442 = vpack.c.b16 %v4895, %v4894
        %v5443 = vpack.c.b16 %v4897, %v4896
        %v5444 = vpack.c.b16 %v4899, %v4898
        %v5445 = vpack.c.b16 %v4901, %v4900
        %v5446 = vpack.c.b16 %v4903, %v4902
        %v5447 = vpack.c.b16 %v4905, %v4904
        %v5448 = vpack.c.b16 %v4907, %v4906
        %v5449 = vpack.c.b16 %v4909, %v4908
        %v5450 = vpack.c.b16 %v4911, %v4910
        %v5451 = vpack.c.b16 %v4913, %v4912
        %v5452 = vpack.c.b16 %v4915, %v4914
        %v5453 = vpack.c.b16 %v4917, %v4916
        %v5454 = vpack.c.b16 %v4919, %v4918
        %v5455 = vpack.c.b16 %v4921, %v4920
        %v5456 = vpack.c.b16 %v4923, %v4922
        %v5457 = vpack.c.b16 %v4925, %v4924
        %v5458 = vpack.c.b16 %v4927, %v4926
        %v5459 = vpack.c.b16 %v4929, %v4928
        %v5460 = vpack.c.b16 %v4931, %v4930
        %v5461 = vpack.c.b16 %v4933, %v4932
        %v5462 = vpack.c.b16 %v4935, %v4934
        %v5463 = vpack.c.b16 %v4937, %v4936
        %v5464 = vpack.c.b16 %v4939, %v4938
        %v5465 = vpack.c.b16 %v4941, %v4940
        %v5466 = vpack.c.b16 %v4943, %v4942
        %v5467 = vpack.c.b16 %v4945, %v4944
        %v5468 = vpack.c.b16 %v4947, %v4946
        %v5469 = vpack.c.b16 %v4949, %v4948
        %v5470 = vpack.c.b16 %v4951, %v4950
        %v5471 = vpack.c.b16 %v4953, %v4952
        %v5472 = vpack.c.b16 %v4955, %v4954
        %v5473 = vpack.c.b16 %v4957, %v4956
        %v5474 = vpack.c.b16 %v4959, %v4958
        %v5475 = vpack.c.b16 %v4961, %v4960
        %v5476 = vpack.c.b16 %v4963, %v4962
        %v5477 = vpack.c.b16 %v4965, %v4964
        %5990 = vmatprep.subr.bf16.mxu0 0
        %5991 = vmatpush1.bf16.msra.mxu0 %v4966
        %5992 = vmatprep.subr.bf16.mxu0 0
        %5993 = vmatpush1.bf16.msra.mxu0 %v4967
        %5994 = vmatprep.subr.bf16.mxu0 0
        %5995 = vmatpush1.bf16.msra.mxu0 %v4968
        %5996 = vmatprep.subr.bf16.mxu0 0
        %5997 = vmatpush1.bf16.msra.mxu0 %v4969
        %5998 = vmatprep.subr.bf16.mxu0 0
        %5999 = vmatpush1.bf16.msra.mxu0 %v4970
        %6000 = vmatprep.subr.bf16.mxu0 0
        %6001 = vmatpush1.bf16.msra.mxu0 %v4971
        %6002 = vmatprep.subr.bf16.mxu0 0
        %6003 = vmatpush1.bf16.msra.mxu0 %v4972
        %6004 = vmatprep.subr.bf16.mxu0 0
        %6005 = vmatpush1.bf16.msra.mxu0 %v4973
        %6006 = vmatprep.subr.bf16.mxu0 0
        %6007 = vmatpush1.bf16.msra.mxu0 %v4974
        %6008 = vmatprep.subr.bf16.mxu0 0
        %6009 = vmatpush1.bf16.msra.mxu0 %v4975
        %6010 = vmatprep.subr.bf16.mxu0 0
        %6011 = vmatpush1.bf16.msra.mxu0 %v4976
        %6012 = vmatprep.subr.bf16.mxu0 0
        %6013 = vmatpush1.bf16.msra.mxu0 %v4977
        %6014 = vmatprep.subr.bf16.mxu0 0
        %6015 = vmatpush1.bf16.msra.mxu0 %v4978
        %6016 = vmatprep.subr.bf16.mxu0 0
        %6017 = vmatpush1.bf16.msra.mxu0 %v4979
        %6018 = vmatprep.subr.bf16.mxu0 0
        %6019 = vmatpush1.bf16.msra.mxu0 %v4980
        %6020 = vmatprep.subr.bf16.mxu0 0
        %6021 = vmatpush1.bf16.msra.mxu0 %v4981
        %6022 = vmatprep.mubr.bf16.mxu0 %v1831
        %6023 = vmatmul.mubr.bf16.gmra.mrb[0].mxu0 %v1830
        %v6024 = vpop.f32.mrb[0].mxu0
        %v6025 = vadd.f32 0.0, %v6024
        %v6026 = vpop.f32.mrb[0].mxu0
        %v6027 = vpop.f32.mrb[0].mxu0
        %v6028 = vpop.f32.mrb[0].mxu0
        %6029 = vdwg.mxu0
        %6030 = vmatprep.subr.bf16.mxu0 0
        %6031 = vmatpush1.bf16.msra.mxu0 %v4982
        %6032 = vmatprep.subr.bf16.mxu0 0
        %6033 = vmatpush1.bf16.msra.mxu0 %v4983
        %6034 = vmatprep.subr.bf16.mxu0 0
        %6035 = vmatpush1.bf16.msra.mxu0 %v4984
        %6036 = vmatprep.subr.bf16.mxu0 0
        %6037 = vmatpush1.bf16.msra.mxu0 %v4985
        %6038 = vmatprep.subr.bf16.mxu0 0
        %6039 = vmatpush1.bf16.msra.mxu0 %v4986
        %6040 = vmatprep.subr.bf16.mxu0 0
        %6041 = vmatpush1.bf16.msra.mxu0 %v4987
        %6042 = vmatprep.subr.bf16.mxu0 0
        %6043 = vmatpush1.bf16.msra.mxu0 %v4988
        %6044 = vmatprep.subr.bf16.mxu0 0
        %6045 = vmatpush1.bf16.msra.mxu0 %v4989
        %6046 = vmatprep.subr.bf16.mxu0 0
        %6047 = vmatpush1.bf16.msra.mxu0 %v4990
        %6048 = vmatprep.subr.bf16.mxu0 0
        %6049 = vmatpush1.bf16.msra.mxu0 %v4991
        %6050 = vmatprep.subr.bf16.mxu0 0
        %6051 = vmatpush1.bf16.msra.mxu0 %v4992
        %6052 = vmatprep.subr.bf16.mxu0 0
        %6053 = vmatpush1.bf16.msra.mxu0 %v4993
        %6054 = vmatprep.subr.bf16.mxu0 0
        %6055 = vmatpush1.bf16.msra.mxu0 %v4994
        %6056 = vmatprep.subr.bf16.mxu0 0
        %6057 = vmatpush1.bf16.msra.mxu0 %v4995
        %6058 = vmatprep.subr.bf16.mxu0 0
        %6059 = vmatpush1.bf16.msra.mxu0 %v4996
        %6060 = vmatprep.subr.bf16.mxu0 0
        %6061 = vmatpush1.bf16.msra.mxu0 %v4997
        %6062 = vmatprep.mubr.bf16.mxu0 %v1833
        %6063 = vmatmul.mubr.bf16.gmra.mrb[0].mxu0 %v1832
        %v6064 = vpop.f32.mrb[0].mxu0
        %v6065 = vadd.f32 %v6025, %v6064
        %v6066 = vpop.f32.mrb[0].mxu0
        %v6067 = vpop.f32.mrb[0].mxu0
        %v6068 = vpop.f32.mrb[0].mxu0
        %6069 = vdwg.mxu0
        %6070 = vmatprep.subr.bf16.mxu0 0
        %6071 = vmatpush1.bf16.msra.mxu0 %v4998
        %6072 = vmatprep.subr.bf16.mxu0 0
        %6073 = vmatpush1.bf16.msra.mxu0 %v4999
        %6074 = vmatprep.subr.bf16.mxu0 0
        %6075 = vmatpush1.bf16.msra.mxu0 %v5000
        %6076 = vmatprep.subr.bf16.mxu0 0
        %6077 = vmatpush1.bf16.msra.mxu0 %v5001
        %6078 = vmatprep.subr.bf16.mxu0 0
        %6079 = vmatpush1.bf16.msra.mxu0 %v5002
        %6080 = vmatprep.subr.bf16.mxu0 0
        %6081 = vmatpush1.bf16.msra.mxu0 %v5003
        %6082 = vmatprep.subr.bf16.mxu0 0
        %6083 = vmatpush1.bf16.msra.mxu0 %v5004
        %6084 = vmatprep.subr.bf16.mxu0 0
        %6085 = vmatpush1.bf16.msra.mxu0 %v5005
        %6086 = vmatprep.subr.bf16.mxu0 0
        %6087 = vmatpush1.bf16.msra.mxu0 %v5006
        %6088 = vmatprep.subr.bf16.mxu0 0
        %6089 = vmatpush1.bf16.msra.mxu0 %v5007
        %6090 = vmatprep.subr.bf16.mxu0 0
        %6091 = vmatpush1.bf16.msra.mxu0 %v5008
        %6092 = vmatprep.subr.bf16.mxu0 0
        %6093 = vmatpush1.bf16.msra.mxu0 %v5009
        %6094 = vmatprep.subr.bf16.mxu0 0
        %6095 = vmatpush1.bf16.msra.mxu0 %v5010
        %6096 = vmatprep.subr.bf16.mxu0 0
        %6097 = vmatpush1.bf16.msra.mxu0 %v5011
        %6098 = vmatprep.subr.bf16.mxu0 0
        %6099 = vmatpush1.bf16.msra.mxu0 %v5012
        %6100 = vmatprep.subr.bf16.mxu0 0
        %6101 = vmatpush1.bf16.msra.mxu0 %v5013
        %6102 = vmatprep.mubr.bf16.mxu0 %v1835
        %6103 = vmatmul.mubr.bf16.gmra.mrb[0].mxu0 %v1834
        %v6104 = vpop.f32.mrb[0].mxu0
        %v6105 = vadd.f32 %v6065, %v6104
        %v6106 = vpop.f32.mrb[0].mxu0
        %v6107 = vpop.f32.mrb[0].mxu0
        %v6108 = vpop.f32.mrb[0].mxu0
        %6109 = vdwg.mxu0
        %6110 = vmatprep.subr.bf16.mxu0 0
        %6111 = vmatpush1.bf16.msra.mxu0 %v5014
        %6112 = vmatprep.subr.bf16.mxu0 0
        %6113 = vmatpush1.bf16.msra.mxu0 %v5015
        %6114 = vmatprep.subr.bf16.mxu0 0
        %6115 = vmatpush1.bf16.msra.mxu0 %v5016
        %6116 = vmatprep.subr.bf16.mxu0 0
        %6117 = vmatpush1.bf16.msra.mxu0 %v5017
        %6118 = vmatprep.subr.bf16.mxu0 0
        %6119 = vmatpush1.bf16.msra.mxu0 %v5018
        %6120 = vmatprep.subr.bf16.mxu0 0
        %6121 = vmatpush1.bf16.msra.mxu0 %v5019
        %6122 = vmatprep.subr.bf16.mxu0 0
        %6123 = vmatpush1.bf16.msra.mxu0 %v5020
        %6124 = vmatprep.subr.bf16.mxu0 0
        %6125 = vmatpush1.bf16.msra.mxu0 %v5021
        %6126 = vmatprep.subr.bf16.mxu0 0
        %6127 = vmatpush1.bf16.msra.mxu0 %v5022
        %6128 = vmatprep.subr.bf16.mxu0 0
        %6129 = vmatpush1.bf16.msra.mxu0 %v5023
        %6130 = vmatprep.subr.bf16.mxu0 0
        %6131 = vmatpush1.bf16.msra.mxu0 %v5024
        %6132 = vmatprep.subr.bf16.mxu0 0
        %6133 = vmatpush1.bf16.msra.mxu0 %v5025
        %6134 = vmatprep.subr.bf16.mxu0 0
        %6135 = vmatpush1.bf16.msra.mxu0 %v5026
        %6136 = vmatprep.subr.bf16.mxu0 0
        %6137 = vmatpush1.bf16.msra.mxu0 %v5027
        %6138 = vmatprep.subr.bf16.mxu0 0
        %6139 = vmatpush1.bf16.msra.mxu0 %v5028
        %6140 = vmatprep.subr.bf16.mxu0 0
        %6141 = vmatpush1.bf16.msra.mxu0 %v5029
        %6142 = vmatprep.mubr.bf16.mxu0 %v1837
        %6143 = vmatmul.mubr.bf16.gmra.mrb[0].mxu0 %v1836
        %v6144 = vpop.f32.mrb[0].mxu0
        %v6145 = vadd.f32 %v6105, %v6144
        %v6146 = vpop.f32.mrb[0].mxu0
        %v6147 = vpop.f32.mrb[0].mxu0
        %v6148 = vpop.f32.mrb[0].mxu0
        %6149 = vdwg.mxu0
        %6150 = vmatprep.subr.bf16.mxu0 0
        %6151 = vmatpush1.bf16.msra.mxu0 %v5030
        %6152 = vmatprep.subr.bf16.mxu0 0
        %6153 = vmatpush1.bf16.msra.mxu0 %v5031
        %6154 = vmatprep.subr.bf16.mxu0 0
        %6155 = vmatpush1.bf16.msra.mxu0 %v5032
        %6156 = vmatprep.subr.bf16.mxu0 0
        %6157 = vmatpush1.bf16.msra.mxu0 %v5033
        %6158 = vmatprep.subr.bf16.mxu0 0
        %6159 = vmatpush1.bf16.msra.mxu0 %v5034
        %6160 = vmatprep.subr.bf16.mxu0 0
        %6161 = vmatpush1.bf16.msra.mxu0 %v5035
        %6162 = vmatprep.subr.bf16.mxu0 0
        %6163 = vmatpush1.bf16.msra.mxu0 %v5036
        %6164 = vmatprep.subr.bf16.mxu0 0
        %6165 = vmatpush1.bf16.msra.mxu0 %v5037
        %6166 = vmatprep.subr.bf16.mxu0 0
        %6167 = vmatpush1.bf16.msra.mxu0 %v5038
        %6168 = vmatprep.subr.bf16.mxu0 0
        %6169 = vmatpush1.bf16.msra.mxu0 %v5039
        %6170 = vmatprep.subr.bf16.mxu0 0
        %6171 = vmatpush1.bf16.msra.mxu0 %v5040
        %6172 = vmatprep.subr.bf16.mxu0 0
        %6173 = vmatpush1.bf16.msra.mxu0 %v5041
        %6174 = vmatprep.subr.bf16.mxu0 0
        %6175 = vmatpush1.bf16.msra.mxu0 %v5042
        %6176 = vmatprep.subr.bf16.mxu0 0
        %6177 = vmatpush1.bf16.msra.mxu0 %v5043
        %6178 = vmatprep.subr.bf16.mxu0 0
        %6179 = vmatpush1.bf16.msra.mxu0 %v5044
        %6180 = vmatprep.subr.bf16.mxu0 0
        %6181 = vmatpush1.bf16.msra.mxu0 %v5045
        %6182 = vmatprep.mubr.bf16.mxu0 %v1839
        %6183 = vmatmul.mubr.bf16.gmra.mrb[0].mxu0 %v1838
        %v6184 = vpop.f32.mrb[0].mxu0
        %v6185 = vadd.f32 %v6145, %v6184
        %v6186 = vpop.f32.mrb[0].mxu0
        %v6187 = vpop.f32.mrb[0].mxu0
        %v6188 = vpop.f32.mrb[0].mxu0
        %6189 = vdwg.mxu0
        %6190 = vmatprep.subr.bf16.mxu0 0
        %6191 = vmatpush1.bf16.msra.mxu0 %v5046
        %6192 = vmatprep.subr.bf16.mxu0 0
        %6193 = vmatpush1.bf16.msra.mxu0 %v5047
        %6194 = vmatprep.subr.bf16.mxu0 0
        %6195 = vmatpush1.bf16.msra.mxu0 %v5048
        %6196 = vmatprep.subr.bf16.mxu0 0
        %6197 = vmatpush1.bf16.msra.mxu0 %v5049
        %6198 = vmatprep.subr.bf16.mxu0 0
        %6199 = vmatpush1.bf16.msra.mxu0 %v5050
        %6200 = vmatprep.subr.bf16.mxu0 0
        %6201 = vmatpush1.bf16.msra.mxu0 %v5051
        %6202 = vmatprep.subr.bf16.mxu0 0
        %6203 = vmatpush1.bf16.msra.mxu0 %v5052
        %6204 = vmatprep.subr.bf16.mxu0 0
        %6205 = vmatpush1.bf16.msra.mxu0 %v5053
        %6206 = vmatprep.subr.bf16.mxu0 0
        %6207 = vmatpush1.bf16.msra.mxu0 %v5054
        %6208 = vmatprep.subr.bf16.mxu0 0
        %6209 = vmatpush1.bf16.msra.mxu0 %v5055
        %6210 = vmatprep.subr.bf16.mxu0 0
        %6211 = vmatpush1.bf16.msra.mxu0 %v5056
        %6212 = vmatprep.subr.bf16.mxu0 0
        %6213 = vmatpush1.bf16.msra.mxu0 %v5057
        %6214 = vmatprep.subr.bf16.mxu0 0
        %6215 = vmatpush1.bf16.msra.mxu0 %v5058
        %6216 = vmatprep.subr.bf16.mxu0 0
        %6217 = vmatpush1.bf16.msra.mxu0 %v5059
        %6218 = vmatprep.subr.bf16.mxu0 0
        %6219 = vmatpush1.bf16.msra.mxu0 %v5060
        %6220 = vmatprep.subr.bf16.mxu0 0
        %6221 = vmatpush1.bf16.msra.mxu0 %v5061
        %6222 = vmatprep.mubr.bf16.mxu0 %v1841
        %6223 = vmatmul.mubr.bf16.gmra.mrb[0].mxu0 %v1840
        %v6224 = vpop.f32.mrb[0].mxu0
        %v6225 = vadd.f32 %v6185, %v6224
        %v6226 = vpop.f32.mrb[0].mxu0
        %v6227 = vpop.f32.mrb[0].mxu0
        %v6228 = vpop.f32.mrb[0].mxu0
        %6229 = vdwg.mxu0
        %6230 = vmatprep.subr.bf16.mxu0 0
        %6231 = vmatpush1.bf16.msra.mxu0 %v5062
        %6232 = vmatprep.subr.bf16.mxu0 0
        %6233 = vmatpush1.bf16.msra.mxu0 %v5063
        %6234 = vmatprep.subr.bf16.mxu0 0
        %6235 = vmatpush1.bf16.msra.mxu0 %v5064
        %6236 = vmatprep.subr.bf16.mxu0 0
        %6237 = vmatpush1.bf16.msra.mxu0 %v5065
        %6238 = vmatprep.subr.bf16.mxu0 0
        %6239 = vmatpush1.bf16.msra.mxu0 %v5066
        %6240 = vmatprep.subr.bf16.mxu0 0
        %6241 = vmatpush1.bf16.msra.mxu0 %v5067
        %6242 = vmatprep.subr.bf16.mxu0 0
        %6243 = vmatpush1.bf16.msra.mxu0 %v5068
        %6244 = vmatprep.subr.bf16.mxu0 0
        %6245 = vmatpush1.bf16.msra.mxu0 %v5069
        %6246 = vmatprep.subr.bf16.mxu0 0
        %6247 = vmatpush1.bf16.msra.mxu0 %v5070
        %6248 = vmatprep.subr.bf16.mxu0 0
        %6249 = vmatpush1.bf16.msra.mxu0 %v5071
        %6250 = vmatprep.subr.bf16.mxu0 0
        %6251 = vmatpush1.bf16.msra.mxu0 %v5072
        %6252 = vmatprep.subr.bf16.mxu0 0
        %6253 = vmatpush1.bf16.msra.mxu0 %v5073
        %6254 = vmatprep.subr.bf16.mxu0 0
        %6255 = vmatpush1.bf16.msra.mxu0 %v5074
        %6256 = vmatprep.subr.bf16.mxu0 0
        %6257 = vmatpush1.bf16.msra.mxu0 %v5075
        %6258 = vmatprep.subr.bf16.mxu0 0
        %6259 = vmatpush1.bf16.msra.mxu0 %v5076
        %6260 = vmatprep.subr.bf16.mxu0 0
        %6261 = vmatpush1.bf16.msra.mxu0 %v5077
        %6262 = vmatprep.mubr.bf16.mxu0 %v1843
        %6263 = vmatmul.mubr.bf16.gmra.mrb[0].mxu0 %v1842
        %v6264 = vpop.f32.mrb[0].mxu0
        %v6265 = vadd.f32 %v6225, %v6264
        %v6266 = vpop.f32.mrb[0].mxu0
        %v6267 = vpop.f32.mrb[0].mxu0
        %v6268 = vpop.f32.mrb[0].mxu0
        %6269 = vdwg.mxu0
        %6270 = vmatprep.subr.bf16.mxu0 0
        %6271 = vmatpush1.bf16.msra.mxu0 %v5078
        %6272 = vmatprep.subr.bf16.mxu0 0
        %6273 = vmatpush1.bf16.msra.mxu0 %v5079
        %6274 = vmatprep.subr.bf16.mxu0 0
        %6275 = vmatpush1.bf16.msra.mxu0 %v5080
        %6276 = vmatprep.subr.bf16.mxu0 0
        %6277 = vmatpush1.bf16.msra.mxu0 %v5081
        %6278 = vmatprep.subr.bf16.mxu0 0
        %6279 = vmatpush1.bf16.msra.mxu0 %v5082
        %6280 = vmatprep.subr.bf16.mxu0 0
        %6281 = vmatpush1.bf16.msra.mxu0 %v5083
        %6282 = vmatprep.subr.bf16.mxu0 0
        %6283 = vmatpush1.bf16.msra.mxu0 %v5084
        %6284 = vmatprep.subr.bf16.mxu0 0
        %6285 = vmatpush1.bf16.msra.mxu0 %v5085
        %6286 = vmatprep.subr.bf16.mxu0 0
        %6287 = vmatpush1.bf16.msra.mxu0 %v5086
        %6288 = vmatprep.subr.bf16.mxu0 0
        %6289 = vmatpush1.bf16.msra.mxu0 %v5087
        %6290 = vmatprep.subr.bf16.mxu0 0
        %6291 = vmatpush1.bf16.msra.mxu0 %v5088
        %6292 = vmatprep.subr.bf16.mxu0 0
        %6293 = vmatpush1.bf16.msra.mxu0 %v5089
        %6294 = vmatprep.subr.bf16.mxu0 0
        %6295 = vmatpush1.bf16.msra.mxu0 %v5090
        %6296 = vmatprep.subr.bf16.mxu0 0
        %6297 = vmatpush1.bf16.msra.mxu0 %v5091
        %6298 = vmatprep.subr.bf16.mxu0 0
        %6299 = vmatpush1.bf16.msra.mxu0 %v5092
        %6300 = vmatprep.subr.bf16.mxu0 0
        %6301 = vmatpush1.bf16.msra.mxu0 %v5093
        %6302 = vmatprep.mubr.bf16.mxu0 %v1845
        %6303 = vmatmul.mubr.bf16.gmra.mrb[0].mxu0 %v1844
        %v6304 = vpop.f32.mrb[0].mxu0
        %v6305 = vadd.f32 %v6265, %v6304
        %v6306 = vpop.f32.mrb[0].mxu0
        %v6307 = vpop.f32.mrb[0].mxu0
        %v6308 = vpop.f32.mrb[0].mxu0
        %6309 = vdwg.mxu0
        %6310 = vmatprep.subr.bf16.mxu0 0
        %6311 = vmatpush1.bf16.msra.mxu0 %v5094
        %6312 = vmatprep.subr.bf16.mxu0 0
        %6313 = vmatpush1.bf16.msra.mxu0 %v5095
        %6314 = vmatprep.subr.bf16.mxu0 0
        %6315 = vmatpush1.bf16.msra.mxu0 %v5096
        %6316 = vmatprep.subr.bf16.mxu0 0
        %6317 = vmatpush1.bf16.msra.mxu0 %v5097
        %6318 = vmatprep.subr.bf16.mxu0 0
        %6319 = vmatpush1.bf16.msra.mxu0 %v5098
        %6320 = vmatprep.subr.bf16.mxu0 0
        %6321 = vmatpush1.bf16.msra.mxu0 %v5099
        %6322 = vmatprep.subr.bf16.mxu0 0
        %6323 = vmatpush1.bf16.msra.mxu0 %v5100
        %6324 = vmatprep.subr.bf16.mxu0 0
        %6325 = vmatpush1.bf16.msra.mxu0 %v5101
        %6326 = vmatprep.subr.bf16.mxu0 0
        %6327 = vmatpush1.bf16.msra.mxu0 %v5102
        %6328 = vmatprep.subr.bf16.mxu0 0
        %6329 = vmatpush1.bf16.msra.mxu0 %v5103
        %6330 = vmatprep.subr.bf16.mxu0 0
        %6331 = vmatpush1.bf16.msra.mxu0 %v5104
        %6332 = vmatprep.subr.bf16.mxu0 0
        %6333 = vmatpush1.bf16.msra.mxu0 %v5105
        %6334 = vmatprep.subr.bf16.mxu0 0
        %6335 = vmatpush1.bf16.msra.mxu0 %v5106
        %6336 = vmatprep.subr.bf16.mxu0 0
        %6337 = vmatpush1.bf16.msra.mxu0 %v5107
        %6338 = vmatprep.subr.bf16.mxu0 0
        %6339 = vmatpush1.bf16.msra.mxu0 %v5108
        %6340 = vmatprep.subr.bf16.mxu0 0
        %6341 = vmatpush1.bf16.msra.mxu0 %v5109
        %6342 = vmatprep.mubr.bf16.mxu0 %v1847
        %6343 = vmatmul.mubr.bf16.gmra.mrb[0].mxu0 %v1846
        %v6344 = vpop.f32.mrb[0].mxu0
        %v6345 = vadd.f32 %v6305, %v6344
        %v6346 = vpop.f32.mrb[0].mxu0
        %v6347 = vpop.f32.mrb[0].mxu0
        %v6348 = vpop.f32.mrb[0].mxu0
        %6349 = vdwg.mxu0
        %6350 = vmatprep.subr.bf16.mxu0 0
        %6351 = vmatpush1.bf16.msra.mxu0 %v5110
        %6352 = vmatprep.subr.bf16.mxu0 0
        %6353 = vmatpush1.bf16.msra.mxu0 %v5111
        %6354 = vmatprep.subr.bf16.mxu0 0
        %6355 = vmatpush1.bf16.msra.mxu0 %v5112
        %6356 = vmatprep.subr.bf16.mxu0 0
        %6357 = vmatpush1.bf16.msra.mxu0 %v5113
        %6358 = vmatprep.subr.bf16.mxu0 0
        %6359 = vmatpush1.bf16.msra.mxu0 %v5114
        %6360 = vmatprep.subr.bf16.mxu0 0
        %6361 = vmatpush1.bf16.msra.mxu0 %v5115
        %6362 = vmatprep.subr.bf16.mxu0 0
        %6363 = vmatpush1.bf16.msra.mxu0 %v5116
        %6364 = vmatprep.subr.bf16.mxu0 0
        %6365 = vmatpush1.bf16.msra.mxu0 %v5117
        %6366 = vmatprep.subr.bf16.mxu0 0
        %6367 = vmatpush1.bf16.msra.mxu0 %v5118
        %6368 = vmatprep.subr.bf16.mxu0 0
        %6369 = vmatpush1.bf16.msra.mxu0 %v5119
        %6370 = vmatprep.subr.bf16.mxu0 0
        %6371 = vmatpush1.bf16.msra.mxu0 %v5120
        %6372 = vmatprep.subr.bf16.mxu0 0
        %6373 = vmatpush1.bf16.msra.mxu0 %v5121
        %6374 = vmatprep.subr.bf16.mxu0 0
        %6375 = vmatpush1.bf16.msra.mxu0 %v5122
        %6376 = vmatprep.subr.bf16.mxu0 0
        %6377 = vmatpush1.bf16.msra.mxu0 %v5123
        %6378 = vmatprep.subr.bf16.mxu0 0
        %6379 = vmatpush1.bf16.msra.mxu0 %v5124
        %6380 = vmatprep.subr.bf16.mxu0 0
        %6381 = vmatpush1.bf16.msra.mxu0 %v5125
        %6382 = vmatprep.mubr.bf16.mxu0 %v1849
        %6383 = vmatmul.mubr.bf16.gmra.mrb[0].mxu0 %v1848
        %v6384 = vpop.f32.mrb[0].mxu0
        %v6385 = vadd.f32 %v6345, %v6384
        %v6386 = vpop.f32.mrb[0].mxu0
        %v6387 = vpop.f32.mrb[0].mxu0
        %v6388 = vpop.f32.mrb[0].mxu0
        %6389 = vdwg.mxu0
        %6390 = vmatprep.subr.bf16.mxu0 0
        %6391 = vmatpush1.bf16.msra.mxu0 %v5126
        %6392 = vmatprep.subr.bf16.mxu0 0
        %6393 = vmatpush1.bf16.msra.mxu0 %v5127
        %6394 = vmatprep.subr.bf16.mxu0 0
        %6395 = vmatpush1.bf16.msra.mxu0 %v5128
        %6396 = vmatprep.subr.bf16.mxu0 0
        %6397 = vmatpush1.bf16.msra.mxu0 %v5129
        %6398 = vmatprep.subr.bf16.mxu0 0
        %6399 = vmatpush1.bf16.msra.mxu0 %v5130
        %6400 = vmatprep.subr.bf16.mxu0 0
        %6401 = vmatpush1.bf16.msra.mxu0 %v5131
        %6402 = vmatprep.subr.bf16.mxu0 0
        %6403 = vmatpush1.bf16.msra.mxu0 %v5132
        %6404 = vmatprep.subr.bf16.mxu0 0
        %6405 = vmatpush1.bf16.msra.mxu0 %v5133
        %6406 = vmatprep.subr.bf16.mxu0 0
        %6407 = vmatpush1.bf16.msra.mxu0 %v5134
        %6408 = vmatprep.subr.bf16.mxu0 0
        %6409 = vmatpush1.bf16.msra.mxu0 %v5135
        %6410 = vmatprep.subr.bf16.mxu0 0
        %6411 = vmatpush1.bf16.msra.mxu0 %v5136
        %6412 = vmatprep.subr.bf16.mxu0 0
        %6413 = vmatpush1.bf16.msra.mxu0 %v5137
        %6414 = vmatprep.subr.bf16.mxu0 0
        %6415 = vmatpush1.bf16.msra.mxu0 %v5138
        %6416 = vmatprep.subr.bf16.mxu0 0
        %6417 = vmatpush1.bf16.msra.mxu0 %v5139
        %6418 = vmatprep.subr.bf16.mxu0 0
        %6419 = vmatpush1.bf16.msra.mxu0 %v5140
        %6420 = vmatprep.subr.bf16.mxu0 0
        %6421 = vmatpush1.bf16.msra.mxu0 %v5141
        %6422 = vmatprep.mubr.bf16.mxu0 %v1851
        %6423 = vmatmul.mubr.bf16.gmra.mrb[0].mxu0 %v1850
        %v6424 = vpop.f32.mrb[0].mxu0
        %v6425 = vadd.f32 %v6385, %v6424
        %v6426 = vpop.f32.mrb[0].mxu0
        %v6427 = vpop.f32.mrb[0].mxu0
        %v6428 = vpop.f32.mrb[0].mxu0
        %6429 = vdwg.mxu0
        %6430 = vmatprep.subr.bf16.mxu0 0
        %6431 = vmatpush1.bf16.msra.mxu0 %v5142
        %6432 = vmatprep.subr.bf16.mxu0 0
        %6433 = vmatpush1.bf16.msra.mxu0 %v5143
        %6434 = vmatprep.subr.bf16.mxu0 0
        %6435 = vmatpush1.bf16.msra.mxu0 %v5144
        %6436 = vmatprep.subr.bf16.mxu0 0
        %6437 = vmatpush1.bf16.msra.mxu0 %v5145
        %6438 = vmatprep.subr.bf16.mxu0 0
        %6439 = vmatpush1.bf16.msra.mxu0 %v5146
        %6440 = vmatprep.subr.bf16.mxu0 0
        %6441 = vmatpush1.bf16.msra.mxu0 %v5147
        %6442 = vmatprep.subr.bf16.mxu0 0
        %6443 = vmatpush1.bf16.msra.mxu0 %v5148
        %6444 = vmatprep.subr.bf16.mxu0 0
        %6445 = vmatpush1.bf16.msra.mxu0 %v5149
        %6446 = vmatprep.subr.bf16.mxu0 0
        %6447 = vmatpush1.bf16.msra.mxu0 %v5150
        %6448 = vmatprep.subr.bf16.mxu0 0
        %6449 = vmatpush1.bf16.msra.mxu0 %v5151
        %6450 = vmatprep.subr.bf16.mxu0 0
        %6451 = vmatpush1.bf16.msra.mxu0 %v5152
        %6452 = vmatprep.subr.bf16.mxu0 0
        %6453 = vmatpush1.bf16.msra.mxu0 %v5153
        %6454 = vmatprep.subr.bf16.mxu0 0
        %6455 = vmatpush1.bf16.msra.mxu0 %v5154
        %6456 = vmatprep.subr.bf16.mxu0 0
        %6457 = vmatpush1.bf16.msra.mxu0 %v5155
        %6458 = vmatprep.subr.bf16.mxu0 0
        %6459 = vmatpush1.bf16.msra.mxu0 %v5156
        %6460 = vmatprep.subr.bf16.mxu0 0
        %6461 = vmatpush1.bf16.msra.mxu0 %v5157
        %6462 = vmatprep.mubr.bf16.mxu0 %v1853
        %6463 = vmatmul.mubr.bf16.gmra.mrb[0].mxu0 %v1852
        %v6464 = vpop.f32.mrb[0].mxu0
        %v6465 = vadd.f32 %v6425, %v6464
        %v6466 = vpop.f32.mrb[0].mxu0
        %v6467 = vpop.f32.mrb[0].mxu0
        %v6468 = vpop.f32.mrb[0].mxu0
        %6469 = vdwg.mxu0
        %6470 = vmatprep.subr.bf16.mxu0 0
        %6471 = vmatpush1.bf16.msra.mxu0 %v5158
        %6472 = vmatprep.subr.bf16.mxu0 0
        %6473 = vmatpush1.bf16.msra.mxu0 %v5159
        %6474 = vmatprep.subr.bf16.mxu0 0
        %6475 = vmatpush1.bf16.msra.mxu0 %v5160
        %6476 = vmatprep.subr.bf16.mxu0 0
        %6477 = vmatpush1.bf16.msra.mxu0 %v5161
        %6478 = vmatprep.subr.bf16.mxu0 0
        %6479 = vmatpush1.bf16.msra.mxu0 %v5162
        %6480 = vmatprep.subr.bf16.mxu0 0
        %6481 = vmatpush1.bf16.msra.mxu0 %v5163
        %6482 = vmatprep.subr.bf16.mxu0 0
        %6483 = vmatpush1.bf16.msra.mxu0 %v5164
        %6484 = vmatprep.subr.bf16.mxu0 0
        %6485 = vmatpush1.bf16.msra.mxu0 %v5165
        %6486 = vmatprep.subr.bf16.mxu0 0
        %6487 = vmatpush1.bf16.msra.mxu0 %v5166
        %6488 = vmatprep.subr.bf16.mxu0 0
        %6489 = vmatpush1.bf16.msra.mxu0 %v5167
        %6490 = vmatprep.subr.bf16.mxu0 0
        %6491 = vmatpush1.bf16.msra.mxu0 %v5168
        %6492 = vmatprep.subr.bf16.mxu0 0
        %6493 = vmatpush1.bf16.msra.mxu0 %v5169
        %6494 = vmatprep.subr.bf16.mxu0 0
        %6495 = vmatpush1.bf16.msra.mxu0 %v5170
        %6496 = vmatprep.subr.bf16.mxu0 0
        %6497 = vmatpush1.bf16.msra.mxu0 %v5171
        %6498 = vmatprep.subr.bf16.mxu0 0
        %6499 = vmatpush1.bf16.msra.mxu0 %v5172
        %6500 = vmatprep.subr.bf16.mxu0 0
        %6501 = vmatpush1.bf16.msra.mxu0 %v5173
        %6502 = vmatprep.mubr.bf16.mxu0 %v1855
        %6503 = vmatmul.mubr.bf16.gmra.mrb[0].mxu0 %v1854
        %v6504 = vpop.f32.mrb[0].mxu0
        %v6505 = vadd.f32 %v6465, %v6504
        %v6506 = vpop.f32.mrb[0].mxu0
        %v6507 = vpop.f32.mrb[0].mxu0
        %v6508 = vpop.f32.mrb[0].mxu0
        %6509 = vdwg.mxu0
        %6510 = vmatprep.subr.bf16.mxu0 0
        %6511 = vmatpush1.bf16.msra.mxu0 %v5174
        %6512 = vmatprep.subr.bf16.mxu0 0
        %6513 = vmatpush1.bf16.msra.mxu0 %v5175
        %6514 = vmatprep.subr.bf16.mxu0 0
        %6515 = vmatpush1.bf16.msra.mxu0 %v5176
        %6516 = vmatprep.subr.bf16.mxu0 0
        %6517 = vmatpush1.bf16.msra.mxu0 %v5177
        %6518 = vmatprep.subr.bf16.mxu0 0
        %6519 = vmatpush1.bf16.msra.mxu0 %v5178
        %6520 = vmatprep.subr.bf16.mxu0 0
        %6521 = vmatpush1.bf16.msra.mxu0 %v5179
        %6522 = vmatprep.subr.bf16.mxu0 0
        %6523 = vmatpush1.bf16.msra.mxu0 %v5180
        %6524 = vmatprep.subr.bf16.mxu0 0
        %6525 = vmatpush1.bf16.msra.mxu0 %v5181
        %6526 = vmatprep.subr.bf16.mxu0 0
        %6527 = vmatpush1.bf16.msra.mxu0 %v5182
        %6528 = vmatprep.subr.bf16.mxu0 0
        %6529 = vmatpush1.bf16.msra.mxu0 %v5183
        %6530 = vmatprep.subr.bf16.mxu0 0
        %6531 = vmatpush1.bf16.msra.mxu0 %v5184
        %6532 = vmatprep.subr.bf16.mxu0 0
        %6533 = vmatpush1.bf16.msra.mxu0 %v5185
        %6534 = vmatprep.subr.bf16.mxu0 0
        %6535 = vmatpush1.bf16.msra.mxu0 %v5186
        %6536 = vmatprep.subr.bf16.mxu0 0
        %6537 = vmatpush1.bf16.msra.mxu0 %v5187
        %6538 = vmatprep.subr.bf16.mxu0 0
        %6539 = vmatpush1.bf16.msra.mxu0 %v5188
        %6540 = vmatprep.subr.bf16.mxu0 0
        %6541 = vmatpush1.bf16.msra.mxu0 %v5189
        %6542 = vmatprep.mubr.bf16.mxu0 %v1857
        %6543 = vmatmul.mubr.bf16.gmra.mrb[0].mxu0 %v1856
        %v6544 = vpop.f32.mrb[0].mxu0
        %v6545 = vadd.f32 %v6505, %v6544
        %v6546 = vpop.f32.mrb[0].mxu0
        %v6547 = vpop.f32.mrb[0].mxu0
        %v6548 = vpop.f32.mrb[0].mxu0
        %6549 = vdwg.mxu0
        %6550 = vmatprep.subr.bf16.mxu0 0
        %6551 = vmatpush1.bf16.msra.mxu0 %v5190
        %6552 = vmatprep.subr.bf16.mxu0 0
        %6553 = vmatpush1.bf16.msra.mxu0 %v5191
        %6554 = vmatprep.subr.bf16.mxu0 0
        %6555 = vmatpush1.bf16.msra.mxu0 %v5192
        %6556 = vmatprep.subr.bf16.mxu0 0
        %6557 = vmatpush1.bf16.msra.mxu0 %v5193
        %6558 = vmatprep.subr.bf16.mxu0 0
        %6559 = vmatpush1.bf16.msra.mxu0 %v5194
        %6560 = vmatprep.subr.bf16.mxu0 0
        %6561 = vmatpush1.bf16.msra.mxu0 %v5195
        %6562 = vmatprep.subr.bf16.mxu0 0
        %6563 = vmatpush1.bf16.msra.mxu0 %v5196
        %6564 = vmatprep.subr.bf16.mxu0 0
        %6565 = vmatpush1.bf16.msra.mxu0 %v5197
        %6566 = vmatprep.subr.bf16.mxu0 0
        %6567 = vmatpush1.bf16.msra.mxu0 %v5198
        %6568 = vmatprep.subr.bf16.mxu0 0
        %6569 = vmatpush1.bf16.msra.mxu0 %v5199
        %6570 = vmatprep.subr.bf16.mxu0 0
        %6571 = vmatpush1.bf16.msra.mxu0 %v5200
        %6572 = vmatprep.subr.bf16.mxu0 0
        %6573 = vmatpush1.bf16.msra.mxu0 %v5201
        %6574 = vmatprep.subr.bf16.mxu0 0
        %6575 = vmatpush1.bf16.msra.mxu0 %v5202
        %6576 = vmatprep.subr.bf16.mxu0 0
        %6577 = vmatpush1.bf16.msra.mxu0 %v5203
        %6578 = vmatprep.subr.bf16.mxu0 0
        %6579 = vmatpush1.bf16.msra.mxu0 %v5204
        %6580 = vmatprep.subr.bf16.mxu0 0
        %6581 = vmatpush1.bf16.msra.mxu0 %v5205
        %6582 = vmatprep.mubr.bf16.mxu0 %v1859
        %6583 = vmatmul.mubr.bf16.gmra.mrb[0].mxu0 %v1858
        %v6584 = vpop.f32.mrb[0].mxu0
        %v6585 = vadd.f32 %v6545, %v6584
        %v6586 = vpop.f32.mrb[0].mxu0
        %v6587 = vpop.f32.mrb[0].mxu0
        %v6588 = vpop.f32.mrb[0].mxu0
        %6589 = vdwg.mxu0
        %6590 = vmatprep.subr.bf16.mxu0 0
        %6591 = vmatpush1.bf16.msra.mxu0 %v5206
        %6592 = vmatprep.subr.bf16.mxu0 0
        %6593 = vmatpush1.bf16.msra.mxu0 %v5207
        %6594 = vmatprep.subr.bf16.mxu0 0
        %6595 = vmatpush1.bf16.msra.mxu0 %v5208
        %6596 = vmatprep.subr.bf16.mxu0 0
        %6597 = vmatpush1.bf16.msra.mxu0 %v5209
        %6598 = vmatprep.subr.bf16.mxu0 0
        %6599 = vmatpush1.bf16.msra.mxu0 %v5210
        %6600 = vmatprep.subr.bf16.mxu0 0
        %6601 = vmatpush1.bf16.msra.mxu0 %v5211
        %6602 = vmatprep.subr.bf16.mxu0 0
        %6603 = vmatpush1.bf16.msra.mxu0 %v5212
        %6604 = vmatprep.subr.bf16.mxu0 0
        %6605 = vmatpush1.bf16.msra.mxu0 %v5213
        %6606 = vmatprep.subr.bf16.mxu0 0
        %6607 = vmatpush1.bf16.msra.mxu0 %v5214
        %6608 = vmatprep.subr.bf16.mxu0 0
        %6609 = vmatpush1.bf16.msra.mxu0 %v5215
        %6610 = vmatprep.subr.bf16.mxu0 0
        %6611 = vmatpush1.bf16.msra.mxu0 %v5216
        %6612 = vmatprep.subr.bf16.mxu0 0
        %6613 = vmatpush1.bf16.msra.mxu0 %v5217
        %6614 = vmatprep.subr.bf16.mxu0 0
        %6615 = vmatpush1.bf16.msra.mxu0 %v5218
        %6616 = vmatprep.subr.bf16.mxu0 0
        %6617 = vmatpush1.bf16.msra.mxu0 %v5219
        %6618 = vmatprep.subr.bf16.mxu0 0
        %6619 = vmatpush1.bf16.msra.mxu0 %v5220
        %6620 = vmatprep.subr.bf16.mxu0 0
        %6621 = vmatpush1.bf16.msra.mxu0 %v5221
        %6622 = vmatprep.mubr.bf16.mxu0 %v1861
        %6623 = vmatmul.mubr.bf16.gmra.mrb[0].mxu0 %v1860
        %v6624 = vpop.f32.mrb[0].mxu0
        %v6625 = vadd.f32 %v6585, %v6624
        %v6626 = vpop.f32.mrb[0].mxu0
        %v6627 = vpop.f32.mrb[0].mxu0
        %v6628 = vpop.f32.mrb[0].mxu0
        %6629 = vdwg.mxu0
        %6630 = vmatprep.subr.bf16.mxu0 0
        %6631 = vmatpush1.bf16.msra.mxu0 %v5222
        %6632 = vmatprep.subr.bf16.mxu0 0
        %6633 = vmatpush1.bf16.msra.mxu0 %v5223
        %6634 = vmatprep.subr.bf16.mxu0 0
        %6635 = vmatpush1.bf16.msra.mxu0 %v5224
        %6636 = vmatprep.subr.bf16.mxu0 0
        %6637 = vmatpush1.bf16.msra.mxu0 %v5225
        %6638 = vmatprep.subr.bf16.mxu0 0
        %6639 = vmatpush1.bf16.msra.mxu0 %v5226
        %6640 = vmatprep.subr.bf16.mxu0 0
        %6641 = vmatpush1.bf16.msra.mxu0 %v5227
        %6642 = vmatprep.subr.bf16.mxu0 0
        %6643 = vmatpush1.bf16.msra.mxu0 %v5228
        %6644 = vmatprep.subr.bf16.mxu0 0
        %6645 = vmatpush1.bf16.msra.mxu0 %v5229
        %6646 = vmatprep.subr.bf16.mxu0 0
        %6647 = vmatpush1.bf16.msra.mxu0 %v5230
        %6648 = vmatprep.subr.bf16.mxu0 0
        %6649 = vmatpush1.bf16.msra.mxu0 %v5231
        %6650 = vmatprep.subr.bf16.mxu0 0
        %6651 = vmatpush1.bf16.msra.mxu0 %v5232
        %6652 = vmatprep.subr.bf16.mxu0 0
        %6653 = vmatpush1.bf16.msra.mxu0 %v5233
        %6654 = vmatprep.subr.bf16.mxu0 0
        %6655 = vmatpush1.bf16.msra.mxu0 %v5234
        %6656 = vmatprep.subr.bf16.mxu0 0
        %6657 = vmatpush1.bf16.msra.mxu0 %v5235
        %6658 = vmatprep.subr.bf16.mxu0 0
        %6659 = vmatpush1.bf16.msra.mxu0 %v5236
        %6660 = vmatprep.subr.bf16.mxu0 0
        %6661 = vmatpush1.bf16.msra.mxu0 %v5237
        %6662 = vmatprep.mubr.bf16.mxu0 %v1863
        %6663 = vmatmul.mubr.bf16.gmra.mrb[0].mxu0 %v1862
        %v6664 = vpop.f32.mrb[0].mxu0
        %v6665 = vadd.f32 %v6625, %v6664
        %v6666 = vpop.f32.mrb[0].mxu0
        %v6667 = vpop.f32.mrb[0].mxu0
        %v6668 = vpop.f32.mrb[0].mxu0
        %6669 = vdwg.mxu0
        %6670 = vmatprep.subr.bf16.mxu0 0
        %6671 = vmatpush1.bf16.msra.mxu0 %v5238
        %6672 = vmatprep.subr.bf16.mxu0 0
        %6673 = vmatpush1.bf16.msra.mxu0 %v5239
        %6674 = vmatprep.subr.bf16.mxu0 0
        %6675 = vmatpush1.bf16.msra.mxu0 %v5240
        %6676 = vmatprep.subr.bf16.mxu0 0
        %6677 = vmatpush1.bf16.msra.mxu0 %v5241
        %6678 = vmatprep.subr.bf16.mxu0 0
        %6679 = vmatpush1.bf16.msra.mxu0 %v5242
        %6680 = vmatprep.subr.bf16.mxu0 0
        %6681 = vmatpush1.bf16.msra.mxu0 %v5243
        %6682 = vmatprep.subr.bf16.mxu0 0
        %6683 = vmatpush1.bf16.msra.mxu0 %v5244
        %6684 = vmatprep.subr.bf16.mxu0 0
        %6685 = vmatpush1.bf16.msra.mxu0 %v5245
        %6686 = vmatprep.subr.bf16.mxu0 0
        %6687 = vmatpush1.bf16.msra.mxu0 %v5246
        %6688 = vmatprep.subr.bf16.mxu0 0
        %6689 = vmatpush1.bf16.msra.mxu0 %v5247
        %6690 = vmatprep.subr.bf16.mxu0 0
        %6691 = vmatpush1.bf16.msra.mxu0 %v5248
        %6692 = vmatprep.subr.bf16.mxu0 0
        %6693 = vmatpush1.bf16.msra.mxu0 %v5249
        %6694 = vmatprep.subr.bf16.mxu0 0
        %6695 = vmatpush1.bf16.msra.mxu0 %v5250
        %6696 = vmatprep.subr.bf16.mxu0 0
        %6697 = vmatpush1.bf16.msra.mxu0 %v5251
        %6698 = vmatprep.subr.bf16.mxu0 0
        %6699 = vmatpush1.bf16.msra.mxu0 %v5252
        %6700 = vmatprep.subr.bf16.mxu0 0
        %6701 = vmatpush1.bf16.msra.mxu0 %v5253
        %6702 = vmatprep.mubr.bf16.mxu0 %v1865
        %6703 = vmatmul.mubr.bf16.gmra.mrb[0].mxu0 %v1864
        %v6704 = vpop.f32.mrb[0].mxu0
        %v6705 = vadd.f32 %v6665, %v6704
        %v6706 = vpop.f32.mrb[0].mxu0
        %v6707 = vpop.f32.mrb[0].mxu0
        %v6708 = vpop.f32.mrb[0].mxu0
        %6709 = vdwg.mxu0
        %6710 = vmatprep.subr.bf16.mxu0 0
        %6711 = vmatpush1.bf16.msra.mxu0 %v5254
        %6712 = vmatprep.subr.bf16.mxu0 0
        %6713 = vmatpush1.bf16.msra.mxu0 %v5255
        %6714 = vmatprep.subr.bf16.mxu0 0
        %6715 = vmatpush1.bf16.msra.mxu0 %v5256
        %6716 = vmatprep.subr.bf16.mxu0 0
        %6717 = vmatpush1.bf16.msra.mxu0 %v5257
        %6718 = vmatprep.subr.bf16.mxu0 0
        %6719 = vmatpush1.bf16.msra.mxu0 %v5258
        %6720 = vmatprep.subr.bf16.mxu0 0
        %6721 = vmatpush1.bf16.msra.mxu0 %v5259
        %6722 = vmatprep.subr.bf16.mxu0 0
        %6723 = vmatpush1.bf16.msra.mxu0 %v5260
        %6724 = vmatprep.subr.bf16.mxu0 0
        %6725 = vmatpush1.bf16.msra.mxu0 %v5261
        %6726 = vmatprep.subr.bf16.mxu0 0
        %6727 = vmatpush1.bf16.msra.mxu0 %v5262
        %6728 = vmatprep.subr.bf16.mxu0 0
        %6729 = vmatpush1.bf16.msra.mxu0 %v5263
        %6730 = vmatprep.subr.bf16.mxu0 0
        %6731 = vmatpush1.bf16.msra.mxu0 %v5264
        %6732 = vmatprep.subr.bf16.mxu0 0
        %6733 = vmatpush1.bf16.msra.mxu0 %v5265
        %6734 = vmatprep.subr.bf16.mxu0 0
        %6735 = vmatpush1.bf16.msra.mxu0 %v5266
        %6736 = vmatprep.subr.bf16.mxu0 0
        %6737 = vmatpush1.bf16.msra.mxu0 %v5267
        %6738 = vmatprep.subr.bf16.mxu0 0
        %6739 = vmatpush1.bf16.msra.mxu0 %v5268
        %6740 = vmatprep.subr.bf16.mxu0 0
        %6741 = vmatpush1.bf16.msra.mxu0 %v5269
        %6742 = vmatprep.mubr.bf16.mxu0 %v1867
        %6743 = vmatmul.mubr.bf16.gmra.mrb[0].mxu0 %v1866
        %v6744 = vpop.f32.mrb[0].mxu0
        %v6745 = vadd.f32 %v6705, %v6744
        %v6746 = vpop.f32.mrb[0].mxu0
        %v6747 = vpop.f32.mrb[0].mxu0
        %v6748 = vpop.f32.mrb[0].mxu0
        %6749 = vdwg.mxu0
        %6750 = vmatprep.subr.bf16.mxu0 0
        %6751 = vmatpush1.bf16.msra.mxu0 %v5270
        %6752 = vmatprep.subr.bf16.mxu0 0
        %6753 = vmatpush1.bf16.msra.mxu0 %v5271
        %6754 = vmatprep.subr.bf16.mxu0 0
        %6755 = vmatpush1.bf16.msra.mxu0 %v5272
        %6756 = vmatprep.subr.bf16.mxu0 0
        %6757 = vmatpush1.bf16.msra.mxu0 %v5273
        %6758 = vmatprep.subr.bf16.mxu0 0
        %6759 = vmatpush1.bf16.msra.mxu0 %v5274
        %6760 = vmatprep.subr.bf16.mxu0 0
        %6761 = vmatpush1.bf16.msra.mxu0 %v5275
        %6762 = vmatprep.subr.bf16.mxu0 0
        %6763 = vmatpush1.bf16.msra.mxu0 %v5276
        %6764 = vmatprep.subr.bf16.mxu0 0
        %6765 = vmatpush1.bf16.msra.mxu0 %v5277
        %6766 = vmatprep.subr.bf16.mxu0 0
        %6767 = vmatpush1.bf16.msra.mxu0 %v5278
        %6768 = vmatprep.subr.bf16.mxu0 0
        %6769 = vmatpush1.bf16.msra.mxu0 %v5279
        %6770 = vmatprep.subr.bf16.mxu0 0
        %6771 = vmatpush1.bf16.msra.mxu0 %v5280
        %6772 = vmatprep.subr.bf16.mxu0 0
        %6773 = vmatpush1.bf16.msra.mxu0 %v5281
        %6774 = vmatprep.subr.bf16.mxu0 0
        %6775 = vmatpush1.bf16.msra.mxu0 %v5282
        %6776 = vmatprep.subr.bf16.mxu0 0
        %6777 = vmatpush1.bf16.msra.mxu0 %v5283
        %6778 = vmatprep.subr.bf16.mxu0 0
        %6779 = vmatpush1.bf16.msra.mxu0 %v5284
        %6780 = vmatprep.subr.bf16.mxu0 0
        %6781 = vmatpush1.bf16.msra.mxu0 %v5285
        %6782 = vmatprep.mubr.bf16.mxu0 %v1869
        %6783 = vmatmul.mubr.bf16.gmra.mrb[0].mxu0 %v1868
        %v6784 = vpop.f32.mrb[0].mxu0
        %v6785 = vadd.f32 %v6745, %v6784
        %v6786 = vpop.f32.mrb[0].mxu0
        %v6787 = vpop.f32.mrb[0].mxu0
        %v6788 = vpop.f32.mrb[0].mxu0
        %6789 = vdwg.mxu0
        %6790 = vmatprep.subr.bf16.mxu0 0
        %6791 = vmatpush1.bf16.msra.mxu0 %v5286
        %6792 = vmatprep.subr.bf16.mxu0 0
        %6793 = vmatpush1.bf16.msra.mxu0 %v5287
        %6794 = vmatprep.subr.bf16.mxu0 0
        %6795 = vmatpush1.bf16.msra.mxu0 %v5288
        %6796 = vmatprep.subr.bf16.mxu0 0
        %6797 = vmatpush1.bf16.msra.mxu0 %v5289
        %6798 = vmatprep.subr.bf16.mxu0 0
        %6799 = vmatpush1.bf16.msra.mxu0 %v5290
        %6800 = vmatprep.subr.bf16.mxu0 0
        %6801 = vmatpush1.bf16.msra.mxu0 %v5291
        %6802 = vmatprep.subr.bf16.mxu0 0
        %6803 = vmatpush1.bf16.msra.mxu0 %v5292
        %6804 = vmatprep.subr.bf16.mxu0 0
        %6805 = vmatpush1.bf16.msra.mxu0 %v5293
        %6806 = vmatprep.subr.bf16.mxu0 0
        %6807 = vmatpush1.bf16.msra.mxu0 %v5294
        %6808 = vmatprep.subr.bf16.mxu0 0
        %6809 = vmatpush1.bf16.msra.mxu0 %v5295
        %6810 = vmatprep.subr.bf16.mxu0 0
        %6811 = vmatpush1.bf16.msra.mxu0 %v5296
        %6812 = vmatprep.subr.bf16.mxu0 0
        %6813 = vmatpush1.bf16.msra.mxu0 %v5297
        %6814 = vmatprep.subr.bf16.mxu0 0
        %6815 = vmatpush1.bf16.msra.mxu0 %v5298
        %6816 = vmatprep.subr.bf16.mxu0 0
        %6817 = vmatpush1.bf16.msra.mxu0 %v5299
        %6818 = vmatprep.subr.bf16.mxu0 0
        %6819 = vmatpush1.bf16.msra.mxu0 %v5300
        %6820 = vmatprep.subr.bf16.mxu0 0
        %6821 = vmatpush1.bf16.msra.mxu0 %v5301
        %6822 = vmatprep.mubr.bf16.mxu0 %v1871
        %6823 = vmatmul.mubr.bf16.gmra.mrb[0].mxu0 %v1870
        %v6824 = vpop.f32.mrb[0].mxu0
        %v6825 = vadd.f32 %v6785, %v6824
        %v6826 = vpop.f32.mrb[0].mxu0
        %v6827 = vpop.f32.mrb[0].mxu0
        %v6828 = vpop.f32.mrb[0].mxu0
        %6829 = vdwg.mxu0
        %6830 = vmatprep.subr.bf16.mxu0 0
        %6831 = vmatpush1.bf16.msra.mxu0 %v5302
        %6832 = vmatprep.subr.bf16.mxu0 0
        %6833 = vmatpush1.bf16.msra.mxu0 %v5303
        %6834 = vmatprep.subr.bf16.mxu0 0
        %6835 = vmatpush1.bf16.msra.mxu0 %v5304
        %6836 = vmatprep.subr.bf16.mxu0 0
        %6837 = vmatpush1.bf16.msra.mxu0 %v5305
        %6838 = vmatprep.subr.bf16.mxu0 0
        %6839 = vmatpush1.bf16.msra.mxu0 %v5306
        %6840 = vmatprep.subr.bf16.mxu0 0
        %6841 = vmatpush1.bf16.msra.mxu0 %v5307
        %6842 = vmatprep.subr.bf16.mxu0 0
        %6843 = vmatpush1.bf16.msra.mxu0 %v5308
        %6844 = vmatprep.subr.bf16.mxu0 0
        %6845 = vmatpush1.bf16.msra.mxu0 %v5309
        %6846 = vmatprep.subr.bf16.mxu0 0
        %6847 = vmatpush1.bf16.msra.mxu0 %v5310
        %6848 = vmatprep.subr.bf16.mxu0 0
        %6849 = vmatpush1.bf16.msra.mxu0 %v5311
        %6850 = vmatprep.subr.bf16.mxu0 0
        %6851 = vmatpush1.bf16.msra.mxu0 %v5312
        %6852 = vmatprep.subr.bf16.mxu0 0
        %6853 = vmatpush1.bf16.msra.mxu0 %v5313
        %6854 = vmatprep.subr.bf16.mxu0 0
        %6855 = vmatpush1.bf16.msra.mxu0 %v5314
        %6856 = vmatprep.subr.bf16.mxu0 0
        %6857 = vmatpush1.bf16.msra.mxu0 %v5315
        %6858 = vmatprep.subr.bf16.mxu0 0
        %6859 = vmatpush1.bf16.msra.mxu0 %v5316
        %6860 = vmatprep.subr.bf16.mxu0 0
        %6861 = vmatpush1.bf16.msra.mxu0 %v5317
        %6862 = vmatprep.mubr.bf16.mxu0 %v1873
        %6863 = vmatmul.mubr.bf16.gmra.mrb[0].mxu0 %v1872
        %v6864 = vpop.f32.mrb[0].mxu0
        %v6865 = vadd.f32 %v6825, %v6864
        %v6866 = vpop.f32.mrb[0].mxu0
        %v6867 = vpop.f32.mrb[0].mxu0
        %v6868 = vpop.f32.mrb[0].mxu0
        %6869 = vdwg.mxu0
        %6870 = vmatprep.subr.bf16.mxu0 0
        %6871 = vmatpush1.bf16.msra.mxu0 %v5318
        %6872 = vmatprep.subr.bf16.mxu0 0
        %6873 = vmatpush1.bf16.msra.mxu0 %v5319
        %6874 = vmatprep.subr.bf16.mxu0 0
        %6875 = vmatpush1.bf16.msra.mxu0 %v5320
        %6876 = vmatprep.subr.bf16.mxu0 0
        %6877 = vmatpush1.bf16.msra.mxu0 %v5321
        %6878 = vmatprep.subr.bf16.mxu0 0
        %6879 = vmatpush1.bf16.msra.mxu0 %v5322
        %6880 = vmatprep.subr.bf16.mxu0 0
        %6881 = vmatpush1.bf16.msra.mxu0 %v5323
        %6882 = vmatprep.subr.bf16.mxu0 0
        %6883 = vmatpush1.bf16.msra.mxu0 %v5324
        %6884 = vmatprep.subr.bf16.mxu0 0
        %6885 = vmatpush1.bf16.msra.mxu0 %v5325
        %6886 = vmatprep.subr.bf16.mxu0 0
        %6887 = vmatpush1.bf16.msra.mxu0 %v5326
        %6888 = vmatprep.subr.bf16.mxu0 0
        %6889 = vmatpush1.bf16.msra.mxu0 %v5327
        %6890 = vmatprep.subr.bf16.mxu0 0
        %6891 = vmatpush1.bf16.msra.mxu0 %v5328
        %6892 = vmatprep.subr.bf16.mxu0 0
        %6893 = vmatpush1.bf16.msra.mxu0 %v5329
        %6894 = vmatprep.subr.bf16.mxu0 0
        %6895 = vmatpush1.bf16.msra.mxu0 %v5330
        %6896 = vmatprep.subr.bf16.mxu0 0
        %6897 = vmatpush1.bf16.msra.mxu0 %v5331
        %6898 = vmatprep.subr.bf16.mxu0 0
        %6899 = vmatpush1.bf16.msra.mxu0 %v5332
        %6900 = vmatprep.subr.bf16.mxu0 0
        %6901 = vmatpush1.bf16.msra.mxu0 %v5333
        %6902 = vmatprep.mubr.bf16.mxu0 %v1875
        %6903 = vmatmul.mubr.bf16.gmra.mrb[0].mxu0 %v1874
        %v6904 = vpop.f32.mrb[0].mxu0
        %v6905 = vadd.f32 %v6865, %v6904
        %v6906 = vpop.f32.mrb[0].mxu0
        %v6907 = vpop.f32.mrb[0].mxu0
        %v6908 = vpop.f32.mrb[0].mxu0
        %6909 = vdwg.mxu0
        %6910 = vmatprep.subr.bf16.mxu0 0
        %6911 = vmatpush1.bf16.msra.mxu0 %v5334
        %6912 = vmatprep.subr.bf16.mxu0 0
        %6913 = vmatpush1.bf16.msra.mxu0 %v5335
        %6914 = vmatprep.subr.bf16.mxu0 0
        %6915 = vmatpush1.bf16.msra.mxu0 %v5336
        %6916 = vmatprep.subr.bf16.mxu0 0
        %6917 = vmatpush1.bf16.msra.mxu0 %v5337
        %6918 = vmatprep.subr.bf16.mxu0 0
        %6919 = vmatpush1.bf16.msra.mxu0 %v5338
        %6920 = vmatprep.subr.bf16.mxu0 0
        %6921 = vmatpush1.bf16.msra.mxu0 %v5339
        %6922 = vmatprep.subr.bf16.mxu0 0
        %6923 = vmatpush1.bf16.msra.mxu0 %v5340
        %6924 = vmatprep.subr.bf16.mxu0 0
        %6925 = vmatpush1.bf16.msra.mxu0 %v5341
        %6926 = vmatprep.subr.bf16.mxu0 0
        %6927 = vmatpush1.bf16.msra.mxu0 %v5342
        %6928 = vmatprep.subr.bf16.mxu0 0
        %6929 = vmatpush1.bf16.msra.mxu0 %v5343
        %6930 = vmatprep.subr.bf16.mxu0 0
        %6931 = vmatpush1.bf16.msra.mxu0 %v5344
        %6932 = vmatprep.subr.bf16.mxu0 0
        %6933 = vmatpush1.bf16.msra.mxu0 %v5345
        %6934 = vmatprep.subr.bf16.mxu0 0
        %6935 = vmatpush1.bf16.msra.mxu0 %v5346
        %6936 = vmatprep.subr.bf16.mxu0 0
        %6937 = vmatpush1.bf16.msra.mxu0 %v5347
        %6938 = vmatprep.subr.bf16.mxu0 0
        %6939 = vmatpush1.bf16.msra.mxu0 %v5348
        %6940 = vmatprep.subr.bf16.mxu0 0
        %6941 = vmatpush1.bf16.msra.mxu0 %v5349
        %6942 = vmatprep.mubr.bf16.mxu0 %v1877
        %6943 = vmatmul.mubr.bf16.gmra.mrb[0].mxu0 %v1876
        %v6944 = vpop.f32.mrb[0].mxu0
        %v6945 = vadd.f32 %v6905, %v6944
        %v6946 = vpop.f32.mrb[0].mxu0
        %v6947 = vpop.f32.mrb[0].mxu0
        %v6948 = vpop.f32.mrb[0].mxu0
        %6949 = vdwg.mxu0
        %6950 = vmatprep.subr.bf16.mxu0 0
        %6951 = vmatpush1.bf16.msra.mxu0 %v5350
        %6952 = vmatprep.subr.bf16.mxu0 0
        %6953 = vmatpush1.bf16.msra.mxu0 %v5351
        %6954 = vmatprep.subr.bf16.mxu0 0
        %6955 = vmatpush1.bf16.msra.mxu0 %v5352
        %6956 = vmatprep.subr.bf16.mxu0 0
        %6957 = vmatpush1.bf16.msra.mxu0 %v5353
        %6958 = vmatprep.subr.bf16.mxu0 0
        %6959 = vmatpush1.bf16.msra.mxu0 %v5354
        %6960 = vmatprep.subr.bf16.mxu0 0
        %6961 = vmatpush1.bf16.msra.mxu0 %v5355
        %6962 = vmatprep.subr.bf16.mxu0 0
        %6963 = vmatpush1.bf16.msra.mxu0 %v5356
        %6964 = vmatprep.subr.bf16.mxu0 0
        %6965 = vmatpush1.bf16.msra.mxu0 %v5357
        %6966 = vmatprep.subr.bf16.mxu0 0
        %6967 = vmatpush1.bf16.msra.mxu0 %v5358
        %6968 = vmatprep.subr.bf16.mxu0 0
        %6969 = vmatpush1.bf16.msra.mxu0 %v5359
        %6970 = vmatprep.subr.bf16.mxu0 0
        %6971 = vmatpush1.bf16.msra.mxu0 %v5360
        %6972 = vmatprep.subr.bf16.mxu0 0
        %6973 = vmatpush1.bf16.msra.mxu0 %v5361
        %6974 = vmatprep.subr.bf16.mxu0 0
        %6975 = vmatpush1.bf16.msra.mxu0 %v5362
        %6976 = vmatprep.subr.bf16.mxu0 0
        %6977 = vmatpush1.bf16.msra.mxu0 %v5363
        %6978 = vmatprep.subr.bf16.mxu0 0
        %6979 = vmatpush1.bf16.msra.mxu0 %v5364
        %6980 = vmatprep.subr.bf16.mxu0 0
        %6981 = vmatpush1.bf16.msra.mxu0 %v5365
        %6982 = vmatprep.mubr.bf16.mxu0 %v1879
        %6983 = vmatmul.mubr.bf16.gmra.mrb[0].mxu0 %v1878
        %v6984 = vpop.f32.mrb[0].mxu0
        %v6985 = vadd.f32 %v6945, %v6984
        %v6986 = vpop.f32.mrb[0].mxu0
        %v6987 = vpop.f32.mrb[0].mxu0
        %v6988 = vpop.f32.mrb[0].mxu0
        %6989 = vdwg.mxu0
        %6990 = vmatprep.subr.bf16.mxu0 0
        %6991 = vmatpush1.bf16.msra.mxu0 %v5366
        %6992 = vmatprep.subr.bf16.mxu0 0
        %6993 = vmatpush1.bf16.msra.mxu0 %v5367
        %6994 = vmatprep.subr.bf16.mxu0 0
        %6995 = vmatpush1.bf16.msra.mxu0 %v5368
        %6996 = vmatprep.subr.bf16.mxu0 0
        %6997 = vmatpush1.bf16.msra.mxu0 %v5369
        %6998 = vmatprep.subr.bf16.mxu0 0
        %6999 = vmatpush1.bf16.msra.mxu0 %v5370
        %7000 = vmatprep.subr.bf16.mxu0 0
        %7001 = vmatpush1.bf16.msra.mxu0 %v5371
        %7002 = vmatprep.subr.bf16.mxu0 0
        %7003 = vmatpush1.bf16.msra.mxu0 %v5372
        %7004 = vmatprep.subr.bf16.mxu0 0
        %7005 = vmatpush1.bf16.msra.mxu0 %v5373
        %7006 = vmatprep.subr.bf16.mxu0 0
        %7007 = vmatpush1.bf16.msra.mxu0 %v5374
        %7008 = vmatprep.subr.bf16.mxu0 0
        %7009 = vmatpush1.bf16.msra.mxu0 %v5375
        %7010 = vmatprep.subr.bf16.mxu0 0
        %7011 = vmatpush1.bf16.msra.mxu0 %v5376
        %7012 = vmatprep.subr.bf16.mxu0 0
        %7013 = vmatpush1.bf16.msra.mxu0 %v5377
        %7014 = vmatprep.subr.bf16.mxu0 0
        %7015 = vmatpush1.bf16.msra.mxu0 %v5378
        %7016 = vmatprep.subr.bf16.mxu0 0
        %7017 = vmatpush1.bf16.msra.mxu0 %v5379
        %7018 = vmatprep.subr.bf16.mxu0 0
        %7019 = vmatpush1.bf16.msra.mxu0 %v5380
        %7020 = vmatprep.subr.bf16.mxu0 0
        %7021 = vmatpush1.bf16.msra.mxu0 %v5381
        %7022 = vmatprep.mubr.bf16.mxu0 %v1881
        %7023 = vmatmul.mubr.bf16.gmra.mrb[0].mxu0 %v1880
        %v7024 = vpop.f32.mrb[0].mxu0
        %v7025 = vadd.f32 %v6985, %v7024
        %v7026 = vpop.f32.mrb[0].mxu0
        %v7027 = vpop.f32.mrb[0].mxu0
        %v7028 = vpop.f32.mrb[0].mxu0
        %7029 = vdwg.mxu0
        %7030 = vmatprep.subr.bf16.mxu0 0
        %7031 = vmatpush1.bf16.msra.mxu0 %v5382
        %7032 = vmatprep.subr.bf16.mxu0 0
        %7033 = vmatpush1.bf16.msra.mxu0 %v5383
        %7034 = vmatprep.subr.bf16.mxu0 0
        %7035 = vmatpush1.bf16.msra.mxu0 %v5384
        %7036 = vmatprep.subr.bf16.mxu0 0
        %7037 = vmatpush1.bf16.msra.mxu0 %v5385
        %7038 = vmatprep.subr.bf16.mxu0 0
        %7039 = vmatpush1.bf16.msra.mxu0 %v5386
        %7040 = vmatprep.subr.bf16.mxu0 0
        %7041 = vmatpush1.bf16.msra.mxu0 %v5387
        %7042 = vmatprep.subr.bf16.mxu0 0
        %7043 = vmatpush1.bf16.msra.mxu0 %v5388
        %7044 = vmatprep.subr.bf16.mxu0 0
        %7045 = vmatpush1.bf16.msra.mxu0 %v5389
        %7046 = vmatprep.subr.bf16.mxu0 0
        %7047 = vmatpush1.bf16.msra.mxu0 %v5390
        %7048 = vmatprep.subr.bf16.mxu0 0
        %7049 = vmatpush1.bf16.msra.mxu0 %v5391
        %7050 = vmatprep.subr.bf16.mxu0 0
        %7051 = vmatpush1.bf16.msra.mxu0 %v5392
        %7052 = vmatprep.subr.bf16.mxu0 0
        %7053 = vmatpush1.bf16.msra.mxu0 %v5393
        %7054 = vmatprep.subr.bf16.mxu0 0
        %7055 = vmatpush1.bf16.msra.mxu0 %v5394
        %7056 = vmatprep.subr.bf16.mxu0 0
        %7057 = vmatpush1.bf16.msra.mxu0 %v5395
        %7058 = vmatprep.subr.bf16.mxu0 0
        %7059 = vmatpush1.bf16.msra.mxu0 %v5396
        %7060 = vmatprep.subr.bf16.mxu0 0
        %7061 = vmatpush1.bf16.msra.mxu0 %v5397
        %7062 = vmatprep.mubr.bf16.mxu0 %v1883
        %7063 = vmatmul.mubr.bf16.gmra.mrb[0].mxu0 %v1882
        %v7064 = vpop.f32.mrb[0].mxu0
        %v7065 = vadd.f32 %v7025, %v7064
        %v7066 = vpop.f32.mrb[0].mxu0
        %v7067 = vpop.f32.mrb[0].mxu0
        %v7068 = vpop.f32.mrb[0].mxu0
        %7069 = vdwg.mxu0
        %7070 = vmatprep.subr.bf16.mxu0 0
        %7071 = vmatpush1.bf16.msra.mxu0 %v5398
        %7072 = vmatprep.subr.bf16.mxu0 0
        %7073 = vmatpush1.bf16.msra.mxu0 %v5399
        %7074 = vmatprep.subr.bf16.mxu0 0
        %7075 = vmatpush1.bf16.msra.mxu0 %v5400
        %7076 = vmatprep.subr.bf16.mxu0 0
        %7077 = vmatpush1.bf16.msra.mxu0 %v5401
        %7078 = vmatprep.subr.bf16.mxu0 0
        %7079 = vmatpush1.bf16.msra.mxu0 %v5402
        %7080 = vmatprep.subr.bf16.mxu0 0
        %7081 = vmatpush1.bf16.msra.mxu0 %v5403
        %7082 = vmatprep.subr.bf16.mxu0 0
        %7083 = vmatpush1.bf16.msra.mxu0 %v5404
        %7084 = vmatprep.subr.bf16.mxu0 0
        %7085 = vmatpush1.bf16.msra.mxu0 %v5405
        %7086 = vmatprep.subr.bf16.mxu0 0
        %7087 = vmatpush1.bf16.msra.mxu0 %v5406
        %7088 = vmatprep.subr.bf16.mxu0 0
        %7089 = vmatpush1.bf16.msra.mxu0 %v5407
        %7090 = vmatprep.subr.bf16.mxu0 0
        %7091 = vmatpush1.bf16.msra.mxu0 %v5408
        %7092 = vmatprep.subr.bf16.mxu0 0
        %7093 = vmatpush1.bf16.msra.mxu0 %v5409
        %7094 = vmatprep.subr.bf16.mxu0 0
        %7095 = vmatpush1.bf16.msra.mxu0 %v5410
        %7096 = vmatprep.subr.bf16.mxu0 0
        %7097 = vmatpush1.bf16.msra.mxu0 %v5411
        %7098 = vmatprep.subr.bf16.mxu0 0
        %7099 = vmatpush1.bf16.msra.mxu0 %v5412
        %7100 = vmatprep.subr.bf16.mxu0 0
        %7101 = vmatpush1.bf16.msra.mxu0 %v5413
        %7102 = vmatprep.mubr.bf16.mxu0 %v1885
        %7103 = vmatmul.mubr.bf16.gmra.mrb[0].mxu0 %v1884
        %v7104 = vpop.f32.mrb[0].mxu0
        %v7105 = vadd.f32 %v7065, %v7104
        %v7106 = vpop.f32.mrb[0].mxu0
        %v7107 = vpop.f32.mrb[0].mxu0
        %v7108 = vpop.f32.mrb[0].mxu0
        %7109 = vdwg.mxu0
        %7110 = vmatprep.subr.bf16.mxu0 0
        %7111 = vmatpush1.bf16.msra.mxu0 %v5414
        %7112 = vmatprep.subr.bf16.mxu0 0
        %7113 = vmatpush1.bf16.msra.mxu0 %v5415
        %7114 = vmatprep.subr.bf16.mxu0 0
        %7115 = vmatpush1.bf16.msra.mxu0 %v5416
        %7116 = vmatprep.subr.bf16.mxu0 0
        %7117 = vmatpush1.bf16.msra.mxu0 %v5417
        %7118 = vmatprep.subr.bf16.mxu0 0
        %7119 = vmatpush1.bf16.msra.mxu0 %v5418
        %7120 = vmatprep.subr.bf16.mxu0 0
        %7121 = vmatpush1.bf16.msra.mxu0 %v5419
        %7122 = vmatprep.subr.bf16.mxu0 0
        %7123 = vmatpush1.bf16.msra.mxu0 %v5420
        %7124 = vmatprep.subr.bf16.mxu0 0
        %7125 = vmatpush1.bf16.msra.mxu0 %v5421
        %7126 = vmatprep.subr.bf16.mxu0 0
        %7127 = vmatpush1.bf16.msra.mxu0 %v5422
        %7128 = vmatprep.subr.bf16.mxu0 0
        %7129 = vmatpush1.bf16.msra.mxu0 %v5423
        %7130 = vmatprep.subr.bf16.mxu0 0
        %7131 = vmatpush1.bf16.msra.mxu0 %v5424
        %7132 = vmatprep.subr.bf16.mxu0 0
        %7133 = vmatpush1.bf16.msra.mxu0 %v5425
        %7134 = vmatprep.subr.bf16.mxu0 0
        %7135 = vmatpush1.bf16.msra.mxu0 %v5426
        %7136 = vmatprep.subr.bf16.mxu0 0
        %7137 = vmatpush1.bf16.msra.mxu0 %v5427
        %7138 = vmatprep.subr.bf16.mxu0 0
        %7139 = vmatpush1.bf16.msra.mxu0 %v5428
        %7140 = vmatprep.subr.bf16.mxu0 0
        %7141 = vmatpush1.bf16.msra.mxu0 %v5429
        %7142 = vmatprep.mubr.bf16.mxu0 %v1887
        %7143 = vmatmul.mubr.bf16.gmra.mrb[0].mxu0 %v1886
        %v7144 = vpop.f32.mrb[0].mxu0
        %v7145 = vadd.f32 %v7105, %v7144
        %v7146 = vpop.f32.mrb[0].mxu0
        %v7147 = vpop.f32.mrb[0].mxu0
        %v7148 = vpop.f32.mrb[0].mxu0
        %7149 = vdwg.mxu0
        %7150 = vmatprep.subr.bf16.mxu0 0
        %7151 = vmatpush1.bf16.msra.mxu0 %v5430
        %7152 = vmatprep.subr.bf16.mxu0 0
        %7153 = vmatpush1.bf16.msra.mxu0 %v5431
        %7154 = vmatprep.subr.bf16.mxu0 0
        %7155 = vmatpush1.bf16.msra.mxu0 %v5432
        %7156 = vmatprep.subr.bf16.mxu0 0
        %7157 = vmatpush1.bf16.msra.mxu0 %v5433
        %7158 = vmatprep.subr.bf16.mxu0 0
        %7159 = vmatpush1.bf16.msra.mxu0 %v5434
        %7160 = vmatprep.subr.bf16.mxu0 0
        %7161 = vmatpush1.bf16.msra.mxu0 %v5435
        %7162 = vmatprep.subr.bf16.mxu0 0
        %7163 = vmatpush1.bf16.msra.mxu0 %v5436
        %7164 = vmatprep.subr.bf16.mxu0 0
        %7165 = vmatpush1.bf16.msra.mxu0 %v5437
        %7166 = vmatprep.subr.bf16.mxu0 0
        %7167 = vmatpush1.bf16.msra.mxu0 %v5438
        %7168 = vmatprep.subr.bf16.mxu0 0
        %7169 = vmatpush1.bf16.msra.mxu0 %v5439
        %7170 = vmatprep.subr.bf16.mxu0 0
        %7171 = vmatpush1.bf16.msra.mxu0 %v5440
        %7172 = vmatprep.subr.bf16.mxu0 0
        %7173 = vmatpush1.bf16.msra.mxu0 %v5441
        %7174 = vmatprep.subr.bf16.mxu0 0
        %7175 = vmatpush1.bf16.msra.mxu0 %v5442
        %7176 = vmatprep.subr.bf16.mxu0 0
        %7177 = vmatpush1.bf16.msra.mxu0 %v5443
        %7178 = vmatprep.subr.bf16.mxu0 0
        %7179 = vmatpush1.bf16.msra.mxu0 %v5444
        %7180 = vmatprep.subr.bf16.mxu0 0
        %7181 = vmatpush1.bf16.msra.mxu0 %v5445
        %7182 = vmatprep.mubr.bf16.mxu0 %v1889
        %7183 = vmatmul.mubr.bf16.gmra.mrb[0].mxu0 %v1888
        %v7184 = vpop.f32.mrb[0].mxu0
        %v7185 = vadd.f32 %v7145, %v7184
        %v7186 = vpop.f32.mrb[0].mxu0
        %v7187 = vpop.f32.mrb[0].mxu0
        %v7188 = vpop.f32.mrb[0].mxu0
        %7189 = vdwg.mxu0
        %7190 = vmatprep.subr.bf16.mxu0 0
        %7191 = vmatpush1.bf16.msra.mxu0 %v5446
        %7192 = vmatprep.subr.bf16.mxu0 0
        %7193 = vmatpush1.bf16.msra.mxu0 %v5447
        %7194 = vmatprep.subr.bf16.mxu0 0
        %7195 = vmatpush1.bf16.msra.mxu0 %v5448
        %7196 = vmatprep.subr.bf16.mxu0 0
        %7197 = vmatpush1.bf16.msra.mxu0 %v5449
        %7198 = vmatprep.subr.bf16.mxu0 0
        %7199 = vmatpush1.bf16.msra.mxu0 %v5450
        %7200 = vmatprep.subr.bf16.mxu0 0
        %7201 = vmatpush1.bf16.msra.mxu0 %v5451
        %7202 = vmatprep.subr.bf16.mxu0 0
        %7203 = vmatpush1.bf16.msra.mxu0 %v5452
        %7204 = vmatprep.subr.bf16.mxu0 0
        %7205 = vmatpush1.bf16.msra.mxu0 %v5453
        %7206 = vmatprep.subr.bf16.mxu0 0
        %7207 = vmatpush1.bf16.msra.mxu0 %v5454
        %7208 = vmatprep.subr.bf16.mxu0 0
        %7209 = vmatpush1.bf16.msra.mxu0 %v5455
        %7210 = vmatprep.subr.bf16.mxu0 0
        %7211 = vmatpush1.bf16.msra.mxu0 %v5456
        %7212 = vmatprep.subr.bf16.mxu0 0
        %7213 = vmatpush1.bf16.msra.mxu0 %v5457
        %7214 = vmatprep.subr.bf16.mxu0 0
        %7215 = vmatpush1.bf16.msra.mxu0 %v5458
        %7216 = vmatprep.subr.bf16.mxu0 0
        %7217 = vmatpush1.bf16.msra.mxu0 %v5459
        %7218 = vmatprep.subr.bf16.mxu0 0
        %7219 = vmatpush1.bf16.msra.mxu0 %v5460
        %7220 = vmatprep.subr.bf16.mxu0 0
        %7221 = vmatpush1.bf16.msra.mxu0 %v5461
        %7222 = vmatprep.mubr.bf16.mxu0 %v1891
        %7223 = vmatmul.mubr.bf16.gmra.mrb[0].mxu0 %v1890
        %v7224 = vpop.f32.mrb[0].mxu0
        %v7225 = vadd.f32 %v7185, %v7224
        %v7226 = vpop.f32.mrb[0].mxu0
        %v7227 = vpop.f32.mrb[0].mxu0
        %v7228 = vpop.f32.mrb[0].mxu0
        %7229 = vdwg.mxu0
        %7230 = vmatprep.subr.bf16.mxu0 0
        %7231 = vmatpush1.bf16.msra.mxu0 %v5462
        %7232 = vmatprep.subr.bf16.mxu0 0
        %7233 = vmatpush1.bf16.msra.mxu0 %v5463
        %7234 = vmatprep.subr.bf16.mxu0 0
        %7235 = vmatpush1.bf16.msra.mxu0 %v5464
        %7236 = vmatprep.subr.bf16.mxu0 0
        %7237 = vmatpush1.bf16.msra.mxu0 %v5465
        %7238 = vmatprep.subr.bf16.mxu0 0
        %7239 = vmatpush1.bf16.msra.mxu0 %v5466
        %7240 = vmatprep.subr.bf16.mxu0 0
        %7241 = vmatpush1.bf16.msra.mxu0 %v5467
        %7242 = vmatprep.subr.bf16.mxu0 0
        %7243 = vmatpush1.bf16.msra.mxu0 %v5468
        %7244 = vmatprep.subr.bf16.mxu0 0
        %7245 = vmatpush1.bf16.msra.mxu0 %v5469
        %7246 = vmatprep.subr.bf16.mxu0 0
        %7247 = vmatpush1.bf16.msra.mxu0 %v5470
        %7248 = vmatprep.subr.bf16.mxu0 0
        %7249 = vmatpush1.bf16.msra.mxu0 %v5471
        %7250 = vmatprep.subr.bf16.mxu0 0
        %7251 = vmatpush1.bf16.msra.mxu0 %v5472
        %7252 = vmatprep.subr.bf16.mxu0 0
        %7253 = vmatpush1.bf16.msra.mxu0 %v5473
        %7254 = vmatprep.subr.bf16.mxu0 0
        %7255 = vmatpush1.bf16.msra.mxu0 %v5474
        %7256 = vmatprep.subr.bf16.mxu0 0
        %7257 = vmatpush1.bf16.msra.mxu0 %v5475
        %7258 = vmatprep.subr.bf16.mxu0 0
        %7259 = vmatpush1.bf16.msra.mxu0 %v5476
        %7260 = vmatprep.subr.bf16.mxu0 0
        %7261 = vmatpush1.bf16.msra.mxu0 %v5477
        %7262 = vmatprep.mubr.bf16.mxu0 %v1893
        %7263 = vmatmul.mubr.bf16.gmra.mrb[0].mxu0 %v1892
        %v7264 = vpop.f32.mrb[0].mxu0
        %v7265 = vadd.f32 %v7225, %v7264
        %v7266 = vpop.f32.mrb[0].mxu0
        %v7267 = vpop.f32.mrb[0].mxu0
        %v7268 = vpop.f32.mrb[0].mxu0
        %7269 = vdwg.mxu0
        %v7270 = vadd.f32 %v1477, %v7265
        %vm7271 = vcmask 74752
        %7272 = vst.msk [vmem:[#allocation2] sm:$0x3] %vm7271, %v7270
        // Predicated region
        $region45: #{dgr_cnn_forward.5} parent=39 // pred_check
          %p7273 = pneg %p155
        $region46: #{dgr_cnn_forward.5} parent=39 // pred_check_branch
          %7275 = sbr.rel (%p7273) target = $region48
        $region47: #{dgr_cnn_forward.5} parent=39 // pred_region
          %s7277 = ssub.s32 32, 32
          %7278 = vsyncadd [#allocation3], %s7277
          %s7280 = sshll.u32 [#allocation2], 4
          %s7281 = int_to_ptr.vmem [resolvable:$true] %s7280
          %7283 = dma.vmem_to_hbm [thread:$0]  %s7281, 32, %s5, [#allocation3]
        $region48: #{dgr_cnn_forward.5} parent=39 // pred_fallthru
          _
        // Predicated region
        $region49: #{dgr_cnn_forward.5} parent=39 // pred_check
          %p7284 = pneg %p155
        $region50: #{dgr_cnn_forward.5} parent=39 // pred_check_branch
          %7286 = sbr.rel (%p7284) target = $region52
        $region51: #{dgr_cnn_forward.5} parent=39 // pred_region
          %7287 = dma.done [#allocation3], 32
        $region52: #{dgr_cnn_forward.5} parent=39 // pred_fallthru
          _
      $region40: #{dgr_cnn_forward.5} parent=5 // pred_fallthru
        _
      %p7288 = scmp.le.s32.totalorder 2, %s12
      // Predicated region
      $region53: #{dgr_cnn_forward.5} parent=5 // pred_check
        %p7289 = pneg %p7288
      $region54: #{dgr_cnn_forward.5} parent=5 // pred_check_branch
        %7291 = sbr.rel (%p7289) target = $region56
      $region55: #{dgr_cnn_forward.5} parent=5 // pred_region
        %s7292 = ssub.s32 %s12, 2
      $region56: #{dgr_cnn_forward.5} parent=5 // pred_fallthru
        _
    $region6: #{dgr_cnn_forward.5} parent=1 // loop_footer
      %s16 = sadd.s32 1, %s12
    $region7: #{dgr_cnn_forward.5} parent=1 // loop_footer_branch
      %11 = sbr.rel target = $region3
    $region8: #{dgr_cnn_forward.5} parent=1 // loop_exit
      _
    %7293 = vsyncpa [#allocation3], 1
    %s7294 = scalar_lea.sflag [#allocation3], 1
    %7295 = vsyncpa %s7294, 1

</llo_original>
